<compile_context>
chip_gen: v5e
topology: v5e:2x2
jax: 0.10.0
libtpu: 0.0.40
codegen_flags: <defaults>
</compile_context>

<pallas_src>
import math

import jax
import jax.numpy as jnp
from jax.experimental import pallas as pl
from jax.experimental.pallas import tpu as pltpu

HIDDEN = 256          # hidden_size hard-coded inside MLPDiffusion.__init__
HALF = HIDDEN // 2    # sinusoidal half-dim
LANE = 128


def _round_up(x, m):
    return ((x + m - 1) // m) * m


def _choose_tiles(B, batch_tile):
    """Few, evenly sized, 128-aligned batch tiles; >=2 even tiles for large B."""
    n_tiles = max(1, math.ceil(B / batch_tile))
    if B >= 2 * LANE:                       # big enough that padding won't dominate
        n_tiles = max(2, n_tiles)           # keep both TensorCores busy (v7x megacore)
        if n_tiles % 2:
            n_tiles += 1
    tb = _round_up(math.ceil(B / n_tiles), LANE)
    b_pad = tb * n_tiles
    return tb, b_pad, n_tiles


# ----------------------------------------------------------------------------------
# Kernel
# ----------------------------------------------------------------------------------
def _mlp_diffusion_kernel(freq_ref, phase_ref, t_ref, xc_ref,
                          bw1_ref, bb1_ref, bw2_ref, bb2_ref, bw3_ref, bb3_ref,
                          dw1t_ref, dw1b_ref, db1_ref,
                          dw2_ref, db2_ref, dw3_ref, db3_ref,
                          out_ref):
    f32 = jnp.float32
    bf16 = jnp.bfloat16

    # ---- SinusoidalPosEmb(1, 256): [cos(t*f) | sin(t*f)] == cos(t*[f|f] + [0|-pi/2])
    t = t_ref[...].astype(f32)                                   # (TB, 1)
    arg = t * freq_ref[...] + phase_ref[...]                     # (TB, 256)
    te = jnp.cos(arg).astype(bf16)                               # time embedding

    # ---- base_model: MLP(in+cond, [256, 256], 256), ReLU hidden activations -------
    x = xc_ref[...]                                              # (TB, in+cond) bf16
    h = jnp.dot(x, bw1_ref[...], preferred_element_type=f32) + bb1_ref[...]
    h = jnp.maximum(h, 0.0).astype(bf16)
    h = jnp.dot(h, bw2_ref[...], preferred_element_type=f32) + bb2_ref[...]
    h = jnp.maximum(h, 0.0).astype(bf16)
    base = jnp.dot(h, bw3_ref[...], preferred_element_type=f32) + bb3_ref[...]
    base = base.astype(bf16)                                     # (TB, 256)

    # ---- decoder: MLP(512, [256, 256], out_dim) ------------------------------------
    # lane-axis concat [te | base] @ dw1 replaced by two K=256 dots summed in f32.
    h = (jnp.dot(te, dw1t_ref[...], preferred_element_type=f32)
         + jnp.dot(base, dw1b_ref[...], preferred_element_type=f32)
         + db1_ref[...])
    h = jnp.maximum(h, 0.0).astype(bf16)
    h = jnp.dot(h, dw2_ref[...], preferred_element_type=f32) + db2_ref[...]
    h = jnp.maximum(h, 0.0).astype(bf16)
    out = jnp.dot(h, dw3_ref[...], preferred_element_type=f32) + db3_ref[...]

    out_ref[...] = out.astype(out_ref.dtype)                     # (TB, out_pad) bf16


# ----------------------------------------------------------------------------------
# Wrapper
# ----------------------------------------------------------------------------------
def mlp_diffusion_forward(xt, t, cond, params, *, batch_tile=2048):
    """xt: (B, input_dim), t: (B,), cond: (B, cond_dim) or None. Returns (B, out_dim) f32."""
    f32 = jnp.float32
    bf16 = jnp.bfloat16

    B = xt.shape[0]
    out_dim = params["dw3"].shape[1]

    # -- concat xt || cond once here (one K=(in+cond) matmul in-kernel) --------------
    if cond is not None and cond.shape[-1] > 0:
        xc = jnp.concatenate([xt, cond], axis=-1)
    else:
        xc = xt
    d_in = xc.shape[-1]
    assert params["bw1"].shape[0] == d_in, "bw1 rows must equal input_dim + cond_dim"

    # -- split dw1 into time-embedding / base-embedding halves (avoids lane concat) --
    dw1_t = params["dw1"][:HIDDEN]          # (256, 256) rows hit by time embedding
    dw1_b = params["dw1"][HIDDEN:]          # (256, 256) rows hit by base embedding

    # -- lane-pad the output head to 128 lanes (unmasked lane-dense stores) ----------
    out_pad = _round_up(out_dim, LANE)
    dw3_p = jnp.pad(params["dw3"], ((0, 0), (0, out_pad - out_dim)))
    db3_p = jnp.pad(params["db3"], ((0, 0), (0, out_pad - out_dim)))

    # -- batch tiling: few, even, 128-aligned tiles ----------------------------------
    tb, b_pad, n_tiles = _choose_tiles(B, batch_tile)

    def pad_rows(a):
        return a if a.shape[0] == b_pad else jnp.pad(a, ((0, b_pad - a.shape[0]), (0, 0)))

    t2d = pad_rows(t.reshape(-1, 1).astype(f32))     # t.view(-1, 1); keep f32 for t*freq
    xc_p = pad_rows(xc.astype(bf16))                 # bf16 activations halve input DMA

    # -- hoisted frequency / phase tables: te = cos(t * freq2 + phase) ---------------
    log_f = math.log(10000.0) / (HALF - 1)
    freqs = jnp.exp(jnp.arange(HALF, dtype=f32) * -log_f)
    freq2 = jnp.concatenate([freqs, freqs]).reshape(1, HIDDEN)               # (1, 256)
    phase = jnp.concatenate([jnp.zeros((HALF,), f32),
                             jnp.full((HALF,), -0.5 * math.pi, f32)]).reshape(1, HIDDEN)

    # -- resident operands (weights bf16, biases f32), order matches kernel signature
    resident = [
        params["bw1"].astype(bf16), params["bb1"].astype(f32),
        params["bw2"].astype(bf16), params["bb2"].astype(f32),
        params["bw3"].astype(bf16), params["bb3"].astype(f32),
        dw1_t.astype(bf16), dw1_b.astype(bf16), params["db1"].astype(f32),
        params["dw2"].astype(bf16), params["db2"].astype(f32),
        dw3_p.astype(bf16), db3_p.astype(f32),
    ]

    def tile_spec(ncols):
        # batch-tiled: new block per grid step (double-buffered by the pipeline)
        return pl.BlockSpec((tb, ncols), lambda i: (i, 0))

    def resident_spec(shape):
        # constant index_map: DMA'd once, stays resident in VMEM across the grid
        return pl.BlockSpec(shape, lambda i: (0, 0))

    in_specs = ([resident_spec(freq2.shape), resident_spec(phase.shape),
                 tile_spec(1), tile_spec(d_in)]
                + [resident_spec(w.shape) for w in resident])

    # -- advisory cost estimate for XLA scheduling ------------------------------------
    flops = 2 * b_pad * HIDDEN * (d_in + 5 * HIDDEN + out_pad)
    bytes_accessed = int(t2d.size) * 4 + int(xc_p.size) * 2 + b_pad * out_pad * 2
    bytes_accessed += sum(int(w.size) * w.dtype.itemsize for w in resident)
    cost = pl.CostEstimate(flops=flops,
                           transcendentals=b_pad * HIDDEN,
                           bytes_accessed=bytes_accessed)

    out = pl.pallas_call(
        _mlp_diffusion_kernel,
        out_shape=jax.ShapeDtypeStruct((b_pad, out_pad), bf16),
        grid=(n_tiles,),
        in_specs=in_specs,
        out_specs=tile_spec(out_pad),
        compiler_params=pltpu.CompilerParams(
            dimension_semantics=("parallel",),           # megacore split on v7x
            vmem_limit_bytes=48 * 1024 * 1024),          # > v5e's 16 MiB scoped default
        cost_estimate=cost,
    )(freq2, phase, t2d, xc_p, *resident)

    return out[:B, :out_dim].astype(f32)


# ----------------------------------------------------------------------------------
# Synthetic parameter init (PyTorch-style (in, out) weights, (1, out) biases)
# ----------------------------------------------------------------------------------
def init_params(key, input_dim, cond_dim, output_dim):
    d_in = input_dim + cond_dim
    shapes = {
        # base_model: MLP(d_in, [256, 256], 256)
        "bw1": (d_in, HIDDEN),   "bb1": (1, HIDDEN),
        "bw2": (HIDDEN, HIDDEN), "bb2": (1, HIDDEN),
        "bw3": (HIDDEN, HIDDEN), "bb3": (1, HIDDEN),
        # decoder: MLP(512, [256, 256], output_dim)
        "dw1": (2 * HIDDEN, HIDDEN), "db1": (1, HIDDEN),
        "dw2": (HIDDEN, HIDDEN),     "db2": (1, HIDDEN),
        "dw3": (HIDDEN, output_dim), "db3": (1, output_dim),
    }
    params = {}
    keys = jax.random.split(key, len(shapes))
    for k_rng, name in zip(keys, sorted(shapes)):
        shp = shapes[name]
        # biases ('bb*'/'db*') take fan_in from the matching weight ('bw*'/'dw*')
        wname = name if name[1] == "w" else name[0] + "w" + name[2:]
        fan_in = shapes[wname][0]
        scale = 1.0 / math.sqrt(max(fan_in, 1))
        params[name] = (scale * jax.random.normal(k_rng, shp)).astype(jnp.float32)
    return params


# ----------------------------------------------------------------------------------
# Pure-JAX reference of the same math
# ----------------------------------------------------------------------------------
def reference_forward(xt, t, cond, params, matmul_dtype=jnp.float32):
    def dot(a, b):
        return jnp.dot(a.astype(matmul_dtype), b.astype(matmul_dtype),
                       preferred_element_type=jnp.float32)

    if cond is not None:
        xt = jnp.concatenate([xt, cond], axis=-1)

    log_f = math.log(10000.0) / (HALF - 1)
    freqs = jnp.exp(jnp.arange(HALF, dtype=jnp.float32) * -log_f)
    tf = t.reshape(-1, 1).astype(jnp.float32) * freqs[None, :]
    te = jnp.concatenate([jnp.cos(tf), jnp.sin(tf)], axis=-1)

    h = jax.nn.relu(dot(xt, params["bw1"]) + params["bb1"])
    h = jax.nn.relu(dot(h, params["bw2"]) + params["bb2"])
    be = dot(h, params["bw3"]) + params["bb3"]

    e = jnp.concatenate([te, be], axis=-1)
    h = jax.nn.relu(dot(e, params["dw1"]) + params["db1"])
    h = jax.nn.relu(dot(h, params["dw2"]) + params["db2"])
    return dot(h, params["dw3"]) + params["db3"]


if __name__ == "__main__":
    B, INPUT_DIM, COND_DIM, OUTPUT_DIM = 8, 16, 16, 16

    key = jax.random.PRNGKey(0)
    k_p, k_x, k_c, k_t = jax.random.split(key, 4)

    params = init_params(k_p, INPUT_DIM, COND_DIM, OUTPUT_DIM)
    xt = jax.random.normal(k_x, (B, INPUT_DIM), dtype=jnp.float32)
    cond = jax.random.normal(k_c, (B, COND_DIM), dtype=jnp.float32)
    t = jax.random.uniform(k_t, (B,), dtype=jnp.float32) * 100.0  # diffusion timestep

    out = mlp_diffusion_forward(xt, t, cond, params)
    out = jax.block_until_ready(out)
    assert out.shape == (B, OUTPUT_DIM)

    # Check vs a reference using bf16 matmul operands (f32 accumulation).  Tolerance
    # accounts for the kernel's bf16 output writeback (one extra bf16 rounding).
    ref_bf16 = reference_forward(xt, t, cond, params, matmul_dtype=jnp.bfloat16)
    assert jnp.allclose(out, ref_bf16, atol=2e-2, rtol=2e-2), "mismatch vs bf16 reference"

    # Loose semantic sanity check vs full-f32 math (bf16 operands lose mantissa bits).
    ref_f32 = reference_forward(xt, t, cond, params, matmul_dtype=jnp.float32)
    assert jnp.allclose(out, ref_f32, atol=1e-1, rtol=1e-1), "mismatch vs f32 reference"

    print("KERNEL_OK")
</pallas_src>

<mosaic_0001>
module attributes {stable_mosaic.version = 11 : i64} {
  func.func @_mlp_diffusion_kernel(%arg0: i32, %arg1: memref<1x256xf32, #tpu.memory_space<vmem>>, %arg2: memref<1x256xf32, #tpu.memory_space<vmem>>, %arg3: memref<128x1xf32, #tpu.memory_space<vmem>>, %arg4: memref<128x32xbf16, #tpu.memory_space<vmem>>, %arg5: memref<32x256xbf16, #tpu.memory_space<vmem>>, %arg6: memref<1x256xf32, #tpu.memory_space<vmem>>, %arg7: memref<256x256xbf16, #tpu.memory_space<vmem>>, %arg8: memref<1x256xf32, #tpu.memory_space<vmem>>, %arg9: memref<256x256xbf16, #tpu.memory_space<vmem>>, %arg10: memref<1x256xf32, #tpu.memory_space<vmem>>, %arg11: memref<256x256xbf16, #tpu.memory_space<vmem>>, %arg12: memref<256x256xbf16, #tpu.memory_space<vmem>>, %arg13: memref<1x256xf32, #tpu.memory_space<vmem>>, %arg14: memref<256x256xbf16, #tpu.memory_space<vmem>>, %arg15: memref<1x256xf32, #tpu.memory_space<vmem>>, %arg16: memref<256x128xbf16, #tpu.memory_space<vmem>>, %arg17: memref<1x128xf32, #tpu.memory_space<vmem>>, %arg18: memref<128x128xbf16, #tpu.memory_space<vmem>>) attributes {dimension_semantics = [#tpu.dimension_semantics<parallel>], iteration_bounds = array<i64: 1>, scalar_prefetch = 0 : i64, scratch_operands = 0 : i64, tpu.core_type = #tpu.core_type<tc>, window_params = [{pipeline_mode = #tpu.pipeline_mode<synchronous>, transform_indices = @transform_0, window_bounds = array<i64: 1, 256>}, {pipeline_mode = #tpu.pipeline_mode<synchronous>, transform_indices = @transform_1, window_bounds = array<i64: 1, 256>}, {transform_indices = @transform_2, window_bounds = array<i64: 128, 1>}, {transform_indices = @transform_3, window_bounds = array<i64: 128, 32>}, {pipeline_mode = #tpu.pipeline_mode<synchronous>, transform_indices = @transform_4, window_bounds = array<i64: 32, 256>}, {pipeline_mode = #tpu.pipeline_mode<synchronous>, transform_indices = @transform_5, window_bounds = array<i64: 1, 256>}, {pipeline_mode = #tpu.pipeline_mode<synchronous>, transform_indices = @transform_6, window_bounds = array<i64: 256, 256>}, {pipeline_mode = #tpu.pipeline_mode<synchronous>, transform_indices = @transform_7, window_bounds = array<i64: 1, 256>}, {pipeline_mode = #tpu.pipeline_mode<synchronous>, transform_indices = @transform_8, window_bounds = array<i64: 256, 256>}, {pipeline_mode = #tpu.pipeline_mode<synchronous>, transform_indices = @transform_9, window_bounds = array<i64: 1, 256>}, {pipeline_mode = #tpu.pipeline_mode<synchronous>, transform_indices = @transform_10, window_bounds = array<i64: 256, 256>}, {pipeline_mode = #tpu.pipeline_mode<synchronous>, transform_indices = @transform_11, window_bounds = array<i64: 256, 256>}, {pipeline_mode = #tpu.pipeline_mode<synchronous>, transform_indices = @transform_12, window_bounds = array<i64: 1, 256>}, {pipeline_mode = #tpu.pipeline_mode<synchronous>, transform_indices = @transform_13, window_bounds = array<i64: 256, 256>}, {pipeline_mode = #tpu.pipeline_mode<synchronous>, transform_indices = @transform_14, window_bounds = array<i64: 1, 256>}, {pipeline_mode = #tpu.pipeline_mode<synchronous>, transform_indices = @transform_15, window_bounds = array<i64: 256, 128>}, {pipeline_mode = #tpu.pipeline_mode<synchronous>, transform_indices = @transform_16, window_bounds = array<i64: 1, 128>}, {transform_indices = @transform_17, window_bounds = array<i64: 128, 128>}]} {
    %c0 = arith.constant 0 : index
    %c0_0 = arith.constant 0 : index
    %0 = vector.load %arg3[%c0, %c0_0] : memref<128x1xf32, #tpu.memory_space<vmem>>, vector<128x1xf32>
    %c0_1 = arith.constant 0 : index
    %c0_2 = arith.constant 0 : index
    %1 = vector.load %arg1[%c0_1, %c0_2] : memref<1x256xf32, #tpu.memory_space<vmem>>, vector<1x256xf32>
    %2 = vector.broadcast %0 : vector<128x1xf32> to vector<128x256xf32>
    %3 = vector.broadcast %1 : vector<1x256xf32> to vector<128x256xf32>
    %4 = arith.mulf %2, %3 : vector<128x256xf32>
    %c0_3 = arith.constant 0 : index
    %c0_4 = arith.constant 0 : index
    %5 = vector.load %arg2[%c0_3, %c0_4] : memref<1x256xf32, #tpu.memory_space<vmem>>, vector<1x256xf32>
    %6 = vector.broadcast %5 : vector<1x256xf32> to vector<128x256xf32>
    %7 = arith.addf %4, %6 : vector<128x256xf32>
    %8 = math.cos %7 : vector<128x256xf32>
    %9 = arith.truncf %8 : vector<128x256xf32> to vector<128x256xbf16>
    %c0_5 = arith.constant 0 : index
    %c0_6 = arith.constant 0 : index
    %10 = vector.load %arg4[%c0_5, %c0_6] : memref<128x32xbf16, #tpu.memory_space<vmem>>, vector<128x32xbf16>
    %c0_7 = arith.constant 0 : index
    %c0_8 = arith.constant 0 : index
    %11 = vector.load %arg5[%c0_7, %c0_8] : memref<32x256xbf16, #tpu.memory_space<vmem>>, vector<32x256xbf16>
    %cst = arith.constant dense<0.000000e+00> : vector<128x256xf32>
    %12 = tpu.matmul %10, %11, %cst {dimension_numbers = #tpu.dot_dimension_numbers<[1], [0], [0], [1], [0, 0, 1, 1], [], []>} : vector<128x32xbf16>, vector<32x256xbf16>, vector<128x256xf32> -> vector<128x256xf32>
    %c0_9 = arith.constant 0 : index
    %c0_10 = arith.constant 0 : index
    %13 = vector.load %arg6[%c0_9, %c0_10] : memref<1x256xf32, #tpu.memory_space<vmem>>, vector<1x256xf32>
    %14 = vector.broadcast %13 : vector<1x256xf32> to vector<128x256xf32>
    %15 = arith.addf %12, %14 : vector<128x256xf32>
    %cst_11 = arith.constant 0.000000e+00 : f32
    %16 = vector.broadcast %cst_11 : f32 to vector<128x256xf32>
    %17 = arith.maximumf %15, %16 : vector<128x256xf32>
    %18 = arith.truncf %17 : vector<128x256xf32> to vector<128x256xbf16>
    %c0_12 = arith.constant 0 : index
    %c0_13 = arith.constant 0 : index
    %19 = vector.load %arg7[%c0_12, %c0_13] : memref<256x256xbf16, #tpu.memory_space<vmem>>, vector<256x256xbf16>
    %cst_14 = arith.constant dense<0.000000e+00> : vector<128x256xf32>
    %20 = tpu.matmul %18, %19, %cst_14 {dimension_numbers = #tpu.dot_dimension_numbers<[1], [0], [0], [1], [0, 0, 1, 1], [], []>} : vector<128x256xbf16>, vector<256x256xbf16>, vector<128x256xf32> -> vector<128x256xf32>
    %c0_15 = arith.constant 0 : index
    %c0_16 = arith.constant 0 : index
    %21 = vector.load %arg8[%c0_15, %c0_16] : memref<1x256xf32, #tpu.memory_space<vmem>>, vector<1x256xf32>
    %22 = vector.broadcast %21 : vector<1x256xf32> to vector<128x256xf32>
    %23 = arith.addf %20, %22 : vector<128x256xf32>
    %cst_17 = arith.constant 0.000000e+00 : f32
    %24 = vector.broadcast %cst_17 : f32 to vector<128x256xf32>
    %25 = arith.maximumf %23, %24 : vector<128x256xf32>
    %26 = arith.truncf %25 : vector<128x256xf32> to vector<128x256xbf16>
    %c0_18 = arith.constant 0 : index
    %c0_19 = arith.constant 0 : index
    %27 = vector.load %arg9[%c0_18, %c0_19] : memref<256x256xbf16, #tpu.memory_space<vmem>>, vector<256x256xbf16>
    %cst_20 = arith.constant dense<0.000000e+00> : vector<128x256xf32>
    %28 = tpu.matmul %26, %27, %cst_20 {dimension_numbers = #tpu.dot_dimension_numbers<[1], [0], [0], [1], [0, 0, 1, 1], [], []>} : vector<128x256xbf16>, vector<256x256xbf16>, vector<128x256xf32> -> vector<128x256xf32>
    %c0_21 = arith.constant 0 : index
    %c0_22 = arith.constant 0 : index
    %29 = vector.load %arg10[%c0_21, %c0_22] : memref<1x256xf32, #tpu.memory_space<vmem>>, vector<1x256xf32>
    %30 = vector.broadcast %29 : vector<1x256xf32> to vector<128x256xf32>
    %31 = arith.addf %28, %30 : vector<128x256xf32>
    %32 = arith.truncf %31 : vector<128x256xf32> to vector<128x256xbf16>
    %c0_23 = arith.constant 0 : index
    %c0_24 = arith.constant 0 : index
    %33 = vector.load %arg11[%c0_23, %c0_24] : memref<256x256xbf16, #tpu.memory_space<vmem>>, vector<256x256xbf16>
    %cst_25 = arith.constant dense<0.000000e+00> : vector<128x256xf32>
    %34 = tpu.matmul %9, %33, %cst_25 {dimension_numbers = #tpu.dot_dimension_numbers<[1], [0], [0], [1], [0, 0, 1, 1], [], []>} : vector<128x256xbf16>, vector<256x256xbf16>, vector<128x256xf32> -> vector<128x256xf32>
    %c0_26 = arith.constant 0 : index
    %c0_27 = arith.constant 0 : index
    %35 = vector.load %arg12[%c0_26, %c0_27] : memref<256x256xbf16, #tpu.memory_space<vmem>>, vector<256x256xbf16>
    %cst_28 = arith.constant dense<0.000000e+00> : vector<128x256xf32>
    %36 = tpu.matmul %32, %35, %cst_28 {dimension_numbers = #tpu.dot_dimension_numbers<[1], [0], [0], [1], [0, 0, 1, 1], [], []>} : vector<128x256xbf16>, vector<256x256xbf16>, vector<128x256xf32> -> vector<128x256xf32>
    %37 = arith.addf %34, %36 : vector<128x256xf32>
    %c0_29 = arith.constant 0 : index
    %c0_30 = arith.constant 0 : index
    %38 = vector.load %arg13[%c0_29, %c0_30] : memref<1x256xf32, #tpu.memory_space<vmem>>, vector<1x256xf32>
    %39 = vector.broadcast %38 : vector<1x256xf32> to vector<128x256xf32>
    %40 = arith.addf %37, %39 : vector<128x256xf32>
    %cst_31 = arith.constant 0.000000e+00 : f32
    %41 = vector.broadcast %cst_31 : f32 to vector<128x256xf32>
    %42 = arith.maximumf %40, %41 : vector<128x256xf32>
    %43 = arith.truncf %42 : vector<128x256xf32> to vector<128x256xbf16>
    %c0_32 = arith.constant 0 : index
    %c0_33 = arith.constant 0 : index
    %44 = vector.load %arg14[%c0_32, %c0_33] : memref<256x256xbf16, #tpu.memory_space<vmem>>, vector<256x256xbf16>
    %cst_34 = arith.constant dense<0.000000e+00> : vector<128x256xf32>
    %45 = tpu.matmul %43, %44, %cst_34 {dimension_numbers = #tpu.dot_dimension_numbers<[1], [0], [0], [1], [0, 0, 1, 1], [], []>} : vector<128x256xbf16>, vector<256x256xbf16>, vector<128x256xf32> -> vector<128x256xf32>
    %c0_35 = arith.constant 0 : index
    %c0_36 = arith.constant 0 : index
    %46 = vector.load %arg15[%c0_35, %c0_36] : memref<1x256xf32, #tpu.memory_space<vmem>>, vector<1x256xf32>
    %47 = vector.broadcast %46 : vector<1x256xf32> to vector<128x256xf32>
    %48 = arith.addf %45, %47 : vector<128x256xf32>
    %cst_37 = arith.constant 0.000000e+00 : f32
    %49 = vector.broadcast %cst_37 : f32 to vector<128x256xf32>
    %50 = arith.maximumf %48, %49 : vector<128x256xf32>
    %51 = arith.truncf %50 : vector<128x256xf32> to vector<128x256xbf16>
    %c0_38 = arith.constant 0 : index
    %c0_39 = arith.constant 0 : index
    %52 = vector.load %arg16[%c0_38, %c0_39] : memref<256x128xbf16, #tpu.memory_space<vmem>>, vector<256x128xbf16>
    %cst_40 = arith.constant dense<0.000000e+00> : vector<128x128xf32>
    %53 = tpu.matmul %51, %52, %cst_40 {dimension_numbers = #tpu.dot_dimension_numbers<[1], [0], [0], [1], [0, 0, 1, 1], [], []>} : vector<128x256xbf16>, vector<256x128xbf16>, vector<128x128xf32> -> vector<128x128xf32>
    %c0_41 = arith.constant 0 : index
    %c0_42 = arith.constant 0 : index
    %54 = vector.load %arg17[%c0_41, %c0_42] : memref<1x128xf32, #tpu.memory_space<vmem>>, vector<1x128xf32>
    %55 = vector.broadcast %54 : vector<1x128xf32> to vector<128x128xf32>
    %56 = arith.addf %53, %55 : vector<128x128xf32>
    %57 = arith.truncf %56 : vector<128x128xf32> to vector<128x128xbf16>
    %c0_43 = arith.constant 0 : index
    %c0_44 = arith.constant 0 : index
    %58 = vector.load %arg18[%c0_43, %c0_44] : memref<128x128xbf16, #tpu.memory_space<vmem>>, vector<128x128xbf16>
    tpu.vector_store %arg18[%c0_43, %c0_44], %57 {strides = array<i32>} : memref<128x128xbf16, #tpu.memory_space<vmem>>, vector<128x128xbf16>,
    return
  }
  func.func @transform_0(%arg0: i32) -> (i32, i32) {
    %c0_i32 = arith.constant 0 : i32
    %c0_i32_0 = arith.constant 0 : i32
    %c0_i32_1 = arith.constant 0 : i32
    return %c0_i32, %c0_i32_0 : i32, i32
  }
  func.func @transform_1(%arg0: i32) -> (i32, i32) {
    %c0_i32 = arith.constant 0 : i32
    %c0_i32_0 = arith.constant 0 : i32
    %c0_i32_1 = arith.constant 0 : i32
    return %c0_i32, %c0_i32_0 : i32, i32
  }
  func.func @transform_2(%arg0: i32) -> (i32, i32) {
    %c0_i32 = arith.constant 0 : i32
    %c0_i32_0 = arith.constant 0 : i32
    return %arg0, %c0_i32 : i32, i32
  }
  func.func @transform_3(%arg0: i32) -> (i32, i32) {
    %c0_i32 = arith.constant 0 : i32
    %c0_i32_0 = arith.constant 0 : i32
    return %arg0, %c0_i32 : i32, i32
  }
  func.func @transform_4(%arg0: i32) -> (i32, i32) {
    %c0_i32 = arith.constant 0 : i32
    %c0_i32_0 = arith.constant 0 : i32
    %c0_i32_1 = arith.constant 0 : i32
    return %c0_i32, %c0_i32_0 : i32, i32
  }
  func.func @transform_5(%arg0: i32) -> (i32, i32) {
    %c0_i32 = arith.constant 0 : i32
    %c0_i32_0 = arith.constant 0 : i32
    %c0_i32_1 = arith.constant 0 : i32
    return %c0_i32, %c0_i32_0 : i32, i32
  }
  func.func @transform_6(%arg0: i32) -> (i32, i32) {
    %c0_i32 = arith.constant 0 : i32
    %c0_i32_0 = arith.constant 0 : i32
    %c0_i32_1 = arith.constant 0 : i32
    return %c0_i32, %c0_i32_0 : i32, i32
  }
  func.func @transform_7(%arg0: i32) -> (i32, i32) {
    %c0_i32 = arith.constant 0 : i32
    %c0_i32_0 = arith.constant 0 : i32
    %c0_i32_1 = arith.constant 0 : i32
    return %c0_i32, %c0_i32_0 : i32, i32
  }
  func.func @transform_8(%arg0: i32) -> (i32, i32) {
    %c0_i32 = arith.constant 0 : i32
    %c0_i32_0 = arith.constant 0 : i32
    %c0_i32_1 = arith.constant 0 : i32
    return %c0_i32, %c0_i32_0 : i32, i32
  }
  func.func @transform_9(%arg0: i32) -> (i32, i32) {
    %c0_i32 = arith.constant 0 : i32
    %c0_i32_0 = arith.constant 0 : i32
    %c0_i32_1 = arith.constant 0 : i32
    return %c0_i32, %c0_i32_0 : i32, i32
  }
  func.func @transform_10(%arg0: i32) -> (i32, i32) {
    %c0_i32 = arith.constant 0 : i32
    %c0_i32_0 = arith.constant 0 : i32
    %c0_i32_1 = arith.constant 0 : i32
    return %c0_i32, %c0_i32_0 : i32, i32
  }
  func.func @transform_11(%arg0: i32) -> (i32, i32) {
    %c0_i32 = arith.constant 0 : i32
    %c0_i32_0 = arith.constant 0 : i32
    %c0_i32_1 = arith.constant 0 : i32
    return %c0_i32, %c0_i32_0 : i32, i32
  }
  func.func @transform_12(%arg0: i32) -> (i32, i32) {
    %c0_i32 = arith.constant 0 : i32
    %c0_i32_0 = arith.constant 0 : i32
    %c0_i32_1 = arith.constant 0 : i32
    return %c0_i32, %c0_i32_0 : i32, i32
  }
  func.func @transform_13(%arg0: i32) -> (i32, i32) {
    %c0_i32 = arith.constant 0 : i32
    %c0_i32_0 = arith.constant 0 : i32
    %c0_i32_1 = arith.constant 0 : i32
    return %c0_i32, %c0_i32_0 : i32, i32
  }
  func.func @transform_14(%arg0: i32) -> (i32, i32) {
    %c0_i32 = arith.constant 0 : i32
    %c0_i32_0 = arith.constant 0 : i32
    %c0_i32_1 = arith.constant 0 : i32
    return %c0_i32, %c0_i32_0 : i32, i32
  }
  func.func @transform_15(%arg0: i32) -> (i32, i32) {
    %c0_i32 = arith.constant 0 : i32
    %c0_i32_0 = arith.constant 0 : i32
    %c0_i32_1 = arith.constant 0 : i32
    return %c0_i32, %c0_i32_0 : i32, i32
  }
  func.func @transform_16(%arg0: i32) -> (i32, i32) {
    %c0_i32 = arith.constant 0 : i32
    %c0_i32_0 = arith.constant 0 : i32
    %c0_i32_1 = arith.constant 0 : i32
    return %c0_i32, %c0_i32_0 : i32, i32
  }
  func.func @transform_17(%arg0: i32) -> (i32, i32) {
    %c0_i32 = arith.constant 0 : i32
    %c0_i32_0 = arith.constant 0 : i32
    return %arg0, %c0_i32 : i32, i32
  }
}

</mosaic_0001>

<llo_original>
// kernel: tpu_custom_call.1
$region0: #{tpu_custom_call.1}
  #allocation0 [shape = 'u32[]', space=smem, size = 0x4, offset = 0x4, fixed_abs, tag = 'smem constant byte address 0x4 - core index']
  #allocation1 [shape = 'u32[72,128]{1,0:T(1,128)}', space=vmem, size = 0x9000, scoped, tag = 'internal scratch']
  %s0 = inlined_call_operand.vmem [shape: f32[1,256], index: 0, kind: input, shape index: {}]
  %s1 = inlined_call_operand.vmem [shape: f32[1,256], index: 1, kind: input, shape index: {}]
  %s2 = inlined_call_operand.vmem [shape: f32[128,1], index: 2, kind: input, shape index: {}]
  %s3 = inlined_call_operand.vmem [shape: bf16[128,32], index: 3, kind: input, shape index: {}]
  %s4 = inlined_call_operand.vmem [shape: bf16[32,256], index: 4, kind: input, shape index: {}]
  %s5 = inlined_call_operand.vmem [shape: f32[1,256], index: 5, kind: input, shape index: {}]
  %s6 = inlined_call_operand.hbm [shape: bf16[256,256], index: 6, kind: input, shape index: {}]
  %s7 = inlined_call_operand.vmem [shape: f32[1,256], index: 7, kind: input, shape index: {}]
  %s8 = inlined_call_operand.hbm [shape: bf16[256,256], index: 8, kind: input, shape index: {}]
  %s9 = inlined_call_operand.vmem [shape: f32[1,256], index: 9, kind: input, shape index: {}]
  %s10 = inlined_call_operand.hbm [shape: bf16[256,256], index: 10, kind: input, shape index: {}]
  %s11 = inlined_call_operand.hbm [shape: bf16[256,256], index: 11, kind: input, shape index: {}]
  %s12 = inlined_call_operand.vmem [shape: f32[1,256], index: 12, kind: input, shape index: {}]
  %s13 = inlined_call_operand.hbm [shape: bf16[256,256], index: 13, kind: input, shape index: {}]
  %s14 = inlined_call_operand.vmem [shape: f32[1,256], index: 14, kind: input, shape index: {}]
  %s15 = inlined_call_operand.vmem [shape: bf16[256,128], index: 15, kind: input, shape index: {}]
  %s16 = inlined_call_operand.vmem [shape: f32[1,128], index: 16, kind: input, shape index: {}]
  %s17 = inlined_call_operand.hbm [shape: bf16[128,128], index: 17, kind: output, shape index: {}]
  %s18 = sld [smem:[#allocation0]]
  $region98: #{tpu_custom_call.1} parent=0
    _
  %s20 = ssub.s32 1, %s18
  %s21 = scalar_select 0, %s20, %s18
  $region1: #{tpu_custom_call.1} parent=0
    #allocation2 [shape = 'u8[131072]{0}', space=vmem, size = 0x20000, scoped, tag = 'input window, operand 6, single buffered']
    #allocation3 [shape = 's32[1]{0}', space=sflag, size = 0x4, scoped, tag = 'scoped memory for tpu_custom_call.1']
    #allocation4 [shape = 's32[1]{0}', space=sflag, size = 0x4, scoped, tag = 'scoped memory for tpu_custom_call.1']
    #allocation5 [shape = 'u8[131072]{0}', space=vmem, size = 0x20000, scoped, tag = 'input window, operand 8, single buffered']
    #allocation6 [shape = 's32[1]{0}', space=sflag, size = 0x4, scoped, tag = 'scoped memory for tpu_custom_call.1']
    #allocation7 [shape = 'u8[131072]{0}', space=vmem, size = 0x20000, scoped, tag = 'input window, operand 10, single buffered']
    #allocation8 [shape = 'u8[131072]{0}', space=vmem, size = 0x20000, scoped, tag = 'input window, operand 11, single buffered']
    #allocation9 [shape = 's32[1]{0}', space=sflag, size = 0x4, scoped, tag = 'scoped memory for tpu_custom_call.1']
    #allocation10 [shape = 'u8[131072]{0}', space=vmem, size = 0x20000, scoped, tag = 'input window, operand 13, single buffered']
    #allocation11 [shape = 'u8[32768]{0}', space=vmem, size = 0x8000, scoped, tag = 'output window, operand 0, single buffered']
    %22 = vsyncpa [#allocation3], 0
    %23 = vsyncpa [#allocation6], 0
    %24 = vsyncpa [#allocation9], 0
    %25 = vsyncpa [#allocation4], 0
    // Predicated region
    $region2: #{tpu_custom_call.1} parent=1 // pred_check
      _
    $region3: #{tpu_custom_call.1} parent=1 // pred_check_branch
      %27 = sbr.rel (0) target = $region5
    $region4: #{tpu_custom_call.1} parent=1 // pred_region
      _
    $region5: #{tpu_custom_call.1} parent=1 // pred_fallthru
      _
    // Predicated region
    $region6: #{tpu_custom_call.1} parent=1 // pred_check
      _
    $region7: #{tpu_custom_call.1} parent=1 // pred_check_branch
      %29 = sbr.rel (0) target = $region9
    $region8: #{tpu_custom_call.1} parent=1 // pred_region
      _
    $region9: #{tpu_custom_call.1} parent=1 // pred_fallthru
      _
    // Predicated region
    $region10: #{tpu_custom_call.1} parent=1 // pred_check
      _
    $region11: #{tpu_custom_call.1} parent=1 // pred_check_branch
      %31 = sbr.rel (0) target = $region13
    $region12: #{tpu_custom_call.1} parent=1 // pred_region
      _
    $region13: #{tpu_custom_call.1} parent=1 // pred_fallthru
      _
    // Predicated region
    $region14: #{tpu_custom_call.1} parent=1 // pred_check
      _
    $region15: #{tpu_custom_call.1} parent=1 // pred_check_branch
      %33 = sbr.rel (0) target = $region17
    $region16: #{tpu_custom_call.1} parent=1 // pred_region
      _
    $region17: #{tpu_custom_call.1} parent=1 // pred_fallthru
      _
    // Predicated region
    $region18: #{tpu_custom_call.1} parent=1 // pred_check
      _
    $region19: #{tpu_custom_call.1} parent=1 // pred_check_branch
      %35 = sbr.rel (0) target = $region21
    $region20: #{tpu_custom_call.1} parent=1 // pred_region
      _
    $region21: #{tpu_custom_call.1} parent=1 // pred_fallthru
      _
    // Predicated region
    $region22: #{tpu_custom_call.1} parent=1 // pred_check
      _
    $region23: #{tpu_custom_call.1} parent=1 // pred_check_branch
      %37 = sbr.rel (0) target = $region25
    $region24: #{tpu_custom_call.1} parent=1 // pred_region
      _
    $region25: #{tpu_custom_call.1} parent=1 // pred_fallthru
      _
    // Predicated region
    $region26: #{tpu_custom_call.1} parent=1 // pred_check
      _
    $region27: #{tpu_custom_call.1} parent=1 // pred_check_branch
      %39 = sbr.rel (0) target = $region29
    $region28: #{tpu_custom_call.1} parent=1 // pred_region
      %41 = vsyncadd [#allocation3], 0
      %s42 = sshll.u32 %s6, 4
      %s43 = int_to_ptr.hbm [resolvable:$true] %s42
      %s44 = sshll.u32 [#allocation2], 4
      %s45 = int_to_ptr.vmem [resolvable:$true] %s44
      %50 = dma.hbm_to_vmem [thread:$0]  %s43, 4096, %s45, [#allocation3], 128, 128, 8
    $region29: #{tpu_custom_call.1} parent=1 // pred_fallthru
      _
    // Predicated region
    $region30: #{tpu_custom_call.1} parent=1 // pred_check
      _
    $region31: #{tpu_custom_call.1} parent=1 // pred_check_branch
      %52 = sbr.rel (0) target = $region33
    $region32: #{tpu_custom_call.1} parent=1 // pred_region
      _
    $region33: #{tpu_custom_call.1} parent=1 // pred_fallthru
      _
    // Predicated region
    $region34: #{tpu_custom_call.1} parent=1 // pred_check
      _
    $region35: #{tpu_custom_call.1} parent=1 // pred_check_branch
      %54 = sbr.rel (0) target = $region37
    $region36: #{tpu_custom_call.1} parent=1 // pred_region
      %56 = vsyncadd [#allocation6], 0
      %s57 = sshll.u32 %s8, 4
      %s58 = int_to_ptr.hbm [resolvable:$true] %s57
      %s59 = sshll.u32 [#allocation5], 4
      %s60 = int_to_ptr.vmem [resolvable:$true] %s59
      %65 = dma.hbm_to_vmem [thread:$0]  %s58, 4096, %s60, [#allocation6], 128, 128, 8
    $region37: #{tpu_custom_call.1} parent=1 // pred_fallthru
      _
    // Predicated region
    $region38: #{tpu_custom_call.1} parent=1 // pred_check
      _
    $region39: #{tpu_custom_call.1} parent=1 // pred_check_branch
      %67 = sbr.rel (0) target = $region41
    $region40: #{tpu_custom_call.1} parent=1 // pred_region
      _
    $region41: #{tpu_custom_call.1} parent=1 // pred_fallthru
      _
    // Predicated region
    $region42: #{tpu_custom_call.1} parent=1 // pred_check
      _
    $region43: #{tpu_custom_call.1} parent=1 // pred_check_branch
      %69 = sbr.rel (0) target = $region45
    $region44: #{tpu_custom_call.1} parent=1 // pred_region
      %71 = vsyncadd [#allocation6], 0
      %s72 = sshll.u32 %s10, 4
      %s73 = int_to_ptr.hbm [resolvable:$true] %s72
      %s74 = sshll.u32 [#allocation7], 4
      %s75 = int_to_ptr.vmem [resolvable:$true] %s74
      %80 = dma.hbm_to_vmem [thread:$0]  %s73, 4096, %s75, [#allocation6], 128, 128, 8
    $region45: #{tpu_custom_call.1} parent=1 // pred_fallthru
      _
    // Predicated region
    $region46: #{tpu_custom_call.1} parent=1 // pred_check
      _
    $region47: #{tpu_custom_call.1} parent=1 // pred_check_branch
      %82 = sbr.rel (0) target = $region49
    $region48: #{tpu_custom_call.1} parent=1 // pred_region
      %84 = vsyncadd [#allocation9], 0
      %s85 = sshll.u32 %s11, 4
      %s86 = int_to_ptr.hbm [resolvable:$true] %s85
      %s87 = sshll.u32 [#allocation8], 4
      %s88 = int_to_ptr.vmem [resolvable:$true] %s87
      %93 = dma.hbm_to_vmem [thread:$0]  %s86, 4096, %s88, [#allocation9], 128, 128, 8
    $region49: #{tpu_custom_call.1} parent=1 // pred_fallthru
      _
    // Predicated region
    $region50: #{tpu_custom_call.1} parent=1 // pred_check
      _
    $region51: #{tpu_custom_call.1} parent=1 // pred_check_branch
      %95 = sbr.rel (0) target = $region53
    $region52: #{tpu_custom_call.1} parent=1 // pred_region
      _
    $region53: #{tpu_custom_call.1} parent=1 // pred_fallthru
      _
    // Predicated region
    $region54: #{tpu_custom_call.1} parent=1 // pred_check
      _
    $region55: #{tpu_custom_call.1} parent=1 // pred_check_branch
      %97 = sbr.rel (0) target = $region57
    $region56: #{tpu_custom_call.1} parent=1 // pred_region
      %99 = vsyncadd [#allocation9], 0
      %s100 = sshll.u32 %s13, 4
      %s101 = int_to_ptr.hbm [resolvable:$true] %s100
      %s102 = sshll.u32 [#allocation10], 4
      %s103 = int_to_ptr.vmem [resolvable:$true] %s102
      %108 = dma.hbm_to_vmem [thread:$0]  %s101, 4096, %s103, [#allocation9], 128, 128, 8
    $region57: #{tpu_custom_call.1} parent=1 // pred_fallthru
      _
    // Predicated region
    $region58: #{tpu_custom_call.1} parent=1 // pred_check
      _
    $region59: #{tpu_custom_call.1} parent=1 // pred_check_branch
      %110 = sbr.rel (0) target = $region61
    $region60: #{tpu_custom_call.1} parent=1 // pred_region
      _
    $region61: #{tpu_custom_call.1} parent=1 // pred_fallthru
      _
    // Predicated region
    $region62: #{tpu_custom_call.1} parent=1 // pred_check
      _
    $region63: #{tpu_custom_call.1} parent=1 // pred_check_branch
      %112 = sbr.rel (0) target = $region65
    $region64: #{tpu_custom_call.1} parent=1 // pred_region
      _
    $region65: #{tpu_custom_call.1} parent=1 // pred_fallthru
      _
    // Predicated region
    $region66: #{tpu_custom_call.1} parent=1 // pred_check
      _
    $region67: #{tpu_custom_call.1} parent=1 // pred_check_branch
      %114 = sbr.rel (0) target = $region69
    $region68: #{tpu_custom_call.1} parent=1 // pred_region
      _
    $region69: #{tpu_custom_call.1} parent=1 // pred_fallthru
      _
    // Predicated region
    $region70: #{tpu_custom_call.1} parent=1 // pred_check
      _
    $region71: #{tpu_custom_call.1} parent=1 // pred_check_branch
      %116 = sbr.rel (0) target = $region73
    $region72: #{tpu_custom_call.1} parent=1 // pred_region
      %118 = dma.done [#allocation3], 4096
    $region73: #{tpu_custom_call.1} parent=1 // pred_fallthru
      _
    // Predicated region
    $region74: #{tpu_custom_call.1} parent=1 // pred_check
      _
    $region75: #{tpu_custom_call.1} parent=1 // pred_check_branch
      %120 = sbr.rel (0) target = $region77
    $region76: #{tpu_custom_call.1} parent=1 // pred_region
      %122 = dma.done [#allocation6], 4096
    $region77: #{tpu_custom_call.1} parent=1 // pred_fallthru
      _
    // Predicated region
    $region78: #{tpu_custom_call.1} parent=1 // pred_check
      _
    $region79: #{tpu_custom_call.1} parent=1 // pred_check_branch
      %124 = sbr.rel (0) target = $region81
    $region80: #{tpu_custom_call.1} parent=1 // pred_region
      %126 = dma.done [#allocation6], 4096
    $region81: #{tpu_custom_call.1} parent=1 // pred_fallthru
      _
    // Predicated region
    $region82: #{tpu_custom_call.1} parent=1 // pred_check
      _
    $region83: #{tpu_custom_call.1} parent=1 // pred_check_branch
      %128 = sbr.rel (0) target = $region85
    $region84: #{tpu_custom_call.1} parent=1 // pred_region
      %130 = dma.done [#allocation9], 4096
    $region85: #{tpu_custom_call.1} parent=1 // pred_fallthru
      _
    // Predicated region
    $region86: #{tpu_custom_call.1} parent=1 // pred_check
      _
    $region87: #{tpu_custom_call.1} parent=1 // pred_check_branch
      %132 = sbr.rel (0) target = $region89
    $region88: #{tpu_custom_call.1} parent=1 // pred_region
      %134 = dma.done [#allocation9], 4096
    $region89: #{tpu_custom_call.1} parent=1 // pred_fallthru
      _
    %v136 = vld [vmem:[%s2] sm:$0xff]
    %v137 = vld [vmem:[%s2 + $0x8] sm:$0xff]
    %v138 = vld [vmem:[%s2 + $0x10] sm:$0xff]
    %v139 = vld [vmem:[%s2 + $0x18] sm:$0xff]
    %v140 = vld [vmem:[%s2 + $0x20] sm:$0xff]
    %v141 = vld [vmem:[%s2 + $0x28] sm:$0xff]
    %v142 = vld [vmem:[%s2 + $0x30] sm:$0xff]
    %v143 = vld [vmem:[%s2 + $0x38] sm:$0xff]
    %v144 = vld [vmem:[%s2 + $0x40] sm:$0xff]
    %v145 = vld [vmem:[%s2 + $0x48] sm:$0xff]
    %v146 = vld [vmem:[%s2 + $0x50] sm:$0xff]
    %v147 = vld [vmem:[%s2 + $0x58] sm:$0xff]
    %v148 = vld [vmem:[%s2 + $0x60] sm:$0xff]
    %v149 = vld [vmem:[%s2 + $0x68] sm:$0xff]
    %v150 = vld [vmem:[%s2 + $0x70] sm:$0xff]
    %v151 = vld [vmem:[%s2 + $0x78] sm:$0xff]
    %v152 = vld [vmem:[%s0] sm:$0x3]
    %154 = vset.pattern.permute.xlu0 0
    %155 = vperm.xlu0 %154, %v136
    %v156 = vpop.permute.xlu0 %155
    %159 = vset.pattern.permute.xlu0 0
    %160 = vperm.xlu0 %159, %v137
    %v161 = vpop.permute.xlu0 %160
    %164 = vset.pattern.permute.xlu0 0
    %165 = vperm.xlu0 %164, %v138
    %v166 = vpop.permute.xlu0 %165
    %169 = vset.pattern.permute.xlu0 0
    %170 = vperm.xlu0 %169, %v139
    %v171 = vpop.permute.xlu0 %170
    %174 = vset.pattern.permute.xlu0 0
    %175 = vperm.xlu0 %174, %v140
    %v176 = vpop.permute.xlu0 %175
    %179 = vset.pattern.permute.xlu0 0
    %180 = vperm.xlu0 %179, %v141
    %v181 = vpop.permute.xlu0 %180
    %184 = vset.pattern.permute.xlu0 0
    %185 = vperm.xlu0 %184, %v142
    %v186 = vpop.permute.xlu0 %185
    %189 = vset.pattern.permute.xlu0 0
    %190 = vperm.xlu0 %189, %v143
    %v191 = vpop.permute.xlu0 %190
    %194 = vset.pattern.permute.xlu0 0
    %195 = vperm.xlu0 %194, %v144
    %v196 = vpop.permute.xlu0 %195
    %199 = vset.pattern.permute.xlu0 0
    %200 = vperm.xlu0 %199, %v145
    %v201 = vpop.permute.xlu0 %200
    %204 = vset.pattern.permute.xlu0 0
    %205 = vperm.xlu0 %204, %v146
    %v206 = vpop.permute.xlu0 %205
    %209 = vset.pattern.permute.xlu0 0
    %210 = vperm.xlu0 %209, %v147
    %v211 = vpop.permute.xlu0 %210
    %214 = vset.pattern.permute.xlu0 0
    %215 = vperm.xlu0 %214, %v148
    %v216 = vpop.permute.xlu0 %215
    %219 = vset.pattern.permute.xlu0 0
    %220 = vperm.xlu0 %219, %v149
    %v221 = vpop.permute.xlu0 %220
    %224 = vset.pattern.permute.xlu0 0
    %225 = vperm.xlu0 %224, %v150
    %v226 = vpop.permute.xlu0 %225
    %229 = vset.pattern.permute.xlu0 0
    %230 = vperm.xlu0 %229, %v151
    %v231 = vpop.permute.xlu0 %230
    %v234 = vperm.slane %v152, 0
    %v235 = vperm.slane %v152, 1
    %v238 = vmul.f32 %v156, %v234
    %v239 = vmul.f32 %v156, %v235
    %v240 = vmul.f32 %v161, %v234
    %v241 = vmul.f32 %v161, %v235
    %v242 = vmul.f32 %v166, %v234
    %v243 = vmul.f32 %v166, %v235
    %v244 = vmul.f32 %v171, %v234
    %v245 = vmul.f32 %v171, %v235
    %v246 = vmul.f32 %v176, %v234
    %v247 = vmul.f32 %v176, %v235
    %v248 = vmul.f32 %v181, %v234
    %v249 = vmul.f32 %v181, %v235
    %v250 = vmul.f32 %v186, %v234
    %v251 = vmul.f32 %v186, %v235
    %v252 = vmul.f32 %v191, %v234
    %v253 = vmul.f32 %v191, %v235
    %v254 = vmul.f32 %v196, %v234
    %v255 = vmul.f32 %v196, %v235
    %v256 = vmul.f32 %v201, %v234
    %v257 = vmul.f32 %v201, %v235
    %v258 = vmul.f32 %v206, %v234
    %v259 = vmul.f32 %v206, %v235
    %v260 = vmul.f32 %v211, %v234
    %v261 = vmul.f32 %v211, %v235
    %v262 = vmul.f32 %v216, %v234
    %v263 = vmul.f32 %v216, %v235
    %v264 = vmul.f32 %v221, %v234
    %v265 = vmul.f32 %v221, %v235
    %v266 = vmul.f32 %v226, %v234
    %v267 = vmul.f32 %v226, %v235
    %v268 = vmul.f32 %v231, %v234
    %v269 = vmul.f32 %v231, %v235
    %v270 = vld [vmem:[%s1] sm:$0x3]
    %v272 = vperm.slane %v270, 0
    %v273 = vperm.slane %v270, 1
    %v276 = vadd.f32 %v238, %v272
    %v277 = vadd.f32 %v239, %v273
    %v278 = vadd.f32 %v240, %v272
    %v279 = vadd.f32 %v241, %v273
    %v280 = vadd.f32 %v242, %v272
    %v281 = vadd.f32 %v243, %v273
    %v282 = vadd.f32 %v244, %v272
    %v283 = vadd.f32 %v245, %v273
    %v284 = vadd.f32 %v246, %v272
    %v285 = vadd.f32 %v247, %v273
    %v286 = vadd.f32 %v248, %v272
    %v287 = vadd.f32 %v249, %v273
    %v288 = vadd.f32 %v250, %v272
    %v289 = vadd.f32 %v251, %v273
    %v290 = vadd.f32 %v252, %v272
    %v291 = vadd.f32 %v253, %v273
    %v292 = vadd.f32 %v254, %v272
    %v293 = vadd.f32 %v255, %v273
    %v294 = vadd.f32 %v256, %v272
    %v295 = vadd.f32 %v257, %v273
    %v296 = vadd.f32 %v258, %v272
    %v297 = vadd.f32 %v259, %v273
    %v298 = vadd.f32 %v260, %v272
    %v299 = vadd.f32 %v261, %v273
    %v300 = vadd.f32 %v262, %v272
    %v301 = vadd.f32 %v263, %v273
    %v302 = vadd.f32 %v264, %v272
    %v303 = vadd.f32 %v265, %v273
    %v304 = vadd.f32 %v266, %v272
    %v305 = vadd.f32 %v267, %v273
    %v306 = vadd.f32 %v268, %v272
    %v307 = vadd.f32 %v269, %v273
    %v308 = vand.u32 2147483647, %v276
    %vm309 = vcmp.le.f32.partialorder %v308, 0.7853982
    %vm310 = vcmp.lt.s32.totalorder %v276, 0
    %v311 = vand.u32 %v276, 2139095040
    %v312 = vshrl.u32 %v311, 23
    %v313 = vsub.s32 %v312, 127
    %v314 = vand.u32 2147483647, %v276
    %v315 = vand.u32 %v314, 8388607
    %v316 = vor.u32 %v315, 8388608
    %v317 = vsub.s32 0, %v316
    %v318 = vadd.s32 %v313, 1
    %vm319 = vcmp.gt.s32.totalorder %v318, 0
    %v320 = vsel %vm319, %v318, 0
    %v321 = vshrl.u32 %v320, 5
    %v322 = vand.u32 %v320, 31
    %v323 = vsub.s32 32, %v322
    %v324 = vshrl.u32 683565275, %v323
    %v325 = vshll.u32 683565275, %v322
    %v326 = vshrl.u32 2475754826, %v323
    %v327 = vor.u32 %v325, %v326
    %v328 = vshll.u32 2475754826, %v322
    %v329 = vshrl.u32 2131351028, %v323
    %v330 = vor.u32 %v328, %v329
    %v331 = vshll.u32 2131351028, %v322
    %v332 = vshrl.u32 2102212464, %v323
    %v333 = vor.u32 %v331, %v332
    %v334 = vshll.u32 2102212464, %v322
    %v335 = vshrl.u32 920167782, %v323
    %v336 = vor.u32 %v334, %v335
    %v337 = vshll.u32 920167782, %v322
    %v338 = vshrl.u32 1326507024, %v323
    %v339 = vor.u32 %v337, %v338
    %vm340 = vcmp.lt.s32.totalorder %v321, 1
    %vm341 = vcmp.lt.s32.totalorder %v321, 2
    %vm342 = vcmp.lt.s32.totalorder %v321, 3
    %vm343 = vcmp.lt.s32.totalorder %v321, 4
    %v344 = vsel %vm340, %v324, %v327
    %v345 = vsel %vm343, %v333, 2102212464
    %v346 = vsel %vm342, %v330, %v345
    %v347 = vsel %vm341, %v344, %v346
    %v348 = vsel %vm340, %v327, %v330
    %v349 = vsel %vm343, %v336, 920167782
    %v350 = vsel %vm342, %v333, %v349
    %v351 = vsel %vm341, %v348, %v350
    %v352 = vsel %vm340, %v330, %v333
    %v353 = vsel %vm343, %v339, 1326507024
    %v354 = vsel %vm342, %v336, %v353
    %v355 = vsel %vm341, %v352, %v354
    %v356 = vshll.u32 %v316, 8
    %v357 = vand.u32 %v356, 65535
    %v358 = vshrl.u32 %v356, 16
    %v359 = vand.u32 %v355, 65535
    %v360 = vshrl.u32 %v355, 16
    %v361 = vmul.u32 %v357, %v359
    %v362 = vmul.u32 %v357, %v360
    %v363 = vmul.u32 %v358, %v359
    %v364 = vmul.u32 %v358, %v360
    %v365 = vshll.u32 %v362, 16
    %v366 = vshrl.u32 %v362, 16
    %v367 = vshll.u32 %v363, 16
    %v368 = vshrl.u32 %v363, 16
    %vm369 = vc.u32 %v361, %v365
    %v370 = vsel %vm369, 1, 0
    %v371 = vadd.s32 %v361, %v365
    %v372 = vadd.s32 %v364, %v370
    %vm373 = vc.u32 %v371, %v367
    %v374 = vsel %vm373, 1, 0
    %v375 = vadd.s32 %v371, %v367
    %v376 = vadd.s32 %v372, %v374
    %v377 = vadd.s32 %v376, %v366
    %v378 = vadd.s32 %v377, %v368
    %v379 = vand.u32 %v356, 65535
    %v380 = vshrl.u32 %v356, 16
    %v381 = vand.u32 %v351, 65535
    %v382 = vshrl.u32 %v351, 16
    %v383 = vmul.u32 %v379, %v381
    %v384 = vmul.u32 %v379, %v382
    %v385 = vmul.u32 %v380, %v381
    %v386 = vmul.u32 %v380, %v382
    %v387 = vshll.u32 %v384, 16
    %v388 = vshrl.u32 %v384, 16
    %v389 = vshll.u32 %v385, 16
    %v390 = vshrl.u32 %v385, 16
    %vm391 = vc.u32 %v383, %v387
    %v392 = vsel %vm391, 1, 0
    %v393 = vadd.s32 %v383, %v387
    %v394 = vadd.s32 %v386, %v392
    %vm395 = vc.u32 %v393, %v389
    %v396 = vsel %vm395, 1, 0
    %v397 = vadd.s32 %v393, %v389
    %v398 = vadd.s32 %v394, %v396
    %v399 = vadd.s32 %v398, %v388
    %v400 = vadd.s32 %v399, %v390
    %v401 = vmul.u32 %v356, %v347
    %v402 = vadd.s32 %v378, %v397
    %vm403 = vc.u32 %v378, %v397
    %v404 = vadd.s32 %v400, 1
    %v405 = vsel %vm403, %v404, %v400
    %v406 = vadd.s32 %v401, %v405
    %v407 = vadd.s32 %v406, 536870912
    %v408 = vshrl.u32 %v407, 30
    %v409 = vshll.u32 %v408, 30
    %v410 = vsub.s32 %v406, %v409
    %vm411 = vcmp.lt.s32.totalorder %v410, 0
    %v412 = vsub.s32 0, %v410
    %v413 = vsel %vm411, %v412, %v410
    %v414 = vclz %v413
    %v415 = vsub.s32 %v414, 2
    %vm416 = vcmp.gt.s32.totalorder 0, %v415
    %v417 = vsel %vm416, 0, %v415
    %v418 = vsub.s32 32, %v417
    %v419 = vshll.u32 %v410, %v417
    %v420 = vshrl.u32 %v402, %v418
    %v421 = vor.u32 %v419, %v420
    %v422 = vsub.s32 4294967266, %v417
    %v423 = vadd.s32 %v422, 127
    %v424 = vshll.u32 %v423, 23
    %v425 = vor.u32 4788187, %v424
    %v426 = vand.u32 2147483647, %v425
    %v428 = vcvt.s32.f32 %v421
    %v429 = vmul.f32 %v428, %v426
    %v430 = vxor.u32 %v429, 2147483648
    %v431 = vsel %vm310, %v430, %v429
    %v432 = vsub.s32 4, %v408
    %v433 = vsel %vm310, %v432, %v408
    %v434 = vsel %vm309, %v276, %v431
    %v435 = vsel %vm309, 0, %v433
    %v436 = vmul.f32 %v434, %v434
    %v437 = vmul.f32 %v436, -0.001358992
    %v438 = vadd.f32 %v437, 0.041655596
    %v439 = vmul.f32 %v436, %v438
    %v440 = vadd.f32 %v439, -0.4999988
    %v441 = vmul.f32 %v436, %v440
    %v442 = vadd.f32 1.0, %v441
    %v443 = vmul.f32 %v434, %v434
    %v444 = vmul.f32 %v443, -0.00019511016
    %v445 = vadd.f32 %v444, 0.008332121
    %v446 = vmul.f32 %v443, %v445
    %v447 = vadd.f32 %v446, -0.16666654
    %v448 = vmul.f32 %v443, %v447
    %v449 = vadd.f32 %v448, 1.0
    %v450 = vmul.f32 %v449, %v434
    %vm451 = vweird.f32 %v276
    %v452 = vand.u32 %v435, 3
    %vm453 = vcmp.lt.s32.totalorder %v452, 2
    %vm454 = vcmp.eq.s32.totalorder %v452, 0
    %v455 = vxor.u32 %v450, 2147483648
    %v456 = vsel %vm454, %v442, %v455
    %vm457 = vcmp.eq.s32.totalorder %v452, 2
    %v458 = vxor.u32 %v442, 2147483648
    %v459 = vsel %vm457, %v458, %v450
    %v460 = vsel %vm453, %v456, %v459
    %v461 = vsel %vm451, nan, %v460
    %v462 = vand.u32 2147483647, %v277
    %vm463 = vcmp.le.f32.partialorder %v462, 0.7853982
    %vm464 = vcmp.lt.s32.totalorder %v277, 0
    %v465 = vand.u32 %v277, 2139095040
    %v466 = vshrl.u32 %v465, 23
    %v467 = vsub.s32 %v466, 127
    %v468 = vand.u32 2147483647, %v277
    %v469 = vand.u32 %v468, 8388607
    %v470 = vor.u32 %v469, 8388608
    %v471 = vsub.s32 0, %v470
    %v472 = vadd.s32 %v467, 1
    %vm473 = vcmp.gt.s32.totalorder %v472, 0
    %v474 = vsel %vm473, %v472, 0
    %v475 = vshrl.u32 %v474, 5
    %v476 = vand.u32 %v474, 31
    %v477 = vsub.s32 32, %v476
    %v478 = vshrl.u32 683565275, %v477
    %v479 = vshll.u32 683565275, %v476
    %v480 = vshrl.u32 2475754826, %v477
    %v481 = vor.u32 %v479, %v480
    %v482 = vshll.u32 2475754826, %v476
    %v483 = vshrl.u32 2131351028, %v477
    %v484 = vor.u32 %v482, %v483
    %v485 = vshll.u32 2131351028, %v476
    %v486 = vshrl.u32 2102212464, %v477
    %v487 = vor.u32 %v485, %v486
    %v488 = vshll.u32 2102212464, %v476
    %v489 = vshrl.u32 920167782, %v477
    %v490 = vor.u32 %v488, %v489
    %v491 = vshll.u32 920167782, %v476
    %v492 = vshrl.u32 1326507024, %v477
    %v493 = vor.u32 %v491, %v492
    %vm494 = vcmp.lt.s32.totalorder %v475, 1
    %vm495 = vcmp.lt.s32.totalorder %v475, 2
    %vm496 = vcmp.lt.s32.totalorder %v475, 3
    %vm497 = vcmp.lt.s32.totalorder %v475, 4
    %v498 = vsel %vm494, %v478, %v481
    %v499 = vsel %vm497, %v487, 2102212464
    %v500 = vsel %vm496, %v484, %v499
    %v501 = vsel %vm495, %v498, %v500
    %v502 = vsel %vm494, %v481, %v484
    %v503 = vsel %vm497, %v490, 920167782
    %v504 = vsel %vm496, %v487, %v503
    %v505 = vsel %vm495, %v502, %v504
    %v506 = vsel %vm494, %v484, %v487
    %v507 = vsel %vm497, %v493, 1326507024
    %v508 = vsel %vm496, %v490, %v507
    %v509 = vsel %vm495, %v506, %v508
    %v510 = vshll.u32 %v470, 8
    %v511 = vand.u32 %v510, 65535
    %v512 = vshrl.u32 %v510, 16
    %v513 = vand.u32 %v509, 65535
    %v514 = vshrl.u32 %v509, 16
    %v515 = vmul.u32 %v511, %v513
    %v516 = vmul.u32 %v511, %v514
    %v517 = vmul.u32 %v512, %v513
    %v518 = vmul.u32 %v512, %v514
    %v519 = vshll.u32 %v516, 16
    %v520 = vshrl.u32 %v516, 16
    %v521 = vshll.u32 %v517, 16
    %v522 = vshrl.u32 %v517, 16
    %vm523 = vc.u32 %v515, %v519
    %v524 = vsel %vm523, 1, 0
    %v525 = vadd.s32 %v515, %v519
    %v526 = vadd.s32 %v518, %v524
    %vm527 = vc.u32 %v525, %v521
    %v528 = vsel %vm527, 1, 0
    %v529 = vadd.s32 %v525, %v521
    %v530 = vadd.s32 %v526, %v528
    %v531 = vadd.s32 %v530, %v520
    %v532 = vadd.s32 %v531, %v522
    %v533 = vand.u32 %v510, 65535
    %v534 = vshrl.u32 %v510, 16
    %v535 = vand.u32 %v505, 65535
    %v536 = vshrl.u32 %v505, 16
    %v537 = vmul.u32 %v533, %v535
    %v538 = vmul.u32 %v533, %v536
    %v539 = vmul.u32 %v534, %v535
    %v540 = vmul.u32 %v534, %v536
    %v541 = vshll.u32 %v538, 16
    %v542 = vshrl.u32 %v538, 16
    %v543 = vshll.u32 %v539, 16
    %v544 = vshrl.u32 %v539, 16
    %vm545 = vc.u32 %v537, %v541
    %v546 = vsel %vm545, 1, 0
    %v547 = vadd.s32 %v537, %v541
    %v548 = vadd.s32 %v540, %v546
    %vm549 = vc.u32 %v547, %v543
    %v550 = vsel %vm549, 1, 0
    %v551 = vadd.s32 %v547, %v543
    %v552 = vadd.s32 %v548, %v550
    %v553 = vadd.s32 %v552, %v542
    %v554 = vadd.s32 %v553, %v544
    %v555 = vmul.u32 %v510, %v501
    %v556 = vadd.s32 %v532, %v551
    %vm557 = vc.u32 %v532, %v551
    %v558 = vadd.s32 %v554, 1
    %v559 = vsel %vm557, %v558, %v554
    %v560 = vadd.s32 %v555, %v559
    %v561 = vadd.s32 %v560, 536870912
    %v562 = vshrl.u32 %v561, 30
    %v563 = vshll.u32 %v562, 30
    %v564 = vsub.s32 %v560, %v563
    %vm565 = vcmp.lt.s32.totalorder %v564, 0
    %v566 = vsub.s32 0, %v564
    %v567 = vsel %vm565, %v566, %v564
    %v568 = vclz %v567
    %v569 = vsub.s32 %v568, 2
    %vm570 = vcmp.gt.s32.totalorder 0, %v569
    %v571 = vsel %vm570, 0, %v569
    %v572 = vsub.s32 32, %v571
    %v573 = vshll.u32 %v564, %v571
    %v574 = vshrl.u32 %v556, %v572
    %v575 = vor.u32 %v573, %v574
    %v576 = vsub.s32 4294967266, %v571
    %v577 = vadd.s32 %v576, 127
    %v578 = vshll.u32 %v577, 23
    %v579 = vor.u32 4788187, %v578
    %v580 = vand.u32 2147483647, %v579
    %v582 = vcvt.s32.f32 %v575
    %v583 = vmul.f32 %v582, %v580
    %v584 = vxor.u32 %v583, 2147483648
    %v585 = vsel %vm464, %v584, %v583
    %v586 = vsub.s32 4, %v562
    %v587 = vsel %vm464, %v586, %v562
    %v588 = vsel %vm463, %v277, %v585
    %v589 = vsel %vm463, 0, %v587
    %v590 = vmul.f32 %v588, %v588
    %v591 = vmul.f32 %v590, -0.001358992
    %v592 = vadd.f32 %v591, 0.041655596
    %v593 = vmul.f32 %v590, %v592
    %v594 = vadd.f32 %v593, -0.4999988
    %v595 = vmul.f32 %v590, %v594
    %v596 = vadd.f32 1.0, %v595
    %v597 = vmul.f32 %v588, %v588
    %v598 = vmul.f32 %v597, -0.00019511016
    %v599 = vadd.f32 %v598, 0.008332121
    %v600 = vmul.f32 %v597, %v599
    %v601 = vadd.f32 %v600, -0.16666654
    %v602 = vmul.f32 %v597, %v601
    %v603 = vadd.f32 %v602, 1.0
    %v604 = vmul.f32 %v603, %v588
    %vm605 = vweird.f32 %v277
    %v606 = vand.u32 %v589, 3
    %vm607 = vcmp.lt.s32.totalorder %v606, 2
    %vm608 = vcmp.eq.s32.totalorder %v606, 0
    %v609 = vxor.u32 %v604, 2147483648
    %v610 = vsel %vm608, %v596, %v609
    %vm611 = vcmp.eq.s32.totalorder %v606, 2
    %v612 = vxor.u32 %v596, 2147483648
    %v613 = vsel %vm611, %v612, %v604
    %v614 = vsel %vm607, %v610, %v613
    %v615 = vsel %vm605, nan, %v614
    %v616 = vand.u32 2147483647, %v278
    %vm617 = vcmp.le.f32.partialorder %v616, 0.7853982
    %vm618 = vcmp.lt.s32.totalorder %v278, 0
    %v619 = vand.u32 %v278, 2139095040
    %v620 = vshrl.u32 %v619, 23
    %v621 = vsub.s32 %v620, 127
    %v622 = vand.u32 2147483647, %v278
    %v623 = vand.u32 %v622, 8388607
    %v624 = vor.u32 %v623, 8388608
    %v625 = vsub.s32 0, %v624
    %v626 = vadd.s32 %v621, 1
    %vm627 = vcmp.gt.s32.totalorder %v626, 0
    %v628 = vsel %vm627, %v626, 0
    %v629 = vshrl.u32 %v628, 5
    %v630 = vand.u32 %v628, 31
    %v631 = vsub.s32 32, %v630
    %v632 = vshrl.u32 683565275, %v631
    %v633 = vshll.u32 683565275, %v630
    %v634 = vshrl.u32 2475754826, %v631
    %v635 = vor.u32 %v633, %v634
    %v636 = vshll.u32 2475754826, %v630
    %v637 = vshrl.u32 2131351028, %v631
    %v638 = vor.u32 %v636, %v637
    %v639 = vshll.u32 2131351028, %v630
    %v640 = vshrl.u32 2102212464, %v631
    %v641 = vor.u32 %v639, %v640
    %v642 = vshll.u32 2102212464, %v630
    %v643 = vshrl.u32 920167782, %v631
    %v644 = vor.u32 %v642, %v643
    %v645 = vshll.u32 920167782, %v630
    %v646 = vshrl.u32 1326507024, %v631
    %v647 = vor.u32 %v645, %v646
    %vm648 = vcmp.lt.s32.totalorder %v629, 1
    %vm649 = vcmp.lt.s32.totalorder %v629, 2
    %vm650 = vcmp.lt.s32.totalorder %v629, 3
    %vm651 = vcmp.lt.s32.totalorder %v629, 4
    %v652 = vsel %vm648, %v632, %v635
    %v653 = vsel %vm651, %v641, 2102212464
    %v654 = vsel %vm650, %v638, %v653
    %v655 = vsel %vm649, %v652, %v654
    %v656 = vsel %vm648, %v635, %v638
    %v657 = vsel %vm651, %v644, 920167782
    %v658 = vsel %vm650, %v641, %v657
    %v659 = vsel %vm649, %v656, %v658
    %v660 = vsel %vm648, %v638, %v641
    %v661 = vsel %vm651, %v647, 1326507024
    %v662 = vsel %vm650, %v644, %v661
    %v663 = vsel %vm649, %v660, %v662
    %v664 = vshll.u32 %v624, 8
    %v665 = vand.u32 %v664, 65535
    %v666 = vshrl.u32 %v664, 16
    %v667 = vand.u32 %v663, 65535
    %v668 = vshrl.u32 %v663, 16
    %v669 = vmul.u32 %v665, %v667
    %v670 = vmul.u32 %v665, %v668
    %v671 = vmul.u32 %v666, %v667
    %v672 = vmul.u32 %v666, %v668
    %v673 = vshll.u32 %v670, 16
    %v674 = vshrl.u32 %v670, 16
    %v675 = vshll.u32 %v671, 16
    %v676 = vshrl.u32 %v671, 16
    %vm677 = vc.u32 %v669, %v673
    %v678 = vsel %vm677, 1, 0
    %v679 = vadd.s32 %v669, %v673
    %v680 = vadd.s32 %v672, %v678
    %vm681 = vc.u32 %v679, %v675
    %v682 = vsel %vm681, 1, 0
    %v683 = vadd.s32 %v679, %v675
    %v684 = vadd.s32 %v680, %v682
    %v685 = vadd.s32 %v684, %v674
    %v686 = vadd.s32 %v685, %v676
    %v687 = vand.u32 %v664, 65535
    %v688 = vshrl.u32 %v664, 16
    %v689 = vand.u32 %v659, 65535
    %v690 = vshrl.u32 %v659, 16
    %v691 = vmul.u32 %v687, %v689
    %v692 = vmul.u32 %v687, %v690
    %v693 = vmul.u32 %v688, %v689
    %v694 = vmul.u32 %v688, %v690
    %v695 = vshll.u32 %v692, 16
    %v696 = vshrl.u32 %v692, 16
    %v697 = vshll.u32 %v693, 16
    %v698 = vshrl.u32 %v693, 16
    %vm699 = vc.u32 %v691, %v695
    %v700 = vsel %vm699, 1, 0
    %v701 = vadd.s32 %v691, %v695
    %v702 = vadd.s32 %v694, %v700
    %vm703 = vc.u32 %v701, %v697
    %v704 = vsel %vm703, 1, 0
    %v705 = vadd.s32 %v701, %v697
    %v706 = vadd.s32 %v702, %v704
    %v707 = vadd.s32 %v706, %v696
    %v708 = vadd.s32 %v707, %v698
    %v709 = vmul.u32 %v664, %v655
    %v710 = vadd.s32 %v686, %v705
    %vm711 = vc.u32 %v686, %v705
    %v712 = vadd.s32 %v708, 1
    %v713 = vsel %vm711, %v712, %v708
    %v714 = vadd.s32 %v709, %v713
    %v715 = vadd.s32 %v714, 536870912
    %v716 = vshrl.u32 %v715, 30
    %v717 = vshll.u32 %v716, 30
    %v718 = vsub.s32 %v714, %v717
    %vm719 = vcmp.lt.s32.totalorder %v718, 0
    %v720 = vsub.s32 0, %v718
    %v721 = vsel %vm719, %v720, %v718
    %v722 = vclz %v721
    %v723 = vsub.s32 %v722, 2
    %vm724 = vcmp.gt.s32.totalorder 0, %v723
    %v725 = vsel %vm724, 0, %v723
    %v726 = vsub.s32 32, %v725
    %v727 = vshll.u32 %v718, %v725
    %v728 = vshrl.u32 %v710, %v726
    %v729 = vor.u32 %v727, %v728
    %v730 = vsub.s32 4294967266, %v725
    %v731 = vadd.s32 %v730, 127
    %v732 = vshll.u32 %v731, 23
    %v733 = vor.u32 4788187, %v732
    %v734 = vand.u32 2147483647, %v733
    %v736 = vcvt.s32.f32 %v729
    %v737 = vmul.f32 %v736, %v734
    %v738 = vxor.u32 %v737, 2147483648
    %v739 = vsel %vm618, %v738, %v737
    %v740 = vsub.s32 4, %v716
    %v741 = vsel %vm618, %v740, %v716
    %v742 = vsel %vm617, %v278, %v739
    %v743 = vsel %vm617, 0, %v741
    %v744 = vmul.f32 %v742, %v742
    %v745 = vmul.f32 %v744, -0.001358992
    %v746 = vadd.f32 %v745, 0.041655596
    %v747 = vmul.f32 %v744, %v746
    %v748 = vadd.f32 %v747, -0.4999988
    %v749 = vmul.f32 %v744, %v748
    %v750 = vadd.f32 1.0, %v749
    %v751 = vmul.f32 %v742, %v742
    %v752 = vmul.f32 %v751, -0.00019511016
    %v753 = vadd.f32 %v752, 0.008332121
    %v754 = vmul.f32 %v751, %v753
    %v755 = vadd.f32 %v754, -0.16666654
    %v756 = vmul.f32 %v751, %v755
    %v757 = vadd.f32 %v756, 1.0
    %v758 = vmul.f32 %v757, %v742
    %vm759 = vweird.f32 %v278
    %v760 = vand.u32 %v743, 3
    %vm761 = vcmp.lt.s32.totalorder %v760, 2
    %vm762 = vcmp.eq.s32.totalorder %v760, 0
    %v763 = vxor.u32 %v758, 2147483648
    %v764 = vsel %vm762, %v750, %v763
    %vm765 = vcmp.eq.s32.totalorder %v760, 2
    %v766 = vxor.u32 %v750, 2147483648
    %v767 = vsel %vm765, %v766, %v758
    %v768 = vsel %vm761, %v764, %v767
    %v769 = vsel %vm759, nan, %v768
    %v770 = vand.u32 2147483647, %v279
    %vm771 = vcmp.le.f32.partialorder %v770, 0.7853982
    %vm772 = vcmp.lt.s32.totalorder %v279, 0
    %v773 = vand.u32 %v279, 2139095040
    %v774 = vshrl.u32 %v773, 23
    %v775 = vsub.s32 %v774, 127
    %v776 = vand.u32 2147483647, %v279
    %v777 = vand.u32 %v776, 8388607
    %v778 = vor.u32 %v777, 8388608
    %v779 = vsub.s32 0, %v778
    %v780 = vadd.s32 %v775, 1
    %vm781 = vcmp.gt.s32.totalorder %v780, 0
    %v782 = vsel %vm781, %v780, 0
    %v783 = vshrl.u32 %v782, 5
    %v784 = vand.u32 %v782, 31
    %v785 = vsub.s32 32, %v784
    %v786 = vshrl.u32 683565275, %v785
    %v787 = vshll.u32 683565275, %v784
    %v788 = vshrl.u32 2475754826, %v785
    %v789 = vor.u32 %v787, %v788
    %v790 = vshll.u32 2475754826, %v784
    %v791 = vshrl.u32 2131351028, %v785
    %v792 = vor.u32 %v790, %v791
    %v793 = vshll.u32 2131351028, %v784
    %v794 = vshrl.u32 2102212464, %v785
    %v795 = vor.u32 %v793, %v794
    %v796 = vshll.u32 2102212464, %v784
    %v797 = vshrl.u32 920167782, %v785
    %v798 = vor.u32 %v796, %v797
    %v799 = vshll.u32 920167782, %v784
    %v800 = vshrl.u32 1326507024, %v785
    %v801 = vor.u32 %v799, %v800
    %vm802 = vcmp.lt.s32.totalorder %v783, 1
    %vm803 = vcmp.lt.s32.totalorder %v783, 2
    %vm804 = vcmp.lt.s32.totalorder %v783, 3
    %vm805 = vcmp.lt.s32.totalorder %v783, 4
    %v806 = vsel %vm802, %v786, %v789
    %v807 = vsel %vm805, %v795, 2102212464
    %v808 = vsel %vm804, %v792, %v807
    %v809 = vsel %vm803, %v806, %v808
    %v810 = vsel %vm802, %v789, %v792
    %v811 = vsel %vm805, %v798, 920167782
    %v812 = vsel %vm804, %v795, %v811
    %v813 = vsel %vm803, %v810, %v812
    %v814 = vsel %vm802, %v792, %v795
    %v815 = vsel %vm805, %v801, 1326507024
    %v816 = vsel %vm804, %v798, %v815
    %v817 = vsel %vm803, %v814, %v816
    %v818 = vshll.u32 %v778, 8
    %v819 = vand.u32 %v818, 65535
    %v820 = vshrl.u32 %v818, 16
    %v821 = vand.u32 %v817, 65535
    %v822 = vshrl.u32 %v817, 16
    %v823 = vmul.u32 %v819, %v821
    %v824 = vmul.u32 %v819, %v822
    %v825 = vmul.u32 %v820, %v821
    %v826 = vmul.u32 %v820, %v822
    %v827 = vshll.u32 %v824, 16
    %v828 = vshrl.u32 %v824, 16
    %v829 = vshll.u32 %v825, 16
    %v830 = vshrl.u32 %v825, 16
    %vm831 = vc.u32 %v823, %v827
    %v832 = vsel %vm831, 1, 0
    %v833 = vadd.s32 %v823, %v827
    %v834 = vadd.s32 %v826, %v832
    %vm835 = vc.u32 %v833, %v829
    %v836 = vsel %vm835, 1, 0
    %v837 = vadd.s32 %v833, %v829
    %v838 = vadd.s32 %v834, %v836
    %v839 = vadd.s32 %v838, %v828
    %v840 = vadd.s32 %v839, %v830
    %v841 = vand.u32 %v818, 65535
    %v842 = vshrl.u32 %v818, 16
    %v843 = vand.u32 %v813, 65535
    %v844 = vshrl.u32 %v813, 16
    %v845 = vmul.u32 %v841, %v843
    %v846 = vmul.u32 %v841, %v844
    %v847 = vmul.u32 %v842, %v843
    %v848 = vmul.u32 %v842, %v844
    %v849 = vshll.u32 %v846, 16
    %v850 = vshrl.u32 %v846, 16
    %v851 = vshll.u32 %v847, 16
    %v852 = vshrl.u32 %v847, 16
    %vm853 = vc.u32 %v845, %v849
    %v854 = vsel %vm853, 1, 0
    %v855 = vadd.s32 %v845, %v849
    %v856 = vadd.s32 %v848, %v854
    %vm857 = vc.u32 %v855, %v851
    %v858 = vsel %vm857, 1, 0
    %v859 = vadd.s32 %v855, %v851
    %v860 = vadd.s32 %v856, %v858
    %v861 = vadd.s32 %v860, %v850
    %v862 = vadd.s32 %v861, %v852
    %v863 = vmul.u32 %v818, %v809
    %v864 = vadd.s32 %v840, %v859
    %vm865 = vc.u32 %v840, %v859
    %v866 = vadd.s32 %v862, 1
    %v867 = vsel %vm865, %v866, %v862
    %v868 = vadd.s32 %v863, %v867
    %v869 = vadd.s32 %v868, 536870912
    %v870 = vshrl.u32 %v869, 30
    %v871 = vshll.u32 %v870, 30
    %v872 = vsub.s32 %v868, %v871
    %vm873 = vcmp.lt.s32.totalorder %v872, 0
    %v874 = vsub.s32 0, %v872
    %v875 = vsel %vm873, %v874, %v872
    %v876 = vclz %v875
    %v877 = vsub.s32 %v876, 2
    %vm878 = vcmp.gt.s32.totalorder 0, %v877
    %v879 = vsel %vm878, 0, %v877
    %v880 = vsub.s32 32, %v879
    %v881 = vshll.u32 %v872, %v879
    %v882 = vshrl.u32 %v864, %v880
    %v883 = vor.u32 %v881, %v882
    %v884 = vsub.s32 4294967266, %v879
    %v885 = vadd.s32 %v884, 127
    %v886 = vshll.u32 %v885, 23
    %v887 = vor.u32 4788187, %v886
    %v888 = vand.u32 2147483647, %v887
    %v890 = vcvt.s32.f32 %v883
    %v891 = vmul.f32 %v890, %v888
    %v892 = vxor.u32 %v891, 2147483648
    %v893 = vsel %vm772, %v892, %v891
    %v894 = vsub.s32 4, %v870
    %v895 = vsel %vm772, %v894, %v870
    %v896 = vsel %vm771, %v279, %v893
    %v897 = vsel %vm771, 0, %v895
    %v898 = vmul.f32 %v896, %v896
    %v899 = vmul.f32 %v898, -0.001358992
    %v900 = vadd.f32 %v899, 0.041655596
    %v901 = vmul.f32 %v898, %v900
    %v902 = vadd.f32 %v901, -0.4999988
    %v903 = vmul.f32 %v898, %v902
    %v904 = vadd.f32 1.0, %v903
    %v905 = vmul.f32 %v896, %v896
    %v906 = vmul.f32 %v905, -0.00019511016
    %v907 = vadd.f32 %v906, 0.008332121
    %v908 = vmul.f32 %v905, %v907
    %v909 = vadd.f32 %v908, -0.16666654
    %v910 = vmul.f32 %v905, %v909
    %v911 = vadd.f32 %v910, 1.0
    %v912 = vmul.f32 %v911, %v896
    %vm913 = vweird.f32 %v279
    %v914 = vand.u32 %v897, 3
    %vm915 = vcmp.lt.s32.totalorder %v914, 2
    %vm916 = vcmp.eq.s32.totalorder %v914, 0
    %v917 = vxor.u32 %v912, 2147483648
    %v918 = vsel %vm916, %v904, %v917
    %vm919 = vcmp.eq.s32.totalorder %v914, 2
    %v920 = vxor.u32 %v904, 2147483648
    %v921 = vsel %vm919, %v920, %v912
    %v922 = vsel %vm915, %v918, %v921
    %v923 = vsel %vm913, nan, %v922
    %v924 = vand.u32 2147483647, %v280
    %vm925 = vcmp.le.f32.partialorder %v924, 0.7853982
    %vm926 = vcmp.lt.s32.totalorder %v280, 0
    %v927 = vand.u32 %v280, 2139095040
    %v928 = vshrl.u32 %v927, 23
    %v929 = vsub.s32 %v928, 127
    %v930 = vand.u32 2147483647, %v280
    %v931 = vand.u32 %v930, 8388607
    %v932 = vor.u32 %v931, 8388608
    %v933 = vsub.s32 0, %v932
    %v934 = vadd.s32 %v929, 1
    %vm935 = vcmp.gt.s32.totalorder %v934, 0
    %v936 = vsel %vm935, %v934, 0
    %v937 = vshrl.u32 %v936, 5
    %v938 = vand.u32 %v936, 31
    %v939 = vsub.s32 32, %v938
    %v940 = vshrl.u32 683565275, %v939
    %v941 = vshll.u32 683565275, %v938
    %v942 = vshrl.u32 2475754826, %v939
    %v943 = vor.u32 %v941, %v942
    %v944 = vshll.u32 2475754826, %v938
    %v945 = vshrl.u32 2131351028, %v939
    %v946 = vor.u32 %v944, %v945
    %v947 = vshll.u32 2131351028, %v938
    %v948 = vshrl.u32 2102212464, %v939
    %v949 = vor.u32 %v947, %v948
    %v950 = vshll.u32 2102212464, %v938
    %v951 = vshrl.u32 920167782, %v939
    %v952 = vor.u32 %v950, %v951
    %v953 = vshll.u32 920167782, %v938
    %v954 = vshrl.u32 1326507024, %v939
    %v955 = vor.u32 %v953, %v954
    %vm956 = vcmp.lt.s32.totalorder %v937, 1
    %vm957 = vcmp.lt.s32.totalorder %v937, 2
    %vm958 = vcmp.lt.s32.totalorder %v937, 3
    %vm959 = vcmp.lt.s32.totalorder %v937, 4
    %v960 = vsel %vm956, %v940, %v943
    %v961 = vsel %vm959, %v949, 2102212464
    %v962 = vsel %vm958, %v946, %v961
    %v963 = vsel %vm957, %v960, %v962
    %v964 = vsel %vm956, %v943, %v946
    %v965 = vsel %vm959, %v952, 920167782
    %v966 = vsel %vm958, %v949, %v965
    %v967 = vsel %vm957, %v964, %v966
    %v968 = vsel %vm956, %v946, %v949
    %v969 = vsel %vm959, %v955, 1326507024
    %v970 = vsel %vm958, %v952, %v969
    %v971 = vsel %vm957, %v968, %v970
    %v972 = vshll.u32 %v932, 8
    %v973 = vand.u32 %v972, 65535
    %v974 = vshrl.u32 %v972, 16
    %v975 = vand.u32 %v971, 65535
    %v976 = vshrl.u32 %v971, 16
    %v977 = vmul.u32 %v973, %v975
    %v978 = vmul.u32 %v973, %v976
    %v979 = vmul.u32 %v974, %v975
    %v980 = vmul.u32 %v974, %v976
    %v981 = vshll.u32 %v978, 16
    %v982 = vshrl.u32 %v978, 16
    %v983 = vshll.u32 %v979, 16
    %v984 = vshrl.u32 %v979, 16
    %vm985 = vc.u32 %v977, %v981
    %v986 = vsel %vm985, 1, 0
    %v987 = vadd.s32 %v977, %v981
    %v988 = vadd.s32 %v980, %v986
    %vm989 = vc.u32 %v987, %v983
    %v990 = vsel %vm989, 1, 0
    %v991 = vadd.s32 %v987, %v983
    %v992 = vadd.s32 %v988, %v990
    %v993 = vadd.s32 %v992, %v982
    %v994 = vadd.s32 %v993, %v984
    %v995 = vand.u32 %v972, 65535
    %v996 = vshrl.u32 %v972, 16
    %v997 = vand.u32 %v967, 65535
    %v998 = vshrl.u32 %v967, 16
    %v999 = vmul.u32 %v995, %v997
    %v1000 = vmul.u32 %v995, %v998
    %v1001 = vmul.u32 %v996, %v997
    %v1002 = vmul.u32 %v996, %v998
    %v1003 = vshll.u32 %v1000, 16
    %v1004 = vshrl.u32 %v1000, 16
    %v1005 = vshll.u32 %v1001, 16
    %v1006 = vshrl.u32 %v1001, 16
    %vm1007 = vc.u32 %v999, %v1003
    %v1008 = vsel %vm1007, 1, 0
    %v1009 = vadd.s32 %v999, %v1003
    %v1010 = vadd.s32 %v1002, %v1008
    %vm1011 = vc.u32 %v1009, %v1005
    %v1012 = vsel %vm1011, 1, 0
    %v1013 = vadd.s32 %v1009, %v1005
    %v1014 = vadd.s32 %v1010, %v1012
    %v1015 = vadd.s32 %v1014, %v1004
    %v1016 = vadd.s32 %v1015, %v1006
    %v1017 = vmul.u32 %v972, %v963
    %v1018 = vadd.s32 %v994, %v1013
    %vm1019 = vc.u32 %v994, %v1013
    %v1020 = vadd.s32 %v1016, 1
    %v1021 = vsel %vm1019, %v1020, %v1016
    %v1022 = vadd.s32 %v1017, %v1021
    %v1023 = vadd.s32 %v1022, 536870912
    %v1024 = vshrl.u32 %v1023, 30
    %v1025 = vshll.u32 %v1024, 30
    %v1026 = vsub.s32 %v1022, %v1025
    %vm1027 = vcmp.lt.s32.totalorder %v1026, 0
    %v1028 = vsub.s32 0, %v1026
    %v1029 = vsel %vm1027, %v1028, %v1026
    %v1030 = vclz %v1029
    %v1031 = vsub.s32 %v1030, 2
    %vm1032 = vcmp.gt.s32.totalorder 0, %v1031
    %v1033 = vsel %vm1032, 0, %v1031
    %v1034 = vsub.s32 32, %v1033
    %v1035 = vshll.u32 %v1026, %v1033
    %v1036 = vshrl.u32 %v1018, %v1034
    %v1037 = vor.u32 %v1035, %v1036
    %v1038 = vsub.s32 4294967266, %v1033
    %v1039 = vadd.s32 %v1038, 127
    %v1040 = vshll.u32 %v1039, 23
    %v1041 = vor.u32 4788187, %v1040
    %v1042 = vand.u32 2147483647, %v1041
    %v1044 = vcvt.s32.f32 %v1037
    %v1045 = vmul.f32 %v1044, %v1042
    %v1046 = vxor.u32 %v1045, 2147483648
    %v1047 = vsel %vm926, %v1046, %v1045
    %v1048 = vsub.s32 4, %v1024
    %v1049 = vsel %vm926, %v1048, %v1024
    %v1050 = vsel %vm925, %v280, %v1047
    %v1051 = vsel %vm925, 0, %v1049
    %v1052 = vmul.f32 %v1050, %v1050
    %v1053 = vmul.f32 %v1052, -0.001358992
    %v1054 = vadd.f32 %v1053, 0.041655596
    %v1055 = vmul.f32 %v1052, %v1054
    %v1056 = vadd.f32 %v1055, -0.4999988
    %v1057 = vmul.f32 %v1052, %v1056
    %v1058 = vadd.f32 1.0, %v1057
    %v1059 = vmul.f32 %v1050, %v1050
    %v1060 = vmul.f32 %v1059, -0.00019511016
    %v1061 = vadd.f32 %v1060, 0.008332121
    %v1062 = vmul.f32 %v1059, %v1061
    %v1063 = vadd.f32 %v1062, -0.16666654
    %v1064 = vmul.f32 %v1059, %v1063
    %v1065 = vadd.f32 %v1064, 1.0
    %v1066 = vmul.f32 %v1065, %v1050
    %vm1067 = vweird.f32 %v280
    %v1068 = vand.u32 %v1051, 3
    %vm1069 = vcmp.lt.s32.totalorder %v1068, 2
    %vm1070 = vcmp.eq.s32.totalorder %v1068, 0
    %v1071 = vxor.u32 %v1066, 2147483648
    %v1072 = vsel %vm1070, %v1058, %v1071
    %vm1073 = vcmp.eq.s32.totalorder %v1068, 2
    %v1074 = vxor.u32 %v1058, 2147483648
    %v1075 = vsel %vm1073, %v1074, %v1066
    %v1076 = vsel %vm1069, %v1072, %v1075
    %v1077 = vsel %vm1067, nan, %v1076
    %v1078 = vand.u32 2147483647, %v281
    %vm1079 = vcmp.le.f32.partialorder %v1078, 0.7853982
    %vm1080 = vcmp.lt.s32.totalorder %v281, 0
    %v1081 = vand.u32 %v281, 2139095040
    %v1082 = vshrl.u32 %v1081, 23
    %v1083 = vsub.s32 %v1082, 127
    %v1084 = vand.u32 2147483647, %v281
    %v1085 = vand.u32 %v1084, 8388607
    %v1086 = vor.u32 %v1085, 8388608
    %v1087 = vsub.s32 0, %v1086
    %v1088 = vadd.s32 %v1083, 1
    %vm1089 = vcmp.gt.s32.totalorder %v1088, 0
    %v1090 = vsel %vm1089, %v1088, 0
    %v1091 = vshrl.u32 %v1090, 5
    %v1092 = vand.u32 %v1090, 31
    %v1093 = vsub.s32 32, %v1092
    %v1094 = vshrl.u32 683565275, %v1093
    %v1095 = vshll.u32 683565275, %v1092
    %v1096 = vshrl.u32 2475754826, %v1093
    %v1097 = vor.u32 %v1095, %v1096
    %v1098 = vshll.u32 2475754826, %v1092
    %v1099 = vshrl.u32 2131351028, %v1093
    %v1100 = vor.u32 %v1098, %v1099
    %v1101 = vshll.u32 2131351028, %v1092
    %v1102 = vshrl.u32 2102212464, %v1093
    %v1103 = vor.u32 %v1101, %v1102
    %v1104 = vshll.u32 2102212464, %v1092
    %v1105 = vshrl.u32 920167782, %v1093
    %v1106 = vor.u32 %v1104, %v1105
    %v1107 = vshll.u32 920167782, %v1092
    %v1108 = vshrl.u32 1326507024, %v1093
    %v1109 = vor.u32 %v1107, %v1108
    %vm1110 = vcmp.lt.s32.totalorder %v1091, 1
    %vm1111 = vcmp.lt.s32.totalorder %v1091, 2
    %vm1112 = vcmp.lt.s32.totalorder %v1091, 3
    %vm1113 = vcmp.lt.s32.totalorder %v1091, 4
    %v1114 = vsel %vm1110, %v1094, %v1097
    %v1115 = vsel %vm1113, %v1103, 2102212464
    %v1116 = vsel %vm1112, %v1100, %v1115
    %v1117 = vsel %vm1111, %v1114, %v1116
    %v1118 = vsel %vm1110, %v1097, %v1100
    %v1119 = vsel %vm1113, %v1106, 920167782
    %v1120 = vsel %vm1112, %v1103, %v1119
    %v1121 = vsel %vm1111, %v1118, %v1120
    %v1122 = vsel %vm1110, %v1100, %v1103
    %v1123 = vsel %vm1113, %v1109, 1326507024
    %v1124 = vsel %vm1112, %v1106, %v1123
    %v1125 = vsel %vm1111, %v1122, %v1124
    %v1126 = vshll.u32 %v1086, 8
    %v1127 = vand.u32 %v1126, 65535
    %v1128 = vshrl.u32 %v1126, 16
    %v1129 = vand.u32 %v1125, 65535
    %v1130 = vshrl.u32 %v1125, 16
    %v1131 = vmul.u32 %v1127, %v1129
    %v1132 = vmul.u32 %v1127, %v1130
    %v1133 = vmul.u32 %v1128, %v1129
    %v1134 = vmul.u32 %v1128, %v1130
    %v1135 = vshll.u32 %v1132, 16
    %v1136 = vshrl.u32 %v1132, 16
    %v1137 = vshll.u32 %v1133, 16
    %v1138 = vshrl.u32 %v1133, 16
    %vm1139 = vc.u32 %v1131, %v1135
    %v1140 = vsel %vm1139, 1, 0
    %v1141 = vadd.s32 %v1131, %v1135
    %v1142 = vadd.s32 %v1134, %v1140
    %vm1143 = vc.u32 %v1141, %v1137
    %v1144 = vsel %vm1143, 1, 0
    %v1145 = vadd.s32 %v1141, %v1137
    %v1146 = vadd.s32 %v1142, %v1144
    %v1147 = vadd.s32 %v1146, %v1136
    %v1148 = vadd.s32 %v1147, %v1138
    %v1149 = vand.u32 %v1126, 65535
    %v1150 = vshrl.u32 %v1126, 16
    %v1151 = vand.u32 %v1121, 65535
    %v1152 = vshrl.u32 %v1121, 16
    %v1153 = vmul.u32 %v1149, %v1151
    %v1154 = vmul.u32 %v1149, %v1152
    %v1155 = vmul.u32 %v1150, %v1151
    %v1156 = vmul.u32 %v1150, %v1152
    %v1157 = vshll.u32 %v1154, 16
    %v1158 = vshrl.u32 %v1154, 16
    %v1159 = vshll.u32 %v1155, 16
    %v1160 = vshrl.u32 %v1155, 16
    %vm1161 = vc.u32 %v1153, %v1157
    %v1162 = vsel %vm1161, 1, 0
    %v1163 = vadd.s32 %v1153, %v1157
    %v1164 = vadd.s32 %v1156, %v1162
    %vm1165 = vc.u32 %v1163, %v1159
    %v1166 = vsel %vm1165, 1, 0
    %v1167 = vadd.s32 %v1163, %v1159
    %v1168 = vadd.s32 %v1164, %v1166
    %v1169 = vadd.s32 %v1168, %v1158
    %v1170 = vadd.s32 %v1169, %v1160
    %v1171 = vmul.u32 %v1126, %v1117
    %v1172 = vadd.s32 %v1148, %v1167
    %vm1173 = vc.u32 %v1148, %v1167
    %v1174 = vadd.s32 %v1170, 1
    %v1175 = vsel %vm1173, %v1174, %v1170
    %v1176 = vadd.s32 %v1171, %v1175
    %v1177 = vadd.s32 %v1176, 536870912
    %v1178 = vshrl.u32 %v1177, 30
    %v1179 = vshll.u32 %v1178, 30
    %v1180 = vsub.s32 %v1176, %v1179
    %vm1181 = vcmp.lt.s32.totalorder %v1180, 0
    %v1182 = vsub.s32 0, %v1180
    %v1183 = vsel %vm1181, %v1182, %v1180
    %v1184 = vclz %v1183
    %v1185 = vsub.s32 %v1184, 2
    %vm1186 = vcmp.gt.s32.totalorder 0, %v1185
    %v1187 = vsel %vm1186, 0, %v1185
    %v1188 = vsub.s32 32, %v1187
    %v1189 = vshll.u32 %v1180, %v1187
    %v1190 = vshrl.u32 %v1172, %v1188
    %v1191 = vor.u32 %v1189, %v1190
    %v1192 = vsub.s32 4294967266, %v1187
    %v1193 = vadd.s32 %v1192, 127
    %v1194 = vshll.u32 %v1193, 23
    %v1195 = vor.u32 4788187, %v1194
    %v1196 = vand.u32 2147483647, %v1195
    %v1198 = vcvt.s32.f32 %v1191
    %v1199 = vmul.f32 %v1198, %v1196
    %v1200 = vxor.u32 %v1199, 2147483648
    %v1201 = vsel %vm1080, %v1200, %v1199
    %v1202 = vsub.s32 4, %v1178
    %v1203 = vsel %vm1080, %v1202, %v1178
    %v1204 = vsel %vm1079, %v281, %v1201
    %v1205 = vsel %vm1079, 0, %v1203
    %v1206 = vmul.f32 %v1204, %v1204
    %v1207 = vmul.f32 %v1206, -0.001358992
    %v1208 = vadd.f32 %v1207, 0.041655596
    %v1209 = vmul.f32 %v1206, %v1208
    %v1210 = vadd.f32 %v1209, -0.4999988
    %v1211 = vmul.f32 %v1206, %v1210
    %v1212 = vadd.f32 1.0, %v1211
    %v1213 = vmul.f32 %v1204, %v1204
    %v1214 = vmul.f32 %v1213, -0.00019511016
    %v1215 = vadd.f32 %v1214, 0.008332121
    %v1216 = vmul.f32 %v1213, %v1215
    %v1217 = vadd.f32 %v1216, -0.16666654
    %v1218 = vmul.f32 %v1213, %v1217
    %v1219 = vadd.f32 %v1218, 1.0
    %v1220 = vmul.f32 %v1219, %v1204
    %vm1221 = vweird.f32 %v281
    %v1222 = vand.u32 %v1205, 3
    %vm1223 = vcmp.lt.s32.totalorder %v1222, 2
    %vm1224 = vcmp.eq.s32.totalorder %v1222, 0
    %v1225 = vxor.u32 %v1220, 2147483648
    %v1226 = vsel %vm1224, %v1212, %v1225
    %vm1227 = vcmp.eq.s32.totalorder %v1222, 2
    %v1228 = vxor.u32 %v1212, 2147483648
    %v1229 = vsel %vm1227, %v1228, %v1220
    %v1230 = vsel %vm1223, %v1226, %v1229
    %v1231 = vsel %vm1221, nan, %v1230
    %v1232 = vand.u32 2147483647, %v282
    %vm1233 = vcmp.le.f32.partialorder %v1232, 0.7853982
    %vm1234 = vcmp.lt.s32.totalorder %v282, 0
    %v1235 = vand.u32 %v282, 2139095040
    %v1236 = vshrl.u32 %v1235, 23
    %v1237 = vsub.s32 %v1236, 127
    %v1238 = vand.u32 2147483647, %v282
    %v1239 = vand.u32 %v1238, 8388607
    %v1240 = vor.u32 %v1239, 8388608
    %v1241 = vsub.s32 0, %v1240
    %v1242 = vadd.s32 %v1237, 1
    %vm1243 = vcmp.gt.s32.totalorder %v1242, 0
    %v1244 = vsel %vm1243, %v1242, 0
    %v1245 = vshrl.u32 %v1244, 5
    %v1246 = vand.u32 %v1244, 31
    %v1247 = vsub.s32 32, %v1246
    %v1248 = vshrl.u32 683565275, %v1247
    %v1249 = vshll.u32 683565275, %v1246
    %v1250 = vshrl.u32 2475754826, %v1247
    %v1251 = vor.u32 %v1249, %v1250
    %v1252 = vshll.u32 2475754826, %v1246
    %v1253 = vshrl.u32 2131351028, %v1247
    %v1254 = vor.u32 %v1252, %v1253
    %v1255 = vshll.u32 2131351028, %v1246
    %v1256 = vshrl.u32 2102212464, %v1247
    %v1257 = vor.u32 %v1255, %v1256
    %v1258 = vshll.u32 2102212464, %v1246
    %v1259 = vshrl.u32 920167782, %v1247
    %v1260 = vor.u32 %v1258, %v1259
    %v1261 = vshll.u32 920167782, %v1246
    %v1262 = vshrl.u32 1326507024, %v1247
    %v1263 = vor.u32 %v1261, %v1262
    %vm1264 = vcmp.lt.s32.totalorder %v1245, 1
    %vm1265 = vcmp.lt.s32.totalorder %v1245, 2
    %vm1266 = vcmp.lt.s32.totalorder %v1245, 3
    %vm1267 = vcmp.lt.s32.totalorder %v1245, 4
    %v1268 = vsel %vm1264, %v1248, %v1251
    %v1269 = vsel %vm1267, %v1257, 2102212464
    %v1270 = vsel %vm1266, %v1254, %v1269
    %v1271 = vsel %vm1265, %v1268, %v1270
    %v1272 = vsel %vm1264, %v1251, %v1254
    %v1273 = vsel %vm1267, %v1260, 920167782
    %v1274 = vsel %vm1266, %v1257, %v1273
    %v1275 = vsel %vm1265, %v1272, %v1274
    %v1276 = vsel %vm1264, %v1254, %v1257
    %v1277 = vsel %vm1267, %v1263, 1326507024
    %v1278 = vsel %vm1266, %v1260, %v1277
    %v1279 = vsel %vm1265, %v1276, %v1278
    %v1280 = vshll.u32 %v1240, 8
    %v1281 = vand.u32 %v1280, 65535
    %v1282 = vshrl.u32 %v1280, 16
    %v1283 = vand.u32 %v1279, 65535
    %v1284 = vshrl.u32 %v1279, 16
    %v1285 = vmul.u32 %v1281, %v1283
    %v1286 = vmul.u32 %v1281, %v1284
    %v1287 = vmul.u32 %v1282, %v1283
    %v1288 = vmul.u32 %v1282, %v1284
    %v1289 = vshll.u32 %v1286, 16
    %v1290 = vshrl.u32 %v1286, 16
    %v1291 = vshll.u32 %v1287, 16
    %v1292 = vshrl.u32 %v1287, 16
    %vm1293 = vc.u32 %v1285, %v1289
    %v1294 = vsel %vm1293, 1, 0
    %v1295 = vadd.s32 %v1285, %v1289
    %v1296 = vadd.s32 %v1288, %v1294
    %vm1297 = vc.u32 %v1295, %v1291
    %v1298 = vsel %vm1297, 1, 0
    %v1299 = vadd.s32 %v1295, %v1291
    %v1300 = vadd.s32 %v1296, %v1298
    %v1301 = vadd.s32 %v1300, %v1290
    %v1302 = vadd.s32 %v1301, %v1292
    %v1303 = vand.u32 %v1280, 65535
    %v1304 = vshrl.u32 %v1280, 16
    %v1305 = vand.u32 %v1275, 65535
    %v1306 = vshrl.u32 %v1275, 16
    %v1307 = vmul.u32 %v1303, %v1305
    %v1308 = vmul.u32 %v1303, %v1306
    %v1309 = vmul.u32 %v1304, %v1305
    %v1310 = vmul.u32 %v1304, %v1306
    %v1311 = vshll.u32 %v1308, 16
    %v1312 = vshrl.u32 %v1308, 16
    %v1313 = vshll.u32 %v1309, 16
    %v1314 = vshrl.u32 %v1309, 16
    %vm1315 = vc.u32 %v1307, %v1311
    %v1316 = vsel %vm1315, 1, 0
    %v1317 = vadd.s32 %v1307, %v1311
    %v1318 = vadd.s32 %v1310, %v1316
    %vm1319 = vc.u32 %v1317, %v1313
    %v1320 = vsel %vm1319, 1, 0
    %v1321 = vadd.s32 %v1317, %v1313
    %v1322 = vadd.s32 %v1318, %v1320
    %v1323 = vadd.s32 %v1322, %v1312
    %v1324 = vadd.s32 %v1323, %v1314
    %v1325 = vmul.u32 %v1280, %v1271
    %v1326 = vadd.s32 %v1302, %v1321
    %vm1327 = vc.u32 %v1302, %v1321
    %v1328 = vadd.s32 %v1324, 1
    %v1329 = vsel %vm1327, %v1328, %v1324
    %v1330 = vadd.s32 %v1325, %v1329
    %v1331 = vadd.s32 %v1330, 536870912
    %v1332 = vshrl.u32 %v1331, 30
    %v1333 = vshll.u32 %v1332, 30
    %v1334 = vsub.s32 %v1330, %v1333
    %vm1335 = vcmp.lt.s32.totalorder %v1334, 0
    %v1336 = vsub.s32 0, %v1334
    %v1337 = vsel %vm1335, %v1336, %v1334
    %v1338 = vclz %v1337
    %v1339 = vsub.s32 %v1338, 2
    %vm1340 = vcmp.gt.s32.totalorder 0, %v1339
    %v1341 = vsel %vm1340, 0, %v1339
    %v1342 = vsub.s32 32, %v1341
    %v1343 = vshll.u32 %v1334, %v1341
    %v1344 = vshrl.u32 %v1326, %v1342
    %v1345 = vor.u32 %v1343, %v1344
    %v1346 = vsub.s32 4294967266, %v1341
    %v1347 = vadd.s32 %v1346, 127
    %v1348 = vshll.u32 %v1347, 23
    %v1349 = vor.u32 4788187, %v1348
    %v1350 = vand.u32 2147483647, %v1349
    %v1352 = vcvt.s32.f32 %v1345
    %v1353 = vmul.f32 %v1352, %v1350
    %v1354 = vxor.u32 %v1353, 2147483648
    %v1355 = vsel %vm1234, %v1354, %v1353
    %v1356 = vsub.s32 4, %v1332
    %v1357 = vsel %vm1234, %v1356, %v1332
    %v1358 = vsel %vm1233, %v282, %v1355
    %v1359 = vsel %vm1233, 0, %v1357
    %v1360 = vmul.f32 %v1358, %v1358
    %v1361 = vmul.f32 %v1360, -0.001358992
    %v1362 = vadd.f32 %v1361, 0.041655596
    %v1363 = vmul.f32 %v1360, %v1362
    %v1364 = vadd.f32 %v1363, -0.4999988
    %v1365 = vmul.f32 %v1360, %v1364
    %v1366 = vadd.f32 1.0, %v1365
    %v1367 = vmul.f32 %v1358, %v1358
    %v1368 = vmul.f32 %v1367, -0.00019511016
    %v1369 = vadd.f32 %v1368, 0.008332121
    %v1370 = vmul.f32 %v1367, %v1369
    %v1371 = vadd.f32 %v1370, -0.16666654
    %v1372 = vmul.f32 %v1367, %v1371
    %v1373 = vadd.f32 %v1372, 1.0
    %v1374 = vmul.f32 %v1373, %v1358
    %vm1375 = vweird.f32 %v282
    %v1376 = vand.u32 %v1359, 3
    %vm1377 = vcmp.lt.s32.totalorder %v1376, 2
    %vm1378 = vcmp.eq.s32.totalorder %v1376, 0
    %v1379 = vxor.u32 %v1374, 2147483648
    %v1380 = vsel %vm1378, %v1366, %v1379
    %vm1381 = vcmp.eq.s32.totalorder %v1376, 2
    %v1382 = vxor.u32 %v1366, 2147483648
    %v1383 = vsel %vm1381, %v1382, %v1374
    %v1384 = vsel %vm1377, %v1380, %v1383
    %v1385 = vsel %vm1375, nan, %v1384
    %v1386 = vand.u32 2147483647, %v283
    %vm1387 = vcmp.le.f32.partialorder %v1386, 0.7853982
    %vm1388 = vcmp.lt.s32.totalorder %v283, 0
    %v1389 = vand.u32 %v283, 2139095040
    %v1390 = vshrl.u32 %v1389, 23
    %v1391 = vsub.s32 %v1390, 127
    %v1392 = vand.u32 2147483647, %v283
    %v1393 = vand.u32 %v1392, 8388607
    %v1394 = vor.u32 %v1393, 8388608
    %v1395 = vsub.s32 0, %v1394
    %v1396 = vadd.s32 %v1391, 1
    %vm1397 = vcmp.gt.s32.totalorder %v1396, 0
    %v1398 = vsel %vm1397, %v1396, 0
    %v1399 = vshrl.u32 %v1398, 5
    %v1400 = vand.u32 %v1398, 31
    %v1401 = vsub.s32 32, %v1400
    %v1402 = vshrl.u32 683565275, %v1401
    %v1403 = vshll.u32 683565275, %v1400
    %v1404 = vshrl.u32 2475754826, %v1401
    %v1405 = vor.u32 %v1403, %v1404
    %v1406 = vshll.u32 2475754826, %v1400
    %v1407 = vshrl.u32 2131351028, %v1401
    %v1408 = vor.u32 %v1406, %v1407
    %v1409 = vshll.u32 2131351028, %v1400
    %v1410 = vshrl.u32 2102212464, %v1401
    %v1411 = vor.u32 %v1409, %v1410
    %v1412 = vshll.u32 2102212464, %v1400
    %v1413 = vshrl.u32 920167782, %v1401
    %v1414 = vor.u32 %v1412, %v1413
    %v1415 = vshll.u32 920167782, %v1400
    %v1416 = vshrl.u32 1326507024, %v1401
    %v1417 = vor.u32 %v1415, %v1416
    %vm1418 = vcmp.lt.s32.totalorder %v1399, 1
    %vm1419 = vcmp.lt.s32.totalorder %v1399, 2
    %vm1420 = vcmp.lt.s32.totalorder %v1399, 3
    %vm1421 = vcmp.lt.s32.totalorder %v1399, 4
    %v1422 = vsel %vm1418, %v1402, %v1405
    %v1423 = vsel %vm1421, %v1411, 2102212464
    %v1424 = vsel %vm1420, %v1408, %v1423
    %v1425 = vsel %vm1419, %v1422, %v1424
    %v1426 = vsel %vm1418, %v1405, %v1408
    %v1427 = vsel %vm1421, %v1414, 920167782
    %v1428 = vsel %vm1420, %v1411, %v1427
    %v1429 = vsel %vm1419, %v1426, %v1428
    %v1430 = vsel %vm1418, %v1408, %v1411
    %v1431 = vsel %vm1421, %v1417, 1326507024
    %v1432 = vsel %vm1420, %v1414, %v1431
    %v1433 = vsel %vm1419, %v1430, %v1432
    %v1434 = vshll.u32 %v1394, 8
    %v1435 = vand.u32 %v1434, 65535
    %v1436 = vshrl.u32 %v1434, 16
    %v1437 = vand.u32 %v1433, 65535
    %v1438 = vshrl.u32 %v1433, 16
    %v1439 = vmul.u32 %v1435, %v1437
    %v1440 = vmul.u32 %v1435, %v1438
    %v1441 = vmul.u32 %v1436, %v1437
    %v1442 = vmul.u32 %v1436, %v1438
    %v1443 = vshll.u32 %v1440, 16
    %v1444 = vshrl.u32 %v1440, 16
    %v1445 = vshll.u32 %v1441, 16
    %v1446 = vshrl.u32 %v1441, 16
    %vm1447 = vc.u32 %v1439, %v1443
    %v1448 = vsel %vm1447, 1, 0
    %v1449 = vadd.s32 %v1439, %v1443
    %v1450 = vadd.s32 %v1442, %v1448
    %vm1451 = vc.u32 %v1449, %v1445
    %v1452 = vsel %vm1451, 1, 0
    %v1453 = vadd.s32 %v1449, %v1445
    %v1454 = vadd.s32 %v1450, %v1452
    %v1455 = vadd.s32 %v1454, %v1444
    %v1456 = vadd.s32 %v1455, %v1446
    %v1457 = vand.u32 %v1434, 65535
    %v1458 = vshrl.u32 %v1434, 16
    %v1459 = vand.u32 %v1429, 65535
    %v1460 = vshrl.u32 %v1429, 16
    %v1461 = vmul.u32 %v1457, %v1459
    %v1462 = vmul.u32 %v1457, %v1460
    %v1463 = vmul.u32 %v1458, %v1459
    %v1464 = vmul.u32 %v1458, %v1460
    %v1465 = vshll.u32 %v1462, 16
    %v1466 = vshrl.u32 %v1462, 16
    %v1467 = vshll.u32 %v1463, 16
    %v1468 = vshrl.u32 %v1463, 16
    %vm1469 = vc.u32 %v1461, %v1465
    %v1470 = vsel %vm1469, 1, 0
    %v1471 = vadd.s32 %v1461, %v1465
    %v1472 = vadd.s32 %v1464, %v1470
    %vm1473 = vc.u32 %v1471, %v1467
    %v1474 = vsel %vm1473, 1, 0
    %v1475 = vadd.s32 %v1471, %v1467
    %v1476 = vadd.s32 %v1472, %v1474
    %v1477 = vadd.s32 %v1476, %v1466
    %v1478 = vadd.s32 %v1477, %v1468
    %v1479 = vmul.u32 %v1434, %v1425
    %v1480 = vadd.s32 %v1456, %v1475
    %vm1481 = vc.u32 %v1456, %v1475
    %v1482 = vadd.s32 %v1478, 1
    %v1483 = vsel %vm1481, %v1482, %v1478
    %v1484 = vadd.s32 %v1479, %v1483
    %v1485 = vadd.s32 %v1484, 536870912
    %v1486 = vshrl.u32 %v1485, 30
    %v1487 = vshll.u32 %v1486, 30
    %v1488 = vsub.s32 %v1484, %v1487
    %vm1489 = vcmp.lt.s32.totalorder %v1488, 0
    %v1490 = vsub.s32 0, %v1488
    %v1491 = vsel %vm1489, %v1490, %v1488
    %v1492 = vclz %v1491
    %v1493 = vsub.s32 %v1492, 2
    %vm1494 = vcmp.gt.s32.totalorder 0, %v1493
    %v1495 = vsel %vm1494, 0, %v1493
    %v1496 = vsub.s32 32, %v1495
    %v1497 = vshll.u32 %v1488, %v1495
    %v1498 = vshrl.u32 %v1480, %v1496
    %v1499 = vor.u32 %v1497, %v1498
    %v1500 = vsub.s32 4294967266, %v1495
    %v1501 = vadd.s32 %v1500, 127
    %v1502 = vshll.u32 %v1501, 23
    %v1503 = vor.u32 4788187, %v1502
    %v1504 = vand.u32 2147483647, %v1503
    %v1506 = vcvt.s32.f32 %v1499
    %v1507 = vmul.f32 %v1506, %v1504
    %v1508 = vxor.u32 %v1507, 2147483648
    %v1509 = vsel %vm1388, %v1508, %v1507
    %v1510 = vsub.s32 4, %v1486
    %v1511 = vsel %vm1388, %v1510, %v1486
    %v1512 = vsel %vm1387, %v283, %v1509
    %v1513 = vsel %vm1387, 0, %v1511
    %v1514 = vmul.f32 %v1512, %v1512
    %v1515 = vmul.f32 %v1514, -0.001358992
    %v1516 = vadd.f32 %v1515, 0.041655596
    %v1517 = vmul.f32 %v1514, %v1516
    %v1518 = vadd.f32 %v1517, -0.4999988
    %v1519 = vmul.f32 %v1514, %v1518
    %v1520 = vadd.f32 1.0, %v1519
    %v1521 = vmul.f32 %v1512, %v1512
    %v1522 = vmul.f32 %v1521, -0.00019511016
    %v1523 = vadd.f32 %v1522, 0.008332121
    %v1524 = vmul.f32 %v1521, %v1523
    %v1525 = vadd.f32 %v1524, -0.16666654
    %v1526 = vmul.f32 %v1521, %v1525
    %v1527 = vadd.f32 %v1526, 1.0
    %v1528 = vmul.f32 %v1527, %v1512
    %vm1529 = vweird.f32 %v283
    %v1530 = vand.u32 %v1513, 3
    %vm1531 = vcmp.lt.s32.totalorder %v1530, 2
    %vm1532 = vcmp.eq.s32.totalorder %v1530, 0
    %v1533 = vxor.u32 %v1528, 2147483648
    %v1534 = vsel %vm1532, %v1520, %v1533
    %vm1535 = vcmp.eq.s32.totalorder %v1530, 2
    %v1536 = vxor.u32 %v1520, 2147483648
    %v1537 = vsel %vm1535, %v1536, %v1528
    %v1538 = vsel %vm1531, %v1534, %v1537
    %v1539 = vsel %vm1529, nan, %v1538
    %v1540 = vand.u32 2147483647, %v284
    %vm1541 = vcmp.le.f32.partialorder %v1540, 0.7853982
    %vm1542 = vcmp.lt.s32.totalorder %v284, 0
    %v1543 = vand.u32 %v284, 2139095040
    %v1544 = vshrl.u32 %v1543, 23
    %v1545 = vsub.s32 %v1544, 127
    %v1546 = vand.u32 2147483647, %v284
    %v1547 = vand.u32 %v1546, 8388607
    %v1548 = vor.u32 %v1547, 8388608
    %v1549 = vsub.s32 0, %v1548
    %v1550 = vadd.s32 %v1545, 1
    %vm1551 = vcmp.gt.s32.totalorder %v1550, 0
    %v1552 = vsel %vm1551, %v1550, 0
    %v1553 = vshrl.u32 %v1552, 5
    %v1554 = vand.u32 %v1552, 31
    %v1555 = vsub.s32 32, %v1554
    %v1556 = vshrl.u32 683565275, %v1555
    %v1557 = vshll.u32 683565275, %v1554
    %v1558 = vshrl.u32 2475754826, %v1555
    %v1559 = vor.u32 %v1557, %v1558
    %v1560 = vshll.u32 2475754826, %v1554
    %v1561 = vshrl.u32 2131351028, %v1555
    %v1562 = vor.u32 %v1560, %v1561
    %v1563 = vshll.u32 2131351028, %v1554
    %v1564 = vshrl.u32 2102212464, %v1555
    %v1565 = vor.u32 %v1563, %v1564
    %v1566 = vshll.u32 2102212464, %v1554
    %v1567 = vshrl.u32 920167782, %v1555
    %v1568 = vor.u32 %v1566, %v1567
    %v1569 = vshll.u32 920167782, %v1554
    %v1570 = vshrl.u32 1326507024, %v1555
    %v1571 = vor.u32 %v1569, %v1570
    %vm1572 = vcmp.lt.s32.totalorder %v1553, 1
    %vm1573 = vcmp.lt.s32.totalorder %v1553, 2
    %vm1574 = vcmp.lt.s32.totalorder %v1553, 3
    %vm1575 = vcmp.lt.s32.totalorder %v1553, 4
    %v1576 = vsel %vm1572, %v1556, %v1559
    %v1577 = vsel %vm1575, %v1565, 2102212464
    %v1578 = vsel %vm1574, %v1562, %v1577
    %v1579 = vsel %vm1573, %v1576, %v1578
    %v1580 = vsel %vm1572, %v1559, %v1562
    %v1581 = vsel %vm1575, %v1568, 920167782
    %v1582 = vsel %vm1574, %v1565, %v1581
    %v1583 = vsel %vm1573, %v1580, %v1582
    %v1584 = vsel %vm1572, %v1562, %v1565
    %v1585 = vsel %vm1575, %v1571, 1326507024
    %v1586 = vsel %vm1574, %v1568, %v1585
    %v1587 = vsel %vm1573, %v1584, %v1586
    %v1588 = vshll.u32 %v1548, 8
    %v1589 = vand.u32 %v1588, 65535
    %v1590 = vshrl.u32 %v1588, 16
    %v1591 = vand.u32 %v1587, 65535
    %v1592 = vshrl.u32 %v1587, 16
    %v1593 = vmul.u32 %v1589, %v1591
    %v1594 = vmul.u32 %v1589, %v1592
    %v1595 = vmul.u32 %v1590, %v1591
    %v1596 = vmul.u32 %v1590, %v1592
    %v1597 = vshll.u32 %v1594, 16
    %v1598 = vshrl.u32 %v1594, 16
    %v1599 = vshll.u32 %v1595, 16
    %v1600 = vshrl.u32 %v1595, 16
    %vm1601 = vc.u32 %v1593, %v1597
    %v1602 = vsel %vm1601, 1, 0
    %v1603 = vadd.s32 %v1593, %v1597
    %v1604 = vadd.s32 %v1596, %v1602
    %vm1605 = vc.u32 %v1603, %v1599
    %v1606 = vsel %vm1605, 1, 0
    %v1607 = vadd.s32 %v1603, %v1599
    %v1608 = vadd.s32 %v1604, %v1606
    %v1609 = vadd.s32 %v1608, %v1598
    %v1610 = vadd.s32 %v1609, %v1600
    %v1611 = vand.u32 %v1588, 65535
    %v1612 = vshrl.u32 %v1588, 16
    %v1613 = vand.u32 %v1583, 65535
    %v1614 = vshrl.u32 %v1583, 16
    %v1615 = vmul.u32 %v1611, %v1613
    %v1616 = vmul.u32 %v1611, %v1614
    %v1617 = vmul.u32 %v1612, %v1613
    %v1618 = vmul.u32 %v1612, %v1614
    %v1619 = vshll.u32 %v1616, 16
    %v1620 = vshrl.u32 %v1616, 16
    %v1621 = vshll.u32 %v1617, 16
    %v1622 = vshrl.u32 %v1617, 16
    %vm1623 = vc.u32 %v1615, %v1619
    %v1624 = vsel %vm1623, 1, 0
    %v1625 = vadd.s32 %v1615, %v1619
    %v1626 = vadd.s32 %v1618, %v1624
    %vm1627 = vc.u32 %v1625, %v1621
    %v1628 = vsel %vm1627, 1, 0
    %v1629 = vadd.s32 %v1625, %v1621
    %v1630 = vadd.s32 %v1626, %v1628
    %v1631 = vadd.s32 %v1630, %v1620
    %v1632 = vadd.s32 %v1631, %v1622
    %v1633 = vmul.u32 %v1588, %v1579
    %v1634 = vadd.s32 %v1610, %v1629
    %vm1635 = vc.u32 %v1610, %v1629
    %v1636 = vadd.s32 %v1632, 1
    %v1637 = vsel %vm1635, %v1636, %v1632
    %v1638 = vadd.s32 %v1633, %v1637
    %v1639 = vadd.s32 %v1638, 536870912
    %v1640 = vshrl.u32 %v1639, 30
    %v1641 = vshll.u32 %v1640, 30
    %v1642 = vsub.s32 %v1638, %v1641
    %vm1643 = vcmp.lt.s32.totalorder %v1642, 0
    %v1644 = vsub.s32 0, %v1642
    %v1645 = vsel %vm1643, %v1644, %v1642
    %v1646 = vclz %v1645
    %v1647 = vsub.s32 %v1646, 2
    %vm1648 = vcmp.gt.s32.totalorder 0, %v1647
    %v1649 = vsel %vm1648, 0, %v1647
    %v1650 = vsub.s32 32, %v1649
    %v1651 = vshll.u32 %v1642, %v1649
    %v1652 = vshrl.u32 %v1634, %v1650
    %v1653 = vor.u32 %v1651, %v1652
    %v1654 = vsub.s32 4294967266, %v1649
    %v1655 = vadd.s32 %v1654, 127
    %v1656 = vshll.u32 %v1655, 23
    %v1657 = vor.u32 4788187, %v1656
    %v1658 = vand.u32 2147483647, %v1657
    %v1660 = vcvt.s32.f32 %v1653
    %v1661 = vmul.f32 %v1660, %v1658
    %v1662 = vxor.u32 %v1661, 2147483648
    %v1663 = vsel %vm1542, %v1662, %v1661
    %v1664 = vsub.s32 4, %v1640
    %v1665 = vsel %vm1542, %v1664, %v1640
    %v1666 = vsel %vm1541, %v284, %v1663
    %v1667 = vsel %vm1541, 0, %v1665
    %v1668 = vmul.f32 %v1666, %v1666
    %v1669 = vmul.f32 %v1668, -0.001358992
    %v1670 = vadd.f32 %v1669, 0.041655596
    %v1671 = vmul.f32 %v1668, %v1670
    %v1672 = vadd.f32 %v1671, -0.4999988
    %v1673 = vmul.f32 %v1668, %v1672
    %v1674 = vadd.f32 1.0, %v1673
    %v1675 = vmul.f32 %v1666, %v1666
    %v1676 = vmul.f32 %v1675, -0.00019511016
    %v1677 = vadd.f32 %v1676, 0.008332121
    %v1678 = vmul.f32 %v1675, %v1677
    %v1679 = vadd.f32 %v1678, -0.16666654
    %v1680 = vmul.f32 %v1675, %v1679
    %v1681 = vadd.f32 %v1680, 1.0
    %v1682 = vmul.f32 %v1681, %v1666
    %vm1683 = vweird.f32 %v284
    %v1684 = vand.u32 %v1667, 3
    %vm1685 = vcmp.lt.s32.totalorder %v1684, 2
    %vm1686 = vcmp.eq.s32.totalorder %v1684, 0
    %v1687 = vxor.u32 %v1682, 2147483648
    %v1688 = vsel %vm1686, %v1674, %v1687
    %vm1689 = vcmp.eq.s32.totalorder %v1684, 2
    %v1690 = vxor.u32 %v1674, 2147483648
    %v1691 = vsel %vm1689, %v1690, %v1682
    %v1692 = vsel %vm1685, %v1688, %v1691
    %v1693 = vsel %vm1683, nan, %v1692
    %v1694 = vand.u32 2147483647, %v285
    %vm1695 = vcmp.le.f32.partialorder %v1694, 0.7853982
    %vm1696 = vcmp.lt.s32.totalorder %v285, 0
    %v1697 = vand.u32 %v285, 2139095040
    %v1698 = vshrl.u32 %v1697, 23
    %v1699 = vsub.s32 %v1698, 127
    %v1700 = vand.u32 2147483647, %v285
    %v1701 = vand.u32 %v1700, 8388607
    %v1702 = vor.u32 %v1701, 8388608
    %v1703 = vsub.s32 0, %v1702
    %v1704 = vadd.s32 %v1699, 1
    %vm1705 = vcmp.gt.s32.totalorder %v1704, 0
    %v1706 = vsel %vm1705, %v1704, 0
    %v1707 = vshrl.u32 %v1706, 5
    %v1708 = vand.u32 %v1706, 31
    %v1709 = vsub.s32 32, %v1708
    %v1710 = vshrl.u32 683565275, %v1709
    %v1711 = vshll.u32 683565275, %v1708
    %v1712 = vshrl.u32 2475754826, %v1709
    %v1713 = vor.u32 %v1711, %v1712
    %v1714 = vshll.u32 2475754826, %v1708
    %v1715 = vshrl.u32 2131351028, %v1709
    %v1716 = vor.u32 %v1714, %v1715
    %v1717 = vshll.u32 2131351028, %v1708
    %v1718 = vshrl.u32 2102212464, %v1709
    %v1719 = vor.u32 %v1717, %v1718
    %v1720 = vshll.u32 2102212464, %v1708
    %v1721 = vshrl.u32 920167782, %v1709
    %v1722 = vor.u32 %v1720, %v1721
    %v1723 = vshll.u32 920167782, %v1708
    %v1724 = vshrl.u32 1326507024, %v1709
    %v1725 = vor.u32 %v1723, %v1724
    %vm1726 = vcmp.lt.s32.totalorder %v1707, 1
    %vm1727 = vcmp.lt.s32.totalorder %v1707, 2
    %vm1728 = vcmp.lt.s32.totalorder %v1707, 3
    %vm1729 = vcmp.lt.s32.totalorder %v1707, 4
    %v1730 = vsel %vm1726, %v1710, %v1713
    %v1731 = vsel %vm1729, %v1719, 2102212464
    %v1732 = vsel %vm1728, %v1716, %v1731
    %v1733 = vsel %vm1727, %v1730, %v1732
    %v1734 = vsel %vm1726, %v1713, %v1716
    %v1735 = vsel %vm1729, %v1722, 920167782
    %v1736 = vsel %vm1728, %v1719, %v1735
    %v1737 = vsel %vm1727, %v1734, %v1736
    %v1738 = vsel %vm1726, %v1716, %v1719
    %v1739 = vsel %vm1729, %v1725, 1326507024
    %v1740 = vsel %vm1728, %v1722, %v1739
    %v1741 = vsel %vm1727, %v1738, %v1740
    %v1742 = vshll.u32 %v1702, 8
    %v1743 = vand.u32 %v1742, 65535
    %v1744 = vshrl.u32 %v1742, 16
    %v1745 = vand.u32 %v1741, 65535
    %v1746 = vshrl.u32 %v1741, 16
    %v1747 = vmul.u32 %v1743, %v1745
    %v1748 = vmul.u32 %v1743, %v1746
    %v1749 = vmul.u32 %v1744, %v1745
    %v1750 = vmul.u32 %v1744, %v1746
    %v1751 = vshll.u32 %v1748, 16
    %v1752 = vshrl.u32 %v1748, 16
    %v1753 = vshll.u32 %v1749, 16
    %v1754 = vshrl.u32 %v1749, 16
    %vm1755 = vc.u32 %v1747, %v1751
    %v1756 = vsel %vm1755, 1, 0
    %v1757 = vadd.s32 %v1747, %v1751
    %v1758 = vadd.s32 %v1750, %v1756
    %vm1759 = vc.u32 %v1757, %v1753
    %v1760 = vsel %vm1759, 1, 0
    %v1761 = vadd.s32 %v1757, %v1753
    %v1762 = vadd.s32 %v1758, %v1760
    %v1763 = vadd.s32 %v1762, %v1752
    %v1764 = vadd.s32 %v1763, %v1754
    %v1765 = vand.u32 %v1742, 65535
    %v1766 = vshrl.u32 %v1742, 16
    %v1767 = vand.u32 %v1737, 65535
    %v1768 = vshrl.u32 %v1737, 16
    %v1769 = vmul.u32 %v1765, %v1767
    %v1770 = vmul.u32 %v1765, %v1768
    %v1771 = vmul.u32 %v1766, %v1767
    %v1772 = vmul.u32 %v1766, %v1768
    %v1773 = vshll.u32 %v1770, 16
    %v1774 = vshrl.u32 %v1770, 16
    %v1775 = vshll.u32 %v1771, 16
    %v1776 = vshrl.u32 %v1771, 16
    %vm1777 = vc.u32 %v1769, %v1773
    %v1778 = vsel %vm1777, 1, 0
    %v1779 = vadd.s32 %v1769, %v1773
    %v1780 = vadd.s32 %v1772, %v1778
    %vm1781 = vc.u32 %v1779, %v1775
    %v1782 = vsel %vm1781, 1, 0
    %v1783 = vadd.s32 %v1779, %v1775
    %v1784 = vadd.s32 %v1780, %v1782
    %v1785 = vadd.s32 %v1784, %v1774
    %v1786 = vadd.s32 %v1785, %v1776
    %v1787 = vmul.u32 %v1742, %v1733
    %v1788 = vadd.s32 %v1764, %v1783
    %vm1789 = vc.u32 %v1764, %v1783
    %v1790 = vadd.s32 %v1786, 1
    %v1791 = vsel %vm1789, %v1790, %v1786
    %v1792 = vadd.s32 %v1787, %v1791
    %v1793 = vadd.s32 %v1792, 536870912
    %v1794 = vshrl.u32 %v1793, 30
    %v1795 = vshll.u32 %v1794, 30
    %v1796 = vsub.s32 %v1792, %v1795
    %vm1797 = vcmp.lt.s32.totalorder %v1796, 0
    %v1798 = vsub.s32 0, %v1796
    %v1799 = vsel %vm1797, %v1798, %v1796
    %v1800 = vclz %v1799
    %v1801 = vsub.s32 %v1800, 2
    %vm1802 = vcmp.gt.s32.totalorder 0, %v1801
    %v1803 = vsel %vm1802, 0, %v1801
    %v1804 = vsub.s32 32, %v1803
    %v1805 = vshll.u32 %v1796, %v1803
    %v1806 = vshrl.u32 %v1788, %v1804
    %v1807 = vor.u32 %v1805, %v1806
    %v1808 = vsub.s32 4294967266, %v1803
    %v1809 = vadd.s32 %v1808, 127
    %v1810 = vshll.u32 %v1809, 23
    %v1811 = vor.u32 4788187, %v1810
    %v1812 = vand.u32 2147483647, %v1811
    %v1814 = vcvt.s32.f32 %v1807
    %v1815 = vmul.f32 %v1814, %v1812
    %v1816 = vxor.u32 %v1815, 2147483648
    %v1817 = vsel %vm1696, %v1816, %v1815
    %v1818 = vsub.s32 4, %v1794
    %v1819 = vsel %vm1696, %v1818, %v1794
    %v1820 = vsel %vm1695, %v285, %v1817
    %v1821 = vsel %vm1695, 0, %v1819
    %v1822 = vmul.f32 %v1820, %v1820
    %v1823 = vmul.f32 %v1822, -0.001358992
    %v1824 = vadd.f32 %v1823, 0.041655596
    %v1825 = vmul.f32 %v1822, %v1824
    %v1826 = vadd.f32 %v1825, -0.4999988
    %v1827 = vmul.f32 %v1822, %v1826
    %v1828 = vadd.f32 1.0, %v1827
    %v1829 = vmul.f32 %v1820, %v1820
    %v1830 = vmul.f32 %v1829, -0.00019511016
    %v1831 = vadd.f32 %v1830, 0.008332121
    %v1832 = vmul.f32 %v1829, %v1831
    %v1833 = vadd.f32 %v1832, -0.16666654
    %v1834 = vmul.f32 %v1829, %v1833
    %v1835 = vadd.f32 %v1834, 1.0
    %v1836 = vmul.f32 %v1835, %v1820
    %vm1837 = vweird.f32 %v285
    %v1838 = vand.u32 %v1821, 3
    %vm1839 = vcmp.lt.s32.totalorder %v1838, 2
    %vm1840 = vcmp.eq.s32.totalorder %v1838, 0
    %v1841 = vxor.u32 %v1836, 2147483648
    %v1842 = vsel %vm1840, %v1828, %v1841
    %vm1843 = vcmp.eq.s32.totalorder %v1838, 2
    %v1844 = vxor.u32 %v1828, 2147483648
    %v1845 = vsel %vm1843, %v1844, %v1836
    %v1846 = vsel %vm1839, %v1842, %v1845
    %v1847 = vsel %vm1837, nan, %v1846
    %v1848 = vand.u32 2147483647, %v286
    %vm1849 = vcmp.le.f32.partialorder %v1848, 0.7853982
    %vm1850 = vcmp.lt.s32.totalorder %v286, 0
    %v1851 = vand.u32 %v286, 2139095040
    %v1852 = vshrl.u32 %v1851, 23
    %v1853 = vsub.s32 %v1852, 127
    %v1854 = vand.u32 2147483647, %v286
    %v1855 = vand.u32 %v1854, 8388607
    %v1856 = vor.u32 %v1855, 8388608
    %v1857 = vsub.s32 0, %v1856
    %v1858 = vadd.s32 %v1853, 1
    %vm1859 = vcmp.gt.s32.totalorder %v1858, 0
    %v1860 = vsel %vm1859, %v1858, 0
    %v1861 = vshrl.u32 %v1860, 5
    %v1862 = vand.u32 %v1860, 31
    %v1863 = vsub.s32 32, %v1862
    %v1864 = vshrl.u32 683565275, %v1863
    %v1865 = vshll.u32 683565275, %v1862
    %v1866 = vshrl.u32 2475754826, %v1863
    %v1867 = vor.u32 %v1865, %v1866
    %v1868 = vshll.u32 2475754826, %v1862
    %v1869 = vshrl.u32 2131351028, %v1863
    %v1870 = vor.u32 %v1868, %v1869
    %v1871 = vshll.u32 2131351028, %v1862
    %v1872 = vshrl.u32 2102212464, %v1863
    %v1873 = vor.u32 %v1871, %v1872
    %v1874 = vshll.u32 2102212464, %v1862
    %v1875 = vshrl.u32 920167782, %v1863
    %v1876 = vor.u32 %v1874, %v1875
    %v1877 = vshll.u32 920167782, %v1862
    %v1878 = vshrl.u32 1326507024, %v1863
    %v1879 = vor.u32 %v1877, %v1878
    %vm1880 = vcmp.lt.s32.totalorder %v1861, 1
    %vm1881 = vcmp.lt.s32.totalorder %v1861, 2
    %vm1882 = vcmp.lt.s32.totalorder %v1861, 3
    %vm1883 = vcmp.lt.s32.totalorder %v1861, 4
    %v1884 = vsel %vm1880, %v1864, %v1867
    %v1885 = vsel %vm1883, %v1873, 2102212464
    %v1886 = vsel %vm1882, %v1870, %v1885
    %v1887 = vsel %vm1881, %v1884, %v1886
    %v1888 = vsel %vm1880, %v1867, %v1870
    %v1889 = vsel %vm1883, %v1876, 920167782
    %v1890 = vsel %vm1882, %v1873, %v1889
    %v1891 = vsel %vm1881, %v1888, %v1890
    %v1892 = vsel %vm1880, %v1870, %v1873
    %v1893 = vsel %vm1883, %v1879, 1326507024
    %v1894 = vsel %vm1882, %v1876, %v1893
    %v1895 = vsel %vm1881, %v1892, %v1894
    %v1896 = vshll.u32 %v1856, 8
    %v1897 = vand.u32 %v1896, 65535
    %v1898 = vshrl.u32 %v1896, 16
    %v1899 = vand.u32 %v1895, 65535
    %v1900 = vshrl.u32 %v1895, 16
    %v1901 = vmul.u32 %v1897, %v1899
    %v1902 = vmul.u32 %v1897, %v1900
    %v1903 = vmul.u32 %v1898, %v1899
    %v1904 = vmul.u32 %v1898, %v1900
    %v1905 = vshll.u32 %v1902, 16
    %v1906 = vshrl.u32 %v1902, 16
    %v1907 = vshll.u32 %v1903, 16
    %v1908 = vshrl.u32 %v1903, 16
    %vm1909 = vc.u32 %v1901, %v1905
    %v1910 = vsel %vm1909, 1, 0
    %v1911 = vadd.s32 %v1901, %v1905
    %v1912 = vadd.s32 %v1904, %v1910
    %vm1913 = vc.u32 %v1911, %v1907
    %v1914 = vsel %vm1913, 1, 0
    %v1915 = vadd.s32 %v1911, %v1907
    %v1916 = vadd.s32 %v1912, %v1914
    %v1917 = vadd.s32 %v1916, %v1906
    %v1918 = vadd.s32 %v1917, %v1908
    %v1919 = vand.u32 %v1896, 65535
    %v1920 = vshrl.u32 %v1896, 16
    %v1921 = vand.u32 %v1891, 65535
    %v1922 = vshrl.u32 %v1891, 16
    %v1923 = vmul.u32 %v1919, %v1921
    %v1924 = vmul.u32 %v1919, %v1922
    %v1925 = vmul.u32 %v1920, %v1921
    %v1926 = vmul.u32 %v1920, %v1922
    %v1927 = vshll.u32 %v1924, 16
    %v1928 = vshrl.u32 %v1924, 16
    %v1929 = vshll.u32 %v1925, 16
    %v1930 = vshrl.u32 %v1925, 16
    %vm1931 = vc.u32 %v1923, %v1927
    %v1932 = vsel %vm1931, 1, 0
    %v1933 = vadd.s32 %v1923, %v1927
    %v1934 = vadd.s32 %v1926, %v1932
    %vm1935 = vc.u32 %v1933, %v1929
    %v1936 = vsel %vm1935, 1, 0
    %v1937 = vadd.s32 %v1933, %v1929
    %v1938 = vadd.s32 %v1934, %v1936
    %v1939 = vadd.s32 %v1938, %v1928
    %v1940 = vadd.s32 %v1939, %v1930
    %v1941 = vmul.u32 %v1896, %v1887
    %v1942 = vadd.s32 %v1918, %v1937
    %vm1943 = vc.u32 %v1918, %v1937
    %v1944 = vadd.s32 %v1940, 1
    %v1945 = vsel %vm1943, %v1944, %v1940
    %v1946 = vadd.s32 %v1941, %v1945
    %v1947 = vadd.s32 %v1946, 536870912
    %v1948 = vshrl.u32 %v1947, 30
    %v1949 = vshll.u32 %v1948, 30
    %v1950 = vsub.s32 %v1946, %v1949
    %vm1951 = vcmp.lt.s32.totalorder %v1950, 0
    %v1952 = vsub.s32 0, %v1950
    %v1953 = vsel %vm1951, %v1952, %v1950
    %v1954 = vclz %v1953
    %v1955 = vsub.s32 %v1954, 2
    %vm1956 = vcmp.gt.s32.totalorder 0, %v1955
    %v1957 = vsel %vm1956, 0, %v1955
    %v1958 = vsub.s32 32, %v1957
    %v1959 = vshll.u32 %v1950, %v1957
    %v1960 = vshrl.u32 %v1942, %v1958
    %v1961 = vor.u32 %v1959, %v1960
    %v1962 = vsub.s32 4294967266, %v1957
    %v1963 = vadd.s32 %v1962, 127
    %v1964 = vshll.u32 %v1963, 23
    %v1965 = vor.u32 4788187, %v1964
    %v1966 = vand.u32 2147483647, %v1965
    %v1968 = vcvt.s32.f32 %v1961
    %v1969 = vmul.f32 %v1968, %v1966
    %v1970 = vxor.u32 %v1969, 2147483648
    %v1971 = vsel %vm1850, %v1970, %v1969
    %v1972 = vsub.s32 4, %v1948
    %v1973 = vsel %vm1850, %v1972, %v1948
    %v1974 = vsel %vm1849, %v286, %v1971
    %v1975 = vsel %vm1849, 0, %v1973
    %v1976 = vmul.f32 %v1974, %v1974
    %v1977 = vmul.f32 %v1976, -0.001358992
    %v1978 = vadd.f32 %v1977, 0.041655596
    %v1979 = vmul.f32 %v1976, %v1978
    %v1980 = vadd.f32 %v1979, -0.4999988
    %v1981 = vmul.f32 %v1976, %v1980
    %v1982 = vadd.f32 1.0, %v1981
    %v1983 = vmul.f32 %v1974, %v1974
    %v1984 = vmul.f32 %v1983, -0.00019511016
    %v1985 = vadd.f32 %v1984, 0.008332121
    %v1986 = vmul.f32 %v1983, %v1985
    %v1987 = vadd.f32 %v1986, -0.16666654
    %v1988 = vmul.f32 %v1983, %v1987
    %v1989 = vadd.f32 %v1988, 1.0
    %v1990 = vmul.f32 %v1989, %v1974
    %vm1991 = vweird.f32 %v286
    %v1992 = vand.u32 %v1975, 3
    %vm1993 = vcmp.lt.s32.totalorder %v1992, 2
    %vm1994 = vcmp.eq.s32.totalorder %v1992, 0
    %v1995 = vxor.u32 %v1990, 2147483648
    %v1996 = vsel %vm1994, %v1982, %v1995
    %vm1997 = vcmp.eq.s32.totalorder %v1992, 2
    %v1998 = vxor.u32 %v1982, 2147483648
    %v1999 = vsel %vm1997, %v1998, %v1990
    %v2000 = vsel %vm1993, %v1996, %v1999
    %v2001 = vsel %vm1991, nan, %v2000
    %v2002 = vand.u32 2147483647, %v287
    %vm2003 = vcmp.le.f32.partialorder %v2002, 0.7853982
    %vm2004 = vcmp.lt.s32.totalorder %v287, 0
    %v2005 = vand.u32 %v287, 2139095040
    %v2006 = vshrl.u32 %v2005, 23
    %v2007 = vsub.s32 %v2006, 127
    %v2008 = vand.u32 2147483647, %v287
    %v2009 = vand.u32 %v2008, 8388607
    %v2010 = vor.u32 %v2009, 8388608
    %v2011 = vsub.s32 0, %v2010
    %v2012 = vadd.s32 %v2007, 1
    %vm2013 = vcmp.gt.s32.totalorder %v2012, 0
    %v2014 = vsel %vm2013, %v2012, 0
    %v2015 = vshrl.u32 %v2014, 5
    %v2016 = vand.u32 %v2014, 31
    %v2017 = vsub.s32 32, %v2016
    %v2018 = vshrl.u32 683565275, %v2017
    %v2019 = vshll.u32 683565275, %v2016
    %v2020 = vshrl.u32 2475754826, %v2017
    %v2021 = vor.u32 %v2019, %v2020
    %v2022 = vshll.u32 2475754826, %v2016
    %v2023 = vshrl.u32 2131351028, %v2017
    %v2024 = vor.u32 %v2022, %v2023
    %v2025 = vshll.u32 2131351028, %v2016
    %v2026 = vshrl.u32 2102212464, %v2017
    %v2027 = vor.u32 %v2025, %v2026
    %v2028 = vshll.u32 2102212464, %v2016
    %v2029 = vshrl.u32 920167782, %v2017
    %v2030 = vor.u32 %v2028, %v2029
    %v2031 = vshll.u32 920167782, %v2016
    %v2032 = vshrl.u32 1326507024, %v2017
    %v2033 = vor.u32 %v2031, %v2032
    %vm2034 = vcmp.lt.s32.totalorder %v2015, 1
    %vm2035 = vcmp.lt.s32.totalorder %v2015, 2
    %vm2036 = vcmp.lt.s32.totalorder %v2015, 3
    %vm2037 = vcmp.lt.s32.totalorder %v2015, 4
    %v2038 = vsel %vm2034, %v2018, %v2021
    %v2039 = vsel %vm2037, %v2027, 2102212464
    %v2040 = vsel %vm2036, %v2024, %v2039
    %v2041 = vsel %vm2035, %v2038, %v2040
    %v2042 = vsel %vm2034, %v2021, %v2024
    %v2043 = vsel %vm2037, %v2030, 920167782
    %v2044 = vsel %vm2036, %v2027, %v2043
    %v2045 = vsel %vm2035, %v2042, %v2044
    %v2046 = vsel %vm2034, %v2024, %v2027
    %v2047 = vsel %vm2037, %v2033, 1326507024
    %v2048 = vsel %vm2036, %v2030, %v2047
    %v2049 = vsel %vm2035, %v2046, %v2048
    %v2050 = vshll.u32 %v2010, 8
    %v2051 = vand.u32 %v2050, 65535
    %v2052 = vshrl.u32 %v2050, 16
    %v2053 = vand.u32 %v2049, 65535
    %v2054 = vshrl.u32 %v2049, 16
    %v2055 = vmul.u32 %v2051, %v2053
    %v2056 = vmul.u32 %v2051, %v2054
    %v2057 = vmul.u32 %v2052, %v2053
    %v2058 = vmul.u32 %v2052, %v2054
    %v2059 = vshll.u32 %v2056, 16
    %v2060 = vshrl.u32 %v2056, 16
    %v2061 = vshll.u32 %v2057, 16
    %v2062 = vshrl.u32 %v2057, 16
    %vm2063 = vc.u32 %v2055, %v2059
    %v2064 = vsel %vm2063, 1, 0
    %v2065 = vadd.s32 %v2055, %v2059
    %v2066 = vadd.s32 %v2058, %v2064
    %vm2067 = vc.u32 %v2065, %v2061
    %v2068 = vsel %vm2067, 1, 0
    %v2069 = vadd.s32 %v2065, %v2061
    %v2070 = vadd.s32 %v2066, %v2068
    %v2071 = vadd.s32 %v2070, %v2060
    %v2072 = vadd.s32 %v2071, %v2062
    %v2073 = vand.u32 %v2050, 65535
    %v2074 = vshrl.u32 %v2050, 16
    %v2075 = vand.u32 %v2045, 65535
    %v2076 = vshrl.u32 %v2045, 16
    %v2077 = vmul.u32 %v2073, %v2075
    %v2078 = vmul.u32 %v2073, %v2076
    %v2079 = vmul.u32 %v2074, %v2075
    %v2080 = vmul.u32 %v2074, %v2076
    %v2081 = vshll.u32 %v2078, 16
    %v2082 = vshrl.u32 %v2078, 16
    %v2083 = vshll.u32 %v2079, 16
    %v2084 = vshrl.u32 %v2079, 16
    %vm2085 = vc.u32 %v2077, %v2081
    %v2086 = vsel %vm2085, 1, 0
    %v2087 = vadd.s32 %v2077, %v2081
    %v2088 = vadd.s32 %v2080, %v2086
    %vm2089 = vc.u32 %v2087, %v2083
    %v2090 = vsel %vm2089, 1, 0
    %v2091 = vadd.s32 %v2087, %v2083
    %v2092 = vadd.s32 %v2088, %v2090
    %v2093 = vadd.s32 %v2092, %v2082
    %v2094 = vadd.s32 %v2093, %v2084
    %v2095 = vmul.u32 %v2050, %v2041
    %v2096 = vadd.s32 %v2072, %v2091
    %vm2097 = vc.u32 %v2072, %v2091
    %v2098 = vadd.s32 %v2094, 1
    %v2099 = vsel %vm2097, %v2098, %v2094
    %v2100 = vadd.s32 %v2095, %v2099
    %v2101 = vadd.s32 %v2100, 536870912
    %v2102 = vshrl.u32 %v2101, 30
    %v2103 = vshll.u32 %v2102, 30
    %v2104 = vsub.s32 %v2100, %v2103
    %vm2105 = vcmp.lt.s32.totalorder %v2104, 0
    %v2106 = vsub.s32 0, %v2104
    %v2107 = vsel %vm2105, %v2106, %v2104
    %v2108 = vclz %v2107
    %v2109 = vsub.s32 %v2108, 2
    %vm2110 = vcmp.gt.s32.totalorder 0, %v2109
    %v2111 = vsel %vm2110, 0, %v2109
    %v2112 = vsub.s32 32, %v2111
    %v2113 = vshll.u32 %v2104, %v2111
    %v2114 = vshrl.u32 %v2096, %v2112
    %v2115 = vor.u32 %v2113, %v2114
    %v2116 = vsub.s32 4294967266, %v2111
    %v2117 = vadd.s32 %v2116, 127
    %v2118 = vshll.u32 %v2117, 23
    %v2119 = vor.u32 4788187, %v2118
    %v2120 = vand.u32 2147483647, %v2119
    %v2122 = vcvt.s32.f32 %v2115
    %v2123 = vmul.f32 %v2122, %v2120
    %v2124 = vxor.u32 %v2123, 2147483648
    %v2125 = vsel %vm2004, %v2124, %v2123
    %v2126 = vsub.s32 4, %v2102
    %v2127 = vsel %vm2004, %v2126, %v2102
    %v2128 = vsel %vm2003, %v287, %v2125
    %v2129 = vsel %vm2003, 0, %v2127
    %v2130 = vmul.f32 %v2128, %v2128
    %v2131 = vmul.f32 %v2130, -0.001358992
    %v2132 = vadd.f32 %v2131, 0.041655596
    %v2133 = vmul.f32 %v2130, %v2132
    %v2134 = vadd.f32 %v2133, -0.4999988
    %v2135 = vmul.f32 %v2130, %v2134
    %v2136 = vadd.f32 1.0, %v2135
    %v2137 = vmul.f32 %v2128, %v2128
    %v2138 = vmul.f32 %v2137, -0.00019511016
    %v2139 = vadd.f32 %v2138, 0.008332121
    %v2140 = vmul.f32 %v2137, %v2139
    %v2141 = vadd.f32 %v2140, -0.16666654
    %v2142 = vmul.f32 %v2137, %v2141
    %v2143 = vadd.f32 %v2142, 1.0
    %v2144 = vmul.f32 %v2143, %v2128
    %vm2145 = vweird.f32 %v287
    %v2146 = vand.u32 %v2129, 3
    %vm2147 = vcmp.lt.s32.totalorder %v2146, 2
    %vm2148 = vcmp.eq.s32.totalorder %v2146, 0
    %v2149 = vxor.u32 %v2144, 2147483648
    %v2150 = vsel %vm2148, %v2136, %v2149
    %vm2151 = vcmp.eq.s32.totalorder %v2146, 2
    %v2152 = vxor.u32 %v2136, 2147483648
    %v2153 = vsel %vm2151, %v2152, %v2144
    %v2154 = vsel %vm2147, %v2150, %v2153
    %v2155 = vsel %vm2145, nan, %v2154
    %v2156 = vand.u32 2147483647, %v288
    %vm2157 = vcmp.le.f32.partialorder %v2156, 0.7853982
    %vm2158 = vcmp.lt.s32.totalorder %v288, 0
    %v2159 = vand.u32 %v288, 2139095040
    %v2160 = vshrl.u32 %v2159, 23
    %v2161 = vsub.s32 %v2160, 127
    %v2162 = vand.u32 2147483647, %v288
    %v2163 = vand.u32 %v2162, 8388607
    %v2164 = vor.u32 %v2163, 8388608
    %v2165 = vsub.s32 0, %v2164
    %v2166 = vadd.s32 %v2161, 1
    %vm2167 = vcmp.gt.s32.totalorder %v2166, 0
    %v2168 = vsel %vm2167, %v2166, 0
    %v2169 = vshrl.u32 %v2168, 5
    %v2170 = vand.u32 %v2168, 31
    %v2171 = vsub.s32 32, %v2170
    %v2172 = vshrl.u32 683565275, %v2171
    %v2173 = vshll.u32 683565275, %v2170
    %v2174 = vshrl.u32 2475754826, %v2171
    %v2175 = vor.u32 %v2173, %v2174
    %v2176 = vshll.u32 2475754826, %v2170
    %v2177 = vshrl.u32 2131351028, %v2171
    %v2178 = vor.u32 %v2176, %v2177
    %v2179 = vshll.u32 2131351028, %v2170
    %v2180 = vshrl.u32 2102212464, %v2171
    %v2181 = vor.u32 %v2179, %v2180
    %v2182 = vshll.u32 2102212464, %v2170
    %v2183 = vshrl.u32 920167782, %v2171
    %v2184 = vor.u32 %v2182, %v2183
    %v2185 = vshll.u32 920167782, %v2170
    %v2186 = vshrl.u32 1326507024, %v2171
    %v2187 = vor.u32 %v2185, %v2186
    %vm2188 = vcmp.lt.s32.totalorder %v2169, 1
    %vm2189 = vcmp.lt.s32.totalorder %v2169, 2
    %vm2190 = vcmp.lt.s32.totalorder %v2169, 3
    %vm2191 = vcmp.lt.s32.totalorder %v2169, 4
    %v2192 = vsel %vm2188, %v2172, %v2175
    %v2193 = vsel %vm2191, %v2181, 2102212464
    %v2194 = vsel %vm2190, %v2178, %v2193
    %v2195 = vsel %vm2189, %v2192, %v2194
    %v2196 = vsel %vm2188, %v2175, %v2178
    %v2197 = vsel %vm2191, %v2184, 920167782
    %v2198 = vsel %vm2190, %v2181, %v2197
    %v2199 = vsel %vm2189, %v2196, %v2198
    %v2200 = vsel %vm2188, %v2178, %v2181
    %v2201 = vsel %vm2191, %v2187, 1326507024
    %v2202 = vsel %vm2190, %v2184, %v2201
    %v2203 = vsel %vm2189, %v2200, %v2202
    %v2204 = vshll.u32 %v2164, 8
    %v2205 = vand.u32 %v2204, 65535
    %v2206 = vshrl.u32 %v2204, 16
    %v2207 = vand.u32 %v2203, 65535
    %v2208 = vshrl.u32 %v2203, 16
    %v2209 = vmul.u32 %v2205, %v2207
    %v2210 = vmul.u32 %v2205, %v2208
    %v2211 = vmul.u32 %v2206, %v2207
    %v2212 = vmul.u32 %v2206, %v2208
    %v2213 = vshll.u32 %v2210, 16
    %v2214 = vshrl.u32 %v2210, 16
    %v2215 = vshll.u32 %v2211, 16
    %v2216 = vshrl.u32 %v2211, 16
    %vm2217 = vc.u32 %v2209, %v2213
    %v2218 = vsel %vm2217, 1, 0
    %v2219 = vadd.s32 %v2209, %v2213
    %v2220 = vadd.s32 %v2212, %v2218
    %vm2221 = vc.u32 %v2219, %v2215
    %v2222 = vsel %vm2221, 1, 0
    %v2223 = vadd.s32 %v2219, %v2215
    %v2224 = vadd.s32 %v2220, %v2222
    %v2225 = vadd.s32 %v2224, %v2214
    %v2226 = vadd.s32 %v2225, %v2216
    %v2227 = vand.u32 %v2204, 65535
    %v2228 = vshrl.u32 %v2204, 16
    %v2229 = vand.u32 %v2199, 65535
    %v2230 = vshrl.u32 %v2199, 16
    %v2231 = vmul.u32 %v2227, %v2229
    %v2232 = vmul.u32 %v2227, %v2230
    %v2233 = vmul.u32 %v2228, %v2229
    %v2234 = vmul.u32 %v2228, %v2230
    %v2235 = vshll.u32 %v2232, 16
    %v2236 = vshrl.u32 %v2232, 16
    %v2237 = vshll.u32 %v2233, 16
    %v2238 = vshrl.u32 %v2233, 16
    %vm2239 = vc.u32 %v2231, %v2235
    %v2240 = vsel %vm2239, 1, 0
    %v2241 = vadd.s32 %v2231, %v2235
    %v2242 = vadd.s32 %v2234, %v2240
    %vm2243 = vc.u32 %v2241, %v2237
    %v2244 = vsel %vm2243, 1, 0
    %v2245 = vadd.s32 %v2241, %v2237
    %v2246 = vadd.s32 %v2242, %v2244
    %v2247 = vadd.s32 %v2246, %v2236
    %v2248 = vadd.s32 %v2247, %v2238
    %v2249 = vmul.u32 %v2204, %v2195
    %v2250 = vadd.s32 %v2226, %v2245
    %vm2251 = vc.u32 %v2226, %v2245
    %v2252 = vadd.s32 %v2248, 1
    %v2253 = vsel %vm2251, %v2252, %v2248
    %v2254 = vadd.s32 %v2249, %v2253
    %v2255 = vadd.s32 %v2254, 536870912
    %v2256 = vshrl.u32 %v2255, 30
    %v2257 = vshll.u32 %v2256, 30
    %v2258 = vsub.s32 %v2254, %v2257
    %vm2259 = vcmp.lt.s32.totalorder %v2258, 0
    %v2260 = vsub.s32 0, %v2258
    %v2261 = vsel %vm2259, %v2260, %v2258
    %v2262 = vclz %v2261
    %v2263 = vsub.s32 %v2262, 2
    %vm2264 = vcmp.gt.s32.totalorder 0, %v2263
    %v2265 = vsel %vm2264, 0, %v2263
    %v2266 = vsub.s32 32, %v2265
    %v2267 = vshll.u32 %v2258, %v2265
    %v2268 = vshrl.u32 %v2250, %v2266
    %v2269 = vor.u32 %v2267, %v2268
    %v2270 = vsub.s32 4294967266, %v2265
    %v2271 = vadd.s32 %v2270, 127
    %v2272 = vshll.u32 %v2271, 23
    %v2273 = vor.u32 4788187, %v2272
    %v2274 = vand.u32 2147483647, %v2273
    %v2276 = vcvt.s32.f32 %v2269
    %v2277 = vmul.f32 %v2276, %v2274
    %v2278 = vxor.u32 %v2277, 2147483648
    %v2279 = vsel %vm2158, %v2278, %v2277
    %v2280 = vsub.s32 4, %v2256
    %v2281 = vsel %vm2158, %v2280, %v2256
    %v2282 = vsel %vm2157, %v288, %v2279
    %v2283 = vsel %vm2157, 0, %v2281
    %v2284 = vmul.f32 %v2282, %v2282
    %v2285 = vmul.f32 %v2284, -0.001358992
    %v2286 = vadd.f32 %v2285, 0.041655596
    %v2287 = vmul.f32 %v2284, %v2286
    %v2288 = vadd.f32 %v2287, -0.4999988
    %v2289 = vmul.f32 %v2284, %v2288
    %v2290 = vadd.f32 1.0, %v2289
    %v2291 = vmul.f32 %v2282, %v2282
    %v2292 = vmul.f32 %v2291, -0.00019511016
    %v2293 = vadd.f32 %v2292, 0.008332121
    %v2294 = vmul.f32 %v2291, %v2293
    %v2295 = vadd.f32 %v2294, -0.16666654
    %v2296 = vmul.f32 %v2291, %v2295
    %v2297 = vadd.f32 %v2296, 1.0
    %v2298 = vmul.f32 %v2297, %v2282
    %vm2299 = vweird.f32 %v288
    %v2300 = vand.u32 %v2283, 3
    %vm2301 = vcmp.lt.s32.totalorder %v2300, 2
    %vm2302 = vcmp.eq.s32.totalorder %v2300, 0
    %v2303 = vxor.u32 %v2298, 2147483648
    %v2304 = vsel %vm2302, %v2290, %v2303
    %vm2305 = vcmp.eq.s32.totalorder %v2300, 2
    %v2306 = vxor.u32 %v2290, 2147483648
    %v2307 = vsel %vm2305, %v2306, %v2298
    %v2308 = vsel %vm2301, %v2304, %v2307
    %v2309 = vsel %vm2299, nan, %v2308
    %v2310 = vand.u32 2147483647, %v289
    %vm2311 = vcmp.le.f32.partialorder %v2310, 0.7853982
    %vm2312 = vcmp.lt.s32.totalorder %v289, 0
    %v2313 = vand.u32 %v289, 2139095040
    %v2314 = vshrl.u32 %v2313, 23
    %v2315 = vsub.s32 %v2314, 127
    %v2316 = vand.u32 2147483647, %v289
    %v2317 = vand.u32 %v2316, 8388607
    %v2318 = vor.u32 %v2317, 8388608
    %v2319 = vsub.s32 0, %v2318
    %v2320 = vadd.s32 %v2315, 1
    %vm2321 = vcmp.gt.s32.totalorder %v2320, 0
    %v2322 = vsel %vm2321, %v2320, 0
    %v2323 = vshrl.u32 %v2322, 5
    %v2324 = vand.u32 %v2322, 31
    %v2325 = vsub.s32 32, %v2324
    %v2326 = vshrl.u32 683565275, %v2325
    %v2327 = vshll.u32 683565275, %v2324
    %v2328 = vshrl.u32 2475754826, %v2325
    %v2329 = vor.u32 %v2327, %v2328
    %v2330 = vshll.u32 2475754826, %v2324
    %v2331 = vshrl.u32 2131351028, %v2325
    %v2332 = vor.u32 %v2330, %v2331
    %v2333 = vshll.u32 2131351028, %v2324
    %v2334 = vshrl.u32 2102212464, %v2325
    %v2335 = vor.u32 %v2333, %v2334
    %v2336 = vshll.u32 2102212464, %v2324
    %v2337 = vshrl.u32 920167782, %v2325
    %v2338 = vor.u32 %v2336, %v2337
    %v2339 = vshll.u32 920167782, %v2324
    %v2340 = vshrl.u32 1326507024, %v2325
    %v2341 = vor.u32 %v2339, %v2340
    %vm2342 = vcmp.lt.s32.totalorder %v2323, 1
    %vm2343 = vcmp.lt.s32.totalorder %v2323, 2
    %vm2344 = vcmp.lt.s32.totalorder %v2323, 3
    %vm2345 = vcmp.lt.s32.totalorder %v2323, 4
    %v2346 = vsel %vm2342, %v2326, %v2329
    %v2347 = vsel %vm2345, %v2335, 2102212464
    %v2348 = vsel %vm2344, %v2332, %v2347
    %v2349 = vsel %vm2343, %v2346, %v2348
    %v2350 = vsel %vm2342, %v2329, %v2332
    %v2351 = vsel %vm2345, %v2338, 920167782
    %v2352 = vsel %vm2344, %v2335, %v2351
    %v2353 = vsel %vm2343, %v2350, %v2352
    %v2354 = vsel %vm2342, %v2332, %v2335
    %v2355 = vsel %vm2345, %v2341, 1326507024
    %v2356 = vsel %vm2344, %v2338, %v2355
    %v2357 = vsel %vm2343, %v2354, %v2356
    %v2358 = vshll.u32 %v2318, 8
    %v2359 = vand.u32 %v2358, 65535
    %v2360 = vshrl.u32 %v2358, 16
    %v2361 = vand.u32 %v2357, 65535
    %v2362 = vshrl.u32 %v2357, 16
    %v2363 = vmul.u32 %v2359, %v2361
    %v2364 = vmul.u32 %v2359, %v2362
    %v2365 = vmul.u32 %v2360, %v2361
    %v2366 = vmul.u32 %v2360, %v2362
    %v2367 = vshll.u32 %v2364, 16
    %v2368 = vshrl.u32 %v2364, 16
    %v2369 = vshll.u32 %v2365, 16
    %v2370 = vshrl.u32 %v2365, 16
    %vm2371 = vc.u32 %v2363, %v2367
    %v2372 = vsel %vm2371, 1, 0
    %v2373 = vadd.s32 %v2363, %v2367
    %v2374 = vadd.s32 %v2366, %v2372
    %vm2375 = vc.u32 %v2373, %v2369
    %v2376 = vsel %vm2375, 1, 0
    %v2377 = vadd.s32 %v2373, %v2369
    %v2378 = vadd.s32 %v2374, %v2376
    %v2379 = vadd.s32 %v2378, %v2368
    %v2380 = vadd.s32 %v2379, %v2370
    %v2381 = vand.u32 %v2358, 65535
    %v2382 = vshrl.u32 %v2358, 16
    %v2383 = vand.u32 %v2353, 65535
    %v2384 = vshrl.u32 %v2353, 16
    %v2385 = vmul.u32 %v2381, %v2383
    %v2386 = vmul.u32 %v2381, %v2384
    %v2387 = vmul.u32 %v2382, %v2383
    %v2388 = vmul.u32 %v2382, %v2384
    %v2389 = vshll.u32 %v2386, 16
    %v2390 = vshrl.u32 %v2386, 16
    %v2391 = vshll.u32 %v2387, 16
    %v2392 = vshrl.u32 %v2387, 16
    %vm2393 = vc.u32 %v2385, %v2389
    %v2394 = vsel %vm2393, 1, 0
    %v2395 = vadd.s32 %v2385, %v2389
    %v2396 = vadd.s32 %v2388, %v2394
    %vm2397 = vc.u32 %v2395, %v2391
    %v2398 = vsel %vm2397, 1, 0
    %v2399 = vadd.s32 %v2395, %v2391
    %v2400 = vadd.s32 %v2396, %v2398
    %v2401 = vadd.s32 %v2400, %v2390
    %v2402 = vadd.s32 %v2401, %v2392
    %v2403 = vmul.u32 %v2358, %v2349
    %v2404 = vadd.s32 %v2380, %v2399
    %vm2405 = vc.u32 %v2380, %v2399
    %v2406 = vadd.s32 %v2402, 1
    %v2407 = vsel %vm2405, %v2406, %v2402
    %v2408 = vadd.s32 %v2403, %v2407
    %v2409 = vadd.s32 %v2408, 536870912
    %v2410 = vshrl.u32 %v2409, 30
    %v2411 = vshll.u32 %v2410, 30
    %v2412 = vsub.s32 %v2408, %v2411
    %vm2413 = vcmp.lt.s32.totalorder %v2412, 0
    %v2414 = vsub.s32 0, %v2412
    %v2415 = vsel %vm2413, %v2414, %v2412
    %v2416 = vclz %v2415
    %v2417 = vsub.s32 %v2416, 2
    %vm2418 = vcmp.gt.s32.totalorder 0, %v2417
    %v2419 = vsel %vm2418, 0, %v2417
    %v2420 = vsub.s32 32, %v2419
    %v2421 = vshll.u32 %v2412, %v2419
    %v2422 = vshrl.u32 %v2404, %v2420
    %v2423 = vor.u32 %v2421, %v2422
    %v2424 = vsub.s32 4294967266, %v2419
    %v2425 = vadd.s32 %v2424, 127
    %v2426 = vshll.u32 %v2425, 23
    %v2427 = vor.u32 4788187, %v2426
    %v2428 = vand.u32 2147483647, %v2427
    %v2430 = vcvt.s32.f32 %v2423
    %v2431 = vmul.f32 %v2430, %v2428
    %v2432 = vxor.u32 %v2431, 2147483648
    %v2433 = vsel %vm2312, %v2432, %v2431
    %v2434 = vsub.s32 4, %v2410
    %v2435 = vsel %vm2312, %v2434, %v2410
    %v2436 = vsel %vm2311, %v289, %v2433
    %v2437 = vsel %vm2311, 0, %v2435
    %v2438 = vmul.f32 %v2436, %v2436
    %v2439 = vmul.f32 %v2438, -0.001358992
    %v2440 = vadd.f32 %v2439, 0.041655596
    %v2441 = vmul.f32 %v2438, %v2440
    %v2442 = vadd.f32 %v2441, -0.4999988
    %v2443 = vmul.f32 %v2438, %v2442
    %v2444 = vadd.f32 1.0, %v2443
    %v2445 = vmul.f32 %v2436, %v2436
    %v2446 = vmul.f32 %v2445, -0.00019511016
    %v2447 = vadd.f32 %v2446, 0.008332121
    %v2448 = vmul.f32 %v2445, %v2447
    %v2449 = vadd.f32 %v2448, -0.16666654
    %v2450 = vmul.f32 %v2445, %v2449
    %v2451 = vadd.f32 %v2450, 1.0
    %v2452 = vmul.f32 %v2451, %v2436
    %vm2453 = vweird.f32 %v289
    %v2454 = vand.u32 %v2437, 3
    %vm2455 = vcmp.lt.s32.totalorder %v2454, 2
    %vm2456 = vcmp.eq.s32.totalorder %v2454, 0
    %v2457 = vxor.u32 %v2452, 2147483648
    %v2458 = vsel %vm2456, %v2444, %v2457
    %vm2459 = vcmp.eq.s32.totalorder %v2454, 2
    %v2460 = vxor.u32 %v2444, 2147483648
    %v2461 = vsel %vm2459, %v2460, %v2452
    %v2462 = vsel %vm2455, %v2458, %v2461
    %v2463 = vsel %vm2453, nan, %v2462
    %v2464 = vand.u32 2147483647, %v290
    %vm2465 = vcmp.le.f32.partialorder %v2464, 0.7853982
    %vm2466 = vcmp.lt.s32.totalorder %v290, 0
    %v2467 = vand.u32 %v290, 2139095040
    %v2468 = vshrl.u32 %v2467, 23
    %v2469 = vsub.s32 %v2468, 127
    %v2470 = vand.u32 2147483647, %v290
    %v2471 = vand.u32 %v2470, 8388607
    %v2472 = vor.u32 %v2471, 8388608
    %v2473 = vsub.s32 0, %v2472
    %v2474 = vadd.s32 %v2469, 1
    %vm2475 = vcmp.gt.s32.totalorder %v2474, 0
    %v2476 = vsel %vm2475, %v2474, 0
    %v2477 = vshrl.u32 %v2476, 5
    %v2478 = vand.u32 %v2476, 31
    %v2479 = vsub.s32 32, %v2478
    %v2480 = vshrl.u32 683565275, %v2479
    %v2481 = vshll.u32 683565275, %v2478
    %v2482 = vshrl.u32 2475754826, %v2479
    %v2483 = vor.u32 %v2481, %v2482
    %v2484 = vshll.u32 2475754826, %v2478
    %v2485 = vshrl.u32 2131351028, %v2479
    %v2486 = vor.u32 %v2484, %v2485
    %v2487 = vshll.u32 2131351028, %v2478
    %v2488 = vshrl.u32 2102212464, %v2479
    %v2489 = vor.u32 %v2487, %v2488
    %v2490 = vshll.u32 2102212464, %v2478
    %v2491 = vshrl.u32 920167782, %v2479
    %v2492 = vor.u32 %v2490, %v2491
    %v2493 = vshll.u32 920167782, %v2478
    %v2494 = vshrl.u32 1326507024, %v2479
    %v2495 = vor.u32 %v2493, %v2494
    %vm2496 = vcmp.lt.s32.totalorder %v2477, 1
    %vm2497 = vcmp.lt.s32.totalorder %v2477, 2
    %vm2498 = vcmp.lt.s32.totalorder %v2477, 3
    %vm2499 = vcmp.lt.s32.totalorder %v2477, 4
    %v2500 = vsel %vm2496, %v2480, %v2483
    %v2501 = vsel %vm2499, %v2489, 2102212464
    %v2502 = vsel %vm2498, %v2486, %v2501
    %v2503 = vsel %vm2497, %v2500, %v2502
    %v2504 = vsel %vm2496, %v2483, %v2486
    %v2505 = vsel %vm2499, %v2492, 920167782
    %v2506 = vsel %vm2498, %v2489, %v2505
    %v2507 = vsel %vm2497, %v2504, %v2506
    %v2508 = vsel %vm2496, %v2486, %v2489
    %v2509 = vsel %vm2499, %v2495, 1326507024
    %v2510 = vsel %vm2498, %v2492, %v2509
    %v2511 = vsel %vm2497, %v2508, %v2510
    %v2512 = vshll.u32 %v2472, 8
    %v2513 = vand.u32 %v2512, 65535
    %v2514 = vshrl.u32 %v2512, 16
    %v2515 = vand.u32 %v2511, 65535
    %v2516 = vshrl.u32 %v2511, 16
    %v2517 = vmul.u32 %v2513, %v2515
    %v2518 = vmul.u32 %v2513, %v2516
    %v2519 = vmul.u32 %v2514, %v2515
    %v2520 = vmul.u32 %v2514, %v2516
    %v2521 = vshll.u32 %v2518, 16
    %v2522 = vshrl.u32 %v2518, 16
    %v2523 = vshll.u32 %v2519, 16
    %v2524 = vshrl.u32 %v2519, 16
    %vm2525 = vc.u32 %v2517, %v2521
    %v2526 = vsel %vm2525, 1, 0
    %v2527 = vadd.s32 %v2517, %v2521
    %v2528 = vadd.s32 %v2520, %v2526
    %vm2529 = vc.u32 %v2527, %v2523
    %v2530 = vsel %vm2529, 1, 0
    %v2531 = vadd.s32 %v2527, %v2523
    %v2532 = vadd.s32 %v2528, %v2530
    %v2533 = vadd.s32 %v2532, %v2522
    %v2534 = vadd.s32 %v2533, %v2524
    %v2535 = vand.u32 %v2512, 65535
    %v2536 = vshrl.u32 %v2512, 16
    %v2537 = vand.u32 %v2507, 65535
    %v2538 = vshrl.u32 %v2507, 16
    %v2539 = vmul.u32 %v2535, %v2537
    %v2540 = vmul.u32 %v2535, %v2538
    %v2541 = vmul.u32 %v2536, %v2537
    %v2542 = vmul.u32 %v2536, %v2538
    %v2543 = vshll.u32 %v2540, 16
    %v2544 = vshrl.u32 %v2540, 16
    %v2545 = vshll.u32 %v2541, 16
    %v2546 = vshrl.u32 %v2541, 16
    %vm2547 = vc.u32 %v2539, %v2543
    %v2548 = vsel %vm2547, 1, 0
    %v2549 = vadd.s32 %v2539, %v2543
    %v2550 = vadd.s32 %v2542, %v2548
    %vm2551 = vc.u32 %v2549, %v2545
    %v2552 = vsel %vm2551, 1, 0
    %v2553 = vadd.s32 %v2549, %v2545
    %v2554 = vadd.s32 %v2550, %v2552
    %v2555 = vadd.s32 %v2554, %v2544
    %v2556 = vadd.s32 %v2555, %v2546
    %v2557 = vmul.u32 %v2512, %v2503
    %v2558 = vadd.s32 %v2534, %v2553
    %vm2559 = vc.u32 %v2534, %v2553
    %v2560 = vadd.s32 %v2556, 1
    %v2561 = vsel %vm2559, %v2560, %v2556
    %v2562 = vadd.s32 %v2557, %v2561
    %v2563 = vadd.s32 %v2562, 536870912
    %v2564 = vshrl.u32 %v2563, 30
    %v2565 = vshll.u32 %v2564, 30
    %v2566 = vsub.s32 %v2562, %v2565
    %vm2567 = vcmp.lt.s32.totalorder %v2566, 0
    %v2568 = vsub.s32 0, %v2566
    %v2569 = vsel %vm2567, %v2568, %v2566
    %v2570 = vclz %v2569
    %v2571 = vsub.s32 %v2570, 2
    %vm2572 = vcmp.gt.s32.totalorder 0, %v2571
    %v2573 = vsel %vm2572, 0, %v2571
    %v2574 = vsub.s32 32, %v2573
    %v2575 = vshll.u32 %v2566, %v2573
    %v2576 = vshrl.u32 %v2558, %v2574
    %v2577 = vor.u32 %v2575, %v2576
    %v2578 = vsub.s32 4294967266, %v2573
    %v2579 = vadd.s32 %v2578, 127
    %v2580 = vshll.u32 %v2579, 23
    %v2581 = vor.u32 4788187, %v2580
    %v2582 = vand.u32 2147483647, %v2581
    %v2584 = vcvt.s32.f32 %v2577
    %v2585 = vmul.f32 %v2584, %v2582
    %v2586 = vxor.u32 %v2585, 2147483648
    %v2587 = vsel %vm2466, %v2586, %v2585
    %v2588 = vsub.s32 4, %v2564
    %v2589 = vsel %vm2466, %v2588, %v2564
    %v2590 = vsel %vm2465, %v290, %v2587
    %v2591 = vsel %vm2465, 0, %v2589
    %v2592 = vmul.f32 %v2590, %v2590
    %v2593 = vmul.f32 %v2592, -0.001358992
    %v2594 = vadd.f32 %v2593, 0.041655596
    %v2595 = vmul.f32 %v2592, %v2594
    %v2596 = vadd.f32 %v2595, -0.4999988
    %v2597 = vmul.f32 %v2592, %v2596
    %v2598 = vadd.f32 1.0, %v2597
    %v2599 = vmul.f32 %v2590, %v2590
    %v2600 = vmul.f32 %v2599, -0.00019511016
    %v2601 = vadd.f32 %v2600, 0.008332121
    %v2602 = vmul.f32 %v2599, %v2601
    %v2603 = vadd.f32 %v2602, -0.16666654
    %v2604 = vmul.f32 %v2599, %v2603
    %v2605 = vadd.f32 %v2604, 1.0
    %v2606 = vmul.f32 %v2605, %v2590
    %vm2607 = vweird.f32 %v290
    %v2608 = vand.u32 %v2591, 3
    %vm2609 = vcmp.lt.s32.totalorder %v2608, 2
    %vm2610 = vcmp.eq.s32.totalorder %v2608, 0
    %v2611 = vxor.u32 %v2606, 2147483648
    %v2612 = vsel %vm2610, %v2598, %v2611
    %vm2613 = vcmp.eq.s32.totalorder %v2608, 2
    %v2614 = vxor.u32 %v2598, 2147483648
    %v2615 = vsel %vm2613, %v2614, %v2606
    %v2616 = vsel %vm2609, %v2612, %v2615
    %v2617 = vsel %vm2607, nan, %v2616
    %v2618 = vand.u32 2147483647, %v291
    %vm2619 = vcmp.le.f32.partialorder %v2618, 0.7853982
    %vm2620 = vcmp.lt.s32.totalorder %v291, 0
    %v2621 = vand.u32 %v291, 2139095040
    %v2622 = vshrl.u32 %v2621, 23
    %v2623 = vsub.s32 %v2622, 127
    %v2624 = vand.u32 2147483647, %v291
    %v2625 = vand.u32 %v2624, 8388607
    %v2626 = vor.u32 %v2625, 8388608
    %v2627 = vsub.s32 0, %v2626
    %v2628 = vadd.s32 %v2623, 1
    %vm2629 = vcmp.gt.s32.totalorder %v2628, 0
    %v2630 = vsel %vm2629, %v2628, 0
    %v2631 = vshrl.u32 %v2630, 5
    %v2632 = vand.u32 %v2630, 31
    %v2633 = vsub.s32 32, %v2632
    %v2634 = vshrl.u32 683565275, %v2633
    %v2635 = vshll.u32 683565275, %v2632
    %v2636 = vshrl.u32 2475754826, %v2633
    %v2637 = vor.u32 %v2635, %v2636
    %v2638 = vshll.u32 2475754826, %v2632
    %v2639 = vshrl.u32 2131351028, %v2633
    %v2640 = vor.u32 %v2638, %v2639
    %v2641 = vshll.u32 2131351028, %v2632
    %v2642 = vshrl.u32 2102212464, %v2633
    %v2643 = vor.u32 %v2641, %v2642
    %v2644 = vshll.u32 2102212464, %v2632
    %v2645 = vshrl.u32 920167782, %v2633
    %v2646 = vor.u32 %v2644, %v2645
    %v2647 = vshll.u32 920167782, %v2632
    %v2648 = vshrl.u32 1326507024, %v2633
    %v2649 = vor.u32 %v2647, %v2648
    %vm2650 = vcmp.lt.s32.totalorder %v2631, 1
    %vm2651 = vcmp.lt.s32.totalorder %v2631, 2
    %vm2652 = vcmp.lt.s32.totalorder %v2631, 3
    %vm2653 = vcmp.lt.s32.totalorder %v2631, 4
    %v2654 = vsel %vm2650, %v2634, %v2637
    %v2655 = vsel %vm2653, %v2643, 2102212464
    %v2656 = vsel %vm2652, %v2640, %v2655
    %v2657 = vsel %vm2651, %v2654, %v2656
    %v2658 = vsel %vm2650, %v2637, %v2640
    %v2659 = vsel %vm2653, %v2646, 920167782
    %v2660 = vsel %vm2652, %v2643, %v2659
    %v2661 = vsel %vm2651, %v2658, %v2660
    %v2662 = vsel %vm2650, %v2640, %v2643
    %v2663 = vsel %vm2653, %v2649, 1326507024
    %v2664 = vsel %vm2652, %v2646, %v2663
    %v2665 = vsel %vm2651, %v2662, %v2664
    %v2666 = vshll.u32 %v2626, 8
    %v2667 = vand.u32 %v2666, 65535
    %v2668 = vshrl.u32 %v2666, 16
    %v2669 = vand.u32 %v2665, 65535
    %v2670 = vshrl.u32 %v2665, 16
    %v2671 = vmul.u32 %v2667, %v2669
    %v2672 = vmul.u32 %v2667, %v2670
    %v2673 = vmul.u32 %v2668, %v2669
    %v2674 = vmul.u32 %v2668, %v2670
    %v2675 = vshll.u32 %v2672, 16
    %v2676 = vshrl.u32 %v2672, 16
    %v2677 = vshll.u32 %v2673, 16
    %v2678 = vshrl.u32 %v2673, 16
    %vm2679 = vc.u32 %v2671, %v2675
    %v2680 = vsel %vm2679, 1, 0
    %v2681 = vadd.s32 %v2671, %v2675
    %v2682 = vadd.s32 %v2674, %v2680
    %vm2683 = vc.u32 %v2681, %v2677
    %v2684 = vsel %vm2683, 1, 0
    %v2685 = vadd.s32 %v2681, %v2677
    %v2686 = vadd.s32 %v2682, %v2684
    %v2687 = vadd.s32 %v2686, %v2676
    %v2688 = vadd.s32 %v2687, %v2678
    %v2689 = vand.u32 %v2666, 65535
    %v2690 = vshrl.u32 %v2666, 16
    %v2691 = vand.u32 %v2661, 65535
    %v2692 = vshrl.u32 %v2661, 16
    %v2693 = vmul.u32 %v2689, %v2691
    %v2694 = vmul.u32 %v2689, %v2692
    %v2695 = vmul.u32 %v2690, %v2691
    %v2696 = vmul.u32 %v2690, %v2692
    %v2697 = vshll.u32 %v2694, 16
    %v2698 = vshrl.u32 %v2694, 16
    %v2699 = vshll.u32 %v2695, 16
    %v2700 = vshrl.u32 %v2695, 16
    %vm2701 = vc.u32 %v2693, %v2697
    %v2702 = vsel %vm2701, 1, 0
    %v2703 = vadd.s32 %v2693, %v2697
    %v2704 = vadd.s32 %v2696, %v2702
    %vm2705 = vc.u32 %v2703, %v2699
    %v2706 = vsel %vm2705, 1, 0
    %v2707 = vadd.s32 %v2703, %v2699
    %v2708 = vadd.s32 %v2704, %v2706
    %v2709 = vadd.s32 %v2708, %v2698
    %v2710 = vadd.s32 %v2709, %v2700
    %v2711 = vmul.u32 %v2666, %v2657
    %v2712 = vadd.s32 %v2688, %v2707
    %vm2713 = vc.u32 %v2688, %v2707
    %v2714 = vadd.s32 %v2710, 1
    %v2715 = vsel %vm2713, %v2714, %v2710
    %v2716 = vadd.s32 %v2711, %v2715
    %v2717 = vadd.s32 %v2716, 536870912
    %v2718 = vshrl.u32 %v2717, 30
    %v2719 = vshll.u32 %v2718, 30
    %v2720 = vsub.s32 %v2716, %v2719
    %vm2721 = vcmp.lt.s32.totalorder %v2720, 0
    %v2722 = vsub.s32 0, %v2720
    %v2723 = vsel %vm2721, %v2722, %v2720
    %v2724 = vclz %v2723
    %v2725 = vsub.s32 %v2724, 2
    %vm2726 = vcmp.gt.s32.totalorder 0, %v2725
    %v2727 = vsel %vm2726, 0, %v2725
    %v2728 = vsub.s32 32, %v2727
    %v2729 = vshll.u32 %v2720, %v2727
    %v2730 = vshrl.u32 %v2712, %v2728
    %v2731 = vor.u32 %v2729, %v2730
    %v2732 = vsub.s32 4294967266, %v2727
    %v2733 = vadd.s32 %v2732, 127
    %v2734 = vshll.u32 %v2733, 23
    %v2735 = vor.u32 4788187, %v2734
    %v2736 = vand.u32 2147483647, %v2735
    %v2738 = vcvt.s32.f32 %v2731
    %v2739 = vmul.f32 %v2738, %v2736
    %v2740 = vxor.u32 %v2739, 2147483648
    %v2741 = vsel %vm2620, %v2740, %v2739
    %v2742 = vsub.s32 4, %v2718
    %v2743 = vsel %vm2620, %v2742, %v2718
    %v2744 = vsel %vm2619, %v291, %v2741
    %v2745 = vsel %vm2619, 0, %v2743
    %v2746 = vmul.f32 %v2744, %v2744
    %v2747 = vmul.f32 %v2746, -0.001358992
    %v2748 = vadd.f32 %v2747, 0.041655596
    %v2749 = vmul.f32 %v2746, %v2748
    %v2750 = vadd.f32 %v2749, -0.4999988
    %v2751 = vmul.f32 %v2746, %v2750
    %v2752 = vadd.f32 1.0, %v2751
    %v2753 = vmul.f32 %v2744, %v2744
    %v2754 = vmul.f32 %v2753, -0.00019511016
    %v2755 = vadd.f32 %v2754, 0.008332121
    %v2756 = vmul.f32 %v2753, %v2755
    %v2757 = vadd.f32 %v2756, -0.16666654
    %v2758 = vmul.f32 %v2753, %v2757
    %v2759 = vadd.f32 %v2758, 1.0
    %v2760 = vmul.f32 %v2759, %v2744
    %vm2761 = vweird.f32 %v291
    %v2762 = vand.u32 %v2745, 3
    %vm2763 = vcmp.lt.s32.totalorder %v2762, 2
    %vm2764 = vcmp.eq.s32.totalorder %v2762, 0
    %v2765 = vxor.u32 %v2760, 2147483648
    %v2766 = vsel %vm2764, %v2752, %v2765
    %vm2767 = vcmp.eq.s32.totalorder %v2762, 2
    %v2768 = vxor.u32 %v2752, 2147483648
    %v2769 = vsel %vm2767, %v2768, %v2760
    %v2770 = vsel %vm2763, %v2766, %v2769
    %v2771 = vsel %vm2761, nan, %v2770
    %v2772 = vand.u32 2147483647, %v292
    %vm2773 = vcmp.le.f32.partialorder %v2772, 0.7853982
    %vm2774 = vcmp.lt.s32.totalorder %v292, 0
    %v2775 = vand.u32 %v292, 2139095040
    %v2776 = vshrl.u32 %v2775, 23
    %v2777 = vsub.s32 %v2776, 127
    %v2778 = vand.u32 2147483647, %v292
    %v2779 = vand.u32 %v2778, 8388607
    %v2780 = vor.u32 %v2779, 8388608
    %v2781 = vsub.s32 0, %v2780
    %v2782 = vadd.s32 %v2777, 1
    %vm2783 = vcmp.gt.s32.totalorder %v2782, 0
    %v2784 = vsel %vm2783, %v2782, 0
    %v2785 = vshrl.u32 %v2784, 5
    %v2786 = vand.u32 %v2784, 31
    %v2787 = vsub.s32 32, %v2786
    %v2788 = vshrl.u32 683565275, %v2787
    %v2789 = vshll.u32 683565275, %v2786
    %v2790 = vshrl.u32 2475754826, %v2787
    %v2791 = vor.u32 %v2789, %v2790
    %v2792 = vshll.u32 2475754826, %v2786
    %v2793 = vshrl.u32 2131351028, %v2787
    %v2794 = vor.u32 %v2792, %v2793
    %v2795 = vshll.u32 2131351028, %v2786
    %v2796 = vshrl.u32 2102212464, %v2787
    %v2797 = vor.u32 %v2795, %v2796
    %v2798 = vshll.u32 2102212464, %v2786
    %v2799 = vshrl.u32 920167782, %v2787
    %v2800 = vor.u32 %v2798, %v2799
    %v2801 = vshll.u32 920167782, %v2786
    %v2802 = vshrl.u32 1326507024, %v2787
    %v2803 = vor.u32 %v2801, %v2802
    %vm2804 = vcmp.lt.s32.totalorder %v2785, 1
    %vm2805 = vcmp.lt.s32.totalorder %v2785, 2
    %vm2806 = vcmp.lt.s32.totalorder %v2785, 3
    %vm2807 = vcmp.lt.s32.totalorder %v2785, 4
    %v2808 = vsel %vm2804, %v2788, %v2791
    %v2809 = vsel %vm2807, %v2797, 2102212464
    %v2810 = vsel %vm2806, %v2794, %v2809
    %v2811 = vsel %vm2805, %v2808, %v2810
    %v2812 = vsel %vm2804, %v2791, %v2794
    %v2813 = vsel %vm2807, %v2800, 920167782
    %v2814 = vsel %vm2806, %v2797, %v2813
    %v2815 = vsel %vm2805, %v2812, %v2814
    %v2816 = vsel %vm2804, %v2794, %v2797
    %v2817 = vsel %vm2807, %v2803, 1326507024
    %v2818 = vsel %vm2806, %v2800, %v2817
    %v2819 = vsel %vm2805, %v2816, %v2818
    %v2820 = vshll.u32 %v2780, 8
    %v2821 = vand.u32 %v2820, 65535
    %v2822 = vshrl.u32 %v2820, 16
    %v2823 = vand.u32 %v2819, 65535
    %v2824 = vshrl.u32 %v2819, 16
    %v2825 = vmul.u32 %v2821, %v2823
    %v2826 = vmul.u32 %v2821, %v2824
    %v2827 = vmul.u32 %v2822, %v2823
    %v2828 = vmul.u32 %v2822, %v2824
    %v2829 = vshll.u32 %v2826, 16
    %v2830 = vshrl.u32 %v2826, 16
    %v2831 = vshll.u32 %v2827, 16
    %v2832 = vshrl.u32 %v2827, 16
    %vm2833 = vc.u32 %v2825, %v2829
    %v2834 = vsel %vm2833, 1, 0
    %v2835 = vadd.s32 %v2825, %v2829
    %v2836 = vadd.s32 %v2828, %v2834
    %vm2837 = vc.u32 %v2835, %v2831
    %v2838 = vsel %vm2837, 1, 0
    %v2839 = vadd.s32 %v2835, %v2831
    %v2840 = vadd.s32 %v2836, %v2838
    %v2841 = vadd.s32 %v2840, %v2830
    %v2842 = vadd.s32 %v2841, %v2832
    %v2843 = vand.u32 %v2820, 65535
    %v2844 = vshrl.u32 %v2820, 16
    %v2845 = vand.u32 %v2815, 65535
    %v2846 = vshrl.u32 %v2815, 16
    %v2847 = vmul.u32 %v2843, %v2845
    %v2848 = vmul.u32 %v2843, %v2846
    %v2849 = vmul.u32 %v2844, %v2845
    %v2850 = vmul.u32 %v2844, %v2846
    %v2851 = vshll.u32 %v2848, 16
    %v2852 = vshrl.u32 %v2848, 16
    %v2853 = vshll.u32 %v2849, 16
    %v2854 = vshrl.u32 %v2849, 16
    %vm2855 = vc.u32 %v2847, %v2851
    %v2856 = vsel %vm2855, 1, 0
    %v2857 = vadd.s32 %v2847, %v2851
    %v2858 = vadd.s32 %v2850, %v2856
    %vm2859 = vc.u32 %v2857, %v2853
    %v2860 = vsel %vm2859, 1, 0
    %v2861 = vadd.s32 %v2857, %v2853
    %v2862 = vadd.s32 %v2858, %v2860
    %v2863 = vadd.s32 %v2862, %v2852
    %v2864 = vadd.s32 %v2863, %v2854
    %v2865 = vmul.u32 %v2820, %v2811
    %v2866 = vadd.s32 %v2842, %v2861
    %vm2867 = vc.u32 %v2842, %v2861
    %v2868 = vadd.s32 %v2864, 1
    %v2869 = vsel %vm2867, %v2868, %v2864
    %v2870 = vadd.s32 %v2865, %v2869
    %v2871 = vadd.s32 %v2870, 536870912
    %v2872 = vshrl.u32 %v2871, 30
    %v2873 = vshll.u32 %v2872, 30
    %v2874 = vsub.s32 %v2870, %v2873
    %vm2875 = vcmp.lt.s32.totalorder %v2874, 0
    %v2876 = vsub.s32 0, %v2874
    %v2877 = vsel %vm2875, %v2876, %v2874
    %v2878 = vclz %v2877
    %v2879 = vsub.s32 %v2878, 2
    %vm2880 = vcmp.gt.s32.totalorder 0, %v2879
    %v2881 = vsel %vm2880, 0, %v2879
    %v2882 = vsub.s32 32, %v2881
    %v2883 = vshll.u32 %v2874, %v2881
    %v2884 = vshrl.u32 %v2866, %v2882
    %v2885 = vor.u32 %v2883, %v2884
    %v2886 = vsub.s32 4294967266, %v2881
    %v2887 = vadd.s32 %v2886, 127
    %v2888 = vshll.u32 %v2887, 23
    %v2889 = vor.u32 4788187, %v2888
    %v2890 = vand.u32 2147483647, %v2889
    %v2892 = vcvt.s32.f32 %v2885
    %v2893 = vmul.f32 %v2892, %v2890
    %v2894 = vxor.u32 %v2893, 2147483648
    %v2895 = vsel %vm2774, %v2894, %v2893
    %v2896 = vsub.s32 4, %v2872
    %v2897 = vsel %vm2774, %v2896, %v2872
    %v2898 = vsel %vm2773, %v292, %v2895
    %v2899 = vsel %vm2773, 0, %v2897
    %v2900 = vmul.f32 %v2898, %v2898
    %v2901 = vmul.f32 %v2900, -0.001358992
    %v2902 = vadd.f32 %v2901, 0.041655596
    %v2903 = vmul.f32 %v2900, %v2902
    %v2904 = vadd.f32 %v2903, -0.4999988
    %v2905 = vmul.f32 %v2900, %v2904
    %v2906 = vadd.f32 1.0, %v2905
    %v2907 = vmul.f32 %v2898, %v2898
    %v2908 = vmul.f32 %v2907, -0.00019511016
    %v2909 = vadd.f32 %v2908, 0.008332121
    %v2910 = vmul.f32 %v2907, %v2909
    %v2911 = vadd.f32 %v2910, -0.16666654
    %v2912 = vmul.f32 %v2907, %v2911
    %v2913 = vadd.f32 %v2912, 1.0
    %v2914 = vmul.f32 %v2913, %v2898
    %vm2915 = vweird.f32 %v292
    %v2916 = vand.u32 %v2899, 3
    %vm2917 = vcmp.lt.s32.totalorder %v2916, 2
    %vm2918 = vcmp.eq.s32.totalorder %v2916, 0
    %v2919 = vxor.u32 %v2914, 2147483648
    %v2920 = vsel %vm2918, %v2906, %v2919
    %vm2921 = vcmp.eq.s32.totalorder %v2916, 2
    %v2922 = vxor.u32 %v2906, 2147483648
    %v2923 = vsel %vm2921, %v2922, %v2914
    %v2924 = vsel %vm2917, %v2920, %v2923
    %v2925 = vsel %vm2915, nan, %v2924
    %v2926 = vand.u32 2147483647, %v293
    %vm2927 = vcmp.le.f32.partialorder %v2926, 0.7853982
    %vm2928 = vcmp.lt.s32.totalorder %v293, 0
    %v2929 = vand.u32 %v293, 2139095040
    %v2930 = vshrl.u32 %v2929, 23
    %v2931 = vsub.s32 %v2930, 127
    %v2932 = vand.u32 2147483647, %v293
    %v2933 = vand.u32 %v2932, 8388607
    %v2934 = vor.u32 %v2933, 8388608
    %v2935 = vsub.s32 0, %v2934
    %v2936 = vadd.s32 %v2931, 1
    %vm2937 = vcmp.gt.s32.totalorder %v2936, 0
    %v2938 = vsel %vm2937, %v2936, 0
    %v2939 = vshrl.u32 %v2938, 5
    %v2940 = vand.u32 %v2938, 31
    %v2941 = vsub.s32 32, %v2940
    %v2942 = vshrl.u32 683565275, %v2941
    %v2943 = vshll.u32 683565275, %v2940
    %v2944 = vshrl.u32 2475754826, %v2941
    %v2945 = vor.u32 %v2943, %v2944
    %v2946 = vshll.u32 2475754826, %v2940
    %v2947 = vshrl.u32 2131351028, %v2941
    %v2948 = vor.u32 %v2946, %v2947
    %v2949 = vshll.u32 2131351028, %v2940
    %v2950 = vshrl.u32 2102212464, %v2941
    %v2951 = vor.u32 %v2949, %v2950
    %v2952 = vshll.u32 2102212464, %v2940
    %v2953 = vshrl.u32 920167782, %v2941
    %v2954 = vor.u32 %v2952, %v2953
    %v2955 = vshll.u32 920167782, %v2940
    %v2956 = vshrl.u32 1326507024, %v2941
    %v2957 = vor.u32 %v2955, %v2956
    %vm2958 = vcmp.lt.s32.totalorder %v2939, 1
    %vm2959 = vcmp.lt.s32.totalorder %v2939, 2
    %vm2960 = vcmp.lt.s32.totalorder %v2939, 3
    %vm2961 = vcmp.lt.s32.totalorder %v2939, 4
    %v2962 = vsel %vm2958, %v2942, %v2945
    %v2963 = vsel %vm2961, %v2951, 2102212464
    %v2964 = vsel %vm2960, %v2948, %v2963
    %v2965 = vsel %vm2959, %v2962, %v2964
    %v2966 = vsel %vm2958, %v2945, %v2948
    %v2967 = vsel %vm2961, %v2954, 920167782
    %v2968 = vsel %vm2960, %v2951, %v2967
    %v2969 = vsel %vm2959, %v2966, %v2968
    %v2970 = vsel %vm2958, %v2948, %v2951
    %v2971 = vsel %vm2961, %v2957, 1326507024
    %v2972 = vsel %vm2960, %v2954, %v2971
    %v2973 = vsel %vm2959, %v2970, %v2972
    %v2974 = vshll.u32 %v2934, 8
    %v2975 = vand.u32 %v2974, 65535
    %v2976 = vshrl.u32 %v2974, 16
    %v2977 = vand.u32 %v2973, 65535
    %v2978 = vshrl.u32 %v2973, 16
    %v2979 = vmul.u32 %v2975, %v2977
    %v2980 = vmul.u32 %v2975, %v2978
    %v2981 = vmul.u32 %v2976, %v2977
    %v2982 = vmul.u32 %v2976, %v2978
    %v2983 = vshll.u32 %v2980, 16
    %v2984 = vshrl.u32 %v2980, 16
    %v2985 = vshll.u32 %v2981, 16
    %v2986 = vshrl.u32 %v2981, 16
    %vm2987 = vc.u32 %v2979, %v2983
    %v2988 = vsel %vm2987, 1, 0
    %v2989 = vadd.s32 %v2979, %v2983
    %v2990 = vadd.s32 %v2982, %v2988
    %vm2991 = vc.u32 %v2989, %v2985
    %v2992 = vsel %vm2991, 1, 0
    %v2993 = vadd.s32 %v2989, %v2985
    %v2994 = vadd.s32 %v2990, %v2992
    %v2995 = vadd.s32 %v2994, %v2984
    %v2996 = vadd.s32 %v2995, %v2986
    %v2997 = vand.u32 %v2974, 65535
    %v2998 = vshrl.u32 %v2974, 16
    %v2999 = vand.u32 %v2969, 65535
    %v3000 = vshrl.u32 %v2969, 16
    %v3001 = vmul.u32 %v2997, %v2999
    %v3002 = vmul.u32 %v2997, %v3000
    %v3003 = vmul.u32 %v2998, %v2999
    %v3004 = vmul.u32 %v2998, %v3000
    %v3005 = vshll.u32 %v3002, 16
    %v3006 = vshrl.u32 %v3002, 16
    %v3007 = vshll.u32 %v3003, 16
    %v3008 = vshrl.u32 %v3003, 16
    %vm3009 = vc.u32 %v3001, %v3005
    %v3010 = vsel %vm3009, 1, 0
    %v3011 = vadd.s32 %v3001, %v3005
    %v3012 = vadd.s32 %v3004, %v3010
    %vm3013 = vc.u32 %v3011, %v3007
    %v3014 = vsel %vm3013, 1, 0
    %v3015 = vadd.s32 %v3011, %v3007
    %v3016 = vadd.s32 %v3012, %v3014
    %v3017 = vadd.s32 %v3016, %v3006
    %v3018 = vadd.s32 %v3017, %v3008
    %v3019 = vmul.u32 %v2974, %v2965
    %v3020 = vadd.s32 %v2996, %v3015
    %vm3021 = vc.u32 %v2996, %v3015
    %v3022 = vadd.s32 %v3018, 1
    %v3023 = vsel %vm3021, %v3022, %v3018
    %v3024 = vadd.s32 %v3019, %v3023
    %v3025 = vadd.s32 %v3024, 536870912
    %v3026 = vshrl.u32 %v3025, 30
    %v3027 = vshll.u32 %v3026, 30
    %v3028 = vsub.s32 %v3024, %v3027
    %vm3029 = vcmp.lt.s32.totalorder %v3028, 0
    %v3030 = vsub.s32 0, %v3028
    %v3031 = vsel %vm3029, %v3030, %v3028
    %v3032 = vclz %v3031
    %v3033 = vsub.s32 %v3032, 2
    %vm3034 = vcmp.gt.s32.totalorder 0, %v3033
    %v3035 = vsel %vm3034, 0, %v3033
    %v3036 = vsub.s32 32, %v3035
    %v3037 = vshll.u32 %v3028, %v3035
    %v3038 = vshrl.u32 %v3020, %v3036
    %v3039 = vor.u32 %v3037, %v3038
    %v3040 = vsub.s32 4294967266, %v3035
    %v3041 = vadd.s32 %v3040, 127
    %v3042 = vshll.u32 %v3041, 23
    %v3043 = vor.u32 4788187, %v3042
    %v3044 = vand.u32 2147483647, %v3043
    %v3046 = vcvt.s32.f32 %v3039
    %v3047 = vmul.f32 %v3046, %v3044
    %v3048 = vxor.u32 %v3047, 2147483648
    %v3049 = vsel %vm2928, %v3048, %v3047
    %v3050 = vsub.s32 4, %v3026
    %v3051 = vsel %vm2928, %v3050, %v3026
    %v3052 = vsel %vm2927, %v293, %v3049
    %v3053 = vsel %vm2927, 0, %v3051
    %v3054 = vmul.f32 %v3052, %v3052
    %v3055 = vmul.f32 %v3054, -0.001358992
    %v3056 = vadd.f32 %v3055, 0.041655596
    %v3057 = vmul.f32 %v3054, %v3056
    %v3058 = vadd.f32 %v3057, -0.4999988
    %v3059 = vmul.f32 %v3054, %v3058
    %v3060 = vadd.f32 1.0, %v3059
    %v3061 = vmul.f32 %v3052, %v3052
    %v3062 = vmul.f32 %v3061, -0.00019511016
    %v3063 = vadd.f32 %v3062, 0.008332121
    %v3064 = vmul.f32 %v3061, %v3063
    %v3065 = vadd.f32 %v3064, -0.16666654
    %v3066 = vmul.f32 %v3061, %v3065
    %v3067 = vadd.f32 %v3066, 1.0
    %v3068 = vmul.f32 %v3067, %v3052
    %vm3069 = vweird.f32 %v293
    %v3070 = vand.u32 %v3053, 3
    %vm3071 = vcmp.lt.s32.totalorder %v3070, 2
    %vm3072 = vcmp.eq.s32.totalorder %v3070, 0
    %v3073 = vxor.u32 %v3068, 2147483648
    %v3074 = vsel %vm3072, %v3060, %v3073
    %vm3075 = vcmp.eq.s32.totalorder %v3070, 2
    %v3076 = vxor.u32 %v3060, 2147483648
    %v3077 = vsel %vm3075, %v3076, %v3068
    %v3078 = vsel %vm3071, %v3074, %v3077
    %v3079 = vsel %vm3069, nan, %v3078
    %v3080 = vand.u32 2147483647, %v294
    %vm3081 = vcmp.le.f32.partialorder %v3080, 0.7853982
    %vm3082 = vcmp.lt.s32.totalorder %v294, 0
    %v3083 = vand.u32 %v294, 2139095040
    %v3084 = vshrl.u32 %v3083, 23
    %v3085 = vsub.s32 %v3084, 127
    %v3086 = vand.u32 2147483647, %v294
    %v3087 = vand.u32 %v3086, 8388607
    %v3088 = vor.u32 %v3087, 8388608
    %v3089 = vsub.s32 0, %v3088
    %v3090 = vadd.s32 %v3085, 1
    %vm3091 = vcmp.gt.s32.totalorder %v3090, 0
    %v3092 = vsel %vm3091, %v3090, 0
    %v3093 = vshrl.u32 %v3092, 5
    %v3094 = vand.u32 %v3092, 31
    %v3095 = vsub.s32 32, %v3094
    %v3096 = vshrl.u32 683565275, %v3095
    %v3097 = vshll.u32 683565275, %v3094
    %v3098 = vshrl.u32 2475754826, %v3095
    %v3099 = vor.u32 %v3097, %v3098
    %v3100 = vshll.u32 2475754826, %v3094
    %v3101 = vshrl.u32 2131351028, %v3095
    %v3102 = vor.u32 %v3100, %v3101
    %v3103 = vshll.u32 2131351028, %v3094
    %v3104 = vshrl.u32 2102212464, %v3095
    %v3105 = vor.u32 %v3103, %v3104
    %v3106 = vshll.u32 2102212464, %v3094
    %v3107 = vshrl.u32 920167782, %v3095
    %v3108 = vor.u32 %v3106, %v3107
    %v3109 = vshll.u32 920167782, %v3094
    %v3110 = vshrl.u32 1326507024, %v3095
    %v3111 = vor.u32 %v3109, %v3110
    %vm3112 = vcmp.lt.s32.totalorder %v3093, 1
    %vm3113 = vcmp.lt.s32.totalorder %v3093, 2
    %vm3114 = vcmp.lt.s32.totalorder %v3093, 3
    %vm3115 = vcmp.lt.s32.totalorder %v3093, 4
    %v3116 = vsel %vm3112, %v3096, %v3099
    %v3117 = vsel %vm3115, %v3105, 2102212464
    %v3118 = vsel %vm3114, %v3102, %v3117
    %v3119 = vsel %vm3113, %v3116, %v3118
    %v3120 = vsel %vm3112, %v3099, %v3102
    %v3121 = vsel %vm3115, %v3108, 920167782
    %v3122 = vsel %vm3114, %v3105, %v3121
    %v3123 = vsel %vm3113, %v3120, %v3122
    %v3124 = vsel %vm3112, %v3102, %v3105
    %v3125 = vsel %vm3115, %v3111, 1326507024
    %v3126 = vsel %vm3114, %v3108, %v3125
    %v3127 = vsel %vm3113, %v3124, %v3126
    %v3128 = vshll.u32 %v3088, 8
    %v3129 = vand.u32 %v3128, 65535
    %v3130 = vshrl.u32 %v3128, 16
    %v3131 = vand.u32 %v3127, 65535
    %v3132 = vshrl.u32 %v3127, 16
    %v3133 = vmul.u32 %v3129, %v3131
    %v3134 = vmul.u32 %v3129, %v3132
    %v3135 = vmul.u32 %v3130, %v3131
    %v3136 = vmul.u32 %v3130, %v3132
    %v3137 = vshll.u32 %v3134, 16
    %v3138 = vshrl.u32 %v3134, 16
    %v3139 = vshll.u32 %v3135, 16
    %v3140 = vshrl.u32 %v3135, 16
    %vm3141 = vc.u32 %v3133, %v3137
    %v3142 = vsel %vm3141, 1, 0
    %v3143 = vadd.s32 %v3133, %v3137
    %v3144 = vadd.s32 %v3136, %v3142
    %vm3145 = vc.u32 %v3143, %v3139
    %v3146 = vsel %vm3145, 1, 0
    %v3147 = vadd.s32 %v3143, %v3139
    %v3148 = vadd.s32 %v3144, %v3146
    %v3149 = vadd.s32 %v3148, %v3138
    %v3150 = vadd.s32 %v3149, %v3140
    %v3151 = vand.u32 %v3128, 65535
    %v3152 = vshrl.u32 %v3128, 16
    %v3153 = vand.u32 %v3123, 65535
    %v3154 = vshrl.u32 %v3123, 16
    %v3155 = vmul.u32 %v3151, %v3153
    %v3156 = vmul.u32 %v3151, %v3154
    %v3157 = vmul.u32 %v3152, %v3153
    %v3158 = vmul.u32 %v3152, %v3154
    %v3159 = vshll.u32 %v3156, 16
    %v3160 = vshrl.u32 %v3156, 16
    %v3161 = vshll.u32 %v3157, 16
    %v3162 = vshrl.u32 %v3157, 16
    %vm3163 = vc.u32 %v3155, %v3159
    %v3164 = vsel %vm3163, 1, 0
    %v3165 = vadd.s32 %v3155, %v3159
    %v3166 = vadd.s32 %v3158, %v3164
    %vm3167 = vc.u32 %v3165, %v3161
    %v3168 = vsel %vm3167, 1, 0
    %v3169 = vadd.s32 %v3165, %v3161
    %v3170 = vadd.s32 %v3166, %v3168
    %v3171 = vadd.s32 %v3170, %v3160
    %v3172 = vadd.s32 %v3171, %v3162
    %v3173 = vmul.u32 %v3128, %v3119
    %v3174 = vadd.s32 %v3150, %v3169
    %vm3175 = vc.u32 %v3150, %v3169
    %v3176 = vadd.s32 %v3172, 1
    %v3177 = vsel %vm3175, %v3176, %v3172
    %v3178 = vadd.s32 %v3173, %v3177
    %v3179 = vadd.s32 %v3178, 536870912
    %v3180 = vshrl.u32 %v3179, 30
    %v3181 = vshll.u32 %v3180, 30
    %v3182 = vsub.s32 %v3178, %v3181
    %vm3183 = vcmp.lt.s32.totalorder %v3182, 0
    %v3184 = vsub.s32 0, %v3182
    %v3185 = vsel %vm3183, %v3184, %v3182
    %v3186 = vclz %v3185
    %v3187 = vsub.s32 %v3186, 2
    %vm3188 = vcmp.gt.s32.totalorder 0, %v3187
    %v3189 = vsel %vm3188, 0, %v3187
    %v3190 = vsub.s32 32, %v3189
    %v3191 = vshll.u32 %v3182, %v3189
    %v3192 = vshrl.u32 %v3174, %v3190
    %v3193 = vor.u32 %v3191, %v3192
    %v3194 = vsub.s32 4294967266, %v3189
    %v3195 = vadd.s32 %v3194, 127
    %v3196 = vshll.u32 %v3195, 23
    %v3197 = vor.u32 4788187, %v3196
    %v3198 = vand.u32 2147483647, %v3197
    %v3200 = vcvt.s32.f32 %v3193
    %v3201 = vmul.f32 %v3200, %v3198
    %v3202 = vxor.u32 %v3201, 2147483648
    %v3203 = vsel %vm3082, %v3202, %v3201
    %v3204 = vsub.s32 4, %v3180
    %v3205 = vsel %vm3082, %v3204, %v3180
    %v3206 = vsel %vm3081, %v294, %v3203
    %v3207 = vsel %vm3081, 0, %v3205
    %v3208 = vmul.f32 %v3206, %v3206
    %v3209 = vmul.f32 %v3208, -0.001358992
    %v3210 = vadd.f32 %v3209, 0.041655596
    %v3211 = vmul.f32 %v3208, %v3210
    %v3212 = vadd.f32 %v3211, -0.4999988
    %v3213 = vmul.f32 %v3208, %v3212
    %v3214 = vadd.f32 1.0, %v3213
    %v3215 = vmul.f32 %v3206, %v3206
    %v3216 = vmul.f32 %v3215, -0.00019511016
    %v3217 = vadd.f32 %v3216, 0.008332121
    %v3218 = vmul.f32 %v3215, %v3217
    %v3219 = vadd.f32 %v3218, -0.16666654
    %v3220 = vmul.f32 %v3215, %v3219
    %v3221 = vadd.f32 %v3220, 1.0
    %v3222 = vmul.f32 %v3221, %v3206
    %vm3223 = vweird.f32 %v294
    %v3224 = vand.u32 %v3207, 3
    %vm3225 = vcmp.lt.s32.totalorder %v3224, 2
    %vm3226 = vcmp.eq.s32.totalorder %v3224, 0
    %v3227 = vxor.u32 %v3222, 2147483648
    %v3228 = vsel %vm3226, %v3214, %v3227
    %vm3229 = vcmp.eq.s32.totalorder %v3224, 2
    %v3230 = vxor.u32 %v3214, 2147483648
    %v3231 = vsel %vm3229, %v3230, %v3222
    %v3232 = vsel %vm3225, %v3228, %v3231
    %v3233 = vsel %vm3223, nan, %v3232
    %v3234 = vand.u32 2147483647, %v295
    %vm3235 = vcmp.le.f32.partialorder %v3234, 0.7853982
    %vm3236 = vcmp.lt.s32.totalorder %v295, 0
    %v3237 = vand.u32 %v295, 2139095040
    %v3238 = vshrl.u32 %v3237, 23
    %v3239 = vsub.s32 %v3238, 127
    %v3240 = vand.u32 2147483647, %v295
    %v3241 = vand.u32 %v3240, 8388607
    %v3242 = vor.u32 %v3241, 8388608
    %v3243 = vsub.s32 0, %v3242
    %v3244 = vadd.s32 %v3239, 1
    %vm3245 = vcmp.gt.s32.totalorder %v3244, 0
    %v3246 = vsel %vm3245, %v3244, 0
    %v3247 = vshrl.u32 %v3246, 5
    %v3248 = vand.u32 %v3246, 31
    %v3249 = vsub.s32 32, %v3248
    %v3250 = vshrl.u32 683565275, %v3249
    %v3251 = vshll.u32 683565275, %v3248
    %v3252 = vshrl.u32 2475754826, %v3249
    %v3253 = vor.u32 %v3251, %v3252
    %v3254 = vshll.u32 2475754826, %v3248
    %v3255 = vshrl.u32 2131351028, %v3249
    %v3256 = vor.u32 %v3254, %v3255
    %v3257 = vshll.u32 2131351028, %v3248
    %v3258 = vshrl.u32 2102212464, %v3249
    %v3259 = vor.u32 %v3257, %v3258
    %v3260 = vshll.u32 2102212464, %v3248
    %v3261 = vshrl.u32 920167782, %v3249
    %v3262 = vor.u32 %v3260, %v3261
    %v3263 = vshll.u32 920167782, %v3248
    %v3264 = vshrl.u32 1326507024, %v3249
    %v3265 = vor.u32 %v3263, %v3264
    %vm3266 = vcmp.lt.s32.totalorder %v3247, 1
    %vm3267 = vcmp.lt.s32.totalorder %v3247, 2
    %vm3268 = vcmp.lt.s32.totalorder %v3247, 3
    %vm3269 = vcmp.lt.s32.totalorder %v3247, 4
    %v3270 = vsel %vm3266, %v3250, %v3253
    %v3271 = vsel %vm3269, %v3259, 2102212464
    %v3272 = vsel %vm3268, %v3256, %v3271
    %v3273 = vsel %vm3267, %v3270, %v3272
    %v3274 = vsel %vm3266, %v3253, %v3256
    %v3275 = vsel %vm3269, %v3262, 920167782
    %v3276 = vsel %vm3268, %v3259, %v3275
    %v3277 = vsel %vm3267, %v3274, %v3276
    %v3278 = vsel %vm3266, %v3256, %v3259
    %v3279 = vsel %vm3269, %v3265, 1326507024
    %v3280 = vsel %vm3268, %v3262, %v3279
    %v3281 = vsel %vm3267, %v3278, %v3280
    %v3282 = vshll.u32 %v3242, 8
    %v3283 = vand.u32 %v3282, 65535
    %v3284 = vshrl.u32 %v3282, 16
    %v3285 = vand.u32 %v3281, 65535
    %v3286 = vshrl.u32 %v3281, 16
    %v3287 = vmul.u32 %v3283, %v3285
    %v3288 = vmul.u32 %v3283, %v3286
    %v3289 = vmul.u32 %v3284, %v3285
    %v3290 = vmul.u32 %v3284, %v3286
    %v3291 = vshll.u32 %v3288, 16
    %v3292 = vshrl.u32 %v3288, 16
    %v3293 = vshll.u32 %v3289, 16
    %v3294 = vshrl.u32 %v3289, 16
    %vm3295 = vc.u32 %v3287, %v3291
    %v3296 = vsel %vm3295, 1, 0
    %v3297 = vadd.s32 %v3287, %v3291
    %v3298 = vadd.s32 %v3290, %v3296
    %vm3299 = vc.u32 %v3297, %v3293
    %v3300 = vsel %vm3299, 1, 0
    %v3301 = vadd.s32 %v3297, %v3293
    %v3302 = vadd.s32 %v3298, %v3300
    %v3303 = vadd.s32 %v3302, %v3292
    %v3304 = vadd.s32 %v3303, %v3294
    %v3305 = vand.u32 %v3282, 65535
    %v3306 = vshrl.u32 %v3282, 16
    %v3307 = vand.u32 %v3277, 65535
    %v3308 = vshrl.u32 %v3277, 16
    %v3309 = vmul.u32 %v3305, %v3307
    %v3310 = vmul.u32 %v3305, %v3308
    %v3311 = vmul.u32 %v3306, %v3307
    %v3312 = vmul.u32 %v3306, %v3308
    %v3313 = vshll.u32 %v3310, 16
    %v3314 = vshrl.u32 %v3310, 16
    %v3315 = vshll.u32 %v3311, 16
    %v3316 = vshrl.u32 %v3311, 16
    %vm3317 = vc.u32 %v3309, %v3313
    %v3318 = vsel %vm3317, 1, 0
    %v3319 = vadd.s32 %v3309, %v3313
    %v3320 = vadd.s32 %v3312, %v3318
    %vm3321 = vc.u32 %v3319, %v3315
    %v3322 = vsel %vm3321, 1, 0
    %v3323 = vadd.s32 %v3319, %v3315
    %v3324 = vadd.s32 %v3320, %v3322
    %v3325 = vadd.s32 %v3324, %v3314
    %v3326 = vadd.s32 %v3325, %v3316
    %v3327 = vmul.u32 %v3282, %v3273
    %v3328 = vadd.s32 %v3304, %v3323
    %vm3329 = vc.u32 %v3304, %v3323
    %v3330 = vadd.s32 %v3326, 1
    %v3331 = vsel %vm3329, %v3330, %v3326
    %v3332 = vadd.s32 %v3327, %v3331
    %v3333 = vadd.s32 %v3332, 536870912
    %v3334 = vshrl.u32 %v3333, 30
    %v3335 = vshll.u32 %v3334, 30
    %v3336 = vsub.s32 %v3332, %v3335
    %vm3337 = vcmp.lt.s32.totalorder %v3336, 0
    %v3338 = vsub.s32 0, %v3336
    %v3339 = vsel %vm3337, %v3338, %v3336
    %v3340 = vclz %v3339
    %v3341 = vsub.s32 %v3340, 2
    %vm3342 = vcmp.gt.s32.totalorder 0, %v3341
    %v3343 = vsel %vm3342, 0, %v3341
    %v3344 = vsub.s32 32, %v3343
    %v3345 = vshll.u32 %v3336, %v3343
    %v3346 = vshrl.u32 %v3328, %v3344
    %v3347 = vor.u32 %v3345, %v3346
    %v3348 = vsub.s32 4294967266, %v3343
    %v3349 = vadd.s32 %v3348, 127
    %v3350 = vshll.u32 %v3349, 23
    %v3351 = vor.u32 4788187, %v3350
    %v3352 = vand.u32 2147483647, %v3351
    %v3354 = vcvt.s32.f32 %v3347
    %v3355 = vmul.f32 %v3354, %v3352
    %v3356 = vxor.u32 %v3355, 2147483648
    %v3357 = vsel %vm3236, %v3356, %v3355
    %v3358 = vsub.s32 4, %v3334
    %v3359 = vsel %vm3236, %v3358, %v3334
    %v3360 = vsel %vm3235, %v295, %v3357
    %v3361 = vsel %vm3235, 0, %v3359
    %v3362 = vmul.f32 %v3360, %v3360
    %v3363 = vmul.f32 %v3362, -0.001358992
    %v3364 = vadd.f32 %v3363, 0.041655596
    %v3365 = vmul.f32 %v3362, %v3364
    %v3366 = vadd.f32 %v3365, -0.4999988
    %v3367 = vmul.f32 %v3362, %v3366
    %v3368 = vadd.f32 1.0, %v3367
    %v3369 = vmul.f32 %v3360, %v3360
    %v3370 = vmul.f32 %v3369, -0.00019511016
    %v3371 = vadd.f32 %v3370, 0.008332121
    %v3372 = vmul.f32 %v3369, %v3371
    %v3373 = vadd.f32 %v3372, -0.16666654
    %v3374 = vmul.f32 %v3369, %v3373
    %v3375 = vadd.f32 %v3374, 1.0
    %v3376 = vmul.f32 %v3375, %v3360
    %vm3377 = vweird.f32 %v295
    %v3378 = vand.u32 %v3361, 3
    %vm3379 = vcmp.lt.s32.totalorder %v3378, 2
    %vm3380 = vcmp.eq.s32.totalorder %v3378, 0
    %v3381 = vxor.u32 %v3376, 2147483648
    %v3382 = vsel %vm3380, %v3368, %v3381
    %vm3383 = vcmp.eq.s32.totalorder %v3378, 2
    %v3384 = vxor.u32 %v3368, 2147483648
    %v3385 = vsel %vm3383, %v3384, %v3376
    %v3386 = vsel %vm3379, %v3382, %v3385
    %v3387 = vsel %vm3377, nan, %v3386
    %v3388 = vand.u32 2147483647, %v296
    %vm3389 = vcmp.le.f32.partialorder %v3388, 0.7853982
    %vm3390 = vcmp.lt.s32.totalorder %v296, 0
    %v3391 = vand.u32 %v296, 2139095040
    %v3392 = vshrl.u32 %v3391, 23
    %v3393 = vsub.s32 %v3392, 127
    %v3394 = vand.u32 2147483647, %v296
    %v3395 = vand.u32 %v3394, 8388607
    %v3396 = vor.u32 %v3395, 8388608
    %v3397 = vsub.s32 0, %v3396
    %v3398 = vadd.s32 %v3393, 1
    %vm3399 = vcmp.gt.s32.totalorder %v3398, 0
    %v3400 = vsel %vm3399, %v3398, 0
    %v3401 = vshrl.u32 %v3400, 5
    %v3402 = vand.u32 %v3400, 31
    %v3403 = vsub.s32 32, %v3402
    %v3404 = vshrl.u32 683565275, %v3403
    %v3405 = vshll.u32 683565275, %v3402
    %v3406 = vshrl.u32 2475754826, %v3403
    %v3407 = vor.u32 %v3405, %v3406
    %v3408 = vshll.u32 2475754826, %v3402
    %v3409 = vshrl.u32 2131351028, %v3403
    %v3410 = vor.u32 %v3408, %v3409
    %v3411 = vshll.u32 2131351028, %v3402
    %v3412 = vshrl.u32 2102212464, %v3403
    %v3413 = vor.u32 %v3411, %v3412
    %v3414 = vshll.u32 2102212464, %v3402
    %v3415 = vshrl.u32 920167782, %v3403
    %v3416 = vor.u32 %v3414, %v3415
    %v3417 = vshll.u32 920167782, %v3402
    %v3418 = vshrl.u32 1326507024, %v3403
    %v3419 = vor.u32 %v3417, %v3418
    %vm3420 = vcmp.lt.s32.totalorder %v3401, 1
    %vm3421 = vcmp.lt.s32.totalorder %v3401, 2
    %vm3422 = vcmp.lt.s32.totalorder %v3401, 3
    %vm3423 = vcmp.lt.s32.totalorder %v3401, 4
    %v3424 = vsel %vm3420, %v3404, %v3407
    %v3425 = vsel %vm3423, %v3413, 2102212464
    %v3426 = vsel %vm3422, %v3410, %v3425
    %v3427 = vsel %vm3421, %v3424, %v3426
    %v3428 = vsel %vm3420, %v3407, %v3410
    %v3429 = vsel %vm3423, %v3416, 920167782
    %v3430 = vsel %vm3422, %v3413, %v3429
    %v3431 = vsel %vm3421, %v3428, %v3430
    %v3432 = vsel %vm3420, %v3410, %v3413
    %v3433 = vsel %vm3423, %v3419, 1326507024
    %v3434 = vsel %vm3422, %v3416, %v3433
    %v3435 = vsel %vm3421, %v3432, %v3434
    %v3436 = vshll.u32 %v3396, 8
    %v3437 = vand.u32 %v3436, 65535
    %v3438 = vshrl.u32 %v3436, 16
    %v3439 = vand.u32 %v3435, 65535
    %v3440 = vshrl.u32 %v3435, 16
    %v3441 = vmul.u32 %v3437, %v3439
    %v3442 = vmul.u32 %v3437, %v3440
    %v3443 = vmul.u32 %v3438, %v3439
    %v3444 = vmul.u32 %v3438, %v3440
    %v3445 = vshll.u32 %v3442, 16
    %v3446 = vshrl.u32 %v3442, 16
    %v3447 = vshll.u32 %v3443, 16
    %v3448 = vshrl.u32 %v3443, 16
    %vm3449 = vc.u32 %v3441, %v3445
    %v3450 = vsel %vm3449, 1, 0
    %v3451 = vadd.s32 %v3441, %v3445
    %v3452 = vadd.s32 %v3444, %v3450
    %vm3453 = vc.u32 %v3451, %v3447
    %v3454 = vsel %vm3453, 1, 0
    %v3455 = vadd.s32 %v3451, %v3447
    %v3456 = vadd.s32 %v3452, %v3454
    %v3457 = vadd.s32 %v3456, %v3446
    %v3458 = vadd.s32 %v3457, %v3448
    %v3459 = vand.u32 %v3436, 65535
    %v3460 = vshrl.u32 %v3436, 16
    %v3461 = vand.u32 %v3431, 65535
    %v3462 = vshrl.u32 %v3431, 16
    %v3463 = vmul.u32 %v3459, %v3461
    %v3464 = vmul.u32 %v3459, %v3462
    %v3465 = vmul.u32 %v3460, %v3461
    %v3466 = vmul.u32 %v3460, %v3462
    %v3467 = vshll.u32 %v3464, 16
    %v3468 = vshrl.u32 %v3464, 16
    %v3469 = vshll.u32 %v3465, 16
    %v3470 = vshrl.u32 %v3465, 16
    %vm3471 = vc.u32 %v3463, %v3467
    %v3472 = vsel %vm3471, 1, 0
    %v3473 = vadd.s32 %v3463, %v3467
    %v3474 = vadd.s32 %v3466, %v3472
    %vm3475 = vc.u32 %v3473, %v3469
    %v3476 = vsel %vm3475, 1, 0
    %v3477 = vadd.s32 %v3473, %v3469
    %v3478 = vadd.s32 %v3474, %v3476
    %v3479 = vadd.s32 %v3478, %v3468
    %v3480 = vadd.s32 %v3479, %v3470
    %v3481 = vmul.u32 %v3436, %v3427
    %v3482 = vadd.s32 %v3458, %v3477
    %vm3483 = vc.u32 %v3458, %v3477
    %v3484 = vadd.s32 %v3480, 1
    %v3485 = vsel %vm3483, %v3484, %v3480
    %v3486 = vadd.s32 %v3481, %v3485
    %v3487 = vadd.s32 %v3486, 536870912
    %v3488 = vshrl.u32 %v3487, 30
    %v3489 = vshll.u32 %v3488, 30
    %v3490 = vsub.s32 %v3486, %v3489
    %vm3491 = vcmp.lt.s32.totalorder %v3490, 0
    %v3492 = vsub.s32 0, %v3490
    %v3493 = vsel %vm3491, %v3492, %v3490
    %v3494 = vclz %v3493
    %v3495 = vsub.s32 %v3494, 2
    %vm3496 = vcmp.gt.s32.totalorder 0, %v3495
    %v3497 = vsel %vm3496, 0, %v3495
    %v3498 = vsub.s32 32, %v3497
    %v3499 = vshll.u32 %v3490, %v3497
    %v3500 = vshrl.u32 %v3482, %v3498
    %v3501 = vor.u32 %v3499, %v3500
    %v3502 = vsub.s32 4294967266, %v3497
    %v3503 = vadd.s32 %v3502, 127
    %v3504 = vshll.u32 %v3503, 23
    %v3505 = vor.u32 4788187, %v3504
    %v3506 = vand.u32 2147483647, %v3505
    %v3508 = vcvt.s32.f32 %v3501
    %v3509 = vmul.f32 %v3508, %v3506
    %v3510 = vxor.u32 %v3509, 2147483648
    %v3511 = vsel %vm3390, %v3510, %v3509
    %v3512 = vsub.s32 4, %v3488
    %v3513 = vsel %vm3390, %v3512, %v3488
    %v3514 = vsel %vm3389, %v296, %v3511
    %v3515 = vsel %vm3389, 0, %v3513
    %v3516 = vmul.f32 %v3514, %v3514
    %v3517 = vmul.f32 %v3516, -0.001358992
    %v3518 = vadd.f32 %v3517, 0.041655596
    %v3519 = vmul.f32 %v3516, %v3518
    %v3520 = vadd.f32 %v3519, -0.4999988
    %v3521 = vmul.f32 %v3516, %v3520
    %v3522 = vadd.f32 1.0, %v3521
    %v3523 = vmul.f32 %v3514, %v3514
    %v3524 = vmul.f32 %v3523, -0.00019511016
    %v3525 = vadd.f32 %v3524, 0.008332121
    %v3526 = vmul.f32 %v3523, %v3525
    %v3527 = vadd.f32 %v3526, -0.16666654
    %v3528 = vmul.f32 %v3523, %v3527
    %v3529 = vadd.f32 %v3528, 1.0
    %v3530 = vmul.f32 %v3529, %v3514
    %vm3531 = vweird.f32 %v296
    %v3532 = vand.u32 %v3515, 3
    %vm3533 = vcmp.lt.s32.totalorder %v3532, 2
    %vm3534 = vcmp.eq.s32.totalorder %v3532, 0
    %v3535 = vxor.u32 %v3530, 2147483648
    %v3536 = vsel %vm3534, %v3522, %v3535
    %vm3537 = vcmp.eq.s32.totalorder %v3532, 2
    %v3538 = vxor.u32 %v3522, 2147483648
    %v3539 = vsel %vm3537, %v3538, %v3530
    %v3540 = vsel %vm3533, %v3536, %v3539
    %v3541 = vsel %vm3531, nan, %v3540
    %v3542 = vand.u32 2147483647, %v297
    %vm3543 = vcmp.le.f32.partialorder %v3542, 0.7853982
    %vm3544 = vcmp.lt.s32.totalorder %v297, 0
    %v3545 = vand.u32 %v297, 2139095040
    %v3546 = vshrl.u32 %v3545, 23
    %v3547 = vsub.s32 %v3546, 127
    %v3548 = vand.u32 2147483647, %v297
    %v3549 = vand.u32 %v3548, 8388607
    %v3550 = vor.u32 %v3549, 8388608
    %v3551 = vsub.s32 0, %v3550
    %v3552 = vadd.s32 %v3547, 1
    %vm3553 = vcmp.gt.s32.totalorder %v3552, 0
    %v3554 = vsel %vm3553, %v3552, 0
    %v3555 = vshrl.u32 %v3554, 5
    %v3556 = vand.u32 %v3554, 31
    %v3557 = vsub.s32 32, %v3556
    %v3558 = vshrl.u32 683565275, %v3557
    %v3559 = vshll.u32 683565275, %v3556
    %v3560 = vshrl.u32 2475754826, %v3557
    %v3561 = vor.u32 %v3559, %v3560
    %v3562 = vshll.u32 2475754826, %v3556
    %v3563 = vshrl.u32 2131351028, %v3557
    %v3564 = vor.u32 %v3562, %v3563
    %v3565 = vshll.u32 2131351028, %v3556
    %v3566 = vshrl.u32 2102212464, %v3557
    %v3567 = vor.u32 %v3565, %v3566
    %v3568 = vshll.u32 2102212464, %v3556
    %v3569 = vshrl.u32 920167782, %v3557
    %v3570 = vor.u32 %v3568, %v3569
    %v3571 = vshll.u32 920167782, %v3556
    %v3572 = vshrl.u32 1326507024, %v3557
    %v3573 = vor.u32 %v3571, %v3572
    %vm3574 = vcmp.lt.s32.totalorder %v3555, 1
    %vm3575 = vcmp.lt.s32.totalorder %v3555, 2
    %vm3576 = vcmp.lt.s32.totalorder %v3555, 3
    %vm3577 = vcmp.lt.s32.totalorder %v3555, 4
    %v3578 = vsel %vm3574, %v3558, %v3561
    %v3579 = vsel %vm3577, %v3567, 2102212464
    %v3580 = vsel %vm3576, %v3564, %v3579
    %v3581 = vsel %vm3575, %v3578, %v3580
    %v3582 = vsel %vm3574, %v3561, %v3564
    %v3583 = vsel %vm3577, %v3570, 920167782
    %v3584 = vsel %vm3576, %v3567, %v3583
    %v3585 = vsel %vm3575, %v3582, %v3584
    %v3586 = vsel %vm3574, %v3564, %v3567
    %v3587 = vsel %vm3577, %v3573, 1326507024
    %v3588 = vsel %vm3576, %v3570, %v3587
    %v3589 = vsel %vm3575, %v3586, %v3588
    %v3590 = vshll.u32 %v3550, 8
    %v3591 = vand.u32 %v3590, 65535
    %v3592 = vshrl.u32 %v3590, 16
    %v3593 = vand.u32 %v3589, 65535
    %v3594 = vshrl.u32 %v3589, 16
    %v3595 = vmul.u32 %v3591, %v3593
    %v3596 = vmul.u32 %v3591, %v3594
    %v3597 = vmul.u32 %v3592, %v3593
    %v3598 = vmul.u32 %v3592, %v3594
    %v3599 = vshll.u32 %v3596, 16
    %v3600 = vshrl.u32 %v3596, 16
    %v3601 = vshll.u32 %v3597, 16
    %v3602 = vshrl.u32 %v3597, 16
    %vm3603 = vc.u32 %v3595, %v3599
    %v3604 = vsel %vm3603, 1, 0
    %v3605 = vadd.s32 %v3595, %v3599
    %v3606 = vadd.s32 %v3598, %v3604
    %vm3607 = vc.u32 %v3605, %v3601
    %v3608 = vsel %vm3607, 1, 0
    %v3609 = vadd.s32 %v3605, %v3601
    %v3610 = vadd.s32 %v3606, %v3608
    %v3611 = vadd.s32 %v3610, %v3600
    %v3612 = vadd.s32 %v3611, %v3602
    %v3613 = vand.u32 %v3590, 65535
    %v3614 = vshrl.u32 %v3590, 16
    %v3615 = vand.u32 %v3585, 65535
    %v3616 = vshrl.u32 %v3585, 16
    %v3617 = vmul.u32 %v3613, %v3615
    %v3618 = vmul.u32 %v3613, %v3616
    %v3619 = vmul.u32 %v3614, %v3615
    %v3620 = vmul.u32 %v3614, %v3616
    %v3621 = vshll.u32 %v3618, 16
    %v3622 = vshrl.u32 %v3618, 16
    %v3623 = vshll.u32 %v3619, 16
    %v3624 = vshrl.u32 %v3619, 16
    %vm3625 = vc.u32 %v3617, %v3621
    %v3626 = vsel %vm3625, 1, 0
    %v3627 = vadd.s32 %v3617, %v3621
    %v3628 = vadd.s32 %v3620, %v3626
    %vm3629 = vc.u32 %v3627, %v3623
    %v3630 = vsel %vm3629, 1, 0
    %v3631 = vadd.s32 %v3627, %v3623
    %v3632 = vadd.s32 %v3628, %v3630
    %v3633 = vadd.s32 %v3632, %v3622
    %v3634 = vadd.s32 %v3633, %v3624
    %v3635 = vmul.u32 %v3590, %v3581
    %v3636 = vadd.s32 %v3612, %v3631
    %vm3637 = vc.u32 %v3612, %v3631
    %v3638 = vadd.s32 %v3634, 1
    %v3639 = vsel %vm3637, %v3638, %v3634
    %v3640 = vadd.s32 %v3635, %v3639
    %v3641 = vadd.s32 %v3640, 536870912
    %v3642 = vshrl.u32 %v3641, 30
    %v3643 = vshll.u32 %v3642, 30
    %v3644 = vsub.s32 %v3640, %v3643
    %vm3645 = vcmp.lt.s32.totalorder %v3644, 0
    %v3646 = vsub.s32 0, %v3644
    %v3647 = vsel %vm3645, %v3646, %v3644
    %v3648 = vclz %v3647
    %v3649 = vsub.s32 %v3648, 2
    %vm3650 = vcmp.gt.s32.totalorder 0, %v3649
    %v3651 = vsel %vm3650, 0, %v3649
    %v3652 = vsub.s32 32, %v3651
    %v3653 = vshll.u32 %v3644, %v3651
    %v3654 = vshrl.u32 %v3636, %v3652
    %v3655 = vor.u32 %v3653, %v3654
    %v3656 = vsub.s32 4294967266, %v3651
    %v3657 = vadd.s32 %v3656, 127
    %v3658 = vshll.u32 %v3657, 23
    %v3659 = vor.u32 4788187, %v3658
    %v3660 = vand.u32 2147483647, %v3659
    %v3662 = vcvt.s32.f32 %v3655
    %v3663 = vmul.f32 %v3662, %v3660
    %v3664 = vxor.u32 %v3663, 2147483648
    %v3665 = vsel %vm3544, %v3664, %v3663
    %v3666 = vsub.s32 4, %v3642
    %v3667 = vsel %vm3544, %v3666, %v3642
    %v3668 = vsel %vm3543, %v297, %v3665
    %v3669 = vsel %vm3543, 0, %v3667
    %v3670 = vmul.f32 %v3668, %v3668
    %v3671 = vmul.f32 %v3670, -0.001358992
    %v3672 = vadd.f32 %v3671, 0.041655596
    %v3673 = vmul.f32 %v3670, %v3672
    %v3674 = vadd.f32 %v3673, -0.4999988
    %v3675 = vmul.f32 %v3670, %v3674
    %v3676 = vadd.f32 1.0, %v3675
    %v3677 = vmul.f32 %v3668, %v3668
    %v3678 = vmul.f32 %v3677, -0.00019511016
    %v3679 = vadd.f32 %v3678, 0.008332121
    %v3680 = vmul.f32 %v3677, %v3679
    %v3681 = vadd.f32 %v3680, -0.16666654
    %v3682 = vmul.f32 %v3677, %v3681
    %v3683 = vadd.f32 %v3682, 1.0
    %v3684 = vmul.f32 %v3683, %v3668
    %vm3685 = vweird.f32 %v297
    %v3686 = vand.u32 %v3669, 3
    %vm3687 = vcmp.lt.s32.totalorder %v3686, 2
    %vm3688 = vcmp.eq.s32.totalorder %v3686, 0
    %v3689 = vxor.u32 %v3684, 2147483648
    %v3690 = vsel %vm3688, %v3676, %v3689
    %vm3691 = vcmp.eq.s32.totalorder %v3686, 2
    %v3692 = vxor.u32 %v3676, 2147483648
    %v3693 = vsel %vm3691, %v3692, %v3684
    %v3694 = vsel %vm3687, %v3690, %v3693
    %v3695 = vsel %vm3685, nan, %v3694
    %v3696 = vand.u32 2147483647, %v298
    %vm3697 = vcmp.le.f32.partialorder %v3696, 0.7853982
    %vm3698 = vcmp.lt.s32.totalorder %v298, 0
    %v3699 = vand.u32 %v298, 2139095040
    %v3700 = vshrl.u32 %v3699, 23
    %v3701 = vsub.s32 %v3700, 127
    %v3702 = vand.u32 2147483647, %v298
    %v3703 = vand.u32 %v3702, 8388607
    %v3704 = vor.u32 %v3703, 8388608
    %v3705 = vsub.s32 0, %v3704
    %v3706 = vadd.s32 %v3701, 1
    %vm3707 = vcmp.gt.s32.totalorder %v3706, 0
    %v3708 = vsel %vm3707, %v3706, 0
    %v3709 = vshrl.u32 %v3708, 5
    %v3710 = vand.u32 %v3708, 31
    %v3711 = vsub.s32 32, %v3710
    %v3712 = vshrl.u32 683565275, %v3711
    %v3713 = vshll.u32 683565275, %v3710
    %v3714 = vshrl.u32 2475754826, %v3711
    %v3715 = vor.u32 %v3713, %v3714
    %v3716 = vshll.u32 2475754826, %v3710
    %v3717 = vshrl.u32 2131351028, %v3711
    %v3718 = vor.u32 %v3716, %v3717
    %v3719 = vshll.u32 2131351028, %v3710
    %v3720 = vshrl.u32 2102212464, %v3711
    %v3721 = vor.u32 %v3719, %v3720
    %v3722 = vshll.u32 2102212464, %v3710
    %v3723 = vshrl.u32 920167782, %v3711
    %v3724 = vor.u32 %v3722, %v3723
    %v3725 = vshll.u32 920167782, %v3710
    %v3726 = vshrl.u32 1326507024, %v3711
    %v3727 = vor.u32 %v3725, %v3726
    %vm3728 = vcmp.lt.s32.totalorder %v3709, 1
    %vm3729 = vcmp.lt.s32.totalorder %v3709, 2
    %vm3730 = vcmp.lt.s32.totalorder %v3709, 3
    %vm3731 = vcmp.lt.s32.totalorder %v3709, 4
    %v3732 = vsel %vm3728, %v3712, %v3715
    %v3733 = vsel %vm3731, %v3721, 2102212464
    %v3734 = vsel %vm3730, %v3718, %v3733
    %v3735 = vsel %vm3729, %v3732, %v3734
    %v3736 = vsel %vm3728, %v3715, %v3718
    %v3737 = vsel %vm3731, %v3724, 920167782
    %v3738 = vsel %vm3730, %v3721, %v3737
    %v3739 = vsel %vm3729, %v3736, %v3738
    %v3740 = vsel %vm3728, %v3718, %v3721
    %v3741 = vsel %vm3731, %v3727, 1326507024
    %v3742 = vsel %vm3730, %v3724, %v3741
    %v3743 = vsel %vm3729, %v3740, %v3742
    %v3744 = vshll.u32 %v3704, 8
    %v3745 = vand.u32 %v3744, 65535
    %v3746 = vshrl.u32 %v3744, 16
    %v3747 = vand.u32 %v3743, 65535
    %v3748 = vshrl.u32 %v3743, 16
    %v3749 = vmul.u32 %v3745, %v3747
    %v3750 = vmul.u32 %v3745, %v3748
    %v3751 = vmul.u32 %v3746, %v3747
    %v3752 = vmul.u32 %v3746, %v3748
    %v3753 = vshll.u32 %v3750, 16
    %v3754 = vshrl.u32 %v3750, 16
    %v3755 = vshll.u32 %v3751, 16
    %v3756 = vshrl.u32 %v3751, 16
    %vm3757 = vc.u32 %v3749, %v3753
    %v3758 = vsel %vm3757, 1, 0
    %v3759 = vadd.s32 %v3749, %v3753
    %v3760 = vadd.s32 %v3752, %v3758
    %vm3761 = vc.u32 %v3759, %v3755
    %v3762 = vsel %vm3761, 1, 0
    %v3763 = vadd.s32 %v3759, %v3755
    %v3764 = vadd.s32 %v3760, %v3762
    %v3765 = vadd.s32 %v3764, %v3754
    %v3766 = vadd.s32 %v3765, %v3756
    %v3767 = vand.u32 %v3744, 65535
    %v3768 = vshrl.u32 %v3744, 16
    %v3769 = vand.u32 %v3739, 65535
    %v3770 = vshrl.u32 %v3739, 16
    %v3771 = vmul.u32 %v3767, %v3769
    %v3772 = vmul.u32 %v3767, %v3770
    %v3773 = vmul.u32 %v3768, %v3769
    %v3774 = vmul.u32 %v3768, %v3770
    %v3775 = vshll.u32 %v3772, 16
    %v3776 = vshrl.u32 %v3772, 16
    %v3777 = vshll.u32 %v3773, 16
    %v3778 = vshrl.u32 %v3773, 16
    %vm3779 = vc.u32 %v3771, %v3775
    %v3780 = vsel %vm3779, 1, 0
    %v3781 = vadd.s32 %v3771, %v3775
    %v3782 = vadd.s32 %v3774, %v3780
    %vm3783 = vc.u32 %v3781, %v3777
    %v3784 = vsel %vm3783, 1, 0
    %v3785 = vadd.s32 %v3781, %v3777
    %v3786 = vadd.s32 %v3782, %v3784
    %v3787 = vadd.s32 %v3786, %v3776
    %v3788 = vadd.s32 %v3787, %v3778
    %v3789 = vmul.u32 %v3744, %v3735
    %v3790 = vadd.s32 %v3766, %v3785
    %vm3791 = vc.u32 %v3766, %v3785
    %v3792 = vadd.s32 %v3788, 1
    %v3793 = vsel %vm3791, %v3792, %v3788
    %v3794 = vadd.s32 %v3789, %v3793
    %v3795 = vadd.s32 %v3794, 536870912
    %v3796 = vshrl.u32 %v3795, 30
    %v3797 = vshll.u32 %v3796, 30
    %v3798 = vsub.s32 %v3794, %v3797
    %vm3799 = vcmp.lt.s32.totalorder %v3798, 0
    %v3800 = vsub.s32 0, %v3798
    %v3801 = vsel %vm3799, %v3800, %v3798
    %v3802 = vclz %v3801
    %v3803 = vsub.s32 %v3802, 2
    %vm3804 = vcmp.gt.s32.totalorder 0, %v3803
    %v3805 = vsel %vm3804, 0, %v3803
    %v3806 = vsub.s32 32, %v3805
    %v3807 = vshll.u32 %v3798, %v3805
    %v3808 = vshrl.u32 %v3790, %v3806
    %v3809 = vor.u32 %v3807, %v3808
    %v3810 = vsub.s32 4294967266, %v3805
    %v3811 = vadd.s32 %v3810, 127
    %v3812 = vshll.u32 %v3811, 23
    %v3813 = vor.u32 4788187, %v3812
    %v3814 = vand.u32 2147483647, %v3813
    %v3816 = vcvt.s32.f32 %v3809
    %v3817 = vmul.f32 %v3816, %v3814
    %v3818 = vxor.u32 %v3817, 2147483648
    %v3819 = vsel %vm3698, %v3818, %v3817
    %v3820 = vsub.s32 4, %v3796
    %v3821 = vsel %vm3698, %v3820, %v3796
    %v3822 = vsel %vm3697, %v298, %v3819
    %v3823 = vsel %vm3697, 0, %v3821
    %v3824 = vmul.f32 %v3822, %v3822
    %v3825 = vmul.f32 %v3824, -0.001358992
    %v3826 = vadd.f32 %v3825, 0.041655596
    %v3827 = vmul.f32 %v3824, %v3826
    %v3828 = vadd.f32 %v3827, -0.4999988
    %v3829 = vmul.f32 %v3824, %v3828
    %v3830 = vadd.f32 1.0, %v3829
    %v3831 = vmul.f32 %v3822, %v3822
    %v3832 = vmul.f32 %v3831, -0.00019511016
    %v3833 = vadd.f32 %v3832, 0.008332121
    %v3834 = vmul.f32 %v3831, %v3833
    %v3835 = vadd.f32 %v3834, -0.16666654
    %v3836 = vmul.f32 %v3831, %v3835
    %v3837 = vadd.f32 %v3836, 1.0
    %v3838 = vmul.f32 %v3837, %v3822
    %vm3839 = vweird.f32 %v298
    %v3840 = vand.u32 %v3823, 3
    %vm3841 = vcmp.lt.s32.totalorder %v3840, 2
    %vm3842 = vcmp.eq.s32.totalorder %v3840, 0
    %v3843 = vxor.u32 %v3838, 2147483648
    %v3844 = vsel %vm3842, %v3830, %v3843
    %vm3845 = vcmp.eq.s32.totalorder %v3840, 2
    %v3846 = vxor.u32 %v3830, 2147483648
    %v3847 = vsel %vm3845, %v3846, %v3838
    %v3848 = vsel %vm3841, %v3844, %v3847
    %v3849 = vsel %vm3839, nan, %v3848
    %v3850 = vand.u32 2147483647, %v299
    %vm3851 = vcmp.le.f32.partialorder %v3850, 0.7853982
    %vm3852 = vcmp.lt.s32.totalorder %v299, 0
    %v3853 = vand.u32 %v299, 2139095040
    %v3854 = vshrl.u32 %v3853, 23
    %v3855 = vsub.s32 %v3854, 127
    %v3856 = vand.u32 2147483647, %v299
    %v3857 = vand.u32 %v3856, 8388607
    %v3858 = vor.u32 %v3857, 8388608
    %v3859 = vsub.s32 0, %v3858
    %v3860 = vadd.s32 %v3855, 1
    %vm3861 = vcmp.gt.s32.totalorder %v3860, 0
    %v3862 = vsel %vm3861, %v3860, 0
    %v3863 = vshrl.u32 %v3862, 5
    %v3864 = vand.u32 %v3862, 31
    %v3865 = vsub.s32 32, %v3864
    %v3866 = vshrl.u32 683565275, %v3865
    %v3867 = vshll.u32 683565275, %v3864
    %v3868 = vshrl.u32 2475754826, %v3865
    %v3869 = vor.u32 %v3867, %v3868
    %v3870 = vshll.u32 2475754826, %v3864
    %v3871 = vshrl.u32 2131351028, %v3865
    %v3872 = vor.u32 %v3870, %v3871
    %v3873 = vshll.u32 2131351028, %v3864
    %v3874 = vshrl.u32 2102212464, %v3865
    %v3875 = vor.u32 %v3873, %v3874
    %v3876 = vshll.u32 2102212464, %v3864
    %v3877 = vshrl.u32 920167782, %v3865
    %v3878 = vor.u32 %v3876, %v3877
    %v3879 = vshll.u32 920167782, %v3864
    %v3880 = vshrl.u32 1326507024, %v3865
    %v3881 = vor.u32 %v3879, %v3880
    %vm3882 = vcmp.lt.s32.totalorder %v3863, 1
    %vm3883 = vcmp.lt.s32.totalorder %v3863, 2
    %vm3884 = vcmp.lt.s32.totalorder %v3863, 3
    %vm3885 = vcmp.lt.s32.totalorder %v3863, 4
    %v3886 = vsel %vm3882, %v3866, %v3869
    %v3887 = vsel %vm3885, %v3875, 2102212464
    %v3888 = vsel %vm3884, %v3872, %v3887
    %v3889 = vsel %vm3883, %v3886, %v3888
    %v3890 = vsel %vm3882, %v3869, %v3872
    %v3891 = vsel %vm3885, %v3878, 920167782
    %v3892 = vsel %vm3884, %v3875, %v3891
    %v3893 = vsel %vm3883, %v3890, %v3892
    %v3894 = vsel %vm3882, %v3872, %v3875
    %v3895 = vsel %vm3885, %v3881, 1326507024
    %v3896 = vsel %vm3884, %v3878, %v3895
    %v3897 = vsel %vm3883, %v3894, %v3896
    %v3898 = vshll.u32 %v3858, 8
    %v3899 = vand.u32 %v3898, 65535
    %v3900 = vshrl.u32 %v3898, 16
    %v3901 = vand.u32 %v3897, 65535
    %v3902 = vshrl.u32 %v3897, 16
    %v3903 = vmul.u32 %v3899, %v3901
    %v3904 = vmul.u32 %v3899, %v3902
    %v3905 = vmul.u32 %v3900, %v3901
    %v3906 = vmul.u32 %v3900, %v3902
    %v3907 = vshll.u32 %v3904, 16
    %v3908 = vshrl.u32 %v3904, 16
    %v3909 = vshll.u32 %v3905, 16
    %v3910 = vshrl.u32 %v3905, 16
    %vm3911 = vc.u32 %v3903, %v3907
    %v3912 = vsel %vm3911, 1, 0
    %v3913 = vadd.s32 %v3903, %v3907
    %v3914 = vadd.s32 %v3906, %v3912
    %vm3915 = vc.u32 %v3913, %v3909
    %v3916 = vsel %vm3915, 1, 0
    %v3917 = vadd.s32 %v3913, %v3909
    %v3918 = vadd.s32 %v3914, %v3916
    %v3919 = vadd.s32 %v3918, %v3908
    %v3920 = vadd.s32 %v3919, %v3910
    %v3921 = vand.u32 %v3898, 65535
    %v3922 = vshrl.u32 %v3898, 16
    %v3923 = vand.u32 %v3893, 65535
    %v3924 = vshrl.u32 %v3893, 16
    %v3925 = vmul.u32 %v3921, %v3923
    %v3926 = vmul.u32 %v3921, %v3924
    %v3927 = vmul.u32 %v3922, %v3923
    %v3928 = vmul.u32 %v3922, %v3924
    %v3929 = vshll.u32 %v3926, 16
    %v3930 = vshrl.u32 %v3926, 16
    %v3931 = vshll.u32 %v3927, 16
    %v3932 = vshrl.u32 %v3927, 16
    %vm3933 = vc.u32 %v3925, %v3929
    %v3934 = vsel %vm3933, 1, 0
    %v3935 = vadd.s32 %v3925, %v3929
    %v3936 = vadd.s32 %v3928, %v3934
    %vm3937 = vc.u32 %v3935, %v3931
    %v3938 = vsel %vm3937, 1, 0
    %v3939 = vadd.s32 %v3935, %v3931
    %v3940 = vadd.s32 %v3936, %v3938
    %v3941 = vadd.s32 %v3940, %v3930
    %v3942 = vadd.s32 %v3941, %v3932
    %v3943 = vmul.u32 %v3898, %v3889
    %v3944 = vadd.s32 %v3920, %v3939
    %vm3945 = vc.u32 %v3920, %v3939
    %v3946 = vadd.s32 %v3942, 1
    %v3947 = vsel %vm3945, %v3946, %v3942
    %v3948 = vadd.s32 %v3943, %v3947
    %v3949 = vadd.s32 %v3948, 536870912
    %v3950 = vshrl.u32 %v3949, 30
    %v3951 = vshll.u32 %v3950, 30
    %v3952 = vsub.s32 %v3948, %v3951
    %vm3953 = vcmp.lt.s32.totalorder %v3952, 0
    %v3954 = vsub.s32 0, %v3952
    %v3955 = vsel %vm3953, %v3954, %v3952
    %v3956 = vclz %v3955
    %v3957 = vsub.s32 %v3956, 2
    %vm3958 = vcmp.gt.s32.totalorder 0, %v3957
    %v3959 = vsel %vm3958, 0, %v3957
    %v3960 = vsub.s32 32, %v3959
    %v3961 = vshll.u32 %v3952, %v3959
    %v3962 = vshrl.u32 %v3944, %v3960
    %v3963 = vor.u32 %v3961, %v3962
    %v3964 = vsub.s32 4294967266, %v3959
    %v3965 = vadd.s32 %v3964, 127
    %v3966 = vshll.u32 %v3965, 23
    %v3967 = vor.u32 4788187, %v3966
    %v3968 = vand.u32 2147483647, %v3967
    %v3970 = vcvt.s32.f32 %v3963
    %v3971 = vmul.f32 %v3970, %v3968
    %v3972 = vxor.u32 %v3971, 2147483648
    %v3973 = vsel %vm3852, %v3972, %v3971
    %v3974 = vsub.s32 4, %v3950
    %v3975 = vsel %vm3852, %v3974, %v3950
    %v3976 = vsel %vm3851, %v299, %v3973
    %v3977 = vsel %vm3851, 0, %v3975
    %v3978 = vmul.f32 %v3976, %v3976
    %v3979 = vmul.f32 %v3978, -0.001358992
    %v3980 = vadd.f32 %v3979, 0.041655596
    %v3981 = vmul.f32 %v3978, %v3980
    %v3982 = vadd.f32 %v3981, -0.4999988
    %v3983 = vmul.f32 %v3978, %v3982
    %v3984 = vadd.f32 1.0, %v3983
    %v3985 = vmul.f32 %v3976, %v3976
    %v3986 = vmul.f32 %v3985, -0.00019511016
    %v3987 = vadd.f32 %v3986, 0.008332121
    %v3988 = vmul.f32 %v3985, %v3987
    %v3989 = vadd.f32 %v3988, -0.16666654
    %v3990 = vmul.f32 %v3985, %v3989
    %v3991 = vadd.f32 %v3990, 1.0
    %v3992 = vmul.f32 %v3991, %v3976
    %vm3993 = vweird.f32 %v299
    %v3994 = vand.u32 %v3977, 3
    %vm3995 = vcmp.lt.s32.totalorder %v3994, 2
    %vm3996 = vcmp.eq.s32.totalorder %v3994, 0
    %v3997 = vxor.u32 %v3992, 2147483648
    %v3998 = vsel %vm3996, %v3984, %v3997
    %vm3999 = vcmp.eq.s32.totalorder %v3994, 2
    %v4000 = vxor.u32 %v3984, 2147483648
    %v4001 = vsel %vm3999, %v4000, %v3992
    %v4002 = vsel %vm3995, %v3998, %v4001
    %v4003 = vsel %vm3993, nan, %v4002
    %v4004 = vand.u32 2147483647, %v300
    %vm4005 = vcmp.le.f32.partialorder %v4004, 0.7853982
    %vm4006 = vcmp.lt.s32.totalorder %v300, 0
    %v4007 = vand.u32 %v300, 2139095040
    %v4008 = vshrl.u32 %v4007, 23
    %v4009 = vsub.s32 %v4008, 127
    %v4010 = vand.u32 2147483647, %v300
    %v4011 = vand.u32 %v4010, 8388607
    %v4012 = vor.u32 %v4011, 8388608
    %v4013 = vsub.s32 0, %v4012
    %v4014 = vadd.s32 %v4009, 1
    %vm4015 = vcmp.gt.s32.totalorder %v4014, 0
    %v4016 = vsel %vm4015, %v4014, 0
    %v4017 = vshrl.u32 %v4016, 5
    %v4018 = vand.u32 %v4016, 31
    %v4019 = vsub.s32 32, %v4018
    %v4020 = vshrl.u32 683565275, %v4019
    %v4021 = vshll.u32 683565275, %v4018
    %v4022 = vshrl.u32 2475754826, %v4019
    %v4023 = vor.u32 %v4021, %v4022
    %v4024 = vshll.u32 2475754826, %v4018
    %v4025 = vshrl.u32 2131351028, %v4019
    %v4026 = vor.u32 %v4024, %v4025
    %v4027 = vshll.u32 2131351028, %v4018
    %v4028 = vshrl.u32 2102212464, %v4019
    %v4029 = vor.u32 %v4027, %v4028
    %v4030 = vshll.u32 2102212464, %v4018
    %v4031 = vshrl.u32 920167782, %v4019
    %v4032 = vor.u32 %v4030, %v4031
    %v4033 = vshll.u32 920167782, %v4018
    %v4034 = vshrl.u32 1326507024, %v4019
    %v4035 = vor.u32 %v4033, %v4034
    %vm4036 = vcmp.lt.s32.totalorder %v4017, 1
    %vm4037 = vcmp.lt.s32.totalorder %v4017, 2
    %vm4038 = vcmp.lt.s32.totalorder %v4017, 3
    %vm4039 = vcmp.lt.s32.totalorder %v4017, 4
    %v4040 = vsel %vm4036, %v4020, %v4023
    %v4041 = vsel %vm4039, %v4029, 2102212464
    %v4042 = vsel %vm4038, %v4026, %v4041
    %v4043 = vsel %vm4037, %v4040, %v4042
    %v4044 = vsel %vm4036, %v4023, %v4026
    %v4045 = vsel %vm4039, %v4032, 920167782
    %v4046 = vsel %vm4038, %v4029, %v4045
    %v4047 = vsel %vm4037, %v4044, %v4046
    %v4048 = vsel %vm4036, %v4026, %v4029
    %v4049 = vsel %vm4039, %v4035, 1326507024
    %v4050 = vsel %vm4038, %v4032, %v4049
    %v4051 = vsel %vm4037, %v4048, %v4050
    %v4052 = vshll.u32 %v4012, 8
    %v4053 = vand.u32 %v4052, 65535
    %v4054 = vshrl.u32 %v4052, 16
    %v4055 = vand.u32 %v4051, 65535
    %v4056 = vshrl.u32 %v4051, 16
    %v4057 = vmul.u32 %v4053, %v4055
    %v4058 = vmul.u32 %v4053, %v4056
    %v4059 = vmul.u32 %v4054, %v4055
    %v4060 = vmul.u32 %v4054, %v4056
    %v4061 = vshll.u32 %v4058, 16
    %v4062 = vshrl.u32 %v4058, 16
    %v4063 = vshll.u32 %v4059, 16
    %v4064 = vshrl.u32 %v4059, 16
    %vm4065 = vc.u32 %v4057, %v4061
    %v4066 = vsel %vm4065, 1, 0
    %v4067 = vadd.s32 %v4057, %v4061
    %v4068 = vadd.s32 %v4060, %v4066
    %vm4069 = vc.u32 %v4067, %v4063
    %v4070 = vsel %vm4069, 1, 0
    %v4071 = vadd.s32 %v4067, %v4063
    %v4072 = vadd.s32 %v4068, %v4070
    %v4073 = vadd.s32 %v4072, %v4062
    %v4074 = vadd.s32 %v4073, %v4064
    %v4075 = vand.u32 %v4052, 65535
    %v4076 = vshrl.u32 %v4052, 16
    %v4077 = vand.u32 %v4047, 65535
    %v4078 = vshrl.u32 %v4047, 16
    %v4079 = vmul.u32 %v4075, %v4077
    %v4080 = vmul.u32 %v4075, %v4078
    %v4081 = vmul.u32 %v4076, %v4077
    %v4082 = vmul.u32 %v4076, %v4078
    %v4083 = vshll.u32 %v4080, 16
    %v4084 = vshrl.u32 %v4080, 16
    %v4085 = vshll.u32 %v4081, 16
    %v4086 = vshrl.u32 %v4081, 16
    %vm4087 = vc.u32 %v4079, %v4083
    %v4088 = vsel %vm4087, 1, 0
    %v4089 = vadd.s32 %v4079, %v4083
    %v4090 = vadd.s32 %v4082, %v4088
    %vm4091 = vc.u32 %v4089, %v4085
    %v4092 = vsel %vm4091, 1, 0
    %v4093 = vadd.s32 %v4089, %v4085
    %v4094 = vadd.s32 %v4090, %v4092
    %v4095 = vadd.s32 %v4094, %v4084
    %v4096 = vadd.s32 %v4095, %v4086
    %v4097 = vmul.u32 %v4052, %v4043
    %v4098 = vadd.s32 %v4074, %v4093
    %vm4099 = vc.u32 %v4074, %v4093
    %v4100 = vadd.s32 %v4096, 1
    %v4101 = vsel %vm4099, %v4100, %v4096
    %v4102 = vadd.s32 %v4097, %v4101
    %v4103 = vadd.s32 %v4102, 536870912
    %v4104 = vshrl.u32 %v4103, 30
    %v4105 = vshll.u32 %v4104, 30
    %v4106 = vsub.s32 %v4102, %v4105
    %vm4107 = vcmp.lt.s32.totalorder %v4106, 0
    %v4108 = vsub.s32 0, %v4106
    %v4109 = vsel %vm4107, %v4108, %v4106
    %v4110 = vclz %v4109
    %v4111 = vsub.s32 %v4110, 2
    %vm4112 = vcmp.gt.s32.totalorder 0, %v4111
    %v4113 = vsel %vm4112, 0, %v4111
    %v4114 = vsub.s32 32, %v4113
    %v4115 = vshll.u32 %v4106, %v4113
    %v4116 = vshrl.u32 %v4098, %v4114
    %v4117 = vor.u32 %v4115, %v4116
    %v4118 = vsub.s32 4294967266, %v4113
    %v4119 = vadd.s32 %v4118, 127
    %v4120 = vshll.u32 %v4119, 23
    %v4121 = vor.u32 4788187, %v4120
    %v4122 = vand.u32 2147483647, %v4121
    %v4124 = vcvt.s32.f32 %v4117
    %v4125 = vmul.f32 %v4124, %v4122
    %v4126 = vxor.u32 %v4125, 2147483648
    %v4127 = vsel %vm4006, %v4126, %v4125
    %v4128 = vsub.s32 4, %v4104
    %v4129 = vsel %vm4006, %v4128, %v4104
    %v4130 = vsel %vm4005, %v300, %v4127
    %v4131 = vsel %vm4005, 0, %v4129
    %v4132 = vmul.f32 %v4130, %v4130
    %v4133 = vmul.f32 %v4132, -0.001358992
    %v4134 = vadd.f32 %v4133, 0.041655596
    %v4135 = vmul.f32 %v4132, %v4134
    %v4136 = vadd.f32 %v4135, -0.4999988
    %v4137 = vmul.f32 %v4132, %v4136
    %v4138 = vadd.f32 1.0, %v4137
    %v4139 = vmul.f32 %v4130, %v4130
    %v4140 = vmul.f32 %v4139, -0.00019511016
    %v4141 = vadd.f32 %v4140, 0.008332121
    %v4142 = vmul.f32 %v4139, %v4141
    %v4143 = vadd.f32 %v4142, -0.16666654
    %v4144 = vmul.f32 %v4139, %v4143
    %v4145 = vadd.f32 %v4144, 1.0
    %v4146 = vmul.f32 %v4145, %v4130
    %vm4147 = vweird.f32 %v300
    %v4148 = vand.u32 %v4131, 3
    %vm4149 = vcmp.lt.s32.totalorder %v4148, 2
    %vm4150 = vcmp.eq.s32.totalorder %v4148, 0
    %v4151 = vxor.u32 %v4146, 2147483648
    %v4152 = vsel %vm4150, %v4138, %v4151
    %vm4153 = vcmp.eq.s32.totalorder %v4148, 2
    %v4154 = vxor.u32 %v4138, 2147483648
    %v4155 = vsel %vm4153, %v4154, %v4146
    %v4156 = vsel %vm4149, %v4152, %v4155
    %v4157 = vsel %vm4147, nan, %v4156
    %v4158 = vand.u32 2147483647, %v301
    %vm4159 = vcmp.le.f32.partialorder %v4158, 0.7853982
    %vm4160 = vcmp.lt.s32.totalorder %v301, 0
    %v4161 = vand.u32 %v301, 2139095040
    %v4162 = vshrl.u32 %v4161, 23
    %v4163 = vsub.s32 %v4162, 127
    %v4164 = vand.u32 2147483647, %v301
    %v4165 = vand.u32 %v4164, 8388607
    %v4166 = vor.u32 %v4165, 8388608
    %v4167 = vsub.s32 0, %v4166
    %v4168 = vadd.s32 %v4163, 1
    %vm4169 = vcmp.gt.s32.totalorder %v4168, 0
    %v4170 = vsel %vm4169, %v4168, 0
    %v4171 = vshrl.u32 %v4170, 5
    %v4172 = vand.u32 %v4170, 31
    %v4173 = vsub.s32 32, %v4172
    %v4174 = vshrl.u32 683565275, %v4173
    %v4175 = vshll.u32 683565275, %v4172
    %v4176 = vshrl.u32 2475754826, %v4173
    %v4177 = vor.u32 %v4175, %v4176
    %v4178 = vshll.u32 2475754826, %v4172
    %v4179 = vshrl.u32 2131351028, %v4173
    %v4180 = vor.u32 %v4178, %v4179
    %v4181 = vshll.u32 2131351028, %v4172
    %v4182 = vshrl.u32 2102212464, %v4173
    %v4183 = vor.u32 %v4181, %v4182
    %v4184 = vshll.u32 2102212464, %v4172
    %v4185 = vshrl.u32 920167782, %v4173
    %v4186 = vor.u32 %v4184, %v4185
    %v4187 = vshll.u32 920167782, %v4172
    %v4188 = vshrl.u32 1326507024, %v4173
    %v4189 = vor.u32 %v4187, %v4188
    %vm4190 = vcmp.lt.s32.totalorder %v4171, 1
    %vm4191 = vcmp.lt.s32.totalorder %v4171, 2
    %vm4192 = vcmp.lt.s32.totalorder %v4171, 3
    %vm4193 = vcmp.lt.s32.totalorder %v4171, 4
    %v4194 = vsel %vm4190, %v4174, %v4177
    %v4195 = vsel %vm4193, %v4183, 2102212464
    %v4196 = vsel %vm4192, %v4180, %v4195
    %v4197 = vsel %vm4191, %v4194, %v4196
    %v4198 = vsel %vm4190, %v4177, %v4180
    %v4199 = vsel %vm4193, %v4186, 920167782
    %v4200 = vsel %vm4192, %v4183, %v4199
    %v4201 = vsel %vm4191, %v4198, %v4200
    %v4202 = vsel %vm4190, %v4180, %v4183
    %v4203 = vsel %vm4193, %v4189, 1326507024
    %v4204 = vsel %vm4192, %v4186, %v4203
    %v4205 = vsel %vm4191, %v4202, %v4204
    %v4206 = vshll.u32 %v4166, 8
    %v4207 = vand.u32 %v4206, 65535
    %v4208 = vshrl.u32 %v4206, 16
    %v4209 = vand.u32 %v4205, 65535
    %v4210 = vshrl.u32 %v4205, 16
    %v4211 = vmul.u32 %v4207, %v4209
    %v4212 = vmul.u32 %v4207, %v4210
    %v4213 = vmul.u32 %v4208, %v4209
    %v4214 = vmul.u32 %v4208, %v4210
    %v4215 = vshll.u32 %v4212, 16
    %v4216 = vshrl.u32 %v4212, 16
    %v4217 = vshll.u32 %v4213, 16
    %v4218 = vshrl.u32 %v4213, 16
    %vm4219 = vc.u32 %v4211, %v4215
    %v4220 = vsel %vm4219, 1, 0
    %v4221 = vadd.s32 %v4211, %v4215
    %v4222 = vadd.s32 %v4214, %v4220
    %vm4223 = vc.u32 %v4221, %v4217
    %v4224 = vsel %vm4223, 1, 0
    %v4225 = vadd.s32 %v4221, %v4217
    %v4226 = vadd.s32 %v4222, %v4224
    %v4227 = vadd.s32 %v4226, %v4216
    %v4228 = vadd.s32 %v4227, %v4218
    %v4229 = vand.u32 %v4206, 65535
    %v4230 = vshrl.u32 %v4206, 16
    %v4231 = vand.u32 %v4201, 65535
    %v4232 = vshrl.u32 %v4201, 16
    %v4233 = vmul.u32 %v4229, %v4231
    %v4234 = vmul.u32 %v4229, %v4232
    %v4235 = vmul.u32 %v4230, %v4231
    %v4236 = vmul.u32 %v4230, %v4232
    %v4237 = vshll.u32 %v4234, 16
    %v4238 = vshrl.u32 %v4234, 16
    %v4239 = vshll.u32 %v4235, 16
    %v4240 = vshrl.u32 %v4235, 16
    %vm4241 = vc.u32 %v4233, %v4237
    %v4242 = vsel %vm4241, 1, 0
    %v4243 = vadd.s32 %v4233, %v4237
    %v4244 = vadd.s32 %v4236, %v4242
    %vm4245 = vc.u32 %v4243, %v4239
    %v4246 = vsel %vm4245, 1, 0
    %v4247 = vadd.s32 %v4243, %v4239
    %v4248 = vadd.s32 %v4244, %v4246
    %v4249 = vadd.s32 %v4248, %v4238
    %v4250 = vadd.s32 %v4249, %v4240
    %v4251 = vmul.u32 %v4206, %v4197
    %v4252 = vadd.s32 %v4228, %v4247
    %vm4253 = vc.u32 %v4228, %v4247
    %v4254 = vadd.s32 %v4250, 1
    %v4255 = vsel %vm4253, %v4254, %v4250
    %v4256 = vadd.s32 %v4251, %v4255
    %v4257 = vadd.s32 %v4256, 536870912
    %v4258 = vshrl.u32 %v4257, 30
    %v4259 = vshll.u32 %v4258, 30
    %v4260 = vsub.s32 %v4256, %v4259
    %vm4261 = vcmp.lt.s32.totalorder %v4260, 0
    %v4262 = vsub.s32 0, %v4260
    %v4263 = vsel %vm4261, %v4262, %v4260
    %v4264 = vclz %v4263
    %v4265 = vsub.s32 %v4264, 2
    %vm4266 = vcmp.gt.s32.totalorder 0, %v4265
    %v4267 = vsel %vm4266, 0, %v4265
    %v4268 = vsub.s32 32, %v4267
    %v4269 = vshll.u32 %v4260, %v4267
    %v4270 = vshrl.u32 %v4252, %v4268
    %v4271 = vor.u32 %v4269, %v4270
    %v4272 = vsub.s32 4294967266, %v4267
    %v4273 = vadd.s32 %v4272, 127
    %v4274 = vshll.u32 %v4273, 23
    %v4275 = vor.u32 4788187, %v4274
    %v4276 = vand.u32 2147483647, %v4275
    %v4278 = vcvt.s32.f32 %v4271
    %v4279 = vmul.f32 %v4278, %v4276
    %v4280 = vxor.u32 %v4279, 2147483648
    %v4281 = vsel %vm4160, %v4280, %v4279
    %v4282 = vsub.s32 4, %v4258
    %v4283 = vsel %vm4160, %v4282, %v4258
    %v4284 = vsel %vm4159, %v301, %v4281
    %v4285 = vsel %vm4159, 0, %v4283
    %v4286 = vmul.f32 %v4284, %v4284
    %v4287 = vmul.f32 %v4286, -0.001358992
    %v4288 = vadd.f32 %v4287, 0.041655596
    %v4289 = vmul.f32 %v4286, %v4288
    %v4290 = vadd.f32 %v4289, -0.4999988
    %v4291 = vmul.f32 %v4286, %v4290
    %v4292 = vadd.f32 1.0, %v4291
    %v4293 = vmul.f32 %v4284, %v4284
    %v4294 = vmul.f32 %v4293, -0.00019511016
    %v4295 = vadd.f32 %v4294, 0.008332121
    %v4296 = vmul.f32 %v4293, %v4295
    %v4297 = vadd.f32 %v4296, -0.16666654
    %v4298 = vmul.f32 %v4293, %v4297
    %v4299 = vadd.f32 %v4298, 1.0
    %v4300 = vmul.f32 %v4299, %v4284
    %vm4301 = vweird.f32 %v301
    %v4302 = vand.u32 %v4285, 3
    %vm4303 = vcmp.lt.s32.totalorder %v4302, 2
    %vm4304 = vcmp.eq.s32.totalorder %v4302, 0
    %v4305 = vxor.u32 %v4300, 2147483648
    %v4306 = vsel %vm4304, %v4292, %v4305
    %vm4307 = vcmp.eq.s32.totalorder %v4302, 2
    %v4308 = vxor.u32 %v4292, 2147483648
    %v4309 = vsel %vm4307, %v4308, %v4300
    %v4310 = vsel %vm4303, %v4306, %v4309
    %v4311 = vsel %vm4301, nan, %v4310
    %v4312 = vand.u32 2147483647, %v302
    %vm4313 = vcmp.le.f32.partialorder %v4312, 0.7853982
    %vm4314 = vcmp.lt.s32.totalorder %v302, 0
    %v4315 = vand.u32 %v302, 2139095040
    %v4316 = vshrl.u32 %v4315, 23
    %v4317 = vsub.s32 %v4316, 127
    %v4318 = vand.u32 2147483647, %v302
    %v4319 = vand.u32 %v4318, 8388607
    %v4320 = vor.u32 %v4319, 8388608
    %v4321 = vsub.s32 0, %v4320
    %v4322 = vadd.s32 %v4317, 1
    %vm4323 = vcmp.gt.s32.totalorder %v4322, 0
    %v4324 = vsel %vm4323, %v4322, 0
    %v4325 = vshrl.u32 %v4324, 5
    %v4326 = vand.u32 %v4324, 31
    %v4327 = vsub.s32 32, %v4326
    %v4328 = vshrl.u32 683565275, %v4327
    %v4329 = vshll.u32 683565275, %v4326
    %v4330 = vshrl.u32 2475754826, %v4327
    %v4331 = vor.u32 %v4329, %v4330
    %v4332 = vshll.u32 2475754826, %v4326
    %v4333 = vshrl.u32 2131351028, %v4327
    %v4334 = vor.u32 %v4332, %v4333
    %v4335 = vshll.u32 2131351028, %v4326
    %v4336 = vshrl.u32 2102212464, %v4327
    %v4337 = vor.u32 %v4335, %v4336
    %v4338 = vshll.u32 2102212464, %v4326
    %v4339 = vshrl.u32 920167782, %v4327
    %v4340 = vor.u32 %v4338, %v4339
    %v4341 = vshll.u32 920167782, %v4326
    %v4342 = vshrl.u32 1326507024, %v4327
    %v4343 = vor.u32 %v4341, %v4342
    %vm4344 = vcmp.lt.s32.totalorder %v4325, 1
    %vm4345 = vcmp.lt.s32.totalorder %v4325, 2
    %vm4346 = vcmp.lt.s32.totalorder %v4325, 3
    %vm4347 = vcmp.lt.s32.totalorder %v4325, 4
    %v4348 = vsel %vm4344, %v4328, %v4331
    %v4349 = vsel %vm4347, %v4337, 2102212464
    %v4350 = vsel %vm4346, %v4334, %v4349
    %v4351 = vsel %vm4345, %v4348, %v4350
    %v4352 = vsel %vm4344, %v4331, %v4334
    %v4353 = vsel %vm4347, %v4340, 920167782
    %v4354 = vsel %vm4346, %v4337, %v4353
    %v4355 = vsel %vm4345, %v4352, %v4354
    %v4356 = vsel %vm4344, %v4334, %v4337
    %v4357 = vsel %vm4347, %v4343, 1326507024
    %v4358 = vsel %vm4346, %v4340, %v4357
    %v4359 = vsel %vm4345, %v4356, %v4358
    %v4360 = vshll.u32 %v4320, 8
    %v4361 = vand.u32 %v4360, 65535
    %v4362 = vshrl.u32 %v4360, 16
    %v4363 = vand.u32 %v4359, 65535
    %v4364 = vshrl.u32 %v4359, 16
    %v4365 = vmul.u32 %v4361, %v4363
    %v4366 = vmul.u32 %v4361, %v4364
    %v4367 = vmul.u32 %v4362, %v4363
    %v4368 = vmul.u32 %v4362, %v4364
    %v4369 = vshll.u32 %v4366, 16
    %v4370 = vshrl.u32 %v4366, 16
    %v4371 = vshll.u32 %v4367, 16
    %v4372 = vshrl.u32 %v4367, 16
    %vm4373 = vc.u32 %v4365, %v4369
    %v4374 = vsel %vm4373, 1, 0
    %v4375 = vadd.s32 %v4365, %v4369
    %v4376 = vadd.s32 %v4368, %v4374
    %vm4377 = vc.u32 %v4375, %v4371
    %v4378 = vsel %vm4377, 1, 0
    %v4379 = vadd.s32 %v4375, %v4371
    %v4380 = vadd.s32 %v4376, %v4378
    %v4381 = vadd.s32 %v4380, %v4370
    %v4382 = vadd.s32 %v4381, %v4372
    %v4383 = vand.u32 %v4360, 65535
    %v4384 = vshrl.u32 %v4360, 16
    %v4385 = vand.u32 %v4355, 65535
    %v4386 = vshrl.u32 %v4355, 16
    %v4387 = vmul.u32 %v4383, %v4385
    %v4388 = vmul.u32 %v4383, %v4386
    %v4389 = vmul.u32 %v4384, %v4385
    %v4390 = vmul.u32 %v4384, %v4386
    %v4391 = vshll.u32 %v4388, 16
    %v4392 = vshrl.u32 %v4388, 16
    %v4393 = vshll.u32 %v4389, 16
    %v4394 = vshrl.u32 %v4389, 16
    %vm4395 = vc.u32 %v4387, %v4391
    %v4396 = vsel %vm4395, 1, 0
    %v4397 = vadd.s32 %v4387, %v4391
    %v4398 = vadd.s32 %v4390, %v4396
    %vm4399 = vc.u32 %v4397, %v4393
    %v4400 = vsel %vm4399, 1, 0
    %v4401 = vadd.s32 %v4397, %v4393
    %v4402 = vadd.s32 %v4398, %v4400
    %v4403 = vadd.s32 %v4402, %v4392
    %v4404 = vadd.s32 %v4403, %v4394
    %v4405 = vmul.u32 %v4360, %v4351
    %v4406 = vadd.s32 %v4382, %v4401
    %vm4407 = vc.u32 %v4382, %v4401
    %v4408 = vadd.s32 %v4404, 1
    %v4409 = vsel %vm4407, %v4408, %v4404
    %v4410 = vadd.s32 %v4405, %v4409
    %v4411 = vadd.s32 %v4410, 536870912
    %v4412 = vshrl.u32 %v4411, 30
    %v4413 = vshll.u32 %v4412, 30
    %v4414 = vsub.s32 %v4410, %v4413
    %vm4415 = vcmp.lt.s32.totalorder %v4414, 0
    %v4416 = vsub.s32 0, %v4414
    %v4417 = vsel %vm4415, %v4416, %v4414
    %v4418 = vclz %v4417
    %v4419 = vsub.s32 %v4418, 2
    %vm4420 = vcmp.gt.s32.totalorder 0, %v4419
    %v4421 = vsel %vm4420, 0, %v4419
    %v4422 = vsub.s32 32, %v4421
    %v4423 = vshll.u32 %v4414, %v4421
    %v4424 = vshrl.u32 %v4406, %v4422
    %v4425 = vor.u32 %v4423, %v4424
    %v4426 = vsub.s32 4294967266, %v4421
    %v4427 = vadd.s32 %v4426, 127
    %v4428 = vshll.u32 %v4427, 23
    %v4429 = vor.u32 4788187, %v4428
    %v4430 = vand.u32 2147483647, %v4429
    %v4432 = vcvt.s32.f32 %v4425
    %v4433 = vmul.f32 %v4432, %v4430
    %v4434 = vxor.u32 %v4433, 2147483648
    %v4435 = vsel %vm4314, %v4434, %v4433
    %v4436 = vsub.s32 4, %v4412
    %v4437 = vsel %vm4314, %v4436, %v4412
    %v4438 = vsel %vm4313, %v302, %v4435
    %v4439 = vsel %vm4313, 0, %v4437
    %v4440 = vmul.f32 %v4438, %v4438
    %v4441 = vmul.f32 %v4440, -0.001358992
    %v4442 = vadd.f32 %v4441, 0.041655596
    %v4443 = vmul.f32 %v4440, %v4442
    %v4444 = vadd.f32 %v4443, -0.4999988
    %v4445 = vmul.f32 %v4440, %v4444
    %v4446 = vadd.f32 1.0, %v4445
    %v4447 = vmul.f32 %v4438, %v4438
    %v4448 = vmul.f32 %v4447, -0.00019511016
    %v4449 = vadd.f32 %v4448, 0.008332121
    %v4450 = vmul.f32 %v4447, %v4449
    %v4451 = vadd.f32 %v4450, -0.16666654
    %v4452 = vmul.f32 %v4447, %v4451
    %v4453 = vadd.f32 %v4452, 1.0
    %v4454 = vmul.f32 %v4453, %v4438
    %vm4455 = vweird.f32 %v302
    %v4456 = vand.u32 %v4439, 3
    %vm4457 = vcmp.lt.s32.totalorder %v4456, 2
    %vm4458 = vcmp.eq.s32.totalorder %v4456, 0
    %v4459 = vxor.u32 %v4454, 2147483648
    %v4460 = vsel %vm4458, %v4446, %v4459
    %vm4461 = vcmp.eq.s32.totalorder %v4456, 2
    %v4462 = vxor.u32 %v4446, 2147483648
    %v4463 = vsel %vm4461, %v4462, %v4454
    %v4464 = vsel %vm4457, %v4460, %v4463
    %v4465 = vsel %vm4455, nan, %v4464
    %v4466 = vand.u32 2147483647, %v303
    %vm4467 = vcmp.le.f32.partialorder %v4466, 0.7853982
    %vm4468 = vcmp.lt.s32.totalorder %v303, 0
    %v4469 = vand.u32 %v303, 2139095040
    %v4470 = vshrl.u32 %v4469, 23
    %v4471 = vsub.s32 %v4470, 127
    %v4472 = vand.u32 2147483647, %v303
    %v4473 = vand.u32 %v4472, 8388607
    %v4474 = vor.u32 %v4473, 8388608
    %v4475 = vsub.s32 0, %v4474
    %v4476 = vadd.s32 %v4471, 1
    %vm4477 = vcmp.gt.s32.totalorder %v4476, 0
    %v4478 = vsel %vm4477, %v4476, 0
    %v4479 = vshrl.u32 %v4478, 5
    %v4480 = vand.u32 %v4478, 31
    %v4481 = vsub.s32 32, %v4480
    %v4482 = vshrl.u32 683565275, %v4481
    %v4483 = vshll.u32 683565275, %v4480
    %v4484 = vshrl.u32 2475754826, %v4481
    %v4485 = vor.u32 %v4483, %v4484
    %v4486 = vshll.u32 2475754826, %v4480
    %v4487 = vshrl.u32 2131351028, %v4481
    %v4488 = vor.u32 %v4486, %v4487
    %v4489 = vshll.u32 2131351028, %v4480
    %v4490 = vshrl.u32 2102212464, %v4481
    %v4491 = vor.u32 %v4489, %v4490
    %v4492 = vshll.u32 2102212464, %v4480
    %v4493 = vshrl.u32 920167782, %v4481
    %v4494 = vor.u32 %v4492, %v4493
    %v4495 = vshll.u32 920167782, %v4480
    %v4496 = vshrl.u32 1326507024, %v4481
    %v4497 = vor.u32 %v4495, %v4496
    %vm4498 = vcmp.lt.s32.totalorder %v4479, 1
    %vm4499 = vcmp.lt.s32.totalorder %v4479, 2
    %vm4500 = vcmp.lt.s32.totalorder %v4479, 3
    %vm4501 = vcmp.lt.s32.totalorder %v4479, 4
    %v4502 = vsel %vm4498, %v4482, %v4485
    %v4503 = vsel %vm4501, %v4491, 2102212464
    %v4504 = vsel %vm4500, %v4488, %v4503
    %v4505 = vsel %vm4499, %v4502, %v4504
    %v4506 = vsel %vm4498, %v4485, %v4488
    %v4507 = vsel %vm4501, %v4494, 920167782
    %v4508 = vsel %vm4500, %v4491, %v4507
    %v4509 = vsel %vm4499, %v4506, %v4508
    %v4510 = vsel %vm4498, %v4488, %v4491
    %v4511 = vsel %vm4501, %v4497, 1326507024
    %v4512 = vsel %vm4500, %v4494, %v4511
    %v4513 = vsel %vm4499, %v4510, %v4512
    %v4514 = vshll.u32 %v4474, 8
    %v4515 = vand.u32 %v4514, 65535
    %v4516 = vshrl.u32 %v4514, 16
    %v4517 = vand.u32 %v4513, 65535
    %v4518 = vshrl.u32 %v4513, 16
    %v4519 = vmul.u32 %v4515, %v4517
    %v4520 = vmul.u32 %v4515, %v4518
    %v4521 = vmul.u32 %v4516, %v4517
    %v4522 = vmul.u32 %v4516, %v4518
    %v4523 = vshll.u32 %v4520, 16
    %v4524 = vshrl.u32 %v4520, 16
    %v4525 = vshll.u32 %v4521, 16
    %v4526 = vshrl.u32 %v4521, 16
    %vm4527 = vc.u32 %v4519, %v4523
    %v4528 = vsel %vm4527, 1, 0
    %v4529 = vadd.s32 %v4519, %v4523
    %v4530 = vadd.s32 %v4522, %v4528
    %vm4531 = vc.u32 %v4529, %v4525
    %v4532 = vsel %vm4531, 1, 0
    %v4533 = vadd.s32 %v4529, %v4525
    %v4534 = vadd.s32 %v4530, %v4532
    %v4535 = vadd.s32 %v4534, %v4524
    %v4536 = vadd.s32 %v4535, %v4526
    %v4537 = vand.u32 %v4514, 65535
    %v4538 = vshrl.u32 %v4514, 16
    %v4539 = vand.u32 %v4509, 65535
    %v4540 = vshrl.u32 %v4509, 16
    %v4541 = vmul.u32 %v4537, %v4539
    %v4542 = vmul.u32 %v4537, %v4540
    %v4543 = vmul.u32 %v4538, %v4539
    %v4544 = vmul.u32 %v4538, %v4540
    %v4545 = vshll.u32 %v4542, 16
    %v4546 = vshrl.u32 %v4542, 16
    %v4547 = vshll.u32 %v4543, 16
    %v4548 = vshrl.u32 %v4543, 16
    %vm4549 = vc.u32 %v4541, %v4545
    %v4550 = vsel %vm4549, 1, 0
    %v4551 = vadd.s32 %v4541, %v4545
    %v4552 = vadd.s32 %v4544, %v4550
    %vm4553 = vc.u32 %v4551, %v4547
    %v4554 = vsel %vm4553, 1, 0
    %v4555 = vadd.s32 %v4551, %v4547
    %v4556 = vadd.s32 %v4552, %v4554
    %v4557 = vadd.s32 %v4556, %v4546
    %v4558 = vadd.s32 %v4557, %v4548
    %v4559 = vmul.u32 %v4514, %v4505
    %v4560 = vadd.s32 %v4536, %v4555
    %vm4561 = vc.u32 %v4536, %v4555
    %v4562 = vadd.s32 %v4558, 1
    %v4563 = vsel %vm4561, %v4562, %v4558
    %v4564 = vadd.s32 %v4559, %v4563
    %v4565 = vadd.s32 %v4564, 536870912
    %v4566 = vshrl.u32 %v4565, 30
    %v4567 = vshll.u32 %v4566, 30
    %v4568 = vsub.s32 %v4564, %v4567
    %vm4569 = vcmp.lt.s32.totalorder %v4568, 0
    %v4570 = vsub.s32 0, %v4568
    %v4571 = vsel %vm4569, %v4570, %v4568
    %v4572 = vclz %v4571
    %v4573 = vsub.s32 %v4572, 2
    %vm4574 = vcmp.gt.s32.totalorder 0, %v4573
    %v4575 = vsel %vm4574, 0, %v4573
    %v4576 = vsub.s32 32, %v4575
    %v4577 = vshll.u32 %v4568, %v4575
    %v4578 = vshrl.u32 %v4560, %v4576
    %v4579 = vor.u32 %v4577, %v4578
    %v4580 = vsub.s32 4294967266, %v4575
    %v4581 = vadd.s32 %v4580, 127
    %v4582 = vshll.u32 %v4581, 23
    %v4583 = vor.u32 4788187, %v4582
    %v4584 = vand.u32 2147483647, %v4583
    %v4586 = vcvt.s32.f32 %v4579
    %v4587 = vmul.f32 %v4586, %v4584
    %v4588 = vxor.u32 %v4587, 2147483648
    %v4589 = vsel %vm4468, %v4588, %v4587
    %v4590 = vsub.s32 4, %v4566
    %v4591 = vsel %vm4468, %v4590, %v4566
    %v4592 = vsel %vm4467, %v303, %v4589
    %v4593 = vsel %vm4467, 0, %v4591
    %v4594 = vmul.f32 %v4592, %v4592
    %v4595 = vmul.f32 %v4594, -0.001358992
    %v4596 = vadd.f32 %v4595, 0.041655596
    %v4597 = vmul.f32 %v4594, %v4596
    %v4598 = vadd.f32 %v4597, -0.4999988
    %v4599 = vmul.f32 %v4594, %v4598
    %v4600 = vadd.f32 1.0, %v4599
    %v4601 = vmul.f32 %v4592, %v4592
    %v4602 = vmul.f32 %v4601, -0.00019511016
    %v4603 = vadd.f32 %v4602, 0.008332121
    %v4604 = vmul.f32 %v4601, %v4603
    %v4605 = vadd.f32 %v4604, -0.16666654
    %v4606 = vmul.f32 %v4601, %v4605
    %v4607 = vadd.f32 %v4606, 1.0
    %v4608 = vmul.f32 %v4607, %v4592
    %vm4609 = vweird.f32 %v303
    %v4610 = vand.u32 %v4593, 3
    %vm4611 = vcmp.lt.s32.totalorder %v4610, 2
    %vm4612 = vcmp.eq.s32.totalorder %v4610, 0
    %v4613 = vxor.u32 %v4608, 2147483648
    %v4614 = vsel %vm4612, %v4600, %v4613
    %vm4615 = vcmp.eq.s32.totalorder %v4610, 2
    %v4616 = vxor.u32 %v4600, 2147483648
    %v4617 = vsel %vm4615, %v4616, %v4608
    %v4618 = vsel %vm4611, %v4614, %v4617
    %v4619 = vsel %vm4609, nan, %v4618
    %v4620 = vand.u32 2147483647, %v304
    %vm4621 = vcmp.le.f32.partialorder %v4620, 0.7853982
    %vm4622 = vcmp.lt.s32.totalorder %v304, 0
    %v4623 = vand.u32 %v304, 2139095040
    %v4624 = vshrl.u32 %v4623, 23
    %v4625 = vsub.s32 %v4624, 127
    %v4626 = vand.u32 2147483647, %v304
    %v4627 = vand.u32 %v4626, 8388607
    %v4628 = vor.u32 %v4627, 8388608
    %v4629 = vsub.s32 0, %v4628
    %v4630 = vadd.s32 %v4625, 1
    %vm4631 = vcmp.gt.s32.totalorder %v4630, 0
    %v4632 = vsel %vm4631, %v4630, 0
    %v4633 = vshrl.u32 %v4632, 5
    %v4634 = vand.u32 %v4632, 31
    %v4635 = vsub.s32 32, %v4634
    %v4636 = vshrl.u32 683565275, %v4635
    %v4637 = vshll.u32 683565275, %v4634
    %v4638 = vshrl.u32 2475754826, %v4635
    %v4639 = vor.u32 %v4637, %v4638
    %v4640 = vshll.u32 2475754826, %v4634
    %v4641 = vshrl.u32 2131351028, %v4635
    %v4642 = vor.u32 %v4640, %v4641
    %v4643 = vshll.u32 2131351028, %v4634
    %v4644 = vshrl.u32 2102212464, %v4635
    %v4645 = vor.u32 %v4643, %v4644
    %v4646 = vshll.u32 2102212464, %v4634
    %v4647 = vshrl.u32 920167782, %v4635
    %v4648 = vor.u32 %v4646, %v4647
    %v4649 = vshll.u32 920167782, %v4634
    %v4650 = vshrl.u32 1326507024, %v4635
    %v4651 = vor.u32 %v4649, %v4650
    %vm4652 = vcmp.lt.s32.totalorder %v4633, 1
    %vm4653 = vcmp.lt.s32.totalorder %v4633, 2
    %vm4654 = vcmp.lt.s32.totalorder %v4633, 3
    %vm4655 = vcmp.lt.s32.totalorder %v4633, 4
    %v4656 = vsel %vm4652, %v4636, %v4639
    %v4657 = vsel %vm4655, %v4645, 2102212464
    %v4658 = vsel %vm4654, %v4642, %v4657
    %v4659 = vsel %vm4653, %v4656, %v4658
    %v4660 = vsel %vm4652, %v4639, %v4642
    %v4661 = vsel %vm4655, %v4648, 920167782
    %v4662 = vsel %vm4654, %v4645, %v4661
    %v4663 = vsel %vm4653, %v4660, %v4662
    %v4664 = vsel %vm4652, %v4642, %v4645
    %v4665 = vsel %vm4655, %v4651, 1326507024
    %v4666 = vsel %vm4654, %v4648, %v4665
    %v4667 = vsel %vm4653, %v4664, %v4666
    %v4668 = vshll.u32 %v4628, 8
    %v4669 = vand.u32 %v4668, 65535
    %v4670 = vshrl.u32 %v4668, 16
    %v4671 = vand.u32 %v4667, 65535
    %v4672 = vshrl.u32 %v4667, 16
    %v4673 = vmul.u32 %v4669, %v4671
    %v4674 = vmul.u32 %v4669, %v4672
    %v4675 = vmul.u32 %v4670, %v4671
    %v4676 = vmul.u32 %v4670, %v4672
    %v4677 = vshll.u32 %v4674, 16
    %v4678 = vshrl.u32 %v4674, 16
    %v4679 = vshll.u32 %v4675, 16
    %v4680 = vshrl.u32 %v4675, 16
    %vm4681 = vc.u32 %v4673, %v4677
    %v4682 = vsel %vm4681, 1, 0
    %v4683 = vadd.s32 %v4673, %v4677
    %v4684 = vadd.s32 %v4676, %v4682
    %vm4685 = vc.u32 %v4683, %v4679
    %v4686 = vsel %vm4685, 1, 0
    %v4687 = vadd.s32 %v4683, %v4679
    %v4688 = vadd.s32 %v4684, %v4686
    %v4689 = vadd.s32 %v4688, %v4678
    %v4690 = vadd.s32 %v4689, %v4680
    %v4691 = vand.u32 %v4668, 65535
    %v4692 = vshrl.u32 %v4668, 16
    %v4693 = vand.u32 %v4663, 65535
    %v4694 = vshrl.u32 %v4663, 16
    %v4695 = vmul.u32 %v4691, %v4693
    %v4696 = vmul.u32 %v4691, %v4694
    %v4697 = vmul.u32 %v4692, %v4693
    %v4698 = vmul.u32 %v4692, %v4694
    %v4699 = vshll.u32 %v4696, 16
    %v4700 = vshrl.u32 %v4696, 16
    %v4701 = vshll.u32 %v4697, 16
    %v4702 = vshrl.u32 %v4697, 16
    %vm4703 = vc.u32 %v4695, %v4699
    %v4704 = vsel %vm4703, 1, 0
    %v4705 = vadd.s32 %v4695, %v4699
    %v4706 = vadd.s32 %v4698, %v4704
    %vm4707 = vc.u32 %v4705, %v4701
    %v4708 = vsel %vm4707, 1, 0
    %v4709 = vadd.s32 %v4705, %v4701
    %v4710 = vadd.s32 %v4706, %v4708
    %v4711 = vadd.s32 %v4710, %v4700
    %v4712 = vadd.s32 %v4711, %v4702
    %v4713 = vmul.u32 %v4668, %v4659
    %v4714 = vadd.s32 %v4690, %v4709
    %vm4715 = vc.u32 %v4690, %v4709
    %v4716 = vadd.s32 %v4712, 1
    %v4717 = vsel %vm4715, %v4716, %v4712
    %v4718 = vadd.s32 %v4713, %v4717
    %v4719 = vadd.s32 %v4718, 536870912
    %v4720 = vshrl.u32 %v4719, 30
    %v4721 = vshll.u32 %v4720, 30
    %v4722 = vsub.s32 %v4718, %v4721
    %vm4723 = vcmp.lt.s32.totalorder %v4722, 0
    %v4724 = vsub.s32 0, %v4722
    %v4725 = vsel %vm4723, %v4724, %v4722
    %v4726 = vclz %v4725
    %v4727 = vsub.s32 %v4726, 2
    %vm4728 = vcmp.gt.s32.totalorder 0, %v4727
    %v4729 = vsel %vm4728, 0, %v4727
    %v4730 = vsub.s32 32, %v4729
    %v4731 = vshll.u32 %v4722, %v4729
    %v4732 = vshrl.u32 %v4714, %v4730
    %v4733 = vor.u32 %v4731, %v4732
    %v4734 = vsub.s32 4294967266, %v4729
    %v4735 = vadd.s32 %v4734, 127
    %v4736 = vshll.u32 %v4735, 23
    %v4737 = vor.u32 4788187, %v4736
    %v4738 = vand.u32 2147483647, %v4737
    %v4740 = vcvt.s32.f32 %v4733
    %v4741 = vmul.f32 %v4740, %v4738
    %v4742 = vxor.u32 %v4741, 2147483648
    %v4743 = vsel %vm4622, %v4742, %v4741
    %v4744 = vsub.s32 4, %v4720
    %v4745 = vsel %vm4622, %v4744, %v4720
    %v4746 = vsel %vm4621, %v304, %v4743
    %v4747 = vsel %vm4621, 0, %v4745
    %v4748 = vmul.f32 %v4746, %v4746
    %v4749 = vmul.f32 %v4748, -0.001358992
    %v4750 = vadd.f32 %v4749, 0.041655596
    %v4751 = vmul.f32 %v4748, %v4750
    %v4752 = vadd.f32 %v4751, -0.4999988
    %v4753 = vmul.f32 %v4748, %v4752
    %v4754 = vadd.f32 1.0, %v4753
    %v4755 = vmul.f32 %v4746, %v4746
    %v4756 = vmul.f32 %v4755, -0.00019511016
    %v4757 = vadd.f32 %v4756, 0.008332121
    %v4758 = vmul.f32 %v4755, %v4757
    %v4759 = vadd.f32 %v4758, -0.16666654
    %v4760 = vmul.f32 %v4755, %v4759
    %v4761 = vadd.f32 %v4760, 1.0
    %v4762 = vmul.f32 %v4761, %v4746
    %vm4763 = vweird.f32 %v304
    %v4764 = vand.u32 %v4747, 3
    %vm4765 = vcmp.lt.s32.totalorder %v4764, 2
    %vm4766 = vcmp.eq.s32.totalorder %v4764, 0
    %v4767 = vxor.u32 %v4762, 2147483648
    %v4768 = vsel %vm4766, %v4754, %v4767
    %vm4769 = vcmp.eq.s32.totalorder %v4764, 2
    %v4770 = vxor.u32 %v4754, 2147483648
    %v4771 = vsel %vm4769, %v4770, %v4762
    %v4772 = vsel %vm4765, %v4768, %v4771
    %v4773 = vsel %vm4763, nan, %v4772
    %v4774 = vand.u32 2147483647, %v305
    %vm4775 = vcmp.le.f32.partialorder %v4774, 0.7853982
    %vm4776 = vcmp.lt.s32.totalorder %v305, 0
    %v4777 = vand.u32 %v305, 2139095040
    %v4778 = vshrl.u32 %v4777, 23
    %v4779 = vsub.s32 %v4778, 127
    %v4780 = vand.u32 2147483647, %v305
    %v4781 = vand.u32 %v4780, 8388607
    %v4782 = vor.u32 %v4781, 8388608
    %v4783 = vsub.s32 0, %v4782
    %v4784 = vadd.s32 %v4779, 1
    %vm4785 = vcmp.gt.s32.totalorder %v4784, 0
    %v4786 = vsel %vm4785, %v4784, 0
    %v4787 = vshrl.u32 %v4786, 5
    %v4788 = vand.u32 %v4786, 31
    %v4789 = vsub.s32 32, %v4788
    %v4790 = vshrl.u32 683565275, %v4789
    %v4791 = vshll.u32 683565275, %v4788
    %v4792 = vshrl.u32 2475754826, %v4789
    %v4793 = vor.u32 %v4791, %v4792
    %v4794 = vshll.u32 2475754826, %v4788
    %v4795 = vshrl.u32 2131351028, %v4789
    %v4796 = vor.u32 %v4794, %v4795
    %v4797 = vshll.u32 2131351028, %v4788
    %v4798 = vshrl.u32 2102212464, %v4789
    %v4799 = vor.u32 %v4797, %v4798
    %v4800 = vshll.u32 2102212464, %v4788
    %v4801 = vshrl.u32 920167782, %v4789
    %v4802 = vor.u32 %v4800, %v4801
    %v4803 = vshll.u32 920167782, %v4788
    %v4804 = vshrl.u32 1326507024, %v4789
    %v4805 = vor.u32 %v4803, %v4804
    %vm4806 = vcmp.lt.s32.totalorder %v4787, 1
    %vm4807 = vcmp.lt.s32.totalorder %v4787, 2
    %vm4808 = vcmp.lt.s32.totalorder %v4787, 3
    %vm4809 = vcmp.lt.s32.totalorder %v4787, 4
    %v4810 = vsel %vm4806, %v4790, %v4793
    %v4811 = vsel %vm4809, %v4799, 2102212464
    %v4812 = vsel %vm4808, %v4796, %v4811
    %v4813 = vsel %vm4807, %v4810, %v4812
    %v4814 = vsel %vm4806, %v4793, %v4796
    %v4815 = vsel %vm4809, %v4802, 920167782
    %v4816 = vsel %vm4808, %v4799, %v4815
    %v4817 = vsel %vm4807, %v4814, %v4816
    %v4818 = vsel %vm4806, %v4796, %v4799
    %v4819 = vsel %vm4809, %v4805, 1326507024
    %v4820 = vsel %vm4808, %v4802, %v4819
    %v4821 = vsel %vm4807, %v4818, %v4820
    %v4822 = vshll.u32 %v4782, 8
    %v4823 = vand.u32 %v4822, 65535
    %v4824 = vshrl.u32 %v4822, 16
    %v4825 = vand.u32 %v4821, 65535
    %v4826 = vshrl.u32 %v4821, 16
    %v4827 = vmul.u32 %v4823, %v4825
    %v4828 = vmul.u32 %v4823, %v4826
    %v4829 = vmul.u32 %v4824, %v4825
    %v4830 = vmul.u32 %v4824, %v4826
    %v4831 = vshll.u32 %v4828, 16
    %v4832 = vshrl.u32 %v4828, 16
    %v4833 = vshll.u32 %v4829, 16
    %v4834 = vshrl.u32 %v4829, 16
    %vm4835 = vc.u32 %v4827, %v4831
    %v4836 = vsel %vm4835, 1, 0
    %v4837 = vadd.s32 %v4827, %v4831
    %v4838 = vadd.s32 %v4830, %v4836
    %vm4839 = vc.u32 %v4837, %v4833
    %v4840 = vsel %vm4839, 1, 0
    %v4841 = vadd.s32 %v4837, %v4833
    %v4842 = vadd.s32 %v4838, %v4840
    %v4843 = vadd.s32 %v4842, %v4832
    %v4844 = vadd.s32 %v4843, %v4834
    %v4845 = vand.u32 %v4822, 65535
    %v4846 = vshrl.u32 %v4822, 16
    %v4847 = vand.u32 %v4817, 65535
    %v4848 = vshrl.u32 %v4817, 16
    %v4849 = vmul.u32 %v4845, %v4847
    %v4850 = vmul.u32 %v4845, %v4848
    %v4851 = vmul.u32 %v4846, %v4847
    %v4852 = vmul.u32 %v4846, %v4848
    %v4853 = vshll.u32 %v4850, 16
    %v4854 = vshrl.u32 %v4850, 16
    %v4855 = vshll.u32 %v4851, 16
    %v4856 = vshrl.u32 %v4851, 16
    %vm4857 = vc.u32 %v4849, %v4853
    %v4858 = vsel %vm4857, 1, 0
    %v4859 = vadd.s32 %v4849, %v4853
    %v4860 = vadd.s32 %v4852, %v4858
    %vm4861 = vc.u32 %v4859, %v4855
    %v4862 = vsel %vm4861, 1, 0
    %v4863 = vadd.s32 %v4859, %v4855
    %v4864 = vadd.s32 %v4860, %v4862
    %v4865 = vadd.s32 %v4864, %v4854
    %v4866 = vadd.s32 %v4865, %v4856
    %v4867 = vmul.u32 %v4822, %v4813
    %v4868 = vadd.s32 %v4844, %v4863
    %vm4869 = vc.u32 %v4844, %v4863
    %v4870 = vadd.s32 %v4866, 1
    %v4871 = vsel %vm4869, %v4870, %v4866
    %v4872 = vadd.s32 %v4867, %v4871
    %v4873 = vadd.s32 %v4872, 536870912
    %v4874 = vshrl.u32 %v4873, 30
    %v4875 = vshll.u32 %v4874, 30
    %v4876 = vsub.s32 %v4872, %v4875
    %vm4877 = vcmp.lt.s32.totalorder %v4876, 0
    %v4878 = vsub.s32 0, %v4876
    %v4879 = vsel %vm4877, %v4878, %v4876
    %v4880 = vclz %v4879
    %v4881 = vsub.s32 %v4880, 2
    %vm4882 = vcmp.gt.s32.totalorder 0, %v4881
    %v4883 = vsel %vm4882, 0, %v4881
    %v4884 = vsub.s32 32, %v4883
    %v4885 = vshll.u32 %v4876, %v4883
    %v4886 = vshrl.u32 %v4868, %v4884
    %v4887 = vor.u32 %v4885, %v4886
    %v4888 = vsub.s32 4294967266, %v4883
    %v4889 = vadd.s32 %v4888, 127
    %v4890 = vshll.u32 %v4889, 23
    %v4891 = vor.u32 4788187, %v4890
    %v4892 = vand.u32 2147483647, %v4891
    %v4894 = vcvt.s32.f32 %v4887
    %v4895 = vmul.f32 %v4894, %v4892
    %v4896 = vxor.u32 %v4895, 2147483648
    %v4897 = vsel %vm4776, %v4896, %v4895
    %v4898 = vsub.s32 4, %v4874
    %v4899 = vsel %vm4776, %v4898, %v4874
    %v4900 = vsel %vm4775, %v305, %v4897
    %v4901 = vsel %vm4775, 0, %v4899
    %v4902 = vmul.f32 %v4900, %v4900
    %v4903 = vmul.f32 %v4902, -0.001358992
    %v4904 = vadd.f32 %v4903, 0.041655596
    %v4905 = vmul.f32 %v4902, %v4904
    %v4906 = vadd.f32 %v4905, -0.4999988
    %v4907 = vmul.f32 %v4902, %v4906
    %v4908 = vadd.f32 1.0, %v4907
    %v4909 = vmul.f32 %v4900, %v4900
    %v4910 = vmul.f32 %v4909, -0.00019511016
    %v4911 = vadd.f32 %v4910, 0.008332121
    %v4912 = vmul.f32 %v4909, %v4911
    %v4913 = vadd.f32 %v4912, -0.16666654
    %v4914 = vmul.f32 %v4909, %v4913
    %v4915 = vadd.f32 %v4914, 1.0
    %v4916 = vmul.f32 %v4915, %v4900
    %vm4917 = vweird.f32 %v305
    %v4918 = vand.u32 %v4901, 3
    %vm4919 = vcmp.lt.s32.totalorder %v4918, 2
    %vm4920 = vcmp.eq.s32.totalorder %v4918, 0
    %v4921 = vxor.u32 %v4916, 2147483648
    %v4922 = vsel %vm4920, %v4908, %v4921
    %vm4923 = vcmp.eq.s32.totalorder %v4918, 2
    %v4924 = vxor.u32 %v4908, 2147483648
    %v4925 = vsel %vm4923, %v4924, %v4916
    %v4926 = vsel %vm4919, %v4922, %v4925
    %v4927 = vsel %vm4917, nan, %v4926
    %v4928 = vand.u32 2147483647, %v306
    %vm4929 = vcmp.le.f32.partialorder %v4928, 0.7853982
    %vm4930 = vcmp.lt.s32.totalorder %v306, 0
    %v4931 = vand.u32 %v306, 2139095040
    %v4932 = vshrl.u32 %v4931, 23
    %v4933 = vsub.s32 %v4932, 127
    %v4934 = vand.u32 2147483647, %v306
    %v4935 = vand.u32 %v4934, 8388607
    %v4936 = vor.u32 %v4935, 8388608
    %v4937 = vsub.s32 0, %v4936
    %v4938 = vadd.s32 %v4933, 1
    %vm4939 = vcmp.gt.s32.totalorder %v4938, 0
    %v4940 = vsel %vm4939, %v4938, 0
    %v4941 = vshrl.u32 %v4940, 5
    %v4942 = vand.u32 %v4940, 31
    %v4943 = vsub.s32 32, %v4942
    %v4944 = vshrl.u32 683565275, %v4943
    %v4945 = vshll.u32 683565275, %v4942
    %v4946 = vshrl.u32 2475754826, %v4943
    %v4947 = vor.u32 %v4945, %v4946
    %v4948 = vshll.u32 2475754826, %v4942
    %v4949 = vshrl.u32 2131351028, %v4943
    %v4950 = vor.u32 %v4948, %v4949
    %v4951 = vshll.u32 2131351028, %v4942
    %v4952 = vshrl.u32 2102212464, %v4943
    %v4953 = vor.u32 %v4951, %v4952
    %v4954 = vshll.u32 2102212464, %v4942
    %v4955 = vshrl.u32 920167782, %v4943
    %v4956 = vor.u32 %v4954, %v4955
    %v4957 = vshll.u32 920167782, %v4942
    %v4958 = vshrl.u32 1326507024, %v4943
    %v4959 = vor.u32 %v4957, %v4958
    %vm4960 = vcmp.lt.s32.totalorder %v4941, 1
    %vm4961 = vcmp.lt.s32.totalorder %v4941, 2
    %vm4962 = vcmp.lt.s32.totalorder %v4941, 3
    %vm4963 = vcmp.lt.s32.totalorder %v4941, 4
    %v4964 = vsel %vm4960, %v4944, %v4947
    %v4965 = vsel %vm4963, %v4953, 2102212464
    %v4966 = vsel %vm4962, %v4950, %v4965
    %v4967 = vsel %vm4961, %v4964, %v4966
    %v4968 = vsel %vm4960, %v4947, %v4950
    %v4969 = vsel %vm4963, %v4956, 920167782
    %v4970 = vsel %vm4962, %v4953, %v4969
    %v4971 = vsel %vm4961, %v4968, %v4970
    %v4972 = vsel %vm4960, %v4950, %v4953
    %v4973 = vsel %vm4963, %v4959, 1326507024
    %v4974 = vsel %vm4962, %v4956, %v4973
    %v4975 = vsel %vm4961, %v4972, %v4974
    %v4976 = vshll.u32 %v4936, 8
    %v4977 = vand.u32 %v4976, 65535
    %v4978 = vshrl.u32 %v4976, 16
    %v4979 = vand.u32 %v4975, 65535
    %v4980 = vshrl.u32 %v4975, 16
    %v4981 = vmul.u32 %v4977, %v4979
    %v4982 = vmul.u32 %v4977, %v4980
    %v4983 = vmul.u32 %v4978, %v4979
    %v4984 = vmul.u32 %v4978, %v4980
    %v4985 = vshll.u32 %v4982, 16
    %v4986 = vshrl.u32 %v4982, 16
    %v4987 = vshll.u32 %v4983, 16
    %v4988 = vshrl.u32 %v4983, 16
    %vm4989 = vc.u32 %v4981, %v4985
    %v4990 = vsel %vm4989, 1, 0
    %v4991 = vadd.s32 %v4981, %v4985
    %v4992 = vadd.s32 %v4984, %v4990
    %vm4993 = vc.u32 %v4991, %v4987
    %v4994 = vsel %vm4993, 1, 0
    %v4995 = vadd.s32 %v4991, %v4987
    %v4996 = vadd.s32 %v4992, %v4994
    %v4997 = vadd.s32 %v4996, %v4986
    %v4998 = vadd.s32 %v4997, %v4988
    %v4999 = vand.u32 %v4976, 65535
    %v5000 = vshrl.u32 %v4976, 16
    %v5001 = vand.u32 %v4971, 65535
    %v5002 = vshrl.u32 %v4971, 16
    %v5003 = vmul.u32 %v4999, %v5001
    %v5004 = vmul.u32 %v4999, %v5002
    %v5005 = vmul.u32 %v5000, %v5001
    %v5006 = vmul.u32 %v5000, %v5002
    %v5007 = vshll.u32 %v5004, 16
    %v5008 = vshrl.u32 %v5004, 16
    %v5009 = vshll.u32 %v5005, 16
    %v5010 = vshrl.u32 %v5005, 16
    %vm5011 = vc.u32 %v5003, %v5007
    %v5012 = vsel %vm5011, 1, 0
    %v5013 = vadd.s32 %v5003, %v5007
    %v5014 = vadd.s32 %v5006, %v5012
    %vm5015 = vc.u32 %v5013, %v5009
    %v5016 = vsel %vm5015, 1, 0
    %v5017 = vadd.s32 %v5013, %v5009
    %v5018 = vadd.s32 %v5014, %v5016
    %v5019 = vadd.s32 %v5018, %v5008
    %v5020 = vadd.s32 %v5019, %v5010
    %v5021 = vmul.u32 %v4976, %v4967
    %v5022 = vadd.s32 %v4998, %v5017
    %vm5023 = vc.u32 %v4998, %v5017
    %v5024 = vadd.s32 %v5020, 1
    %v5025 = vsel %vm5023, %v5024, %v5020
    %v5026 = vadd.s32 %v5021, %v5025
    %v5027 = vadd.s32 %v5026, 536870912
    %v5028 = vshrl.u32 %v5027, 30
    %v5029 = vshll.u32 %v5028, 30
    %v5030 = vsub.s32 %v5026, %v5029
    %vm5031 = vcmp.lt.s32.totalorder %v5030, 0
    %v5032 = vsub.s32 0, %v5030
    %v5033 = vsel %vm5031, %v5032, %v5030
    %v5034 = vclz %v5033
    %v5035 = vsub.s32 %v5034, 2
    %vm5036 = vcmp.gt.s32.totalorder 0, %v5035
    %v5037 = vsel %vm5036, 0, %v5035
    %v5038 = vsub.s32 32, %v5037
    %v5039 = vshll.u32 %v5030, %v5037
    %v5040 = vshrl.u32 %v5022, %v5038
    %v5041 = vor.u32 %v5039, %v5040
    %v5042 = vsub.s32 4294967266, %v5037
    %v5043 = vadd.s32 %v5042, 127
    %v5044 = vshll.u32 %v5043, 23
    %v5045 = vor.u32 4788187, %v5044
    %v5046 = vand.u32 2147483647, %v5045
    %v5048 = vcvt.s32.f32 %v5041
    %v5049 = vmul.f32 %v5048, %v5046
    %v5050 = vxor.u32 %v5049, 2147483648
    %v5051 = vsel %vm4930, %v5050, %v5049
    %v5052 = vsub.s32 4, %v5028
    %v5053 = vsel %vm4930, %v5052, %v5028
    %v5054 = vsel %vm4929, %v306, %v5051
    %v5055 = vsel %vm4929, 0, %v5053
    %v5056 = vmul.f32 %v5054, %v5054
    %v5057 = vmul.f32 %v5056, -0.001358992
    %v5058 = vadd.f32 %v5057, 0.041655596
    %v5059 = vmul.f32 %v5056, %v5058
    %v5060 = vadd.f32 %v5059, -0.4999988
    %v5061 = vmul.f32 %v5056, %v5060
    %v5062 = vadd.f32 1.0, %v5061
    %v5063 = vmul.f32 %v5054, %v5054
    %v5064 = vmul.f32 %v5063, -0.00019511016
    %v5065 = vadd.f32 %v5064, 0.008332121
    %v5066 = vmul.f32 %v5063, %v5065
    %v5067 = vadd.f32 %v5066, -0.16666654
    %v5068 = vmul.f32 %v5063, %v5067
    %v5069 = vadd.f32 %v5068, 1.0
    %v5070 = vmul.f32 %v5069, %v5054
    %vm5071 = vweird.f32 %v306
    %v5072 = vand.u32 %v5055, 3
    %vm5073 = vcmp.lt.s32.totalorder %v5072, 2
    %vm5074 = vcmp.eq.s32.totalorder %v5072, 0
    %v5075 = vxor.u32 %v5070, 2147483648
    %v5076 = vsel %vm5074, %v5062, %v5075
    %vm5077 = vcmp.eq.s32.totalorder %v5072, 2
    %v5078 = vxor.u32 %v5062, 2147483648
    %v5079 = vsel %vm5077, %v5078, %v5070
    %v5080 = vsel %vm5073, %v5076, %v5079
    %v5081 = vsel %vm5071, nan, %v5080
    %v5082 = vand.u32 2147483647, %v307
    %vm5083 = vcmp.le.f32.partialorder %v5082, 0.7853982
    %vm5084 = vcmp.lt.s32.totalorder %v307, 0
    %v5085 = vand.u32 %v307, 2139095040
    %v5086 = vshrl.u32 %v5085, 23
    %v5087 = vsub.s32 %v5086, 127
    %v5088 = vand.u32 2147483647, %v307
    %v5089 = vand.u32 %v5088, 8388607
    %v5090 = vor.u32 %v5089, 8388608
    %v5091 = vsub.s32 0, %v5090
    %v5092 = vadd.s32 %v5087, 1
    %vm5093 = vcmp.gt.s32.totalorder %v5092, 0
    %v5094 = vsel %vm5093, %v5092, 0
    %v5095 = vshrl.u32 %v5094, 5
    %v5096 = vand.u32 %v5094, 31
    %v5097 = vsub.s32 32, %v5096
    %v5098 = vshrl.u32 683565275, %v5097
    %v5099 = vshll.u32 683565275, %v5096
    %v5100 = vshrl.u32 2475754826, %v5097
    %v5101 = vor.u32 %v5099, %v5100
    %v5102 = vshll.u32 2475754826, %v5096
    %v5103 = vshrl.u32 2131351028, %v5097
    %v5104 = vor.u32 %v5102, %v5103
    %v5105 = vshll.u32 2131351028, %v5096
    %v5106 = vshrl.u32 2102212464, %v5097
    %v5107 = vor.u32 %v5105, %v5106
    %v5108 = vshll.u32 2102212464, %v5096
    %v5109 = vshrl.u32 920167782, %v5097
    %v5110 = vor.u32 %v5108, %v5109
    %v5111 = vshll.u32 920167782, %v5096
    %v5112 = vshrl.u32 1326507024, %v5097
    %v5113 = vor.u32 %v5111, %v5112
    %vm5114 = vcmp.lt.s32.totalorder %v5095, 1
    %vm5115 = vcmp.lt.s32.totalorder %v5095, 2
    %vm5116 = vcmp.lt.s32.totalorder %v5095, 3
    %vm5117 = vcmp.lt.s32.totalorder %v5095, 4
    %v5118 = vsel %vm5114, %v5098, %v5101
    %v5119 = vsel %vm5117, %v5107, 2102212464
    %v5120 = vsel %vm5116, %v5104, %v5119
    %v5121 = vsel %vm5115, %v5118, %v5120
    %v5122 = vsel %vm5114, %v5101, %v5104
    %v5123 = vsel %vm5117, %v5110, 920167782
    %v5124 = vsel %vm5116, %v5107, %v5123
    %v5125 = vsel %vm5115, %v5122, %v5124
    %v5126 = vsel %vm5114, %v5104, %v5107
    %v5127 = vsel %vm5117, %v5113, 1326507024
    %v5128 = vsel %vm5116, %v5110, %v5127
    %v5129 = vsel %vm5115, %v5126, %v5128
    %v5130 = vshll.u32 %v5090, 8
    %v5131 = vand.u32 %v5130, 65535
    %v5132 = vshrl.u32 %v5130, 16
    %v5133 = vand.u32 %v5129, 65535
    %v5134 = vshrl.u32 %v5129, 16
    %v5135 = vmul.u32 %v5131, %v5133
    %v5136 = vmul.u32 %v5131, %v5134
    %v5137 = vmul.u32 %v5132, %v5133
    %v5138 = vmul.u32 %v5132, %v5134
    %v5139 = vshll.u32 %v5136, 16
    %v5140 = vshrl.u32 %v5136, 16
    %v5141 = vshll.u32 %v5137, 16
    %v5142 = vshrl.u32 %v5137, 16
    %vm5143 = vc.u32 %v5135, %v5139
    %v5144 = vsel %vm5143, 1, 0
    %v5145 = vadd.s32 %v5135, %v5139
    %v5146 = vadd.s32 %v5138, %v5144
    %vm5147 = vc.u32 %v5145, %v5141
    %v5148 = vsel %vm5147, 1, 0
    %v5149 = vadd.s32 %v5145, %v5141
    %v5150 = vadd.s32 %v5146, %v5148
    %v5151 = vadd.s32 %v5150, %v5140
    %v5152 = vadd.s32 %v5151, %v5142
    %v5153 = vand.u32 %v5130, 65535
    %v5154 = vshrl.u32 %v5130, 16
    %v5155 = vand.u32 %v5125, 65535
    %v5156 = vshrl.u32 %v5125, 16
    %v5157 = vmul.u32 %v5153, %v5155
    %v5158 = vmul.u32 %v5153, %v5156
    %v5159 = vmul.u32 %v5154, %v5155
    %v5160 = vmul.u32 %v5154, %v5156
    %v5161 = vshll.u32 %v5158, 16
    %v5162 = vshrl.u32 %v5158, 16
    %v5163 = vshll.u32 %v5159, 16
    %v5164 = vshrl.u32 %v5159, 16
    %vm5165 = vc.u32 %v5157, %v5161
    %v5166 = vsel %vm5165, 1, 0
    %v5167 = vadd.s32 %v5157, %v5161
    %v5168 = vadd.s32 %v5160, %v5166
    %vm5169 = vc.u32 %v5167, %v5163
    %v5170 = vsel %vm5169, 1, 0
    %v5171 = vadd.s32 %v5167, %v5163
    %v5172 = vadd.s32 %v5168, %v5170
    %v5173 = vadd.s32 %v5172, %v5162
    %v5174 = vadd.s32 %v5173, %v5164
    %v5175 = vmul.u32 %v5130, %v5121
    %v5176 = vadd.s32 %v5152, %v5171
    %vm5177 = vc.u32 %v5152, %v5171
    %v5178 = vadd.s32 %v5174, 1
    %v5179 = vsel %vm5177, %v5178, %v5174
    %v5180 = vadd.s32 %v5175, %v5179
    %v5181 = vadd.s32 %v5180, 536870912
    %v5182 = vshrl.u32 %v5181, 30
    %v5183 = vshll.u32 %v5182, 30
    %v5184 = vsub.s32 %v5180, %v5183
    %vm5185 = vcmp.lt.s32.totalorder %v5184, 0
    %v5186 = vsub.s32 0, %v5184
    %v5187 = vsel %vm5185, %v5186, %v5184
    %v5188 = vclz %v5187
    %v5189 = vsub.s32 %v5188, 2
    %vm5190 = vcmp.gt.s32.totalorder 0, %v5189
    %v5191 = vsel %vm5190, 0, %v5189
    %v5192 = vsub.s32 32, %v5191
    %v5193 = vshll.u32 %v5184, %v5191
    %v5194 = vshrl.u32 %v5176, %v5192
    %v5195 = vor.u32 %v5193, %v5194
    %v5196 = vsub.s32 4294967266, %v5191
    %v5197 = vadd.s32 %v5196, 127
    %v5198 = vshll.u32 %v5197, 23
    %v5199 = vor.u32 4788187, %v5198
    %v5200 = vand.u32 2147483647, %v5199
    %v5202 = vcvt.s32.f32 %v5195
    %v5203 = vmul.f32 %v5202, %v5200
    %v5204 = vxor.u32 %v5203, 2147483648
    %v5205 = vsel %vm5084, %v5204, %v5203
    %v5206 = vsub.s32 4, %v5182
    %v5207 = vsel %vm5084, %v5206, %v5182
    %v5208 = vsel %vm5083, %v307, %v5205
    %v5209 = vsel %vm5083, 0, %v5207
    %v5210 = vmul.f32 %v5208, %v5208
    %v5211 = vmul.f32 %v5210, -0.001358992
    %v5212 = vadd.f32 %v5211, 0.041655596
    %v5213 = vmul.f32 %v5210, %v5212
    %v5214 = vadd.f32 %v5213, -0.4999988
    %v5215 = vmul.f32 %v5210, %v5214
    %v5216 = vadd.f32 1.0, %v5215
    %v5217 = vmul.f32 %v5208, %v5208
    %v5218 = vmul.f32 %v5217, -0.00019511016
    %v5219 = vadd.f32 %v5218, 0.008332121
    %v5220 = vmul.f32 %v5217, %v5219
    %v5221 = vadd.f32 %v5220, -0.16666654
    %v5222 = vmul.f32 %v5217, %v5221
    %v5223 = vadd.f32 %v5222, 1.0
    %v5224 = vmul.f32 %v5223, %v5208
    %vm5225 = vweird.f32 %v307
    %v5226 = vand.u32 %v5209, 3
    %vm5227 = vcmp.lt.s32.totalorder %v5226, 2
    %vm5228 = vcmp.eq.s32.totalorder %v5226, 0
    %v5229 = vxor.u32 %v5224, 2147483648
    %v5230 = vsel %vm5228, %v5216, %v5229
    %vm5231 = vcmp.eq.s32.totalorder %v5226, 2
    %v5232 = vxor.u32 %v5216, 2147483648
    %v5233 = vsel %vm5231, %v5232, %v5224
    %v5234 = vsel %vm5227, %v5230, %v5233
    %v5235 = vsel %vm5225, nan, %v5234
    %v5236 = vpack.c.bf16 %v769, %v461
    %v5237 = vpack.c.bf16 %v923, %v615
    %v5238 = vpack.c.bf16 %v1385, %v1077
    %v5239 = vpack.c.bf16 %v1539, %v1231
    %v5240 = vpack.c.bf16 %v2001, %v1693
    %v5241 = vpack.c.bf16 %v2155, %v1847
    %v5242 = vpack.c.bf16 %v2617, %v2309
    %v5243 = vpack.c.bf16 %v2771, %v2463
    %v5244 = vpack.c.bf16 %v3233, %v2925
    %v5245 = vpack.c.bf16 %v3387, %v3079
    %v5246 = vpack.c.bf16 %v3849, %v3541
    %v5247 = vpack.c.bf16 %v4003, %v3695
    %v5248 = vpack.c.bf16 %v4465, %v4157
    %v5249 = vpack.c.bf16 %v4619, %v4311
    %v5250 = vpack.c.bf16 %v5081, %v4773
    %v5251 = vpack.c.bf16 %v5235, %v4927
    %v5252 = vld [vmem:[%s3] sm:$0xf]
    %v5253 = vld [vmem:[%s3 + $0x4] sm:$0xf]
    %v5254 = vld [vmem:[%s3 + $0x8] sm:$0xf]
    %v5255 = vld [vmem:[%s3 + $0xc] sm:$0xf]
    %v5256 = vld [vmem:[%s3 + $0x10] sm:$0xf]
    %v5257 = vld [vmem:[%s3 + $0x14] sm:$0xf]
    %v5258 = vld [vmem:[%s3 + $0x18] sm:$0xf]
    %v5259 = vld [vmem:[%s3 + $0x1c] sm:$0xf]
    %v5260 = vld [vmem:[%s3 + $0x20] sm:$0xf]
    %v5261 = vld [vmem:[%s3 + $0x24] sm:$0xf]
    %v5262 = vld [vmem:[%s3 + $0x28] sm:$0xf]
    %v5263 = vld [vmem:[%s3 + $0x2c] sm:$0xf]
    %v5264 = vld [vmem:[%s3 + $0x30] sm:$0xf]
    %v5265 = vld [vmem:[%s3 + $0x34] sm:$0xf]
    %v5266 = vld [vmem:[%s3 + $0x38] sm:$0xf]
    %v5267 = vld [vmem:[%s3 + $0x3c] sm:$0xf]
    %v5268 = vld [vmem:[%s4] sm:$0xff]
    %v5269 = vld [vmem:[%s4 + $0x8] sm:$0xff]
    %v5270 = vld [vmem:[%s4 + $0x10] sm:$0xff]
    %v5271 = vld [vmem:[%s4 + $0x18] sm:$0xff]
    %v5272 = vld [vmem:[%s5] sm:$0x3]
    %v5274 = vperm.slane %v5272, 0
    %v5275 = vperm.slane %v5272, 1
    %v5294 = vunpack.c.l.b16 %v5252
    %v5295 = vunpack.c.l.b16 %v5253
    %v5296 = vunpack.c.l.b16 %v5254
    %v5297 = vunpack.c.l.b16 %v5255
    %v5298 = vunpack.c.l.b16 %v5256
    %v5299 = vunpack.c.l.b16 %v5257
    %v5300 = vunpack.c.l.b16 %v5258
    %v5301 = vunpack.c.l.b16 %v5259
    %v5302 = vunpack.c.l.b16 %v5260
    %v5303 = vunpack.c.l.b16 %v5261
    %v5304 = vunpack.c.l.b16 %v5262
    %v5305 = vunpack.c.l.b16 %v5263
    %v5306 = vunpack.c.l.b16 %v5264
    %v5307 = vunpack.c.l.b16 %v5265
    %v5308 = vunpack.c.l.b16 %v5266
    %v5309 = vunpack.c.l.b16 %v5267
    %v5310 = vpack.c.b16 %v5295, %v5294
    %v5311 = vpack.c.b16 %v5297, %v5296
    %v5312 = vpack.c.b16 %v5299, %v5298
    %v5313 = vpack.c.b16 %v5301, %v5300
    %v5314 = vpack.c.b16 %v5303, %v5302
    %v5315 = vpack.c.b16 %v5305, %v5304
    %v5316 = vpack.c.b16 %v5307, %v5306
    %v5317 = vpack.c.b16 %v5309, %v5308
    %v5322 = vunpack.c.l.b16 %v5268
    %v5323 = vunpack.c.h.b16 %v5268
    %v5324 = vunpack.c.l.b16 %v5269
    %v5325 = vunpack.c.h.b16 %v5269
    %v5326 = vunpack.c.l.b16 %v5270
    %v5327 = vunpack.c.h.b16 %v5270
    %v5328 = vunpack.c.l.b16 %v5271
    %v5329 = vunpack.c.h.b16 %v5271
    %v5330 = vpack.c.b16 %v5324, %v5322
    %v5331 = vpack.c.b16 %v5325, %v5323
    %v5332 = vpack.c.b16 %v5328, %v5326
    %v5333 = vpack.c.b16 %v5329, %v5327
    %vm5338 = vcmask 261120
    %v5340 = vsel %vm5338, %v5310, 0
    %v5343 = vsel %vm5338, %v5311, 0
    %v5346 = vsel %vm5338, %v5312, 0
    %v5349 = vsel %vm5338, %v5313, 0
    %v5352 = vsel %vm5338, %v5314, 0
    %v5355 = vsel %vm5338, %v5315, 0
    %v5358 = vsel %vm5338, %v5316, 0
    %v5361 = vsel %vm5338, %v5317, 0
    %5363 = vmatpush.bf16.msra.mxu0 0
    %5364 = vmatpush.bf16.msra.mxu0 0
    %5365 = vmatpush.bf16.msra.mxu0 0
    %5366 = vmatpush.bf16.msra.mxu0 0
    %5367 = vmatpush.bf16.msra.mxu0 0
    %5368 = vmatpush.bf16.msra.mxu0 0
    %5369 = vmatpush.bf16.msra.mxu0 %v5332
    %5370 = vmatpush.bf16.msra.mxu0 %v5330
    %5371 = vmatmul.bf16.gmra.mxu0 %v5340
    %v5372 = vpop.f32.mrf.mxu0
    %v5373 = vadd.f32 %v5274, %v5372
    %v5374 = vpop.f32.mrf.mxu0
    %v5375 = vadd.f32 %v5274, %v5374
    %5376 = vmatmul.bf16.gmra.mxu0 %v5343
    %v5377 = vpop.f32.mrf.mxu0
    %v5378 = vadd.f32 %v5274, %v5377
    %v5379 = vpop.f32.mrf.mxu0
    %v5380 = vadd.f32 %v5274, %v5379
    %5381 = vmatmul.bf16.gmra.mxu0 %v5346
    %v5382 = vpop.f32.mrf.mxu0
    %v5383 = vadd.f32 %v5274, %v5382
    %v5384 = vpop.f32.mrf.mxu0
    %v5385 = vadd.f32 %v5274, %v5384
    %5386 = vmatmul.bf16.gmra.mxu0 %v5349
    %v5387 = vpop.f32.mrf.mxu0
    %v5388 = vadd.f32 %v5274, %v5387
    %v5389 = vpop.f32.mrf.mxu0
    %v5390 = vadd.f32 %v5274, %v5389
    %5391 = vmatmul.bf16.gmra.mxu0 %v5352
    %v5392 = vpop.f32.mrf.mxu0
    %v5393 = vadd.f32 %v5274, %v5392
    %v5394 = vpop.f32.mrf.mxu0
    %v5395 = vadd.f32 %v5274, %v5394
    %5396 = vmatmul.bf16.gmra.mxu0 %v5355
    %v5397 = vpop.f32.mrf.mxu0
    %v5398 = vadd.f32 %v5274, %v5397
    %v5399 = vpop.f32.mrf.mxu0
    %v5400 = vadd.f32 %v5274, %v5399
    %5401 = vmatmul.bf16.gmra.mxu0 %v5358
    %v5402 = vpop.f32.mrf.mxu0
    %v5403 = vadd.f32 %v5274, %v5402
    %v5404 = vpop.f32.mrf.mxu0
    %v5405 = vadd.f32 %v5274, %v5404
    %5406 = vmatmul.bf16.gmra.mxu0 %v5361
    %v5407 = vpop.f32.mrf.mxu0
    %v5408 = vadd.f32 %v5274, %v5407
    %v5409 = vpop.f32.mrf.mxu0
    %v5410 = vadd.f32 %v5274, %v5409
    %5411 = vdwg.mxu0
    %5412 = vmatpush.bf16.msra.mxu0 0
    %5413 = vmatpush.bf16.msra.mxu0 0
    %5414 = vmatpush.bf16.msra.mxu0 0
    %5415 = vmatpush.bf16.msra.mxu0 0
    %5416 = vmatpush.bf16.msra.mxu0 0
    %5417 = vmatpush.bf16.msra.mxu0 0
    %5418 = vmatpush.bf16.msra.mxu0 %v5333
    %5419 = vmatpush.bf16.msra.mxu0 %v5331
    %5420 = vmatmul.bf16.gmra.mxu0 %v5340
    %v5421 = vpop.f32.mrf.mxu0
    %v5422 = vadd.f32 %v5275, %v5421
    %v5423 = vpop.f32.mrf.mxu0
    %v5424 = vadd.f32 %v5275, %v5423
    %5425 = vmatmul.bf16.gmra.mxu0 %v5343
    %v5426 = vpop.f32.mrf.mxu0
    %v5427 = vadd.f32 %v5275, %v5426
    %v5428 = vpop.f32.mrf.mxu0
    %v5429 = vadd.f32 %v5275, %v5428
    %5430 = vmatmul.bf16.gmra.mxu0 %v5346
    %v5431 = vpop.f32.mrf.mxu0
    %v5432 = vadd.f32 %v5275, %v5431
    %v5433 = vpop.f32.mrf.mxu0
    %v5434 = vadd.f32 %v5275, %v5433
    %5435 = vmatmul.bf16.gmra.mxu0 %v5349
    %v5436 = vpop.f32.mrf.mxu0
    %v5437 = vadd.f32 %v5275, %v5436
    %v5438 = vpop.f32.mrf.mxu0
    %v5439 = vadd.f32 %v5275, %v5438
    %5440 = vmatmul.bf16.gmra.mxu0 %v5352
    %v5441 = vpop.f32.mrf.mxu0
    %v5442 = vadd.f32 %v5275, %v5441
    %v5443 = vpop.f32.mrf.mxu0
    %v5444 = vadd.f32 %v5275, %v5443
    %5445 = vmatmul.bf16.gmra.mxu0 %v5355
    %v5446 = vpop.f32.mrf.mxu0
    %v5447 = vadd.f32 %v5275, %v5446
    %v5448 = vpop.f32.mrf.mxu0
    %v5449 = vadd.f32 %v5275, %v5448
    %5450 = vmatmul.bf16.gmra.mxu0 %v5358
    %v5451 = vpop.f32.mrf.mxu0
    %v5452 = vadd.f32 %v5275, %v5451
    %v5453 = vpop.f32.mrf.mxu0
    %v5454 = vadd.f32 %v5275, %v5453
    %5455 = vmatmul.bf16.gmra.mxu0 %v5361
    %v5456 = vpop.f32.mrf.mxu0
    %v5457 = vadd.f32 %v5275, %v5456
    %v5458 = vpop.f32.mrf.mxu0
    %v5459 = vadd.f32 %v5275, %v5458
    %5460 = vdwg.mxu0
    %v5461 = vmax.f32 %v5373, 0.0
    %v5462 = vmax.f32 %v5422, 0.0
    %v5463 = vmax.f32 %v5375, 0.0
    %v5464 = vmax.f32 %v5424, 0.0
    %v5465 = vmax.f32 %v5378, 0.0
    %v5466 = vmax.f32 %v5427, 0.0
    %v5467 = vmax.f32 %v5380, 0.0
    %v5468 = vmax.f32 %v5429, 0.0
    %v5469 = vmax.f32 %v5383, 0.0
    %v5470 = vmax.f32 %v5432, 0.0
    %v5471 = vmax.f32 %v5385, 0.0
    %v5472 = vmax.f32 %v5434, 0.0
    %v5473 = vmax.f32 %v5388, 0.0
    %v5474 = vmax.f32 %v5437, 0.0
    %v5475 = vmax.f32 %v5390, 0.0
    %v5476 = vmax.f32 %v5439, 0.0
    %v5477 = vmax.f32 %v5393, 0.0
    %v5478 = vmax.f32 %v5442, 0.0
    %v5479 = vmax.f32 %v5395, 0.0
    %v5480 = vmax.f32 %v5444, 0.0
    %v5481 = vmax.f32 %v5398, 0.0
    %v5482 = vmax.f32 %v5447, 0.0
    %v5483 = vmax.f32 %v5400, 0.0
    %v5484 = vmax.f32 %v5449, 0.0
    %v5485 = vmax.f32 %v5403, 0.0
    %v5486 = vmax.f32 %v5452, 0.0
    %v5487 = vmax.f32 %v5405, 0.0
    %v5488 = vmax.f32 %v5454, 0.0
    %v5489 = vmax.f32 %v5408, 0.0
    %v5490 = vmax.f32 %v5457, 0.0
    %v5491 = vmax.f32 %v5410, 0.0
    %v5492 = vmax.f32 %v5459, 0.0
    %v5493 = vpack.c.bf16 %v5463, %v5461
    %v5494 = vpack.c.bf16 %v5464, %v5462
    %v5495 = vpack.c.bf16 %v5467, %v5465
    %v5496 = vpack.c.bf16 %v5468, %v5466
    %v5497 = vpack.c.bf16 %v5471, %v5469
    %v5498 = vpack.c.bf16 %v5472, %v5470
    %v5499 = vpack.c.bf16 %v5475, %v5473
    %v5500 = vpack.c.bf16 %v5476, %v5474
    %v5501 = vpack.c.bf16 %v5479, %v5477
    %v5502 = vpack.c.bf16 %v5480, %v5478
    %v5503 = vpack.c.bf16 %v5483, %v5481
    %v5504 = vpack.c.bf16 %v5484, %v5482
    %v5505 = vpack.c.bf16 %v5487, %v5485
    %v5506 = vpack.c.bf16 %v5488, %v5486
    %v5507 = vpack.c.bf16 %v5491, %v5489
    %v5508 = vpack.c.bf16 %v5492, %v5490
    %v5509 = vld [vmem:[#allocation2] sm:$0xff]
    %v5510 = vld [vmem:[#allocation2 + $0x8] sm:$0xff]
    %v5511 = vld [vmem:[#allocation2 + $0x10] sm:$0xff]
    %v5512 = vld [vmem:[#allocation2 + $0x18] sm:$0xff]
    %v5513 = vld [vmem:[#allocation2 + $0x20] sm:$0xff]
    %v5514 = vld [vmem:[#allocation2 + $0x28] sm:$0xff]
    %v5515 = vld [vmem:[#allocation2 + $0x30] sm:$0xff]
    %v5516 = vld [vmem:[#allocation2 + $0x38] sm:$0xff]
    %v5517 = vld [vmem:[#allocation2 + $0x40] sm:$0xff]
    %v5518 = vld [vmem:[#allocation2 + $0x48] sm:$0xff]
    %v5519 = vld [vmem:[#allocation2 + $0x50] sm:$0xff]
    %v5520 = vld [vmem:[#allocation2 + $0x58] sm:$0xff]
    %v5521 = vld [vmem:[#allocation2 + $0x60] sm:$0xff]
    %v5522 = vld [vmem:[#allocation2 + $0x68] sm:$0xff]
    %v5523 = vld [vmem:[#allocation2 + $0x70] sm:$0xff]
    %v5524 = vld [vmem:[#allocation2 + $0x78] sm:$0xff]
    %v5525 = vld [vmem:[#allocation2 + $0x80] sm:$0xff]
    %v5526 = vld [vmem:[#allocation2 + $0x88] sm:$0xff]
    %v5527 = vld [vmem:[#allocation2 + $0x90] sm:$0xff]
    %v5528 = vld [vmem:[#allocation2 + $0x98] sm:$0xff]
    %v5529 = vld [vmem:[#allocation2 + $0xa0] sm:$0xff]
    %v5530 = vld [vmem:[#allocation2 + $0xa8] sm:$0xff]
    %v5531 = vld [vmem:[#allocation2 + $0xb0] sm:$0xff]
    %v5532 = vld [vmem:[#allocation2 + $0xb8] sm:$0xff]
    %v5533 = vld [vmem:[#allocation2 + $0xc0] sm:$0xff]
    %v5534 = vld [vmem:[#allocation2 + $0xc8] sm:$0xff]
    %v5535 = vld [vmem:[#allocation2 + $0xd0] sm:$0xff]
    %v5536 = vld [vmem:[#allocation2 + $0xd8] sm:$0xff]
    %v5537 = vld [vmem:[#allocation2 + $0xe0] sm:$0xff]
    %v5538 = vld [vmem:[#allocation2 + $0xe8] sm:$0xff]
    %v5539 = vld [vmem:[#allocation2 + $0xf0] sm:$0xff]
    %v5540 = vld [vmem:[#allocation2 + $0xf8] sm:$0xff]
    %v5541 = vld [vmem:[%s7] sm:$0x3]
    %v5543 = vperm.slane %v5541, 0
    %v5544 = vperm.slane %v5541, 1
    %v5579 = vunpack.c.l.b16 %v5509
    %v5580 = vunpack.c.h.b16 %v5509
    %v5581 = vunpack.c.l.b16 %v5510
    %v5582 = vunpack.c.h.b16 %v5510
    %v5583 = vunpack.c.l.b16 %v5511
    %v5584 = vunpack.c.h.b16 %v5511
    %v5585 = vunpack.c.l.b16 %v5512
    %v5586 = vunpack.c.h.b16 %v5512
    %v5587 = vunpack.c.l.b16 %v5513
    %v5588 = vunpack.c.h.b16 %v5513
    %v5589 = vunpack.c.l.b16 %v5514
    %v5590 = vunpack.c.h.b16 %v5514
    %v5591 = vunpack.c.l.b16 %v5515
    %v5592 = vunpack.c.h.b16 %v5515
    %v5593 = vunpack.c.l.b16 %v5516
    %v5594 = vunpack.c.h.b16 %v5516
    %v5595 = vunpack.c.l.b16 %v5517
    %v5596 = vunpack.c.h.b16 %v5517
    %v5597 = vunpack.c.l.b16 %v5518
    %v5598 = vunpack.c.h.b16 %v5518
    %v5599 = vunpack.c.l.b16 %v5519
    %v5600 = vunpack.c.h.b16 %v5519
    %v5601 = vunpack.c.l.b16 %v5520
    %v5602 = vunpack.c.h.b16 %v5520
    %v5603 = vunpack.c.l.b16 %v5521
    %v5604 = vunpack.c.h.b16 %v5521
    %v5605 = vunpack.c.l.b16 %v5522
    %v5606 = vunpack.c.h.b16 %v5522
    %v5607 = vunpack.c.l.b16 %v5523
    %v5608 = vunpack.c.h.b16 %v5523
    %v5609 = vunpack.c.l.b16 %v5524
    %v5610 = vunpack.c.h.b16 %v5524
    %v5611 = vunpack.c.l.b16 %v5525
    %v5612 = vunpack.c.h.b16 %v5525
    %v5613 = vunpack.c.l.b16 %v5526
    %v5614 = vunpack.c.h.b16 %v5526
    %v5615 = vunpack.c.l.b16 %v5527
    %v5616 = vunpack.c.h.b16 %v5527
    %v5617 = vunpack.c.l.b16 %v5528
    %v5618 = vunpack.c.h.b16 %v5528
    %v5619 = vunpack.c.l.b16 %v5529
    %v5620 = vunpack.c.h.b16 %v5529
    %v5621 = vunpack.c.l.b16 %v5530
    %v5622 = vunpack.c.h.b16 %v5530
    %v5623 = vunpack.c.l.b16 %v5531
    %v5624 = vunpack.c.h.b16 %v5531
    %v5625 = vunpack.c.l.b16 %v5532
    %v5626 = vunpack.c.h.b16 %v5532
    %v5627 = vunpack.c.l.b16 %v5533
    %v5628 = vunpack.c.h.b16 %v5533
    %v5629 = vunpack.c.l.b16 %v5534
    %v5630 = vunpack.c.h.b16 %v5534
    %v5631 = vunpack.c.l.b16 %v5535
    %v5632 = vunpack.c.h.b16 %v5535
    %v5633 = vunpack.c.l.b16 %v5536
    %v5634 = vunpack.c.h.b16 %v5536
    %v5635 = vunpack.c.l.b16 %v5537
    %v5636 = vunpack.c.h.b16 %v5537
    %v5637 = vunpack.c.l.b16 %v5538
    %v5638 = vunpack.c.h.b16 %v5538
    %v5639 = vunpack.c.l.b16 %v5539
    %v5640 = vunpack.c.h.b16 %v5539
    %v5641 = vunpack.c.l.b16 %v5540
    %v5642 = vunpack.c.h.b16 %v5540
    %v5643 = vpack.c.b16 %v5581, %v5579
    %v5644 = vpack.c.b16 %v5582, %v5580
    %v5645 = vpack.c.b16 %v5585, %v5583
    %v5646 = vpack.c.b16 %v5586, %v5584
    %v5647 = vpack.c.b16 %v5589, %v5587
    %v5648 = vpack.c.b16 %v5590, %v5588
    %v5649 = vpack.c.b16 %v5593, %v5591
    %v5650 = vpack.c.b16 %v5594, %v5592
    %v5651 = vpack.c.b16 %v5597, %v5595
    %v5652 = vpack.c.b16 %v5598, %v5596
    %v5653 = vpack.c.b16 %v5601, %v5599
    %v5654 = vpack.c.b16 %v5602, %v5600
    %v5655 = vpack.c.b16 %v5605, %v5603
    %v5656 = vpack.c.b16 %v5606, %v5604
    %v5657 = vpack.c.b16 %v5609, %v5607
    %v5658 = vpack.c.b16 %v5610, %v5608
    %v5659 = vpack.c.b16 %v5613, %v5611
    %v5660 = vpack.c.b16 %v5614, %v5612
    %v5661 = vpack.c.b16 %v5617, %v5615
    %v5662 = vpack.c.b16 %v5618, %v5616
    %v5663 = vpack.c.b16 %v5621, %v5619
    %v5664 = vpack.c.b16 %v5622, %v5620
    %v5665 = vpack.c.b16 %v5625, %v5623
    %v5666 = vpack.c.b16 %v5626, %v5624
    %v5667 = vpack.c.b16 %v5629, %v5627
    %v5668 = vpack.c.b16 %v5630, %v5628
    %v5669 = vpack.c.b16 %v5633, %v5631
    %v5670 = vpack.c.b16 %v5634, %v5632
    %v5671 = vpack.c.b16 %v5637, %v5635
    %v5672 = vpack.c.b16 %v5638, %v5636
    %v5673 = vpack.c.b16 %v5641, %v5639
    %v5674 = vpack.c.b16 %v5642, %v5640
    %5707 = vmatpush.bf16.msra.mxu0 %v5657
    %5708 = vmatpush.bf16.msra.mxu0 %v5655
    %5709 = vmatpush.bf16.msra.mxu0 %v5653
    %5710 = vmatpush.bf16.msra.mxu0 %v5651
    %5711 = vmatpush.bf16.msra.mxu0 %v5649
    %5712 = vmatpush.bf16.msra.mxu0 %v5647
    %5713 = vmatpush.bf16.msra.mxu0 %v5645
    %5714 = vmatpush.bf16.msra.mxu0 %v5643
    %5715 = vmatmul.bf16.gmra.mxu0 %v5493
    %v5716 = vpop.f32.mrf.mxu0
    %v5717 = vadd.f32 %v5543, %v5716
    %v5718 = vpop.f32.mrf.mxu0
    %v5719 = vadd.f32 %v5543, %v5718
    %5720 = vmatmul.bf16.gmra.mxu0 %v5495
    %v5721 = vpop.f32.mrf.mxu0
    %v5722 = vadd.f32 %v5543, %v5721
    %v5723 = vpop.f32.mrf.mxu0
    %v5724 = vadd.f32 %v5543, %v5723
    %5725 = vmatmul.bf16.gmra.mxu0 %v5497
    %v5726 = vpop.f32.mrf.mxu0
    %v5727 = vadd.f32 %v5543, %v5726
    %v5728 = vpop.f32.mrf.mxu0
    %v5729 = vadd.f32 %v5543, %v5728
    %5730 = vmatmul.bf16.gmra.mxu0 %v5499
    %v5731 = vpop.f32.mrf.mxu0
    %v5732 = vadd.f32 %v5543, %v5731
    %v5733 = vpop.f32.mrf.mxu0
    %v5734 = vadd.f32 %v5543, %v5733
    %5735 = vmatmul.bf16.gmra.mxu0 %v5501
    %v5736 = vpop.f32.mrf.mxu0
    %v5737 = vadd.f32 %v5543, %v5736
    %v5738 = vpop.f32.mrf.mxu0
    %v5739 = vadd.f32 %v5543, %v5738
    %5740 = vmatmul.bf16.gmra.mxu0 %v5503
    %v5741 = vpop.f32.mrf.mxu0
    %v5742 = vadd.f32 %v5543, %v5741
    %v5743 = vpop.f32.mrf.mxu0
    %v5744 = vadd.f32 %v5543, %v5743
    %5745 = vmatmul.bf16.gmra.mxu0 %v5505
    %v5746 = vpop.f32.mrf.mxu0
    %v5747 = vadd.f32 %v5543, %v5746
    %v5748 = vpop.f32.mrf.mxu0
    %v5749 = vadd.f32 %v5543, %v5748
    %5750 = vmatmul.bf16.gmra.mxu0 %v5507
    %v5751 = vpop.f32.mrf.mxu0
    %v5752 = vadd.f32 %v5543, %v5751
    %v5753 = vpop.f32.mrf.mxu0
    %v5754 = vadd.f32 %v5543, %v5753
    %5755 = vdwg.mxu0
    %5756 = vmatpush.bf16.msra.mxu0 %v5673
    %5757 = vmatpush.bf16.msra.mxu0 %v5671
    %5758 = vmatpush.bf16.msra.mxu0 %v5669
    %5759 = vmatpush.bf16.msra.mxu0 %v5667
    %5760 = vmatpush.bf16.msra.mxu0 %v5665
    %5761 = vmatpush.bf16.msra.mxu0 %v5663
    %5762 = vmatpush.bf16.msra.mxu0 %v5661
    %5763 = vmatpush.bf16.msra.mxu0 %v5659
    %5764 = vmatmul.bf16.gmra.mxu0 %v5494
    %v5765 = vpop.f32.mrf.mxu0
    %v5766 = vadd.f32 %v5717, %v5765
    %v5767 = vpop.f32.mrf.mxu0
    %v5768 = vadd.f32 %v5719, %v5767
    %5769 = vmatmul.bf16.gmra.mxu0 %v5496
    %v5770 = vpop.f32.mrf.mxu0
    %v5771 = vadd.f32 %v5722, %v5770
    %v5772 = vpop.f32.mrf.mxu0
    %v5773 = vadd.f32 %v5724, %v5772
    %5774 = vmatmul.bf16.gmra.mxu0 %v5498
    %v5775 = vpop.f32.mrf.mxu0
    %v5776 = vadd.f32 %v5727, %v5775
    %v5777 = vpop.f32.mrf.mxu0
    %v5778 = vadd.f32 %v5729, %v5777
    %5779 = vmatmul.bf16.gmra.mxu0 %v5500
    %v5780 = vpop.f32.mrf.mxu0
    %v5781 = vadd.f32 %v5732, %v5780
    %v5782 = vpop.f32.mrf.mxu0
    %v5783 = vadd.f32 %v5734, %v5782
    %5784 = vmatmul.bf16.gmra.mxu0 %v5502
    %v5785 = vpop.f32.mrf.mxu0
    %v5786 = vadd.f32 %v5737, %v5785
    %v5787 = vpop.f32.mrf.mxu0
    %v5788 = vadd.f32 %v5739, %v5787
    %5789 = vmatmul.bf16.gmra.mxu0 %v5504
    %v5790 = vpop.f32.mrf.mxu0
    %v5791 = vadd.f32 %v5742, %v5790
    %v5792 = vpop.f32.mrf.mxu0
    %v5793 = vadd.f32 %v5744, %v5792
    %5794 = vmatmul.bf16.gmra.mxu0 %v5506
    %v5795 = vpop.f32.mrf.mxu0
    %v5796 = vadd.f32 %v5747, %v5795
    %v5797 = vpop.f32.mrf.mxu0
    %v5798 = vadd.f32 %v5749, %v5797
    %5799 = vmatmul.bf16.gmra.mxu0 %v5508
    %v5800 = vpop.f32.mrf.mxu0
    %v5801 = vadd.f32 %v5752, %v5800
    %v5802 = vpop.f32.mrf.mxu0
    %v5803 = vadd.f32 %v5754, %v5802
    %5804 = vdwg.mxu0
    %5805 = vmatpush.bf16.msra.mxu0 %v5658
    %5806 = vmatpush.bf16.msra.mxu0 %v5656
    %5807 = vmatpush.bf16.msra.mxu0 %v5654
    %5808 = vmatpush.bf16.msra.mxu0 %v5652
    %5809 = vmatpush.bf16.msra.mxu0 %v5650
    %5810 = vmatpush.bf16.msra.mxu0 %v5648
    %5811 = vmatpush.bf16.msra.mxu0 %v5646
    %5812 = vmatpush.bf16.msra.mxu0 %v5644
    %5813 = vmatmul.bf16.gmra.mxu0 %v5493
    %v5814 = vpop.f32.mrf.mxu0
    %v5815 = vadd.f32 %v5544, %v5814
    %v5816 = vpop.f32.mrf.mxu0
    %v5817 = vadd.f32 %v5544, %v5816
    %5818 = vmatmul.bf16.gmra.mxu0 %v5495
    %v5819 = vpop.f32.mrf.mxu0
    %v5820 = vadd.f32 %v5544, %v5819
    %v5821 = vpop.f32.mrf.mxu0
    %v5822 = vadd.f32 %v5544, %v5821
    %5823 = vmatmul.bf16.gmra.mxu0 %v5497
    %v5824 = vpop.f32.mrf.mxu0
    %v5825 = vadd.f32 %v5544, %v5824
    %v5826 = vpop.f32.mrf.mxu0
    %v5827 = vadd.f32 %v5544, %v5826
    %5828 = vmatmul.bf16.gmra.mxu0 %v5499
    %v5829 = vpop.f32.mrf.mxu0
    %v5830 = vadd.f32 %v5544, %v5829
    %v5831 = vpop.f32.mrf.mxu0
    %v5832 = vadd.f32 %v5544, %v5831
    %5833 = vmatmul.bf16.gmra.mxu0 %v5501
    %v5834 = vpop.f32.mrf.mxu0
    %v5835 = vadd.f32 %v5544, %v5834
    %v5836 = vpop.f32.mrf.mxu0
    %v5837 = vadd.f32 %v5544, %v5836
    %5838 = vmatmul.bf16.gmra.mxu0 %v5503
    %v5839 = vpop.f32.mrf.mxu0
    %v5840 = vadd.f32 %v5544, %v5839
    %v5841 = vpop.f32.mrf.mxu0
    %v5842 = vadd.f32 %v5544, %v5841
    %5843 = vmatmul.bf16.gmra.mxu0 %v5505
    %v5844 = vpop.f32.mrf.mxu0
    %v5845 = vadd.f32 %v5544, %v5844
    %v5846 = vpop.f32.mrf.mxu0
    %v5847 = vadd.f32 %v5544, %v5846
    %5848 = vmatmul.bf16.gmra.mxu0 %v5507
    %v5849 = vpop.f32.mrf.mxu0
    %v5850 = vadd.f32 %v5544, %v5849
    %v5851 = vpop.f32.mrf.mxu0
    %v5852 = vadd.f32 %v5544, %v5851
    %5853 = vdwg.mxu0
    %5854 = vmatpush.bf16.msra.mxu0 %v5674
    %5855 = vmatpush.bf16.msra.mxu0 %v5672
    %5856 = vmatpush.bf16.msra.mxu0 %v5670
    %5857 = vmatpush.bf16.msra.mxu0 %v5668
    %5858 = vmatpush.bf16.msra.mxu0 %v5666
    %5859 = vmatpush.bf16.msra.mxu0 %v5664
    %5860 = vmatpush.bf16.msra.mxu0 %v5662
    %5861 = vmatpush.bf16.msra.mxu0 %v5660
    %5862 = vmatmul.bf16.gmra.mxu0 %v5494
    %v5863 = vpop.f32.mrf.mxu0
    %v5864 = vadd.f32 %v5815, %v5863
    %v5865 = vpop.f32.mrf.mxu0
    %v5866 = vadd.f32 %v5817, %v5865
    %5867 = vmatmul.bf16.gmra.mxu0 %v5496
    %v5868 = vpop.f32.mrf.mxu0
    %v5869 = vadd.f32 %v5820, %v5868
    %v5870 = vpop.f32.mrf.mxu0
    %v5871 = vadd.f32 %v5822, %v5870
    %5872 = vmatmul.bf16.gmra.mxu0 %v5498
    %v5873 = vpop.f32.mrf.mxu0
    %v5874 = vadd.f32 %v5825, %v5873
    %v5875 = vpop.f32.mrf.mxu0
    %v5876 = vadd.f32 %v5827, %v5875
    %5877 = vmatmul.bf16.gmra.mxu0 %v5500
    %v5878 = vpop.f32.mrf.mxu0
    %v5879 = vadd.f32 %v5830, %v5878
    %v5880 = vpop.f32.mrf.mxu0
    %v5881 = vadd.f32 %v5832, %v5880
    %5882 = vmatmul.bf16.gmra.mxu0 %v5502
    %v5883 = vpop.f32.mrf.mxu0
    %v5884 = vadd.f32 %v5835, %v5883
    %v5885 = vpop.f32.mrf.mxu0
    %v5886 = vadd.f32 %v5837, %v5885
    %5887 = vmatmul.bf16.gmra.mxu0 %v5504
    %v5888 = vpop.f32.mrf.mxu0
    %v5889 = vadd.f32 %v5840, %v5888
    %v5890 = vpop.f32.mrf.mxu0
    %v5891 = vadd.f32 %v5842, %v5890
    %5892 = vmatmul.bf16.gmra.mxu0 %v5506
    %v5893 = vpop.f32.mrf.mxu0
    %v5894 = vadd.f32 %v5845, %v5893
    %v5895 = vpop.f32.mrf.mxu0
    %v5896 = vadd.f32 %v5847, %v5895
    %5897 = vmatmul.bf16.gmra.mxu0 %v5508
    %v5898 = vpop.f32.mrf.mxu0
    %v5899 = vadd.f32 %v5850, %v5898
    %v5900 = vpop.f32.mrf.mxu0
    %v5901 = vadd.f32 %v5852, %v5900
    %5902 = vdwg.mxu0
    %v5903 = vmax.f32 %v5766, 0.0
    %v5904 = vmax.f32 %v5864, 0.0
    %v5905 = vmax.f32 %v5768, 0.0
    %v5906 = vmax.f32 %v5866, 0.0
    %v5907 = vmax.f32 %v5771, 0.0
    %v5908 = vmax.f32 %v5869, 0.0
    %v5909 = vmax.f32 %v5773, 0.0
    %v5910 = vmax.f32 %v5871, 0.0
    %v5911 = vmax.f32 %v5776, 0.0
    %v5912 = vmax.f32 %v5874, 0.0
    %v5913 = vmax.f32 %v5778, 0.0
    %v5914 = vmax.f32 %v5876, 0.0
    %v5915 = vmax.f32 %v5781, 0.0
    %v5916 = vmax.f32 %v5879, 0.0
    %v5917 = vmax.f32 %v5783, 0.0
    %v5918 = vmax.f32 %v5881, 0.0
    %v5919 = vmax.f32 %v5786, 0.0
    %v5920 = vmax.f32 %v5884, 0.0
    %v5921 = vmax.f32 %v5788, 0.0
    %v5922 = vmax.f32 %v5886, 0.0
    %v5923 = vmax.f32 %v5791, 0.0
    %v5924 = vmax.f32 %v5889, 0.0
    %v5925 = vmax.f32 %v5793, 0.0
    %v5926 = vmax.f32 %v5891, 0.0
    %v5927 = vmax.f32 %v5796, 0.0
    %v5928 = vmax.f32 %v5894, 0.0
    %v5929 = vmax.f32 %v5798, 0.0
    %v5930 = vmax.f32 %v5896, 0.0
    %v5931 = vmax.f32 %v5801, 0.0
    %v5932 = vmax.f32 %v5899, 0.0
    %v5933 = vmax.f32 %v5803, 0.0
    %v5934 = vmax.f32 %v5901, 0.0
    %v5935 = vpack.c.bf16 %v5905, %v5903
    %v5936 = vpack.c.bf16 %v5906, %v5904
    %v5937 = vpack.c.bf16 %v5909, %v5907
    %v5938 = vpack.c.bf16 %v5910, %v5908
    %v5939 = vpack.c.bf16 %v5913, %v5911
    %v5940 = vpack.c.bf16 %v5914, %v5912
    %v5941 = vpack.c.bf16 %v5917, %v5915
    %v5942 = vpack.c.bf16 %v5918, %v5916
    %v5943 = vpack.c.bf16 %v5921, %v5919
    %v5944 = vpack.c.bf16 %v5922, %v5920
    %v5945 = vpack.c.bf16 %v5925, %v5923
    %v5946 = vpack.c.bf16 %v5926, %v5924
    %v5947 = vpack.c.bf16 %v5929, %v5927
    %v5948 = vpack.c.bf16 %v5930, %v5928
    %v5949 = vpack.c.bf16 %v5933, %v5931
    %v5950 = vpack.c.bf16 %v5934, %v5932
    %v5951 = vld [vmem:[#allocation5] sm:$0xff]
    %v5952 = vld [vmem:[#allocation5 + $0x8] sm:$0xff]
    %v5953 = vld [vmem:[#allocation5 + $0x10] sm:$0xff]
    %v5954 = vld [vmem:[#allocation5 + $0x18] sm:$0xff]
    %v5955 = vld [vmem:[#allocation5 + $0x20] sm:$0xff]
    %v5956 = vld [vmem:[#allocation5 + $0x28] sm:$0xff]
    %v5957 = vld [vmem:[#allocation5 + $0x30] sm:$0xff]
    %v5958 = vld [vmem:[#allocation5 + $0x38] sm:$0xff]
    %v5959 = vld [vmem:[#allocation5 + $0x40] sm:$0xff]
    %v5960 = vld [vmem:[#allocation5 + $0x48] sm:$0xff]
    %v5961 = vld [vmem:[#allocation5 + $0x50] sm:$0xff]
    %v5962 = vld [vmem:[#allocation5 + $0x58] sm:$0xff]
    %v5963 = vld [vmem:[#allocation5 + $0x60] sm:$0xff]
    %v5964 = vld [vmem:[#allocation5 + $0x68] sm:$0xff]
    %v5965 = vld [vmem:[#allocation5 + $0x70] sm:$0xff]
    %v5966 = vld [vmem:[#allocation5 + $0x78] sm:$0xff]
    %v5967 = vld [vmem:[#allocation5 + $0x80] sm:$0xff]
    %v5968 = vld [vmem:[#allocation5 + $0x88] sm:$0xff]
    %v5969 = vld [vmem:[#allocation5 + $0x90] sm:$0xff]
    %v5970 = vld [vmem:[#allocation5 + $0x98] sm:$0xff]
    %v5971 = vld [vmem:[#allocation5 + $0xa0] sm:$0xff]
    %v5972 = vld [vmem:[#allocation5 + $0xa8] sm:$0xff]
    %v5973 = vld [vmem:[#allocation5 + $0xb0] sm:$0xff]
    %v5974 = vld [vmem:[#allocation5 + $0xb8] sm:$0xff]
    %v5975 = vld [vmem:[#allocation5 + $0xc0] sm:$0xff]
    %v5976 = vld [vmem:[#allocation5 + $0xc8] sm:$0xff]
    %v5977 = vld [vmem:[#allocation5 + $0xd0] sm:$0xff]
    %v5978 = vld [vmem:[#allocation5 + $0xd8] sm:$0xff]
    %v5979 = vld [vmem:[#allocation5 + $0xe0] sm:$0xff]
    %v5980 = vld [vmem:[#allocation5 + $0xe8] sm:$0xff]
    %v5981 = vld [vmem:[#allocation5 + $0xf0] sm:$0xff]
    %v5982 = vld [vmem:[#allocation5 + $0xf8] sm:$0xff]
    %v5983 = vld [vmem:[%s9] sm:$0x3]
    %v5985 = vperm.slane %v5983, 0
    %v5986 = vperm.slane %v5983, 1
    %v6021 = vunpack.c.l.b16 %v5951
    %v6022 = vunpack.c.h.b16 %v5951
    %v6023 = vunpack.c.l.b16 %v5952
    %v6024 = vunpack.c.h.b16 %v5952
    %v6025 = vunpack.c.l.b16 %v5953
    %v6026 = vunpack.c.h.b16 %v5953
    %v6027 = vunpack.c.l.b16 %v5954
    %v6028 = vunpack.c.h.b16 %v5954
    %v6029 = vunpack.c.l.b16 %v5955
    %v6030 = vunpack.c.h.b16 %v5955
    %v6031 = vunpack.c.l.b16 %v5956
    %v6032 = vunpack.c.h.b16 %v5956
    %v6033 = vunpack.c.l.b16 %v5957
    %v6034 = vunpack.c.h.b16 %v5957
    %v6035 = vunpack.c.l.b16 %v5958
    %v6036 = vunpack.c.h.b16 %v5958
    %v6037 = vunpack.c.l.b16 %v5959
    %v6038 = vunpack.c.h.b16 %v5959
    %v6039 = vunpack.c.l.b16 %v5960
    %v6040 = vunpack.c.h.b16 %v5960
    %v6041 = vunpack.c.l.b16 %v5961
    %v6042 = vunpack.c.h.b16 %v5961
    %v6043 = vunpack.c.l.b16 %v5962
    %v6044 = vunpack.c.h.b16 %v5962
    %v6045 = vunpack.c.l.b16 %v5963
    %v6046 = vunpack.c.h.b16 %v5963
    %v6047 = vunpack.c.l.b16 %v5964
    %v6048 = vunpack.c.h.b16 %v5964
    %v6049 = vunpack.c.l.b16 %v5965
    %v6050 = vunpack.c.h.b16 %v5965
    %v6051 = vunpack.c.l.b16 %v5966
    %v6052 = vunpack.c.h.b16 %v5966
    %v6053 = vunpack.c.l.b16 %v5967
    %v6054 = vunpack.c.h.b16 %v5967
    %v6055 = vunpack.c.l.b16 %v5968
    %v6056 = vunpack.c.h.b16 %v5968
    %v6057 = vunpack.c.l.b16 %v5969
    %v6058 = vunpack.c.h.b16 %v5969
    %v6059 = vunpack.c.l.b16 %v5970
    %v6060 = vunpack.c.h.b16 %v5970
    %v6061 = vunpack.c.l.b16 %v5971
    %v6062 = vunpack.c.h.b16 %v5971
    %v6063 = vunpack.c.l.b16 %v5972
    %v6064 = vunpack.c.h.b16 %v5972
    %v6065 = vunpack.c.l.b16 %v5973
    %v6066 = vunpack.c.h.b16 %v5973
    %v6067 = vunpack.c.l.b16 %v5974
    %v6068 = vunpack.c.h.b16 %v5974
    %v6069 = vunpack.c.l.b16 %v5975
    %v6070 = vunpack.c.h.b16 %v5975
    %v6071 = vunpack.c.l.b16 %v5976
    %v6072 = vunpack.c.h.b16 %v5976
    %v6073 = vunpack.c.l.b16 %v5977
    %v6074 = vunpack.c.h.b16 %v5977
    %v6075 = vunpack.c.l.b16 %v5978
    %v6076 = vunpack.c.h.b16 %v5978
    %v6077 = vunpack.c.l.b16 %v5979
    %v6078 = vunpack.c.h.b16 %v5979
    %v6079 = vunpack.c.l.b16 %v5980
    %v6080 = vunpack.c.h.b16 %v5980
    %v6081 = vunpack.c.l.b16 %v5981
    %v6082 = vunpack.c.h.b16 %v5981
    %v6083 = vunpack.c.l.b16 %v5982
    %v6084 = vunpack.c.h.b16 %v5982
    %v6085 = vpack.c.b16 %v6023, %v6021
    %v6086 = vpack.c.b16 %v6024, %v6022
    %v6087 = vpack.c.b16 %v6027, %v6025
    %v6088 = vpack.c.b16 %v6028, %v6026
    %v6089 = vpack.c.b16 %v6031, %v6029
    %v6090 = vpack.c.b16 %v6032, %v6030
    %v6091 = vpack.c.b16 %v6035, %v6033
    %v6092 = vpack.c.b16 %v6036, %v6034
    %v6093 = vpack.c.b16 %v6039, %v6037
    %v6094 = vpack.c.b16 %v6040, %v6038
    %v6095 = vpack.c.b16 %v6043, %v6041
    %v6096 = vpack.c.b16 %v6044, %v6042
    %v6097 = vpack.c.b16 %v6047, %v6045
    %v6098 = vpack.c.b16 %v6048, %v6046
    %v6099 = vpack.c.b16 %v6051, %v6049
    %v6100 = vpack.c.b16 %v6052, %v6050
    %v6101 = vpack.c.b16 %v6055, %v6053
    %v6102 = vpack.c.b16 %v6056, %v6054
    %v6103 = vpack.c.b16 %v6059, %v6057
    %v6104 = vpack.c.b16 %v6060, %v6058
    %v6105 = vpack.c.b16 %v6063, %v6061
    %v6106 = vpack.c.b16 %v6064, %v6062
    %v6107 = vpack.c.b16 %v6067, %v6065
    %v6108 = vpack.c.b16 %v6068, %v6066
    %v6109 = vpack.c.b16 %v6071, %v6069
    %v6110 = vpack.c.b16 %v6072, %v6070
    %v6111 = vpack.c.b16 %v6075, %v6073
    %v6112 = vpack.c.b16 %v6076, %v6074
    %v6113 = vpack.c.b16 %v6079, %v6077
    %v6114 = vpack.c.b16 %v6080, %v6078
    %v6115 = vpack.c.b16 %v6083, %v6081
    %v6116 = vpack.c.b16 %v6084, %v6082
    %6149 = vmatpush.bf16.msra.mxu0 %v6099
    %6150 = vmatpush.bf16.msra.mxu0 %v6097
    %6151 = vmatpush.bf16.msra.mxu0 %v6095
    %6152 = vmatpush.bf16.msra.mxu0 %v6093
    %6153 = vmatpush.bf16.msra.mxu0 %v6091
    %6154 = vmatpush.bf16.msra.mxu0 %v6089
    %6155 = vmatpush.bf16.msra.mxu0 %v6087
    %6156 = vmatpush.bf16.msra.mxu0 %v6085
    %6157 = vmatmul.bf16.gmra.mxu0 %v5935
    %v6158 = vpop.f32.mrf.mxu0
    %v6159 = vadd.f32 %v5985, %v6158
    %v6160 = vpop.f32.mrf.mxu0
    %v6161 = vadd.f32 %v5985, %v6160
    %6162 = vmatmul.bf16.gmra.mxu0 %v5937
    %v6163 = vpop.f32.mrf.mxu0
    %v6164 = vadd.f32 %v5985, %v6163
    %v6165 = vpop.f32.mrf.mxu0
    %v6166 = vadd.f32 %v5985, %v6165
    %6167 = vmatmul.bf16.gmra.mxu0 %v5939
    %v6168 = vpop.f32.mrf.mxu0
    %v6169 = vadd.f32 %v5985, %v6168
    %v6170 = vpop.f32.mrf.mxu0
    %v6171 = vadd.f32 %v5985, %v6170
    %6172 = vmatmul.bf16.gmra.mxu0 %v5941
    %v6173 = vpop.f32.mrf.mxu0
    %v6174 = vadd.f32 %v5985, %v6173
    %v6175 = vpop.f32.mrf.mxu0
    %v6176 = vadd.f32 %v5985, %v6175
    %6177 = vmatmul.bf16.gmra.mxu0 %v5943
    %v6178 = vpop.f32.mrf.mxu0
    %v6179 = vadd.f32 %v5985, %v6178
    %v6180 = vpop.f32.mrf.mxu0
    %v6181 = vadd.f32 %v5985, %v6180
    %6182 = vmatmul.bf16.gmra.mxu0 %v5945
    %v6183 = vpop.f32.mrf.mxu0
    %v6184 = vadd.f32 %v5985, %v6183
    %v6185 = vpop.f32.mrf.mxu0
    %v6186 = vadd.f32 %v5985, %v6185
    %6187 = vmatmul.bf16.gmra.mxu0 %v5947
    %v6188 = vpop.f32.mrf.mxu0
    %v6189 = vadd.f32 %v5985, %v6188
    %v6190 = vpop.f32.mrf.mxu0
    %v6191 = vadd.f32 %v5985, %v6190
    %6192 = vmatmul.bf16.gmra.mxu0 %v5949
    %v6193 = vpop.f32.mrf.mxu0
    %v6194 = vadd.f32 %v5985, %v6193
    %v6195 = vpop.f32.mrf.mxu0
    %v6196 = vadd.f32 %v5985, %v6195
    %6197 = vdwg.mxu0
    %6198 = vmatpush.bf16.msra.mxu0 %v6115
    %6199 = vmatpush.bf16.msra.mxu0 %v6113
    %6200 = vmatpush.bf16.msra.mxu0 %v6111
    %6201 = vmatpush.bf16.msra.mxu0 %v6109
    %6202 = vmatpush.bf16.msra.mxu0 %v6107
    %6203 = vmatpush.bf16.msra.mxu0 %v6105
    %6204 = vmatpush.bf16.msra.mxu0 %v6103
    %6205 = vmatpush.bf16.msra.mxu0 %v6101
    %6206 = vmatmul.bf16.gmra.mxu0 %v5936
    %v6207 = vpop.f32.mrf.mxu0
    %v6208 = vadd.f32 %v6159, %v6207
    %v6209 = vpop.f32.mrf.mxu0
    %v6210 = vadd.f32 %v6161, %v6209
    %6211 = vmatmul.bf16.gmra.mxu0 %v5938
    %v6212 = vpop.f32.mrf.mxu0
    %v6213 = vadd.f32 %v6164, %v6212
    %v6214 = vpop.f32.mrf.mxu0
    %v6215 = vadd.f32 %v6166, %v6214
    %6216 = vmatmul.bf16.gmra.mxu0 %v5940
    %v6217 = vpop.f32.mrf.mxu0
    %v6218 = vadd.f32 %v6169, %v6217
    %v6219 = vpop.f32.mrf.mxu0
    %v6220 = vadd.f32 %v6171, %v6219
    %6221 = vmatmul.bf16.gmra.mxu0 %v5942
    %v6222 = vpop.f32.mrf.mxu0
    %v6223 = vadd.f32 %v6174, %v6222
    %v6224 = vpop.f32.mrf.mxu0
    %v6225 = vadd.f32 %v6176, %v6224
    %6226 = vmatmul.bf16.gmra.mxu0 %v5944
    %v6227 = vpop.f32.mrf.mxu0
    %v6228 = vadd.f32 %v6179, %v6227
    %v6229 = vpop.f32.mrf.mxu0
    %v6230 = vadd.f32 %v6181, %v6229
    %6231 = vmatmul.bf16.gmra.mxu0 %v5946
    %v6232 = vpop.f32.mrf.mxu0
    %v6233 = vadd.f32 %v6184, %v6232
    %v6234 = vpop.f32.mrf.mxu0
    %v6235 = vadd.f32 %v6186, %v6234
    %6236 = vmatmul.bf16.gmra.mxu0 %v5948
    %v6237 = vpop.f32.mrf.mxu0
    %v6238 = vadd.f32 %v6189, %v6237
    %v6239 = vpop.f32.mrf.mxu0
    %v6240 = vadd.f32 %v6191, %v6239
    %6241 = vmatmul.bf16.gmra.mxu0 %v5950
    %v6242 = vpop.f32.mrf.mxu0
    %v6243 = vadd.f32 %v6194, %v6242
    %v6244 = vpop.f32.mrf.mxu0
    %v6245 = vadd.f32 %v6196, %v6244
    %6246 = vdwg.mxu0
    %6247 = vmatpush.bf16.msra.mxu0 %v6100
    %6248 = vmatpush.bf16.msra.mxu0 %v6098
    %6249 = vmatpush.bf16.msra.mxu0 %v6096
    %6250 = vmatpush.bf16.msra.mxu0 %v6094
    %6251 = vmatpush.bf16.msra.mxu0 %v6092
    %6252 = vmatpush.bf16.msra.mxu0 %v6090
    %6253 = vmatpush.bf16.msra.mxu0 %v6088
    %6254 = vmatpush.bf16.msra.mxu0 %v6086
    %6255 = vmatmul.bf16.gmra.mxu0 %v5935
    %v6256 = vpop.f32.mrf.mxu0
    %v6257 = vadd.f32 %v5986, %v6256
    %v6258 = vpop.f32.mrf.mxu0
    %v6259 = vadd.f32 %v5986, %v6258
    %6260 = vmatmul.bf16.gmra.mxu0 %v5937
    %v6261 = vpop.f32.mrf.mxu0
    %v6262 = vadd.f32 %v5986, %v6261
    %v6263 = vpop.f32.mrf.mxu0
    %v6264 = vadd.f32 %v5986, %v6263
    %6265 = vmatmul.bf16.gmra.mxu0 %v5939
    %v6266 = vpop.f32.mrf.mxu0
    %v6267 = vadd.f32 %v5986, %v6266
    %v6268 = vpop.f32.mrf.mxu0
    %v6269 = vadd.f32 %v5986, %v6268
    %6270 = vmatmul.bf16.gmra.mxu0 %v5941
    %v6271 = vpop.f32.mrf.mxu0
    %v6272 = vadd.f32 %v5986, %v6271
    %v6273 = vpop.f32.mrf.mxu0
    %v6274 = vadd.f32 %v5986, %v6273
    %6275 = vmatmul.bf16.gmra.mxu0 %v5943
    %v6276 = vpop.f32.mrf.mxu0
    %v6277 = vadd.f32 %v5986, %v6276
    %v6278 = vpop.f32.mrf.mxu0
    %v6279 = vadd.f32 %v5986, %v6278
    %6280 = vmatmul.bf16.gmra.mxu0 %v5945
    %v6281 = vpop.f32.mrf.mxu0
    %v6282 = vadd.f32 %v5986, %v6281
    %v6283 = vpop.f32.mrf.mxu0
    %v6284 = vadd.f32 %v5986, %v6283
    %6285 = vmatmul.bf16.gmra.mxu0 %v5947
    %v6286 = vpop.f32.mrf.mxu0
    %v6287 = vadd.f32 %v5986, %v6286
    %v6288 = vpop.f32.mrf.mxu0
    %v6289 = vadd.f32 %v5986, %v6288
    %6290 = vmatmul.bf16.gmra.mxu0 %v5949
    %v6291 = vpop.f32.mrf.mxu0
    %v6292 = vadd.f32 %v5986, %v6291
    %v6293 = vpop.f32.mrf.mxu0
    %v6294 = vadd.f32 %v5986, %v6293
    %6295 = vdwg.mxu0
    %6296 = vmatpush.bf16.msra.mxu0 %v6116
    %6297 = vmatpush.bf16.msra.mxu0 %v6114
    %6298 = vmatpush.bf16.msra.mxu0 %v6112
    %6299 = vmatpush.bf16.msra.mxu0 %v6110
    %6300 = vmatpush.bf16.msra.mxu0 %v6108
    %6301 = vmatpush.bf16.msra.mxu0 %v6106
    %6302 = vmatpush.bf16.msra.mxu0 %v6104
    %6303 = vmatpush.bf16.msra.mxu0 %v6102
    %6304 = vmatmul.bf16.gmra.mxu0 %v5936
    %v6305 = vpop.f32.mrf.mxu0
    %v6306 = vadd.f32 %v6257, %v6305
    %v6307 = vpop.f32.mrf.mxu0
    %v6308 = vadd.f32 %v6259, %v6307
    %6309 = vmatmul.bf16.gmra.mxu0 %v5938
    %v6310 = vpop.f32.mrf.mxu0
    %v6311 = vadd.f32 %v6262, %v6310
    %v6312 = vpop.f32.mrf.mxu0
    %v6313 = vadd.f32 %v6264, %v6312
    %6314 = vmatmul.bf16.gmra.mxu0 %v5940
    %v6315 = vpop.f32.mrf.mxu0
    %v6316 = vadd.f32 %v6267, %v6315
    %v6317 = vpop.f32.mrf.mxu0
    %v6318 = vadd.f32 %v6269, %v6317
    %6319 = vmatmul.bf16.gmra.mxu0 %v5942
    %v6320 = vpop.f32.mrf.mxu0
    %v6321 = vadd.f32 %v6272, %v6320
    %v6322 = vpop.f32.mrf.mxu0
    %v6323 = vadd.f32 %v6274, %v6322
    %6324 = vmatmul.bf16.gmra.mxu0 %v5944
    %v6325 = vpop.f32.mrf.mxu0
    %v6326 = vadd.f32 %v6277, %v6325
    %v6327 = vpop.f32.mrf.mxu0
    %v6328 = vadd.f32 %v6279, %v6327
    %6329 = vmatmul.bf16.gmra.mxu0 %v5946
    %v6330 = vpop.f32.mrf.mxu0
    %v6331 = vadd.f32 %v6282, %v6330
    %v6332 = vpop.f32.mrf.mxu0
    %v6333 = vadd.f32 %v6284, %v6332
    %6334 = vmatmul.bf16.gmra.mxu0 %v5948
    %v6335 = vpop.f32.mrf.mxu0
    %v6336 = vadd.f32 %v6287, %v6335
    %v6337 = vpop.f32.mrf.mxu0
    %v6338 = vadd.f32 %v6289, %v6337
    %6339 = vmatmul.bf16.gmra.mxu0 %v5950
    %v6340 = vpop.f32.mrf.mxu0
    %v6341 = vadd.f32 %v6292, %v6340
    %v6342 = vpop.f32.mrf.mxu0
    %v6343 = vadd.f32 %v6294, %v6342
    %6344 = vdwg.mxu0
    %v6345 = vpack.c.bf16 %v6210, %v6208
    %v6346 = vpack.c.bf16 %v6308, %v6306
    %v6347 = vpack.c.bf16 %v6215, %v6213
    %v6348 = vpack.c.bf16 %v6313, %v6311
    %v6349 = vpack.c.bf16 %v6220, %v6218
    %v6350 = vpack.c.bf16 %v6318, %v6316
    %v6351 = vpack.c.bf16 %v6225, %v6223
    %v6352 = vpack.c.bf16 %v6323, %v6321
    %v6353 = vpack.c.bf16 %v6230, %v6228
    %v6354 = vpack.c.bf16 %v6328, %v6326
    %v6355 = vpack.c.bf16 %v6235, %v6233
    %v6356 = vpack.c.bf16 %v6333, %v6331
    %v6357 = vpack.c.bf16 %v6240, %v6238
    %v6358 = vpack.c.bf16 %v6338, %v6336
    %v6359 = vpack.c.bf16 %v6245, %v6243
    %v6360 = vpack.c.bf16 %v6343, %v6341
    %v6361 = vld [vmem:[#allocation7] sm:$0xff]
    %v6362 = vld [vmem:[#allocation7 + $0x8] sm:$0xff]
    %v6363 = vld [vmem:[#allocation7 + $0x10] sm:$0xff]
    %v6364 = vld [vmem:[#allocation7 + $0x18] sm:$0xff]
    %v6365 = vld [vmem:[#allocation7 + $0x20] sm:$0xff]
    %v6366 = vld [vmem:[#allocation7 + $0x28] sm:$0xff]
    %v6367 = vld [vmem:[#allocation7 + $0x30] sm:$0xff]
    %v6368 = vld [vmem:[#allocation7 + $0x38] sm:$0xff]
    %v6369 = vld [vmem:[#allocation7 + $0x40] sm:$0xff]
    %v6370 = vld [vmem:[#allocation7 + $0x48] sm:$0xff]
    %v6371 = vld [vmem:[#allocation7 + $0x50] sm:$0xff]
    %v6372 = vld [vmem:[#allocation7 + $0x58] sm:$0xff]
    %v6373 = vld [vmem:[#allocation7 + $0x60] sm:$0xff]
    %v6374 = vld [vmem:[#allocation7 + $0x68] sm:$0xff]
    %v6375 = vld [vmem:[#allocation7 + $0x70] sm:$0xff]
    %v6376 = vld [vmem:[#allocation7 + $0x78] sm:$0xff]
    %v6377 = vld [vmem:[#allocation7 + $0x80] sm:$0xff]
    %v6378 = vld [vmem:[#allocation7 + $0x88] sm:$0xff]
    %v6379 = vld [vmem:[#allocation7 + $0x90] sm:$0xff]
    %v6380 = vld [vmem:[#allocation7 + $0x98] sm:$0xff]
    %v6381 = vld [vmem:[#allocation7 + $0xa0] sm:$0xff]
    %v6382 = vld [vmem:[#allocation7 + $0xa8] sm:$0xff]
    %v6383 = vld [vmem:[#allocation7 + $0xb0] sm:$0xff]
    %v6384 = vld [vmem:[#allocation7 + $0xb8] sm:$0xff]
    %v6385 = vld [vmem:[#allocation7 + $0xc0] sm:$0xff]
    %v6386 = vld [vmem:[#allocation7 + $0xc8] sm:$0xff]
    %v6387 = vld [vmem:[#allocation7 + $0xd0] sm:$0xff]
    %v6388 = vld [vmem:[#allocation7 + $0xd8] sm:$0xff]
    %v6389 = vld [vmem:[#allocation7 + $0xe0] sm:$0xff]
    %v6390 = vld [vmem:[#allocation7 + $0xe8] sm:$0xff]
    %v6391 = vld [vmem:[#allocation7 + $0xf0] sm:$0xff]
    %v6392 = vld [vmem:[#allocation7 + $0xf8] sm:$0xff]
    %v6393 = vld [vmem:[#allocation8] sm:$0xff]
    %v6394 = vld [vmem:[#allocation8 + $0x8] sm:$0xff]
    %v6395 = vld [vmem:[#allocation8 + $0x10] sm:$0xff]
    %v6396 = vld [vmem:[#allocation8 + $0x18] sm:$0xff]
    %v6397 = vld [vmem:[#allocation8 + $0x20] sm:$0xff]
    %v6398 = vld [vmem:[#allocation8 + $0x28] sm:$0xff]
    %v6399 = vld [vmem:[#allocation8 + $0x30] sm:$0xff]
    %v6400 = vld [vmem:[#allocation8 + $0x38] sm:$0xff]
    %v6401 = vld [vmem:[#allocation8 + $0x40] sm:$0xff]
    %v6402 = vld [vmem:[#allocation8 + $0x48] sm:$0xff]
    %v6403 = vld [vmem:[#allocation8 + $0x50] sm:$0xff]
    %v6404 = vld [vmem:[#allocation8 + $0x58] sm:$0xff]
    %v6405 = vld [vmem:[#allocation8 + $0x60] sm:$0xff]
    %v6406 = vld [vmem:[#allocation8 + $0x68] sm:$0xff]
    %v6407 = vld [vmem:[#allocation8 + $0x70] sm:$0xff]
    %v6408 = vld [vmem:[#allocation8 + $0x78] sm:$0xff]
    %v6409 = vld [vmem:[#allocation8 + $0x80] sm:$0xff]
    %v6410 = vld [vmem:[#allocation8 + $0x88] sm:$0xff]
    %v6411 = vld [vmem:[#allocation8 + $0x90] sm:$0xff]
    %v6412 = vld [vmem:[#allocation8 + $0x98] sm:$0xff]
    %v6413 = vld [vmem:[#allocation8 + $0xa0] sm:$0xff]
    %v6414 = vld [vmem:[#allocation8 + $0xa8] sm:$0xff]
    %v6415 = vld [vmem:[#allocation8 + $0xb0] sm:$0xff]
    %v6416 = vld [vmem:[#allocation8 + $0xb8] sm:$0xff]
    %v6417 = vld [vmem:[#allocation8 + $0xc0] sm:$0xff]
    %v6418 = vld [vmem:[#allocation8 + $0xc8] sm:$0xff]
    %v6419 = vld [vmem:[#allocation8 + $0xd0] sm:$0xff]
    %v6420 = vld [vmem:[#allocation8 + $0xd8] sm:$0xff]
    %v6421 = vld [vmem:[#allocation8 + $0xe0] sm:$0xff]
    %v6422 = vld [vmem:[#allocation8 + $0xe8] sm:$0xff]
    %v6423 = vld [vmem:[#allocation8 + $0xf0] sm:$0xff]
    %v6424 = vld [vmem:[#allocation8 + $0xf8] sm:$0xff]
    %v6457 = vunpack.c.l.b16 %v6393
    %v6458 = vunpack.c.h.b16 %v6393
    %v6459 = vunpack.c.l.b16 %v6394
    %v6460 = vunpack.c.h.b16 %v6394
    %v6461 = vunpack.c.l.b16 %v6395
    %v6462 = vunpack.c.h.b16 %v6395
    %v6463 = vunpack.c.l.b16 %v6396
    %v6464 = vunpack.c.h.b16 %v6396
    %v6465 = vunpack.c.l.b16 %v6397
    %v6466 = vunpack.c.h.b16 %v6397
    %v6467 = vunpack.c.l.b16 %v6398
    %v6468 = vunpack.c.h.b16 %v6398
    %v6469 = vunpack.c.l.b16 %v6399
    %v6470 = vunpack.c.h.b16 %v6399
    %v6471 = vunpack.c.l.b16 %v6400
    %v6472 = vunpack.c.h.b16 %v6400
    %v6473 = vunpack.c.l.b16 %v6401
    %v6474 = vunpack.c.h.b16 %v6401
    %v6475 = vunpack.c.l.b16 %v6402
    %v6476 = vunpack.c.h.b16 %v6402
    %v6477 = vunpack.c.l.b16 %v6403
    %v6478 = vunpack.c.h.b16 %v6403
    %v6479 = vunpack.c.l.b16 %v6404
    %v6480 = vunpack.c.h.b16 %v6404
    %v6481 = vunpack.c.l.b16 %v6405
    %v6482 = vunpack.c.h.b16 %v6405
    %v6483 = vunpack.c.l.b16 %v6406
    %v6484 = vunpack.c.h.b16 %v6406
    %v6485 = vunpack.c.l.b16 %v6407
    %v6486 = vunpack.c.h.b16 %v6407
    %v6487 = vunpack.c.l.b16 %v6408
    %v6488 = vunpack.c.h.b16 %v6408
    %v6489 = vunpack.c.l.b16 %v6409
    %v6490 = vunpack.c.h.b16 %v6409
    %v6491 = vunpack.c.l.b16 %v6410
    %v6492 = vunpack.c.h.b16 %v6410
    %v6493 = vunpack.c.l.b16 %v6411
    %v6494 = vunpack.c.h.b16 %v6411
    %v6495 = vunpack.c.l.b16 %v6412
    %v6496 = vunpack.c.h.b16 %v6412
    %v6497 = vunpack.c.l.b16 %v6413
    %v6498 = vunpack.c.h.b16 %v6413
    %v6499 = vunpack.c.l.b16 %v6414
    %v6500 = vunpack.c.h.b16 %v6414
    %v6501 = vunpack.c.l.b16 %v6415
    %v6502 = vunpack.c.h.b16 %v6415
    %v6503 = vunpack.c.l.b16 %v6416
    %v6504 = vunpack.c.h.b16 %v6416
    %v6505 = vunpack.c.l.b16 %v6417
    %v6506 = vunpack.c.h.b16 %v6417
    %v6507 = vunpack.c.l.b16 %v6418
    %v6508 = vunpack.c.h.b16 %v6418
    %v6509 = vunpack.c.l.b16 %v6419
    %v6510 = vunpack.c.h.b16 %v6419
    %v6511 = vunpack.c.l.b16 %v6420
    %v6512 = vunpack.c.h.b16 %v6420
    %v6513 = vunpack.c.l.b16 %v6421
    %v6514 = vunpack.c.h.b16 %v6421
    %v6515 = vunpack.c.l.b16 %v6422
    %v6516 = vunpack.c.h.b16 %v6422
    %v6517 = vunpack.c.l.b16 %v6423
    %v6518 = vunpack.c.h.b16 %v6423
    %v6519 = vunpack.c.l.b16 %v6424
    %v6520 = vunpack.c.h.b16 %v6424
    %v6521 = vpack.c.b16 %v6459, %v6457
    %v6522 = vpack.c.b16 %v6460, %v6458
    %v6523 = vpack.c.b16 %v6463, %v6461
    %v6524 = vpack.c.b16 %v6464, %v6462
    %v6525 = vpack.c.b16 %v6467, %v6465
    %v6526 = vpack.c.b16 %v6468, %v6466
    %v6527 = vpack.c.b16 %v6471, %v6469
    %v6528 = vpack.c.b16 %v6472, %v6470
    %v6529 = vpack.c.b16 %v6475, %v6473
    %v6530 = vpack.c.b16 %v6476, %v6474
    %v6531 = vpack.c.b16 %v6479, %v6477
    %v6532 = vpack.c.b16 %v6480, %v6478
    %v6533 = vpack.c.b16 %v6483, %v6481
    %v6534 = vpack.c.b16 %v6484, %v6482
    %v6535 = vpack.c.b16 %v6487, %v6485
    %v6536 = vpack.c.b16 %v6488, %v6486
    %v6537 = vpack.c.b16 %v6491, %v6489
    %v6538 = vpack.c.b16 %v6492, %v6490
    %v6539 = vpack.c.b16 %v6495, %v6493
    %v6540 = vpack.c.b16 %v6496, %v6494
    %v6541 = vpack.c.b16 %v6499, %v6497
    %v6542 = vpack.c.b16 %v6500, %v6498
    %v6543 = vpack.c.b16 %v6503, %v6501
    %v6544 = vpack.c.b16 %v6504, %v6502
    %v6545 = vpack.c.b16 %v6507, %v6505
    %v6546 = vpack.c.b16 %v6508, %v6506
    %v6547 = vpack.c.b16 %v6511, %v6509
    %v6548 = vpack.c.b16 %v6512, %v6510
    %v6549 = vpack.c.b16 %v6515, %v6513
    %v6550 = vpack.c.b16 %v6516, %v6514
    %v6551 = vpack.c.b16 %v6519, %v6517
    %v6552 = vpack.c.b16 %v6520, %v6518
    %6585 = vmatpush.bf16.msra.mxu0 %v6535
    %6586 = vmatpush.bf16.msra.mxu0 %v6533
    %6587 = vmatpush.bf16.msra.mxu0 %v6531
    %6588 = vmatpush.bf16.msra.mxu0 %v6529
    %6589 = vmatpush.bf16.msra.mxu0 %v6527
    %6590 = vmatpush.bf16.msra.mxu0 %v6525
    %6591 = vmatpush.bf16.msra.mxu0 %v6523
    %6592 = vmatpush.bf16.msra.mxu0 %v6521
    %6593 = vmatmul.bf16.gmra.mxu0 %v6345
    %v6594 = vpop.f32.mrf.mxu0
    %v6595 = vadd.f32 0.0, %v6594
    %v6596 = vpop.f32.mrf.mxu0
    %v6597 = vadd.f32 0.0, %v6596
    %6598 = vmatmul.bf16.gmra.mxu0 %v6347
    %v6599 = vpop.f32.mrf.mxu0
    %v6600 = vadd.f32 0.0, %v6599
    %v6601 = vpop.f32.mrf.mxu0
    %v6602 = vadd.f32 0.0, %v6601
    %6603 = vmatmul.bf16.gmra.mxu0 %v6349
    %v6604 = vpop.f32.mrf.mxu0
    %v6605 = vadd.f32 0.0, %v6604
    %v6606 = vpop.f32.mrf.mxu0
    %v6607 = vadd.f32 0.0, %v6606
    %6608 = vmatmul.bf16.gmra.mxu0 %v6351
    %v6609 = vpop.f32.mrf.mxu0
    %v6610 = vadd.f32 0.0, %v6609
    %v6611 = vpop.f32.mrf.mxu0
    %v6612 = vadd.f32 0.0, %v6611
    %6613 = vmatmul.bf16.gmra.mxu0 %v6353
    %v6614 = vpop.f32.mrf.mxu0
    %v6615 = vadd.f32 0.0, %v6614
    %v6616 = vpop.f32.mrf.mxu0
    %v6617 = vadd.f32 0.0, %v6616
    %6618 = vmatmul.bf16.gmra.mxu0 %v6355
    %v6619 = vpop.f32.mrf.mxu0
    %v6620 = vadd.f32 0.0, %v6619
    %v6621 = vpop.f32.mrf.mxu0
    %v6622 = vadd.f32 0.0, %v6621
    %6623 = vmatmul.bf16.gmra.mxu0 %v6357
    %v6624 = vpop.f32.mrf.mxu0
    %v6625 = vadd.f32 0.0, %v6624
    %v6626 = vpop.f32.mrf.mxu0
    %v6627 = vadd.f32 0.0, %v6626
    %6628 = vmatmul.bf16.gmra.mxu0 %v6359
    %v6629 = vpop.f32.mrf.mxu0
    %v6630 = vadd.f32 0.0, %v6629
    %v6631 = vpop.f32.mrf.mxu0
    %v6632 = vadd.f32 0.0, %v6631
    %6633 = vdwg.mxu0
    %6634 = vmatpush.bf16.msra.mxu0 %v6551
    %6635 = vmatpush.bf16.msra.mxu0 %v6549
    %6636 = vmatpush.bf16.msra.mxu0 %v6547
    %6637 = vmatpush.bf16.msra.mxu0 %v6545
    %6638 = vmatpush.bf16.msra.mxu0 %v6543
    %6639 = vmatpush.bf16.msra.mxu0 %v6541
    %6640 = vmatpush.bf16.msra.mxu0 %v6539
    %6641 = vmatpush.bf16.msra.mxu0 %v6537
    %6642 = vmatmul.bf16.gmra.mxu0 %v6346
    %v6643 = vpop.f32.mrf.mxu0
    %v6644 = vadd.f32 %v6595, %v6643
    %v6645 = vpop.f32.mrf.mxu0
    %v6646 = vadd.f32 %v6597, %v6645
    %6647 = vmatmul.bf16.gmra.mxu0 %v6348
    %v6648 = vpop.f32.mrf.mxu0
    %v6649 = vadd.f32 %v6600, %v6648
    %v6650 = vpop.f32.mrf.mxu0
    %v6651 = vadd.f32 %v6602, %v6650
    %6652 = vmatmul.bf16.gmra.mxu0 %v6350
    %v6653 = vpop.f32.mrf.mxu0
    %v6654 = vadd.f32 %v6605, %v6653
    %v6655 = vpop.f32.mrf.mxu0
    %v6656 = vadd.f32 %v6607, %v6655
    %6657 = vmatmul.bf16.gmra.mxu0 %v6352
    %v6658 = vpop.f32.mrf.mxu0
    %v6659 = vadd.f32 %v6610, %v6658
    %v6660 = vpop.f32.mrf.mxu0
    %v6661 = vadd.f32 %v6612, %v6660
    %6662 = vmatmul.bf16.gmra.mxu0 %v6354
    %v6663 = vpop.f32.mrf.mxu0
    %v6664 = vadd.f32 %v6615, %v6663
    %v6665 = vpop.f32.mrf.mxu0
    %v6666 = vadd.f32 %v6617, %v6665
    %6667 = vmatmul.bf16.gmra.mxu0 %v6356
    %v6668 = vpop.f32.mrf.mxu0
    %v6669 = vadd.f32 %v6620, %v6668
    %v6670 = vpop.f32.mrf.mxu0
    %v6671 = vadd.f32 %v6622, %v6670
    %6672 = vmatmul.bf16.gmra.mxu0 %v6358
    %v6673 = vpop.f32.mrf.mxu0
    %v6674 = vadd.f32 %v6625, %v6673
    %v6675 = vpop.f32.mrf.mxu0
    %v6676 = vadd.f32 %v6627, %v6675
    %6677 = vmatmul.bf16.gmra.mxu0 %v6360
    %v6678 = vpop.f32.mrf.mxu0
    %v6679 = vadd.f32 %v6630, %v6678
    %v6680 = vpop.f32.mrf.mxu0
    %v6681 = vadd.f32 %v6632, %v6680
    %6682 = vdwg.mxu0
    %6683 = vmatpush.bf16.msra.mxu0 %v6536
    %6684 = vmatpush.bf16.msra.mxu0 %v6534
    %6685 = vmatpush.bf16.msra.mxu0 %v6532
    %6686 = vmatpush.bf16.msra.mxu0 %v6530
    %6687 = vmatpush.bf16.msra.mxu0 %v6528
    %6688 = vmatpush.bf16.msra.mxu0 %v6526
    %6689 = vmatpush.bf16.msra.mxu0 %v6524
    %6690 = vmatpush.bf16.msra.mxu0 %v6522
    %6691 = vmatmul.bf16.gmra.mxu0 %v6345
    %v6692 = vpop.f32.mrf.mxu0
    %v6693 = vadd.f32 0.0, %v6692
    %v6694 = vpop.f32.mrf.mxu0
    %v6695 = vadd.f32 0.0, %v6694
    %6696 = vmatmul.bf16.gmra.mxu0 %v6347
    %v6697 = vpop.f32.mrf.mxu0
    %v6698 = vadd.f32 0.0, %v6697
    %v6699 = vpop.f32.mrf.mxu0
    %v6700 = vadd.f32 0.0, %v6699
    %6701 = vmatmul.bf16.gmra.mxu0 %v6349
    %v6702 = vpop.f32.mrf.mxu0
    %v6703 = vadd.f32 0.0, %v6702
    %v6704 = vpop.f32.mrf.mxu0
    %v6705 = vadd.f32 0.0, %v6704
    %6706 = vmatmul.bf16.gmra.mxu0 %v6351
    %v6707 = vpop.f32.mrf.mxu0
    %v6708 = vadd.f32 0.0, %v6707
    %v6709 = vpop.f32.mrf.mxu0
    %v6710 = vadd.f32 0.0, %v6709
    %6711 = vmatmul.bf16.gmra.mxu0 %v6353
    %v6712 = vpop.f32.mrf.mxu0
    %v6713 = vadd.f32 0.0, %v6712
    %v6714 = vpop.f32.mrf.mxu0
    %v6715 = vadd.f32 0.0, %v6714
    %6716 = vmatmul.bf16.gmra.mxu0 %v6355
    %v6717 = vpop.f32.mrf.mxu0
    %v6718 = vadd.f32 0.0, %v6717
    %v6719 = vpop.f32.mrf.mxu0
    %v6720 = vadd.f32 0.0, %v6719
    %6721 = vmatmul.bf16.gmra.mxu0 %v6357
    %v6722 = vpop.f32.mrf.mxu0
    %v6723 = vadd.f32 0.0, %v6722
    %v6724 = vpop.f32.mrf.mxu0
    %v6725 = vadd.f32 0.0, %v6724
    %6726 = vmatmul.bf16.gmra.mxu0 %v6359
    %v6727 = vpop.f32.mrf.mxu0
    %v6728 = vadd.f32 0.0, %v6727
    %v6729 = vpop.f32.mrf.mxu0
    %v6730 = vadd.f32 0.0, %v6729
    %6731 = vdwg.mxu0
    %6732 = vmatpush.bf16.msra.mxu0 %v6552
    %6733 = vmatpush.bf16.msra.mxu0 %v6550
    %6734 = vmatpush.bf16.msra.mxu0 %v6548
    %6735 = vmatpush.bf16.msra.mxu0 %v6546
    %6736 = vmatpush.bf16.msra.mxu0 %v6544
    %6737 = vmatpush.bf16.msra.mxu0 %v6542
    %6738 = vmatpush.bf16.msra.mxu0 %v6540
    %6739 = vmatpush.bf16.msra.mxu0 %v6538
    %6740 = vmatmul.bf16.gmra.mxu0 %v6346
    %v6741 = vpop.f32.mrf.mxu0
    %v6742 = vadd.f32 %v6693, %v6741
    %v6743 = vpop.f32.mrf.mxu0
    %v6744 = vadd.f32 %v6695, %v6743
    %6745 = vmatmul.bf16.gmra.mxu0 %v6348
    %v6746 = vpop.f32.mrf.mxu0
    %v6747 = vadd.f32 %v6698, %v6746
    %v6748 = vpop.f32.mrf.mxu0
    %v6749 = vadd.f32 %v6700, %v6748
    %6750 = vmatmul.bf16.gmra.mxu0 %v6350
    %v6751 = vpop.f32.mrf.mxu0
    %v6752 = vadd.f32 %v6703, %v6751
    %v6753 = vpop.f32.mrf.mxu0
    %v6754 = vadd.f32 %v6705, %v6753
    %6755 = vmatmul.bf16.gmra.mxu0 %v6352
    %v6756 = vpop.f32.mrf.mxu0
    %v6757 = vadd.f32 %v6708, %v6756
    %v6758 = vpop.f32.mrf.mxu0
    %v6759 = vadd.f32 %v6710, %v6758
    %6760 = vmatmul.bf16.gmra.mxu0 %v6354
    %v6761 = vpop.f32.mrf.mxu0
    %v6762 = vadd.f32 %v6713, %v6761
    %v6763 = vpop.f32.mrf.mxu0
    %v6764 = vadd.f32 %v6715, %v6763
    %6765 = vmatmul.bf16.gmra.mxu0 %v6356
    %v6766 = vpop.f32.mrf.mxu0
    %v6767 = vadd.f32 %v6718, %v6766
    %v6768 = vpop.f32.mrf.mxu0
    %v6769 = vadd.f32 %v6720, %v6768
    %6770 = vmatmul.bf16.gmra.mxu0 %v6358
    %v6771 = vpop.f32.mrf.mxu0
    %v6772 = vadd.f32 %v6723, %v6771
    %v6773 = vpop.f32.mrf.mxu0
    %v6774 = vadd.f32 %v6725, %v6773
    %6775 = vmatmul.bf16.gmra.mxu0 %v6360
    %v6776 = vpop.f32.mrf.mxu0
    %v6777 = vadd.f32 %v6728, %v6776
    %v6778 = vpop.f32.mrf.mxu0
    %v6779 = vadd.f32 %v6730, %v6778
    %6780 = vdwg.mxu0
    %v6813 = vunpack.c.l.b16 %v6361
    %v6814 = vunpack.c.h.b16 %v6361
    %v6815 = vunpack.c.l.b16 %v6362
    %v6816 = vunpack.c.h.b16 %v6362
    %v6817 = vunpack.c.l.b16 %v6363
    %v6818 = vunpack.c.h.b16 %v6363
    %v6819 = vunpack.c.l.b16 %v6364
    %v6820 = vunpack.c.h.b16 %v6364
    %v6821 = vunpack.c.l.b16 %v6365
    %v6822 = vunpack.c.h.b16 %v6365
    %v6823 = vunpack.c.l.b16 %v6366
    %v6824 = vunpack.c.h.b16 %v6366
    %v6825 = vunpack.c.l.b16 %v6367
    %v6826 = vunpack.c.h.b16 %v6367
    %v6827 = vunpack.c.l.b16 %v6368
    %v6828 = vunpack.c.h.b16 %v6368
    %v6829 = vunpack.c.l.b16 %v6369
    %v6830 = vunpack.c.h.b16 %v6369
    %v6831 = vunpack.c.l.b16 %v6370
    %v6832 = vunpack.c.h.b16 %v6370
    %v6833 = vunpack.c.l.b16 %v6371
    %v6834 = vunpack.c.h.b16 %v6371
    %v6835 = vunpack.c.l.b16 %v6372
    %v6836 = vunpack.c.h.b16 %v6372
    %v6837 = vunpack.c.l.b16 %v6373
    %v6838 = vunpack.c.h.b16 %v6373
    %v6839 = vunpack.c.l.b16 %v6374
    %v6840 = vunpack.c.h.b16 %v6374
    %v6841 = vunpack.c.l.b16 %v6375
    %v6842 = vunpack.c.h.b16 %v6375
    %v6843 = vunpack.c.l.b16 %v6376
    %v6844 = vunpack.c.h.b16 %v6376
    %v6845 = vunpack.c.l.b16 %v6377
    %v6846 = vunpack.c.h.b16 %v6377
    %v6847 = vunpack.c.l.b16 %v6378
    %v6848 = vunpack.c.h.b16 %v6378
    %v6849 = vunpack.c.l.b16 %v6379
    %v6850 = vunpack.c.h.b16 %v6379
    %v6851 = vunpack.c.l.b16 %v6380
    %v6852 = vunpack.c.h.b16 %v6380
    %v6853 = vunpack.c.l.b16 %v6381
    %v6854 = vunpack.c.h.b16 %v6381
    %v6855 = vunpack.c.l.b16 %v6382
    %v6856 = vunpack.c.h.b16 %v6382
    %v6857 = vunpack.c.l.b16 %v6383
    %v6858 = vunpack.c.h.b16 %v6383
    %v6859 = vunpack.c.l.b16 %v6384
    %v6860 = vunpack.c.h.b16 %v6384
    %v6861 = vunpack.c.l.b16 %v6385
    %v6862 = vunpack.c.h.b16 %v6385
    %v6863 = vunpack.c.l.b16 %v6386
    %v6864 = vunpack.c.h.b16 %v6386
    %v6865 = vunpack.c.l.b16 %v6387
    %v6866 = vunpack.c.h.b16 %v6387
    %v6867 = vunpack.c.l.b16 %v6388
    %v6868 = vunpack.c.h.b16 %v6388
    %v6869 = vunpack.c.l.b16 %v6389
    %v6870 = vunpack.c.h.b16 %v6389
    %v6871 = vunpack.c.l.b16 %v6390
    %v6872 = vunpack.c.h.b16 %v6390
    %v6873 = vunpack.c.l.b16 %v6391
    %v6874 = vunpack.c.h.b16 %v6391
    %v6875 = vunpack.c.l.b16 %v6392
    %v6876 = vunpack.c.h.b16 %v6392
    %v6877 = vpack.c.b16 %v6815, %v6813
    %v6878 = vpack.c.b16 %v6816, %v6814
    %v6879 = vpack.c.b16 %v6819, %v6817
    %v6880 = vpack.c.b16 %v6820, %v6818
    %v6881 = vpack.c.b16 %v6823, %v6821
    %v6882 = vpack.c.b16 %v6824, %v6822
    %v6883 = vpack.c.b16 %v6827, %v6825
    %v6884 = vpack.c.b16 %v6828, %v6826
    %v6885 = vpack.c.b16 %v6831, %v6829
    %v6886 = vpack.c.b16 %v6832, %v6830
    %v6887 = vpack.c.b16 %v6835, %v6833
    %v6888 = vpack.c.b16 %v6836, %v6834
    %v6889 = vpack.c.b16 %v6839, %v6837
    %v6890 = vpack.c.b16 %v6840, %v6838
    %v6891 = vpack.c.b16 %v6843, %v6841
    %v6892 = vpack.c.b16 %v6844, %v6842
    %v6893 = vpack.c.b16 %v6847, %v6845
    %v6894 = vpack.c.b16 %v6848, %v6846
    %v6895 = vpack.c.b16 %v6851, %v6849
    %v6896 = vpack.c.b16 %v6852, %v6850
    %v6897 = vpack.c.b16 %v6855, %v6853
    %v6898 = vpack.c.b16 %v6856, %v6854
    %v6899 = vpack.c.b16 %v6859, %v6857
    %v6900 = vpack.c.b16 %v6860, %v6858
    %v6901 = vpack.c.b16 %v6863, %v6861
    %v6902 = vpack.c.b16 %v6864, %v6862
    %v6903 = vpack.c.b16 %v6867, %v6865
    %v6904 = vpack.c.b16 %v6868, %v6866
    %v6905 = vpack.c.b16 %v6871, %v6869
    %v6906 = vpack.c.b16 %v6872, %v6870
    %v6907 = vpack.c.b16 %v6875, %v6873
    %v6908 = vpack.c.b16 %v6876, %v6874
    %6941 = vmatpush.bf16.msra.mxu0 %v6891
    %6942 = vmatpush.bf16.msra.mxu0 %v6889
    %6943 = vmatpush.bf16.msra.mxu0 %v6887
    %6944 = vmatpush.bf16.msra.mxu0 %v6885
    %6945 = vmatpush.bf16.msra.mxu0 %v6883
    %6946 = vmatpush.bf16.msra.mxu0 %v6881
    %6947 = vmatpush.bf16.msra.mxu0 %v6879
    %6948 = vmatpush.bf16.msra.mxu0 %v6877
    %6949 = vmatmul.bf16.gmra.mxu0 %v5236
    %v6950 = vpop.f32.mrf.mxu0
    %v6951 = vadd.f32 %v6644, %v6950
    %v6952 = vpop.f32.mrf.mxu0
    %v6953 = vadd.f32 %v6646, %v6952
    %6954 = vmatmul.bf16.gmra.mxu0 %v5238
    %v6955 = vpop.f32.mrf.mxu0
    %v6956 = vadd.f32 %v6649, %v6955
    %v6957 = vpop.f32.mrf.mxu0
    %v6958 = vadd.f32 %v6651, %v6957
    %6959 = vmatmul.bf16.gmra.mxu0 %v5240
    %v6960 = vpop.f32.mrf.mxu0
    %v6961 = vadd.f32 %v6654, %v6960
    %v6962 = vpop.f32.mrf.mxu0
    %v6963 = vadd.f32 %v6656, %v6962
    %6964 = vmatmul.bf16.gmra.mxu0 %v5242
    %v6965 = vpop.f32.mrf.mxu0
    %v6966 = vadd.f32 %v6659, %v6965
    %v6967 = vpop.f32.mrf.mxu0
    %v6968 = vadd.f32 %v6661, %v6967
    %6969 = vmatmul.bf16.gmra.mxu0 %v5244
    %v6970 = vpop.f32.mrf.mxu0
    %v6971 = vadd.f32 %v6664, %v6970
    %v6972 = vpop.f32.mrf.mxu0
    %v6973 = vadd.f32 %v6666, %v6972
    %6974 = vmatmul.bf16.gmra.mxu0 %v5246
    %v6975 = vpop.f32.mrf.mxu0
    %v6976 = vadd.f32 %v6669, %v6975
    %v6977 = vpop.f32.mrf.mxu0
    %v6978 = vadd.f32 %v6671, %v6977
    %6979 = vmatmul.bf16.gmra.mxu0 %v5248
    %v6980 = vpop.f32.mrf.mxu0
    %v6981 = vadd.f32 %v6674, %v6980
    %v6982 = vpop.f32.mrf.mxu0
    %v6983 = vadd.f32 %v6676, %v6982
    %6984 = vmatmul.bf16.gmra.mxu0 %v5250
    %v6985 = vpop.f32.mrf.mxu0
    %v6986 = vadd.f32 %v6679, %v6985
    %v6987 = vpop.f32.mrf.mxu0
    %v6988 = vadd.f32 %v6681, %v6987
    %6989 = vdwg.mxu0
    %6990 = vmatpush.bf16.msra.mxu0 %v6907
    %6991 = vmatpush.bf16.msra.mxu0 %v6905
    %6992 = vmatpush.bf16.msra.mxu0 %v6903
    %6993 = vmatpush.bf16.msra.mxu0 %v6901
    %6994 = vmatpush.bf16.msra.mxu0 %v6899
    %6995 = vmatpush.bf16.msra.mxu0 %v6897
    %6996 = vmatpush.bf16.msra.mxu0 %v6895
    %6997 = vmatpush.bf16.msra.mxu0 %v6893
    %6998 = vmatmul.bf16.gmra.mxu0 %v5237
    %v6999 = vpop.f32.mrf.mxu0
    %v7000 = vadd.f32 %v6951, %v6999
    %v7001 = vpop.f32.mrf.mxu0
    %v7002 = vadd.f32 %v6953, %v7001
    %7003 = vmatmul.bf16.gmra.mxu0 %v5239
    %v7004 = vpop.f32.mrf.mxu0
    %v7005 = vadd.f32 %v6956, %v7004
    %v7006 = vpop.f32.mrf.mxu0
    %v7007 = vadd.f32 %v6958, %v7006
    %7008 = vmatmul.bf16.gmra.mxu0 %v5241
    %v7009 = vpop.f32.mrf.mxu0
    %v7010 = vadd.f32 %v6961, %v7009
    %v7011 = vpop.f32.mrf.mxu0
    %v7012 = vadd.f32 %v6963, %v7011
    %7013 = vmatmul.bf16.gmra.mxu0 %v5243
    %v7014 = vpop.f32.mrf.mxu0
    %v7015 = vadd.f32 %v6966, %v7014
    %v7016 = vpop.f32.mrf.mxu0
    %v7017 = vadd.f32 %v6968, %v7016
    %7018 = vmatmul.bf16.gmra.mxu0 %v5245
    %v7019 = vpop.f32.mrf.mxu0
    %v7020 = vadd.f32 %v6971, %v7019
    %v7021 = vpop.f32.mrf.mxu0
    %v7022 = vadd.f32 %v6973, %v7021
    %7023 = vmatmul.bf16.gmra.mxu0 %v5247
    %v7024 = vpop.f32.mrf.mxu0
    %v7025 = vadd.f32 %v6976, %v7024
    %v7026 = vpop.f32.mrf.mxu0
    %v7027 = vadd.f32 %v6978, %v7026
    %7028 = vmatmul.bf16.gmra.mxu0 %v5249
    %v7029 = vpop.f32.mrf.mxu0
    %v7030 = vadd.f32 %v6981, %v7029
    %v7031 = vpop.f32.mrf.mxu0
    %v7032 = vadd.f32 %v6983, %v7031
    %7033 = vmatmul.bf16.gmra.mxu0 %v5251
    %v7034 = vpop.f32.mrf.mxu0
    %v7035 = vadd.f32 %v6986, %v7034
    %v7036 = vpop.f32.mrf.mxu0
    %v7037 = vadd.f32 %v6988, %v7036
    %7038 = vdwg.mxu0
    %7039 = vmatpush.bf16.msra.mxu0 %v6892
    %7040 = vmatpush.bf16.msra.mxu0 %v6890
    %7041 = vmatpush.bf16.msra.mxu0 %v6888
    %7042 = vmatpush.bf16.msra.mxu0 %v6886
    %7043 = vmatpush.bf16.msra.mxu0 %v6884
    %7044 = vmatpush.bf16.msra.mxu0 %v6882
    %7045 = vmatpush.bf16.msra.mxu0 %v6880
    %7046 = vmatpush.bf16.msra.mxu0 %v6878
    %7047 = vmatmul.bf16.gmra.mxu0 %v5236
    %v7048 = vpop.f32.mrf.mxu0
    %v7049 = vadd.f32 %v6742, %v7048
    %v7050 = vpop.f32.mrf.mxu0
    %v7051 = vadd.f32 %v6744, %v7050
    %7052 = vmatmul.bf16.gmra.mxu0 %v5238
    %v7053 = vpop.f32.mrf.mxu0
    %v7054 = vadd.f32 %v6747, %v7053
    %v7055 = vpop.f32.mrf.mxu0
    %v7056 = vadd.f32 %v6749, %v7055
    %7057 = vmatmul.bf16.gmra.mxu0 %v5240
    %v7058 = vpop.f32.mrf.mxu0
    %v7059 = vadd.f32 %v6752, %v7058
    %v7060 = vpop.f32.mrf.mxu0
    %v7061 = vadd.f32 %v6754, %v7060
    %7062 = vmatmul.bf16.gmra.mxu0 %v5242
    %v7063 = vpop.f32.mrf.mxu0
    %v7064 = vadd.f32 %v6757, %v7063
    %v7065 = vpop.f32.mrf.mxu0
    %v7066 = vadd.f32 %v6759, %v7065
    %7067 = vmatmul.bf16.gmra.mxu0 %v5244
    %v7068 = vpop.f32.mrf.mxu0
    %v7069 = vadd.f32 %v6762, %v7068
    %v7070 = vpop.f32.mrf.mxu0
    %v7071 = vadd.f32 %v6764, %v7070
    %7072 = vmatmul.bf16.gmra.mxu0 %v5246
    %v7073 = vpop.f32.mrf.mxu0
    %v7074 = vadd.f32 %v6767, %v7073
    %v7075 = vpop.f32.mrf.mxu0
    %v7076 = vadd.f32 %v6769, %v7075
    %7077 = vmatmul.bf16.gmra.mxu0 %v5248
    %v7078 = vpop.f32.mrf.mxu0
    %v7079 = vadd.f32 %v6772, %v7078
    %v7080 = vpop.f32.mrf.mxu0
    %v7081 = vadd.f32 %v6774, %v7080
    %7082 = vmatmul.bf16.gmra.mxu0 %v5250
    %v7083 = vpop.f32.mrf.mxu0
    %v7084 = vadd.f32 %v6777, %v7083
    %v7085 = vpop.f32.mrf.mxu0
    %v7086 = vadd.f32 %v6779, %v7085
    %7087 = vdwg.mxu0
    %7088 = vmatpush.bf16.msra.mxu0 %v6908
    %7089 = vmatpush.bf16.msra.mxu0 %v6906
    %7090 = vmatpush.bf16.msra.mxu0 %v6904
    %7091 = vmatpush.bf16.msra.mxu0 %v6902
    %7092 = vmatpush.bf16.msra.mxu0 %v6900
    %7093 = vmatpush.bf16.msra.mxu0 %v6898
    %7094 = vmatpush.bf16.msra.mxu0 %v6896
    %7095 = vmatpush.bf16.msra.mxu0 %v6894
    %7096 = vmatmul.bf16.gmra.mxu0 %v5237
    %v7097 = vpop.f32.mrf.mxu0
    %v7098 = vadd.f32 %v7049, %v7097
    %v7099 = vpop.f32.mrf.mxu0
    %v7100 = vadd.f32 %v7051, %v7099
    %7101 = vmatmul.bf16.gmra.mxu0 %v5239
    %v7102 = vpop.f32.mrf.mxu0
    %v7103 = vadd.f32 %v7054, %v7102
    %v7104 = vpop.f32.mrf.mxu0
    %v7105 = vadd.f32 %v7056, %v7104
    %7106 = vmatmul.bf16.gmra.mxu0 %v5241
    %v7107 = vpop.f32.mrf.mxu0
    %v7108 = vadd.f32 %v7059, %v7107
    %v7109 = vpop.f32.mrf.mxu0
    %v7110 = vadd.f32 %v7061, %v7109
    %7111 = vmatmul.bf16.gmra.mxu0 %v5243
    %v7112 = vpop.f32.mrf.mxu0
    %v7113 = vadd.f32 %v7064, %v7112
    %v7114 = vpop.f32.mrf.mxu0
    %v7115 = vadd.f32 %v7066, %v7114
    %7116 = vmatmul.bf16.gmra.mxu0 %v5245
    %v7117 = vpop.f32.mrf.mxu0
    %v7118 = vadd.f32 %v7069, %v7117
    %v7119 = vpop.f32.mrf.mxu0
    %v7120 = vadd.f32 %v7071, %v7119
    %7121 = vmatmul.bf16.gmra.mxu0 %v5247
    %v7122 = vpop.f32.mrf.mxu0
    %v7123 = vadd.f32 %v7074, %v7122
    %v7124 = vpop.f32.mrf.mxu0
    %v7125 = vadd.f32 %v7076, %v7124
    %7126 = vmatmul.bf16.gmra.mxu0 %v5249
    %v7127 = vpop.f32.mrf.mxu0
    %v7128 = vadd.f32 %v7079, %v7127
    %v7129 = vpop.f32.mrf.mxu0
    %v7130 = vadd.f32 %v7081, %v7129
    %7131 = vmatmul.bf16.gmra.mxu0 %v5251
    %v7132 = vpop.f32.mrf.mxu0
    %v7133 = vadd.f32 %v7084, %v7132
    %v7134 = vpop.f32.mrf.mxu0
    %v7135 = vadd.f32 %v7086, %v7134
    %7136 = vdwg.mxu0
    %v7137 = vld [vmem:[%s12] sm:$0x3]
    %v7139 = vperm.slane %v7137, 0
    %v7140 = vperm.slane %v7137, 1
    %v7143 = vadd.f32 %v7000, %v7139
    %v7144 = vadd.f32 %v7098, %v7140
    %v7145 = vadd.f32 %v7002, %v7139
    %v7146 = vadd.f32 %v7100, %v7140
    %v7147 = vadd.f32 %v7005, %v7139
    %v7148 = vadd.f32 %v7103, %v7140
    %v7149 = vadd.f32 %v7007, %v7139
    %v7150 = vadd.f32 %v7105, %v7140
    %v7151 = vadd.f32 %v7010, %v7139
    %v7152 = vadd.f32 %v7108, %v7140
    %v7153 = vadd.f32 %v7012, %v7139
    %v7154 = vadd.f32 %v7110, %v7140
    %v7155 = vadd.f32 %v7015, %v7139
    %v7156 = vadd.f32 %v7113, %v7140
    %v7157 = vadd.f32 %v7017, %v7139
    %v7158 = vadd.f32 %v7115, %v7140
    %v7159 = vadd.f32 %v7020, %v7139
    %v7160 = vadd.f32 %v7118, %v7140
    %v7161 = vadd.f32 %v7022, %v7139
    %v7162 = vadd.f32 %v7120, %v7140
    %v7163 = vadd.f32 %v7025, %v7139
    %v7164 = vadd.f32 %v7123, %v7140
    %v7165 = vadd.f32 %v7027, %v7139
    %v7166 = vadd.f32 %v7125, %v7140
    %v7167 = vadd.f32 %v7030, %v7139
    %v7168 = vadd.f32 %v7128, %v7140
    %v7169 = vadd.f32 %v7032, %v7139
    %v7170 = vadd.f32 %v7130, %v7140
    %v7171 = vadd.f32 %v7035, %v7139
    %v7172 = vadd.f32 %v7133, %v7140
    %v7173 = vadd.f32 %v7037, %v7139
    %v7174 = vadd.f32 %v7135, %v7140
    %v7175 = vmax.f32 %v7143, 0.0
    %v7176 = vmax.f32 %v7144, 0.0
    %v7177 = vmax.f32 %v7145, 0.0
    %v7178 = vmax.f32 %v7146, 0.0
    %v7179 = vmax.f32 %v7147, 0.0
    %v7180 = vmax.f32 %v7148, 0.0
    %v7181 = vmax.f32 %v7149, 0.0
    %v7182 = vmax.f32 %v7150, 0.0
    %v7183 = vmax.f32 %v7151, 0.0
    %v7184 = vmax.f32 %v7152, 0.0
    %v7185 = vmax.f32 %v7153, 0.0
    %v7186 = vmax.f32 %v7154, 0.0
    %v7187 = vmax.f32 %v7155, 0.0
    %v7188 = vmax.f32 %v7156, 0.0
    %v7189 = vmax.f32 %v7157, 0.0
    %v7190 = vmax.f32 %v7158, 0.0
    %v7191 = vmax.f32 %v7159, 0.0
    %v7192 = vmax.f32 %v7160, 0.0
    %v7193 = vmax.f32 %v7161, 0.0
    %v7194 = vmax.f32 %v7162, 0.0
    %v7195 = vmax.f32 %v7163, 0.0
    %v7196 = vmax.f32 %v7164, 0.0
    %v7197 = vmax.f32 %v7165, 0.0
    %v7198 = vmax.f32 %v7166, 0.0
    %v7199 = vmax.f32 %v7167, 0.0
    %v7200 = vmax.f32 %v7168, 0.0
    %v7201 = vmax.f32 %v7169, 0.0
    %v7202 = vmax.f32 %v7170, 0.0
    %v7203 = vmax.f32 %v7171, 0.0
    %v7204 = vmax.f32 %v7172, 0.0
    %v7205 = vmax.f32 %v7173, 0.0
    %v7206 = vmax.f32 %v7174, 0.0
    %v7207 = vpack.c.bf16 %v7177, %v7175
    %v7208 = vpack.c.bf16 %v7178, %v7176
    %v7209 = vpack.c.bf16 %v7181, %v7179
    %v7210 = vpack.c.bf16 %v7182, %v7180
    %v7211 = vpack.c.bf16 %v7185, %v7183
    %v7212 = vpack.c.bf16 %v7186, %v7184
    %v7213 = vpack.c.bf16 %v7189, %v7187
    %v7214 = vpack.c.bf16 %v7190, %v7188
    %v7215 = vpack.c.bf16 %v7193, %v7191
    %v7216 = vpack.c.bf16 %v7194, %v7192
    %v7217 = vpack.c.bf16 %v7197, %v7195
    %v7218 = vpack.c.bf16 %v7198, %v7196
    %v7219 = vpack.c.bf16 %v7201, %v7199
    %v7220 = vpack.c.bf16 %v7202, %v7200
    %v7221 = vpack.c.bf16 %v7205, %v7203
    %v7222 = vpack.c.bf16 %v7206, %v7204
    %v7223 = vld [vmem:[#allocation10] sm:$0xff]
    %v7224 = vld [vmem:[#allocation10 + $0x8] sm:$0xff]
    %v7225 = vld [vmem:[#allocation10 + $0x10] sm:$0xff]
    %v7226 = vld [vmem:[#allocation10 + $0x18] sm:$0xff]
    %v7227 = vld [vmem:[#allocation10 + $0x20] sm:$0xff]
    %v7228 = vld [vmem:[#allocation10 + $0x28] sm:$0xff]
    %v7229 = vld [vmem:[#allocation10 + $0x30] sm:$0xff]
    %v7230 = vld [vmem:[#allocation10 + $0x38] sm:$0xff]
    %v7231 = vld [vmem:[#allocation10 + $0x40] sm:$0xff]
    %v7232 = vld [vmem:[#allocation10 + $0x48] sm:$0xff]
    %v7233 = vld [vmem:[#allocation10 + $0x50] sm:$0xff]
    %v7234 = vld [vmem:[#allocation10 + $0x58] sm:$0xff]
    %v7235 = vld [vmem:[#allocation10 + $0x60] sm:$0xff]
    %v7236 = vld [vmem:[#allocation10 + $0x68] sm:$0xff]
    %v7237 = vld [vmem:[#allocation10 + $0x70] sm:$0xff]
    %v7238 = vld [vmem:[#allocation10 + $0x78] sm:$0xff]
    %v7239 = vld [vmem:[#allocation10 + $0x80] sm:$0xff]
    %v7240 = vld [vmem:[#allocation10 + $0x88] sm:$0xff]
    %v7241 = vld [vmem:[#allocation10 + $0x90] sm:$0xff]
    %v7242 = vld [vmem:[#allocation10 + $0x98] sm:$0xff]
    %v7243 = vld [vmem:[#allocation10 + $0xa0] sm:$0xff]
    %v7244 = vld [vmem:[#allocation10 + $0xa8] sm:$0xff]
    %v7245 = vld [vmem:[#allocation10 + $0xb0] sm:$0xff]
    %v7246 = vld [vmem:[#allocation10 + $0xb8] sm:$0xff]
    %v7247 = vld [vmem:[#allocation10 + $0xc0] sm:$0xff]
    %v7248 = vld [vmem:[#allocation10 + $0xc8] sm:$0xff]
    %v7249 = vld [vmem:[#allocation10 + $0xd0] sm:$0xff]
    %v7250 = vld [vmem:[#allocation10 + $0xd8] sm:$0xff]
    %v7251 = vld [vmem:[#allocation10 + $0xe0] sm:$0xff]
    %v7252 = vld [vmem:[#allocation10 + $0xe8] sm:$0xff]
    %v7253 = vld [vmem:[#allocation10 + $0xf0] sm:$0xff]
    %v7254 = vld [vmem:[#allocation10 + $0xf8] sm:$0xff]
    %v7255 = vld [vmem:[%s14] sm:$0x3]
    %v7257 = vperm.slane %v7255, 0
    %v7258 = vperm.slane %v7255, 1
    %v7293 = vunpack.c.l.b16 %v7223
    %v7294 = vunpack.c.h.b16 %v7223
    %v7295 = vunpack.c.l.b16 %v7224
    %v7296 = vunpack.c.h.b16 %v7224
    %v7297 = vunpack.c.l.b16 %v7225
    %v7298 = vunpack.c.h.b16 %v7225
    %v7299 = vunpack.c.l.b16 %v7226
    %v7300 = vunpack.c.h.b16 %v7226
    %v7301 = vunpack.c.l.b16 %v7227
    %v7302 = vunpack.c.h.b16 %v7227
    %v7303 = vunpack.c.l.b16 %v7228
    %v7304 = vunpack.c.h.b16 %v7228
    %v7305 = vunpack.c.l.b16 %v7229
    %v7306 = vunpack.c.h.b16 %v7229
    %v7307 = vunpack.c.l.b16 %v7230
    %v7308 = vunpack.c.h.b16 %v7230
    %v7309 = vunpack.c.l.b16 %v7231
    %v7310 = vunpack.c.h.b16 %v7231
    %v7311 = vunpack.c.l.b16 %v7232
    %v7312 = vunpack.c.h.b16 %v7232
    %v7313 = vunpack.c.l.b16 %v7233
    %v7314 = vunpack.c.h.b16 %v7233
    %v7315 = vunpack.c.l.b16 %v7234
    %v7316 = vunpack.c.h.b16 %v7234
    %v7317 = vunpack.c.l.b16 %v7235
    %v7318 = vunpack.c.h.b16 %v7235
    %v7319 = vunpack.c.l.b16 %v7236
    %v7320 = vunpack.c.h.b16 %v7236
    %v7321 = vunpack.c.l.b16 %v7237
    %v7322 = vunpack.c.h.b16 %v7237
    %v7323 = vunpack.c.l.b16 %v7238
    %v7324 = vunpack.c.h.b16 %v7238
    %v7325 = vunpack.c.l.b16 %v7239
    %v7326 = vunpack.c.h.b16 %v7239
    %v7327 = vunpack.c.l.b16 %v7240
    %v7328 = vunpack.c.h.b16 %v7240
    %v7329 = vunpack.c.l.b16 %v7241
    %v7330 = vunpack.c.h.b16 %v7241
    %v7331 = vunpack.c.l.b16 %v7242
    %v7332 = vunpack.c.h.b16 %v7242
    %v7333 = vunpack.c.l.b16 %v7243
    %v7334 = vunpack.c.h.b16 %v7243
    %v7335 = vunpack.c.l.b16 %v7244
    %v7336 = vunpack.c.h.b16 %v7244
    %v7337 = vunpack.c.l.b16 %v7245
    %v7338 = vunpack.c.h.b16 %v7245
    %v7339 = vunpack.c.l.b16 %v7246
    %v7340 = vunpack.c.h.b16 %v7246
    %v7341 = vunpack.c.l.b16 %v7247
    %v7342 = vunpack.c.h.b16 %v7247
    %v7343 = vunpack.c.l.b16 %v7248
    %v7344 = vunpack.c.h.b16 %v7248
    %v7345 = vunpack.c.l.b16 %v7249
    %v7346 = vunpack.c.h.b16 %v7249
    %v7347 = vunpack.c.l.b16 %v7250
    %v7348 = vunpack.c.h.b16 %v7250
    %v7349 = vunpack.c.l.b16 %v7251
    %v7350 = vunpack.c.h.b16 %v7251
    %v7351 = vunpack.c.l.b16 %v7252
    %v7352 = vunpack.c.h.b16 %v7252
    %v7353 = vunpack.c.l.b16 %v7253
    %v7354 = vunpack.c.h.b16 %v7253
    %v7355 = vunpack.c.l.b16 %v7254
    %v7356 = vunpack.c.h.b16 %v7254
    %v7357 = vpack.c.b16 %v7295, %v7293
    %v7358 = vpack.c.b16 %v7296, %v7294
    %v7359 = vpack.c.b16 %v7299, %v7297
    %v7360 = vpack.c.b16 %v7300, %v7298
    %v7361 = vpack.c.b16 %v7303, %v7301
    %v7362 = vpack.c.b16 %v7304, %v7302
    %v7363 = vpack.c.b16 %v7307, %v7305
    %v7364 = vpack.c.b16 %v7308, %v7306
    %v7365 = vpack.c.b16 %v7311, %v7309
    %v7366 = vpack.c.b16 %v7312, %v7310
    %v7367 = vpack.c.b16 %v7315, %v7313
    %v7368 = vpack.c.b16 %v7316, %v7314
    %v7369 = vpack.c.b16 %v7319, %v7317
    %v7370 = vpack.c.b16 %v7320, %v7318
    %v7371 = vpack.c.b16 %v7323, %v7321
    %v7372 = vpack.c.b16 %v7324, %v7322
    %v7373 = vpack.c.b16 %v7327, %v7325
    %v7374 = vpack.c.b16 %v7328, %v7326
    %v7375 = vpack.c.b16 %v7331, %v7329
    %v7376 = vpack.c.b16 %v7332, %v7330
    %v7377 = vpack.c.b16 %v7335, %v7333
    %v7378 = vpack.c.b16 %v7336, %v7334
    %v7379 = vpack.c.b16 %v7339, %v7337
    %v7380 = vpack.c.b16 %v7340, %v7338
    %v7381 = vpack.c.b16 %v7343, %v7341
    %v7382 = vpack.c.b16 %v7344, %v7342
    %v7383 = vpack.c.b16 %v7347, %v7345
    %v7384 = vpack.c.b16 %v7348, %v7346
    %v7385 = vpack.c.b16 %v7351, %v7349
    %v7386 = vpack.c.b16 %v7352, %v7350
    %v7387 = vpack.c.b16 %v7355, %v7353
    %v7388 = vpack.c.b16 %v7356, %v7354
    %7421 = vmatpush.bf16.msra.mxu0 %v7371
    %7422 = vmatpush.bf16.msra.mxu0 %v7369
    %7423 = vmatpush.bf16.msra.mxu0 %v7367
    %7424 = vmatpush.bf16.msra.mxu0 %v7365
    %7425 = vmatpush.bf16.msra.mxu0 %v7363
    %7426 = vmatpush.bf16.msra.mxu0 %v7361
    %7427 = vmatpush.bf16.msra.mxu0 %v7359
    %7428 = vmatpush.bf16.msra.mxu0 %v7357
    %7429 = vmatmul.bf16.gmra.mxu0 %v7207
    %v7430 = vpop.f32.mrf.mxu0
    %v7431 = vadd.f32 %v7257, %v7430
    %v7432 = vpop.f32.mrf.mxu0
    %v7433 = vadd.f32 %v7257, %v7432
    %7434 = vmatmul.bf16.gmra.mxu0 %v7209
    %v7435 = vpop.f32.mrf.mxu0
    %v7436 = vadd.f32 %v7257, %v7435
    %v7437 = vpop.f32.mrf.mxu0
    %v7438 = vadd.f32 %v7257, %v7437
    %7439 = vmatmul.bf16.gmra.mxu0 %v7211
    %v7440 = vpop.f32.mrf.mxu0
    %v7441 = vadd.f32 %v7257, %v7440
    %v7442 = vpop.f32.mrf.mxu0
    %v7443 = vadd.f32 %v7257, %v7442
    %7444 = vmatmul.bf16.gmra.mxu0 %v7213
    %v7445 = vpop.f32.mrf.mxu0
    %v7446 = vadd.f32 %v7257, %v7445
    %v7447 = vpop.f32.mrf.mxu0
    %v7448 = vadd.f32 %v7257, %v7447
    %7449 = vmatmul.bf16.gmra.mxu0 %v7215
    %v7450 = vpop.f32.mrf.mxu0
    %v7451 = vadd.f32 %v7257, %v7450
    %v7452 = vpop.f32.mrf.mxu0
    %v7453 = vadd.f32 %v7257, %v7452
    %7454 = vmatmul.bf16.gmra.mxu0 %v7217
    %v7455 = vpop.f32.mrf.mxu0
    %v7456 = vadd.f32 %v7257, %v7455
    %v7457 = vpop.f32.mrf.mxu0
    %v7458 = vadd.f32 %v7257, %v7457
    %7459 = vmatmul.bf16.gmra.mxu0 %v7219
    %v7460 = vpop.f32.mrf.mxu0
    %v7461 = vadd.f32 %v7257, %v7460
    %v7462 = vpop.f32.mrf.mxu0
    %v7463 = vadd.f32 %v7257, %v7462
    %7464 = vmatmul.bf16.gmra.mxu0 %v7221
    %v7465 = vpop.f32.mrf.mxu0
    %v7466 = vadd.f32 %v7257, %v7465
    %v7467 = vpop.f32.mrf.mxu0
    %v7468 = vadd.f32 %v7257, %v7467
    %7469 = vdwg.mxu0
    %7470 = vmatpush.bf16.msra.mxu0 %v7387
    %7471 = vmatpush.bf16.msra.mxu0 %v7385
    %7472 = vmatpush.bf16.msra.mxu0 %v7383
    %7473 = vmatpush.bf16.msra.mxu0 %v7381
    %7474 = vmatpush.bf16.msra.mxu0 %v7379
    %7475 = vmatpush.bf16.msra.mxu0 %v7377
    %7476 = vmatpush.bf16.msra.mxu0 %v7375
    %7477 = vmatpush.bf16.msra.mxu0 %v7373
    %7478 = vmatmul.bf16.gmra.mxu0 %v7208
    %v7479 = vpop.f32.mrf.mxu0
    %v7480 = vadd.f32 %v7431, %v7479
    %v7481 = vpop.f32.mrf.mxu0
    %v7482 = vadd.f32 %v7433, %v7481
    %7483 = vmatmul.bf16.gmra.mxu0 %v7210
    %v7484 = vpop.f32.mrf.mxu0
    %v7485 = vadd.f32 %v7436, %v7484
    %v7486 = vpop.f32.mrf.mxu0
    %v7487 = vadd.f32 %v7438, %v7486
    %7488 = vmatmul.bf16.gmra.mxu0 %v7212
    %v7489 = vpop.f32.mrf.mxu0
    %v7490 = vadd.f32 %v7441, %v7489
    %v7491 = vpop.f32.mrf.mxu0
    %v7492 = vadd.f32 %v7443, %v7491
    %7493 = vmatmul.bf16.gmra.mxu0 %v7214
    %v7494 = vpop.f32.mrf.mxu0
    %v7495 = vadd.f32 %v7446, %v7494
    %v7496 = vpop.f32.mrf.mxu0
    %v7497 = vadd.f32 %v7448, %v7496
    %7498 = vmatmul.bf16.gmra.mxu0 %v7216
    %v7499 = vpop.f32.mrf.mxu0
    %v7500 = vadd.f32 %v7451, %v7499
    %v7501 = vpop.f32.mrf.mxu0
    %v7502 = vadd.f32 %v7453, %v7501
    %7503 = vmatmul.bf16.gmra.mxu0 %v7218
    %v7504 = vpop.f32.mrf.mxu0
    %v7505 = vadd.f32 %v7456, %v7504
    %v7506 = vpop.f32.mrf.mxu0
    %v7507 = vadd.f32 %v7458, %v7506
    %7508 = vmatmul.bf16.gmra.mxu0 %v7220
    %v7509 = vpop.f32.mrf.mxu0
    %v7510 = vadd.f32 %v7461, %v7509
    %v7511 = vpop.f32.mrf.mxu0
    %v7512 = vadd.f32 %v7463, %v7511
    %7513 = vmatmul.bf16.gmra.mxu0 %v7222
    %v7514 = vpop.f32.mrf.mxu0
    %v7515 = vadd.f32 %v7466, %v7514
    %v7516 = vpop.f32.mrf.mxu0
    %v7517 = vadd.f32 %v7468, %v7516
    %7518 = vdwg.mxu0
    %7519 = vmatpush.bf16.msra.mxu0 %v7372
    %7520 = vmatpush.bf16.msra.mxu0 %v7370
    %7521 = vmatpush.bf16.msra.mxu0 %v7368
    %7522 = vmatpush.bf16.msra.mxu0 %v7366
    %7523 = vmatpush.bf16.msra.mxu0 %v7364
    %7524 = vmatpush.bf16.msra.mxu0 %v7362
    %7525 = vmatpush.bf16.msra.mxu0 %v7360
    %7526 = vmatpush.bf16.msra.mxu0 %v7358
    %7527 = vmatmul.bf16.gmra.mxu0 %v7207
    %v7528 = vpop.f32.mrf.mxu0
    %v7529 = vadd.f32 %v7258, %v7528
    %v7530 = vpop.f32.mrf.mxu0
    %v7531 = vadd.f32 %v7258, %v7530
    %7532 = vmatmul.bf16.gmra.mxu0 %v7209
    %v7533 = vpop.f32.mrf.mxu0
    %v7534 = vadd.f32 %v7258, %v7533
    %v7535 = vpop.f32.mrf.mxu0
    %v7536 = vadd.f32 %v7258, %v7535
    %7537 = vmatmul.bf16.gmra.mxu0 %v7211
    %v7538 = vpop.f32.mrf.mxu0
    %v7539 = vadd.f32 %v7258, %v7538
    %v7540 = vpop.f32.mrf.mxu0
    %v7541 = vadd.f32 %v7258, %v7540
    %7542 = vmatmul.bf16.gmra.mxu0 %v7213
    %v7543 = vpop.f32.mrf.mxu0
    %v7544 = vadd.f32 %v7258, %v7543
    %v7545 = vpop.f32.mrf.mxu0
    %v7546 = vadd.f32 %v7258, %v7545
    %7547 = vmatmul.bf16.gmra.mxu0 %v7215
    %v7548 = vpop.f32.mrf.mxu0
    %v7549 = vadd.f32 %v7258, %v7548
    %v7550 = vpop.f32.mrf.mxu0
    %v7551 = vadd.f32 %v7258, %v7550
    %7552 = vmatmul.bf16.gmra.mxu0 %v7217
    %v7553 = vpop.f32.mrf.mxu0
    %v7554 = vadd.f32 %v7258, %v7553
    %v7555 = vpop.f32.mrf.mxu0
    %v7556 = vadd.f32 %v7258, %v7555
    %7557 = vmatmul.bf16.gmra.mxu0 %v7219
    %v7558 = vpop.f32.mrf.mxu0
    %v7559 = vadd.f32 %v7258, %v7558
    %v7560 = vpop.f32.mrf.mxu0
    %v7561 = vadd.f32 %v7258, %v7560
    %7562 = vmatmul.bf16.gmra.mxu0 %v7221
    %v7563 = vpop.f32.mrf.mxu0
    %v7564 = vadd.f32 %v7258, %v7563
    %v7565 = vpop.f32.mrf.mxu0
    %v7566 = vadd.f32 %v7258, %v7565
    %7567 = vdwg.mxu0
    %7568 = vmatpush.bf16.msra.mxu0 %v7388
    %7569 = vmatpush.bf16.msra.mxu0 %v7386
    %7570 = vmatpush.bf16.msra.mxu0 %v7384
    %7571 = vmatpush.bf16.msra.mxu0 %v7382
    %7572 = vmatpush.bf16.msra.mxu0 %v7380
    %7573 = vmatpush.bf16.msra.mxu0 %v7378
    %7574 = vmatpush.bf16.msra.mxu0 %v7376
    %7575 = vmatpush.bf16.msra.mxu0 %v7374
    %7576 = vmatmul.bf16.gmra.mxu0 %v7208
    %v7577 = vpop.f32.mrf.mxu0
    %v7578 = vadd.f32 %v7529, %v7577
    %v7579 = vpop.f32.mrf.mxu0
    %v7580 = vadd.f32 %v7531, %v7579
    %7581 = vmatmul.bf16.gmra.mxu0 %v7210
    %v7582 = vpop.f32.mrf.mxu0
    %v7583 = vadd.f32 %v7534, %v7582
    %v7584 = vpop.f32.mrf.mxu0
    %v7585 = vadd.f32 %v7536, %v7584
    %7586 = vmatmul.bf16.gmra.mxu0 %v7212
    %v7587 = vpop.f32.mrf.mxu0
    %v7588 = vadd.f32 %v7539, %v7587
    %v7589 = vpop.f32.mrf.mxu0
    %v7590 = vadd.f32 %v7541, %v7589
    %7591 = vmatmul.bf16.gmra.mxu0 %v7214
    %v7592 = vpop.f32.mrf.mxu0
    %v7593 = vadd.f32 %v7544, %v7592
    %v7594 = vpop.f32.mrf.mxu0
    %v7595 = vadd.f32 %v7546, %v7594
    %7596 = vmatmul.bf16.gmra.mxu0 %v7216
    %v7597 = vpop.f32.mrf.mxu0
    %v7598 = vadd.f32 %v7549, %v7597
    %v7599 = vpop.f32.mrf.mxu0
    %v7600 = vadd.f32 %v7551, %v7599
    %7601 = vmatmul.bf16.gmra.mxu0 %v7218
    %v7602 = vpop.f32.mrf.mxu0
    %v7603 = vadd.f32 %v7554, %v7602
    %v7604 = vpop.f32.mrf.mxu0
    %v7605 = vadd.f32 %v7556, %v7604
    %7606 = vmatmul.bf16.gmra.mxu0 %v7220
    %v7607 = vpop.f32.mrf.mxu0
    %v7608 = vadd.f32 %v7559, %v7607
    %v7609 = vpop.f32.mrf.mxu0
    %v7610 = vadd.f32 %v7561, %v7609
    %7611 = vmatmul.bf16.gmra.mxu0 %v7222
    %v7612 = vpop.f32.mrf.mxu0
    %v7613 = vadd.f32 %v7564, %v7612
    %v7614 = vpop.f32.mrf.mxu0
    %v7615 = vadd.f32 %v7566, %v7614
    %7616 = vdwg.mxu0
    %v7617 = vmax.f32 %v7480, 0.0
    %v7618 = vmax.f32 %v7578, 0.0
    %v7619 = vmax.f32 %v7482, 0.0
    %v7620 = vmax.f32 %v7580, 0.0
    %v7621 = vmax.f32 %v7485, 0.0
    %v7622 = vmax.f32 %v7583, 0.0
    %v7623 = vmax.f32 %v7487, 0.0
    %v7624 = vmax.f32 %v7585, 0.0
    %v7625 = vmax.f32 %v7490, 0.0
    %v7626 = vmax.f32 %v7588, 0.0
    %v7627 = vmax.f32 %v7492, 0.0
    %v7628 = vmax.f32 %v7590, 0.0
    %v7629 = vmax.f32 %v7495, 0.0
    %v7630 = vmax.f32 %v7593, 0.0
    %v7631 = vmax.f32 %v7497, 0.0
    %v7632 = vmax.f32 %v7595, 0.0
    %v7633 = vmax.f32 %v7500, 0.0
    %v7634 = vmax.f32 %v7598, 0.0
    %v7635 = vmax.f32 %v7502, 0.0
    %v7636 = vmax.f32 %v7600, 0.0
    %v7637 = vmax.f32 %v7505, 0.0
    %v7638 = vmax.f32 %v7603, 0.0
    %v7639 = vmax.f32 %v7507, 0.0
    %v7640 = vmax.f32 %v7605, 0.0
    %v7641 = vmax.f32 %v7510, 0.0
    %v7642 = vmax.f32 %v7608, 0.0
    %v7643 = vmax.f32 %v7512, 0.0
    %v7644 = vmax.f32 %v7610, 0.0
    %v7645 = vmax.f32 %v7515, 0.0
    %v7646 = vmax.f32 %v7613, 0.0
    %v7647 = vmax.f32 %v7517, 0.0
    %v7648 = vmax.f32 %v7615, 0.0
    %v7649 = vpack.c.bf16 %v7619, %v7617
    %v7650 = vpack.c.bf16 %v7620, %v7618
    %v7651 = vpack.c.bf16 %v7623, %v7621
    %v7652 = vpack.c.bf16 %v7624, %v7622
    %v7653 = vpack.c.bf16 %v7627, %v7625
    %v7654 = vpack.c.bf16 %v7628, %v7626
    %v7655 = vpack.c.bf16 %v7631, %v7629
    %v7656 = vpack.c.bf16 %v7632, %v7630
    %v7657 = vpack.c.bf16 %v7635, %v7633
    %v7658 = vpack.c.bf16 %v7636, %v7634
    %v7659 = vpack.c.bf16 %v7639, %v7637
    %v7660 = vpack.c.bf16 %v7640, %v7638
    %v7661 = vpack.c.bf16 %v7643, %v7641
    %v7662 = vpack.c.bf16 %v7644, %v7642
    %v7663 = vpack.c.bf16 %v7647, %v7645
    %v7664 = vpack.c.bf16 %v7648, %v7646
    %v7665 = vld [vmem:[%s15] sm:$0xf]
    %v7666 = vld [vmem:[%s15 + $0x4] sm:$0xf]
    %v7667 = vld [vmem:[%s15 + $0x8] sm:$0xf]
    %v7668 = vld [vmem:[%s15 + $0xc] sm:$0xf]
    %v7669 = vld [vmem:[%s15 + $0x10] sm:$0xf]
    %v7670 = vld [vmem:[%s15 + $0x14] sm:$0xf]
    %v7671 = vld [vmem:[%s15 + $0x18] sm:$0xf]
    %v7672 = vld [vmem:[%s15 + $0x1c] sm:$0xf]
    %v7673 = vld [vmem:[%s15 + $0x20] sm:$0xf]
    %v7674 = vld [vmem:[%s15 + $0x24] sm:$0xf]
    %v7675 = vld [vmem:[%s15 + $0x28] sm:$0xf]
    %v7676 = vld [vmem:[%s15 + $0x2c] sm:$0xf]
    %v7677 = vld [vmem:[%s15 + $0x30] sm:$0xf]
    %v7678 = vld [vmem:[%s15 + $0x34] sm:$0xf]
    %v7679 = vld [vmem:[%s15 + $0x38] sm:$0xf]
    %v7680 = vld [vmem:[%s15 + $0x3c] sm:$0xf]
    %v7681 = vld [vmem:[%s15 + $0x40] sm:$0xf]
    %v7682 = vld [vmem:[%s15 + $0x44] sm:$0xf]
    %v7683 = vld [vmem:[%s15 + $0x48] sm:$0xf]
    %v7684 = vld [vmem:[%s15 + $0x4c] sm:$0xf]
    %v7685 = vld [vmem:[%s15 + $0x50] sm:$0xf]
    %v7686 = vld [vmem:[%s15 + $0x54] sm:$0xf]
    %v7687 = vld [vmem:[%s15 + $0x58] sm:$0xf]
    %v7688 = vld [vmem:[%s15 + $0x5c] sm:$0xf]
    %v7689 = vld [vmem:[%s15 + $0x60] sm:$0xf]
    %v7690 = vld [vmem:[%s15 + $0x64] sm:$0xf]
    %v7691 = vld [vmem:[%s15 + $0x68] sm:$0xf]
    %v7692 = vld [vmem:[%s15 + $0x6c] sm:$0xf]
    %v7693 = vld [vmem:[%s15 + $0x70] sm:$0xf]
    %v7694 = vld [vmem:[%s15 + $0x74] sm:$0xf]
    %v7695 = vld [vmem:[%s15 + $0x78] sm:$0xf]
    %v7696 = vld [vmem:[%s15 + $0x7c] sm:$0xf]
    %v7697 = vld [vmem:[%s16] sm:$0x1]
    %v7699 = vperm.slane %v7697, 0
    %v7733 = vunpack.c.l.b16 %v7665
    %v7734 = vunpack.c.l.b16 %v7666
    %v7735 = vunpack.c.l.b16 %v7667
    %v7736 = vunpack.c.l.b16 %v7668
    %v7737 = vunpack.c.l.b16 %v7669
    %v7738 = vunpack.c.l.b16 %v7670
    %v7739 = vunpack.c.l.b16 %v7671
    %v7740 = vunpack.c.l.b16 %v7672
    %v7741 = vunpack.c.l.b16 %v7673
    %v7742 = vunpack.c.l.b16 %v7674
    %v7743 = vunpack.c.l.b16 %v7675
    %v7744 = vunpack.c.l.b16 %v7676
    %v7745 = vunpack.c.l.b16 %v7677
    %v7746 = vunpack.c.l.b16 %v7678
    %v7747 = vunpack.c.l.b16 %v7679
    %v7748 = vunpack.c.l.b16 %v7680
    %v7749 = vunpack.c.l.b16 %v7681
    %v7750 = vunpack.c.l.b16 %v7682
    %v7751 = vunpack.c.l.b16 %v7683
    %v7752 = vunpack.c.l.b16 %v7684
    %v7753 = vunpack.c.l.b16 %v7685
    %v7754 = vunpack.c.l.b16 %v7686
    %v7755 = vunpack.c.l.b16 %v7687
    %v7756 = vunpack.c.l.b16 %v7688
    %v7757 = vunpack.c.l.b16 %v7689
    %v7758 = vunpack.c.l.b16 %v7690
    %v7759 = vunpack.c.l.b16 %v7691
    %v7760 = vunpack.c.l.b16 %v7692
    %v7761 = vunpack.c.l.b16 %v7693
    %v7762 = vunpack.c.l.b16 %v7694
    %v7763 = vunpack.c.l.b16 %v7695
    %v7764 = vunpack.c.l.b16 %v7696
    %v7765 = vpack.c.b16 %v7734, %v7733
    %v7766 = vpack.c.b16 %v7736, %v7735
    %v7767 = vpack.c.b16 %v7738, %v7737
    %v7768 = vpack.c.b16 %v7740, %v7739
    %v7769 = vpack.c.b16 %v7742, %v7741
    %v7770 = vpack.c.b16 %v7744, %v7743
    %v7771 = vpack.c.b16 %v7746, %v7745
    %v7772 = vpack.c.b16 %v7748, %v7747
    %v7773 = vpack.c.b16 %v7750, %v7749
    %v7774 = vpack.c.b16 %v7752, %v7751
    %v7775 = vpack.c.b16 %v7754, %v7753
    %v7776 = vpack.c.b16 %v7756, %v7755
    %v7777 = vpack.c.b16 %v7758, %v7757
    %v7778 = vpack.c.b16 %v7760, %v7759
    %v7779 = vpack.c.b16 %v7762, %v7761
    %v7780 = vpack.c.b16 %v7764, %v7763
    %7797 = vmatpush.bf16.msra.mxu0 %v7772
    %7798 = vmatpush.bf16.msra.mxu0 %v7771
    %7799 = vmatpush.bf16.msra.mxu0 %v7770
    %7800 = vmatpush.bf16.msra.mxu0 %v7769
    %7801 = vmatpush.bf16.msra.mxu0 %v7768
    %7802 = vmatpush.bf16.msra.mxu0 %v7767
    %7803 = vmatpush.bf16.msra.mxu0 %v7766
    %7804 = vmatpush.bf16.msra.mxu0 %v7765
    %7805 = vmatmul.bf16.gmra.mxu0 %v7649
    %v7806 = vpop.f32.mrf.mxu0
    %v7807 = vadd.f32 %v7699, %v7806
    %v7808 = vpop.f32.mrf.mxu0
    %v7809 = vadd.f32 %v7699, %v7808
    %7810 = vmatmul.bf16.gmra.mxu0 %v7651
    %v7811 = vpop.f32.mrf.mxu0
    %v7812 = vadd.f32 %v7699, %v7811
    %v7813 = vpop.f32.mrf.mxu0
    %v7814 = vadd.f32 %v7699, %v7813
    %7815 = vmatmul.bf16.gmra.mxu0 %v7653
    %v7816 = vpop.f32.mrf.mxu0
    %v7817 = vadd.f32 %v7699, %v7816
    %v7818 = vpop.f32.mrf.mxu0
    %v7819 = vadd.f32 %v7699, %v7818
    %7820 = vmatmul.bf16.gmra.mxu0 %v7655
    %v7821 = vpop.f32.mrf.mxu0
    %v7822 = vadd.f32 %v7699, %v7821
    %v7823 = vpop.f32.mrf.mxu0
    %v7824 = vadd.f32 %v7699, %v7823
    %7825 = vmatmul.bf16.gmra.mxu0 %v7657
    %v7826 = vpop.f32.mrf.mxu0
    %v7827 = vadd.f32 %v7699, %v7826
    %v7828 = vpop.f32.mrf.mxu0
    %v7829 = vadd.f32 %v7699, %v7828
    %7830 = vmatmul.bf16.gmra.mxu0 %v7659
    %v7831 = vpop.f32.mrf.mxu0
    %v7832 = vadd.f32 %v7699, %v7831
    %v7833 = vpop.f32.mrf.mxu0
    %v7834 = vadd.f32 %v7699, %v7833
    %7835 = vmatmul.bf16.gmra.mxu0 %v7661
    %v7836 = vpop.f32.mrf.mxu0
    %v7837 = vadd.f32 %v7699, %v7836
    %v7838 = vpop.f32.mrf.mxu0
    %v7839 = vadd.f32 %v7699, %v7838
    %7840 = vmatmul.bf16.gmra.mxu0 %v7663
    %v7841 = vpop.f32.mrf.mxu0
    %v7842 = vadd.f32 %v7699, %v7841
    %v7843 = vpop.f32.mrf.mxu0
    %v7844 = vadd.f32 %v7699, %v7843
    %7845 = vdwg.mxu0
    %7846 = vmatpush.bf16.msra.mxu0 %v7780
    %7847 = vmatpush.bf16.msra.mxu0 %v7779
    %7848 = vmatpush.bf16.msra.mxu0 %v7778
    %7849 = vmatpush.bf16.msra.mxu0 %v7777
    %7850 = vmatpush.bf16.msra.mxu0 %v7776
    %7851 = vmatpush.bf16.msra.mxu0 %v7775
    %7852 = vmatpush.bf16.msra.mxu0 %v7774
    %7853 = vmatpush.bf16.msra.mxu0 %v7773
    %7854 = vmatmul.bf16.gmra.mxu0 %v7650
    %v7855 = vpop.f32.mrf.mxu0
    %v7856 = vadd.f32 %v7807, %v7855
    %v7857 = vpop.f32.mrf.mxu0
    %v7858 = vadd.f32 %v7809, %v7857
    %7859 = vmatmul.bf16.gmra.mxu0 %v7652
    %v7860 = vpop.f32.mrf.mxu0
    %v7861 = vadd.f32 %v7812, %v7860
    %v7862 = vpop.f32.mrf.mxu0
    %v7863 = vadd.f32 %v7814, %v7862
    %7864 = vmatmul.bf16.gmra.mxu0 %v7654
    %v7865 = vpop.f32.mrf.mxu0
    %v7866 = vadd.f32 %v7817, %v7865
    %v7867 = vpop.f32.mrf.mxu0
    %v7868 = vadd.f32 %v7819, %v7867
    %7869 = vmatmul.bf16.gmra.mxu0 %v7656
    %v7870 = vpop.f32.mrf.mxu0
    %v7871 = vadd.f32 %v7822, %v7870
    %v7872 = vpop.f32.mrf.mxu0
    %v7873 = vadd.f32 %v7824, %v7872
    %7874 = vmatmul.bf16.gmra.mxu0 %v7658
    %v7875 = vpop.f32.mrf.mxu0
    %v7876 = vadd.f32 %v7827, %v7875
    %v7877 = vpop.f32.mrf.mxu0
    %v7878 = vadd.f32 %v7829, %v7877
    %7879 = vmatmul.bf16.gmra.mxu0 %v7660
    %v7880 = vpop.f32.mrf.mxu0
    %v7881 = vadd.f32 %v7832, %v7880
    %v7882 = vpop.f32.mrf.mxu0
    %v7883 = vadd.f32 %v7834, %v7882
    %7884 = vmatmul.bf16.gmra.mxu0 %v7662
    %v7885 = vpop.f32.mrf.mxu0
    %v7886 = vadd.f32 %v7837, %v7885
    %v7887 = vpop.f32.mrf.mxu0
    %v7888 = vadd.f32 %v7839, %v7887
    %7889 = vmatmul.bf16.gmra.mxu0 %v7664
    %v7890 = vpop.f32.mrf.mxu0
    %v7891 = vadd.f32 %v7842, %v7890
    %v7892 = vpop.f32.mrf.mxu0
    %v7893 = vadd.f32 %v7844, %v7892
    %7894 = vdwg.mxu0
    %v7895 = vpack.c.bf16 %v7856, %v7856
    %v7896 = vpack.c.bf16 %v7858, %v7858
    %v7897 = vpack.c.bf16 %v7861, %v7861
    %v7898 = vpack.c.bf16 %v7863, %v7863
    %v7899 = vpack.c.bf16 %v7866, %v7866
    %v7900 = vpack.c.bf16 %v7868, %v7868
    %v7901 = vpack.c.bf16 %v7871, %v7871
    %v7902 = vpack.c.bf16 %v7873, %v7873
    %v7903 = vpack.c.bf16 %v7876, %v7876
    %v7904 = vpack.c.bf16 %v7878, %v7878
    %v7905 = vpack.c.bf16 %v7881, %v7881
    %v7906 = vpack.c.bf16 %v7883, %v7883
    %v7907 = vpack.c.bf16 %v7886, %v7886
    %v7908 = vpack.c.bf16 %v7888, %v7888
    %v7909 = vpack.c.bf16 %v7891, %v7891
    %v7910 = vpack.c.bf16 %v7893, %v7893
    %7911 = vst [vmem:[#allocation11] sm:$0xf] %v7895
    %7912 = vst [vmem:[#allocation11 + $0x4] sm:$0xf] %v7896
    %7913 = vst [vmem:[#allocation11 + $0x8] sm:$0xf] %v7897
    %7914 = vst [vmem:[#allocation11 + $0xc] sm:$0xf] %v7898
    %7915 = vst [vmem:[#allocation11 + $0x10] sm:$0xf] %v7899
    %7916 = vst [vmem:[#allocation11 + $0x14] sm:$0xf] %v7900
    %7917 = vst [vmem:[#allocation11 + $0x18] sm:$0xf] %v7901
    %7918 = vst [vmem:[#allocation11 + $0x1c] sm:$0xf] %v7902
    %7919 = vst [vmem:[#allocation11 + $0x20] sm:$0xf] %v7903
    %7920 = vst [vmem:[#allocation11 + $0x24] sm:$0xf] %v7904
    %7921 = vst [vmem:[#allocation11 + $0x28] sm:$0xf] %v7905
    %7922 = vst [vmem:[#allocation11 + $0x2c] sm:$0xf] %v7906
    %7923 = vst [vmem:[#allocation11 + $0x30] sm:$0xf] %v7907
    %7924 = vst [vmem:[#allocation11 + $0x34] sm:$0xf] %v7908
    %7925 = vst [vmem:[#allocation11 + $0x38] sm:$0xf] %v7909
    %7926 = vst [vmem:[#allocation11 + $0x3c] sm:$0xf] %v7910
    // Predicated region
    $region90: #{tpu_custom_call.1} parent=1 // pred_check
      _
    $region91: #{tpu_custom_call.1} parent=1 // pred_check_branch
      %7928 = sbr.rel (0) target = $region93
    $region92: #{tpu_custom_call.1} parent=1 // pred_region
      %7930 = vsyncadd [#allocation4], 0
      %s7931 = sshll.u32 [#allocation11], 4
      %s7932 = int_to_ptr.vmem [resolvable:$true] %s7931
      %s7933 = sshll.u32 %s17, 4
      %s7934 = int_to_ptr.hbm [resolvable:$true] %s7933
      %7939 = dma.vmem_to_hbm [thread:$0]  %s7932, 1024, %s7934, [#allocation4], 64, 64, 4
    $region93: #{tpu_custom_call.1} parent=1 // pred_fallthru
      _
    // Predicated region
    $region94: #{tpu_custom_call.1} parent=1 // pred_check
      _
    $region95: #{tpu_custom_call.1} parent=1 // pred_check_branch
      %7941 = sbr.rel (0) target = $region97
    $region96: #{tpu_custom_call.1} parent=1 // pred_region
      %7943 = dma.done [#allocation4], 1024
    $region97: #{tpu_custom_call.1} parent=1 // pred_fallthru
      _
    %7944 = vsyncpa [#allocation3], 1
    %7945 = vsyncpa [#allocation6], 1
    %7946 = vsyncpa [#allocation9], 1
    %7947 = vsyncpa [#allocation4], 1

</llo_original>
